<compile_context>
chip_gen: v7x
topology: tpu7x:2x2x1
jax: 0.10.0
libtpu: 0.0.40
codegen_flags: <defaults>
</compile_context>

<pallas_src>
import functools

import jax
import jax.numpy as jnp
from jax import lax
from jax.experimental import pallas as pl
from jax.experimental.pallas import tpu as pltpu


def _resblock_kernel(x_ref, p_ref, gmat_ref, w1_ref, w2_ref, o_ref, col_ref,
                     *, B, H, W, C):
    """One (B, H*W, C) batch tile per grid step; everything resident in VMEM.

    x_ref    : (B, H*W, C)        input activations
    p_ref    : (8, C)   f32       rows = [g1, be1, cb1, g2, be2, cb2, 0, 0]
    gmat_ref : (C, C)   f32       group-averaging matrix (1/(H*W*Cg) within a group)
    w1_ref   : (3, 3C, C) bf16    conv1 weights, [dy][dx*C + ci][co]
    w2_ref   : (3, 3C, C) bf16    conv2 weights
    o_ref    : (B, H*W, C)        output
    col_ref  : (B, H+2, W, 3C)    bf16 im2col scratch (persists across grid steps)
    """
    HW = H * W
    f32 = jnp.float32
    eps = 1e-5

    x = x_ref[...].astype(f32)           # (B, HW, C)
    gmat = gmat_ref[...]                 # (C, C)

    def gn_silu(v, gamma, beta):
        # GroupNorm(32, C): per-image, per-group stats over (Cg, H, W);
        # two-pass (centered) biased variance, eps = 1e-5 (PyTorch default).
        s = jnp.sum(v, axis=1)                                    # (B, C)
        mean = jnp.dot(s, gmat, preferred_element_type=f32)       # (B, C) group mean per channel
        cen = v - mean[:, None, :]
        ss = jnp.sum(cen * cen, axis=1)                           # (B, C)
        var = jnp.dot(ss, gmat, preferred_element_type=f32)       # (B, C) group var per channel
        y = cen * lax.rsqrt(var + eps)[:, None, :] * gamma + beta
        # SiLU with a numerically stable sigmoid: sigmoid(y) = 0.5*(tanh(y/2)+1)  (EUP)
        return y * (0.5 * (jnp.tanh(0.5 * y) + 1.0))

    # Zero only the im2col halo, once per grid step (interior regions are fully
    # overwritten by every conv; doing it per step keeps megacore sharding safe).
    zrow = jnp.zeros((B, 1, W, 3 * C), col_ref.dtype)
    col_ref[:, 0:1, :, :] = zrow                        # pad row y' = 0
    col_ref[:, H + 1:H + 2, :, :] = zrow                # pad row y' = H + 1
    zcol = jnp.zeros((B, H + 2, 1, C), col_ref.dtype)
    col_ref[:, :, 0:1, 0:C] = zcol                      # left pad column  (dx = 0 taps)
    col_ref[:, :, W - 1:W, 2 * C:3 * C] = zcol          # right pad column (dx = 2 taps)

    def conv3x3(act, w_ref, bias):
        # act: (B, HW, C) f32  ->  (B, HW, C) f32 ; 'SAME' 3x3 conv, stride 1.
        a = act.astype(col_ref.dtype).reshape(B, H, W, C)
        # col[b, y', x, dx*C + c] = pad[b, y', x + dx, c]   (3 stores per conv)
        col_ref[:, 1:H + 1, 1:W, 0:C] = a[:, :, :W - 1, :]          # dx = 0
        col_ref[:, 1:H + 1, :, C:2 * C] = a                          # dx = 1 (aligned)
        col_ref[:, 1:H + 1, :W - 1, 2 * C:3 * C] = a[:, :, 1:, :]    # dx = 2
        acc = None
        for dy in range(3):                       # dy shift = leading-axis slice (free)
            win = col_ref[:, dy:dy + H, :, :].reshape(B * HW, 3 * C)
            d = jnp.dot(win, w_ref[dy], preferred_element_type=f32)
            acc = d if acc is None else acc + d
        return (acc + bias).reshape(B, HW, C)

    g1, be1, cb1 = p_ref[0:1, :], p_ref[1:2, :], p_ref[2:3, :]
    g2, be2, cb2 = p_ref[3:4, :], p_ref[4:5, :], p_ref[5:6, :]

    h = conv3x3(gn_silu(x, g1, be1), w1_ref, cb1)       # in_layers
    h = conv3x3(gn_silu(h, g2, be2), w2_ref, cb2)       # out_layers (dropout p=0)

    o_ref[...] = (x + h).astype(o_ref.dtype)            # skip_connection = Identity


def resblock_forward(x_nchw, params, *, num_groups=32, compute_dtype=jnp.bfloat16):
    """x_nchw: (N, C, H, W) float32; params: dict of ResBlock parameters (PyTorch layout)."""
    N, C, H, W = x_nchw.shape
    assert C % num_groups == 0, "GroupNorm(32, C) requires C % 32 == 0"
    HW = H * W
    Cg = C // num_groups

    # NCHW -> (N, H*W, C): channels on the lane axis.
    x = jnp.transpose(x_nchw, (0, 2, 3, 1)).reshape(N, HW, C)

    # Conv weights OIHW -> (kh, kw, ci, co) -> (3, 3*C, C), bf16 for the MXU.
    def prep_w(w):
        return jnp.transpose(w, (2, 3, 1, 0)).reshape(3, 3 * C, C).astype(compute_dtype)

    w1, w2 = prep_w(params["w1"]), prep_w(params["w2"])

    # GroupNorm affine params + conv biases packed into a single (8, C) operand.
    zc = jnp.zeros((C,), jnp.float32)
    pmat = jnp.stack([params["g1"], params["be1"], params["cb1"],
                      params["g2"], params["be2"], params["cb2"], zc, zc]
                     ).astype(jnp.float32)

    # Group-averaging matrix: (row_sums @ gmat)[c] = group mean broadcast to channel c.
    gid = jnp.arange(C) // Cg
    gmat = (gid[:, None] == gid[None, :]).astype(jnp.float32) / float(HW * Cg)

    # ---- batch tile + VMEM budget (v7x has only 64 MiB per TensorCore) -------
    cbytes = jnp.dtype(compute_dtype).itemsize

    def per_step_bytes(b):
        io = 2 * 2 * b * HW * C * 4                 # x + out blocks, double-buffered
        col = b * (H + 2) * W * 3 * C * cbytes      # im2col scratch
        live = 6 * b * HW * C * 4                   # headroom for f32 temporaries / spills
        return io + col + live

    shared = 2 * 2 * 9 * C * C * cbytes + (8 * C + C * C) * 4 * 2   # weights + params + gmat
    b_tile = 1
    for b in range(min(N, 8), 0, -1):
        if N % b == 0 and per_step_bytes(b) + shared <= (12 << 20):
            b_tile = b
            break
    vmem_limit = int(min(64 << 20, max(32 << 20, 2 * (per_step_bytes(b_tile) + shared))))
    # TODO(synk): for very large planes (per_step_bytes(1) approaching the v7x 64 MiB
    # budget) tile H into row bands with a 1-row halo instead of keeping the full image
    # resident per grid step.

    kern = functools.partial(_resblock_kernel, B=b_tile, H=H, W=W, C=C)
    out = pl.pallas_call(
        kern,
        out_shape=jax.ShapeDtypeStruct((N, HW, C), x_nchw.dtype),
        grid=(N // b_tile,),
        in_specs=[
            pl.BlockSpec((b_tile, HW, C), lambda n: (n, 0, 0)),     # x
            pl.BlockSpec((8, C), lambda n: (0, 0)),                 # packed GN/bias params
            pl.BlockSpec((C, C), lambda n: (0, 0)),                 # group-averaging matrix
            pl.BlockSpec((3, 3 * C, C), lambda n: (0, 0, 0)),       # conv1 weights (bf16)
            pl.BlockSpec((3, 3 * C, C), lambda n: (0, 0, 0)),       # conv2 weights (bf16)
        ],
        out_specs=pl.BlockSpec((b_tile, HW, C), lambda n: (n, 0, 0)),
        scratch_shapes=[pltpu.VMEM((b_tile, H + 2, W, 3 * C), compute_dtype)],
        compiler_params=pltpu.CompilerParams(
            dimension_semantics=("parallel",),      # batch tiles are independent
            vmem_limit_bytes=vmem_limit,
        ),
    )(x, pmat, gmat, w1, w2)

    return jnp.transpose(out.reshape(N, H, W, C), (0, 3, 1, 2))     # back to NCHW


def resblock_reference(x, params, *, num_groups=32):
    """Pure-JAX (f32) reference matching PyTorch ResBlock.forward semantics."""
    eps = 1e-5

    def gn(v, gamma, beta):
        N, C, H, W = v.shape
        vg = v.reshape(N, num_groups, (C // num_groups) * H * W)
        mean = vg.mean(-1, keepdims=True)
        var = vg.var(-1, keepdims=True)
        vh = ((vg - mean) / jnp.sqrt(var + eps)).reshape(N, C, H, W)
        return vh * gamma[None, :, None, None] + beta[None, :, None, None]

    def silu(v):
        return v * jax.nn.sigmoid(v)

    def conv(v, w, b):
        o = lax.conv_general_dilated(v, w, (1, 1), "SAME",
                                     dimension_numbers=("NCHW", "OIHW", "NCHW"))
        return o + b[None, :, None, None]

    h = conv(silu(gn(x, params["g1"], params["be1"])), params["w1"], params["cb1"])
    h = conv(silu(gn(h, params["g2"], params["be2"])), params["w2"], params["cb2"])
    return x + h


if __name__ == "__main__":
    # Small shapes consistent with the module: GroupNorm(32, C) needs C % 32 == 0.
    # C = 64 also exercises the general (channels-per-group > 1) statistics path.
    N, C, H, W = 2, 64, 16, 16

    key = jax.random.PRNGKey(0)
    ks = jax.random.split(key, 9)
    # NOTE: PyTorch zero-inits the final conv (zero_module); we use nonzero
    # deterministic weights so the kernel's second conv path is actually exercised.
    params = {
        "g1": 1.0 + 0.1 * jax.random.normal(ks[0], (C,), jnp.float32),
        "be1": 0.1 * jax.random.normal(ks[1], (C,), jnp.float32),
        "w1": 0.1 * jax.random.normal(ks[2], (C, C, 3, 3), jnp.float32),
        "cb1": 0.1 * jax.random.normal(ks[3], (C,), jnp.float32),
        "g2": 1.0 + 0.1 * jax.random.normal(ks[4], (C,), jnp.float32),
        "be2": 0.1 * jax.random.normal(ks[5], (C,), jnp.float32),
        "w2": 0.1 * jax.random.normal(ks[6], (C, C, 3, 3), jnp.float32),
        "cb2": 0.1 * jax.random.normal(ks[7], (C,), jnp.float32),
    }
    x = jax.random.normal(ks[8], (N, C, H, W), jnp.float32)

    out = jax.block_until_ready(resblock_forward(x, params))
    ref = jax.block_until_ready(resblock_reference(x, params))

    assert out.shape == ref.shape and out.dtype == ref.dtype
    # Conv matmuls run in bf16 (f32 accumulation), so compare with bf16-level tolerance.
    if not jnp.allclose(out, ref, rtol=2e-2, atol=2e-2):
        max_err = float(jnp.max(jnp.abs(out - ref)))
        raise AssertionError(f"Pallas ResBlock mismatch, max abs err = {max_err}")

    print("KERNEL_OK")
</pallas_src>

<mosaic_0001>
module attributes {stable_mosaic.version = 11 : i64} {
  func.func @_resblock_kernel(%arg0: i32, %arg1: memref<2x256x64xf32, #tpu.memory_space<vmem>>, %arg2: memref<8x64xf32, #tpu.memory_space<vmem>>, %arg3: memref<64x64xf32, #tpu.memory_space<vmem>>, %arg4: memref<3x192x64xbf16, #tpu.memory_space<vmem>>, %arg5: memref<3x192x64xbf16, #tpu.memory_space<vmem>>, %arg6: memref<2x256x64xf32, #tpu.memory_space<vmem>>, %arg7: memref<2x18x16x192xbf16, #tpu.memory_space<vmem>>) attributes {dimension_semantics = [#tpu.dimension_semantics<parallel>], iteration_bounds = array<i64: 1>, scalar_prefetch = 0 : i64, scratch_operands = 1 : i64, tpu.core_type = #tpu.core_type<tc>, window_params = [{transform_indices = @transform_0, window_bounds = array<i64: 2, 256, 64>}, {pipeline_mode = #tpu.pipeline_mode<synchronous>, transform_indices = @transform_1, window_bounds = array<i64: 8, 64>}, {pipeline_mode = #tpu.pipeline_mode<synchronous>, transform_indices = @transform_2, window_bounds = array<i64: 64, 64>}, {pipeline_mode = #tpu.pipeline_mode<synchronous>, transform_indices = @transform_3, window_bounds = array<i64: 3, 192, 64>}, {pipeline_mode = #tpu.pipeline_mode<synchronous>, transform_indices = @transform_4, window_bounds = array<i64: 3, 192, 64>}, {transform_indices = @transform_5, window_bounds = array<i64: 2, 256, 64>}]} {
    %c0 = arith.constant 0 : index
    %c0_0 = arith.constant 0 : index
    %c0_1 = arith.constant 0 : index
    %0 = vector.load %arg1[%c0, %c0_0, %c0_1] : memref<2x256x64xf32, #tpu.memory_space<vmem>>, vector<2x256x64xf32>
    %c0_2 = arith.constant 0 : index
    %c0_3 = arith.constant 0 : index
    %1 = vector.load %arg3[%c0_2, %c0_3] : memref<64x64xf32, #tpu.memory_space<vmem>>, vector<64x64xf32>
    %cst = arith.constant 0.000000e+00 : bf16
    %2 = vector.broadcast %cst : bf16 to vector<2x1x16x192xbf16>
    %c0_4 = arith.constant 0 : index
    %c0_5 = arith.constant 0 : index
    %c0_6 = arith.constant 0 : index
    %c0_7 = arith.constant 0 : index
    %3 = vector.load %arg7[%c0_4, %c0_5, %c0_6, %c0_7] : memref<2x18x16x192xbf16, #tpu.memory_space<vmem>>, vector<2x1x16x192xbf16>
    tpu.vector_store %arg7[%c0_4, %c0_5, %c0_6, %c0_7], %2 {strides = array<i32>} : memref<2x18x16x192xbf16, #tpu.memory_space<vmem>>, vector<2x1x16x192xbf16>,
    %c0_8 = arith.constant 0 : index
    %c17 = arith.constant 17 : index
    %c0_9 = arith.constant 0 : index
    %c0_10 = arith.constant 0 : index
    %4 = vector.load %arg7[%c0_8, %c17, %c0_9, %c0_10] : memref<2x18x16x192xbf16, #tpu.memory_space<vmem>>, vector<2x1x16x192xbf16>
    tpu.vector_store %arg7[%c0_8, %c17, %c0_9, %c0_10], %2 {strides = array<i32>} : memref<2x18x16x192xbf16, #tpu.memory_space<vmem>>, vector<2x1x16x192xbf16>,
    %cst_11 = arith.constant 0.000000e+00 : bf16
    %5 = vector.broadcast %cst_11 : bf16 to vector<2x18x1x64xbf16>
    %c0_12 = arith.constant 0 : index
    %c0_13 = arith.constant 0 : index
    %c0_14 = arith.constant 0 : index
    %c0_15 = arith.constant 0 : index
    %6 = vector.load %arg7[%c0_12, %c0_13, %c0_14, %c0_15] : memref<2x18x16x192xbf16, #tpu.memory_space<vmem>>, vector<2x18x1x64xbf16>
    tpu.vector_store %arg7[%c0_12, %c0_13, %c0_14, %c0_15], %5 {strides = array<i32>} : memref<2x18x16x192xbf16, #tpu.memory_space<vmem>>, vector<2x18x1x64xbf16>,
    %c0_16 = arith.constant 0 : index
    %c0_17 = arith.constant 0 : index
    %c15 = arith.constant 15 : index
    %c128 = arith.constant 128 : index
    %7 = vector.load %arg7[%c0_16, %c0_17, %c15, %c128] : memref<2x18x16x192xbf16, #tpu.memory_space<vmem>>, vector<2x18x1x64xbf16>
    tpu.vector_store %arg7[%c0_16, %c0_17, %c15, %c128], %5 {strides = array<i32>} : memref<2x18x16x192xbf16, #tpu.memory_space<vmem>>, vector<2x18x1x64xbf16>,
    %c0_18 = arith.constant 0 : index
    %c0_19 = arith.constant 0 : index
    %8 = vector.load %arg2[%c0_18, %c0_19] : memref<8x64xf32, #tpu.memory_space<vmem>>, vector<1x64xf32>
    %c1 = arith.constant 1 : index
    %c0_20 = arith.constant 0 : index
    %9 = vector.load %arg2[%c1, %c0_20] : memref<8x64xf32, #tpu.memory_space<vmem>>, vector<1x64xf32>
    %c2 = arith.constant 2 : index
    %c0_21 = arith.constant 0 : index
    %10 = vector.load %arg2[%c2, %c0_21] : memref<8x64xf32, #tpu.memory_space<vmem>>, vector<1x64xf32>
    %c3 = arith.constant 3 : index
    %c0_22 = arith.constant 0 : index
    %11 = vector.load %arg2[%c3, %c0_22] : memref<8x64xf32, #tpu.memory_space<vmem>>, vector<1x64xf32>
    %c4 = arith.constant 4 : index
    %c0_23 = arith.constant 0 : index
    %12 = vector.load %arg2[%c4, %c0_23] : memref<8x64xf32, #tpu.memory_space<vmem>>, vector<1x64xf32>
    %c5 = arith.constant 5 : index
    %c0_24 = arith.constant 0 : index
    %13 = vector.load %arg2[%c5, %c0_24] : memref<8x64xf32, #tpu.memory_space<vmem>>, vector<1x64xf32>
    %cst_25 = arith.constant dense<0.000000e+00> : vector<2x64xf32>
    %14 = vector.multi_reduction <add>, %0, %cst_25 [1] : vector<2x256x64xf32> to vector<2x64xf32>
    %cst_26 = arith.constant dense<0.000000e+00> : vector<2x64xf32>
    %15 = tpu.matmul %14, %1, %cst_26 {dimension_numbers = #tpu.dot_dimension_numbers<[1], [0], [0], [1], [0, 0, 1, 1], [], []>} : vector<2x64xf32>, vector<64x64xf32>, vector<2x64xf32> -> vector<2x64xf32>
    %16 = vector.shape_cast %15 : vector<2x64xf32> to vector<2x1x64xf32>
    %17 = vector.broadcast %16 : vector<2x1x64xf32> to vector<2x256x64xf32>
    %18 = arith.subf %0, %17 : vector<2x256x64xf32>
    %19 = arith.mulf %18, %18 : vector<2x256x64xf32>
    %cst_27 = arith.constant dense<0.000000e+00> : vector<2x64xf32>
    %20 = vector.multi_reduction <add>, %19, %cst_27 [1] : vector<2x256x64xf32> to vector<2x64xf32>
    %cst_28 = arith.constant dense<0.000000e+00> : vector<2x64xf32>
    %21 = tpu.matmul %20, %1, %cst_28 {dimension_numbers = #tpu.dot_dimension_numbers<[1], [0], [0], [1], [0, 0, 1, 1], [], []>} : vector<2x64xf32>, vector<64x64xf32>, vector<2x64xf32> -> vector<2x64xf32>
    %cst_29 = arith.constant 9.99999974E-6 : f32
    %22 = vector.broadcast %cst_29 : f32 to vector<2x64xf32>
    %23 = arith.addf %21, %22 : vector<2x64xf32>
    %24 = math.rsqrt %23 : vector<2x64xf32>
    %25 = vector.shape_cast %24 : vector<2x64xf32> to vector<2x1x64xf32>
    %26 = vector.broadcast %25 : vector<2x1x64xf32> to vector<2x256x64xf32>
    %27 = arith.mulf %18, %26 : vector<2x256x64xf32>
    %28 = vector.shape_cast %8 : vector<1x64xf32> to vector<1x1x64xf32>
    %29 = vector.broadcast %28 : vector<1x1x64xf32> to vector<2x256x64xf32>
    %30 = arith.mulf %27, %29 : vector<2x256x64xf32>
    %31 = vector.shape_cast %9 : vector<1x64xf32> to vector<1x1x64xf32>
    %32 = vector.broadcast %31 : vector<1x1x64xf32> to vector<2x256x64xf32>
    %33 = arith.addf %30, %32 : vector<2x256x64xf32>
    %cst_30 = arith.constant 5.000000e-01 : f32
    %34 = vector.broadcast %cst_30 : f32 to vector<2x256x64xf32>
    %35 = arith.mulf %34, %33 : vector<2x256x64xf32>
    %36 = math.tanh %35 : vector<2x256x64xf32>
    %cst_31 = arith.constant 1.000000e+00 : f32
    %37 = vector.broadcast %cst_31 : f32 to vector<2x256x64xf32>
    %38 = arith.addf %36, %37 : vector<2x256x64xf32>
    %cst_32 = arith.constant 5.000000e-01 : f32
    %39 = vector.broadcast %cst_32 : f32 to vector<2x256x64xf32>
    %40 = arith.mulf %39, %38 : vector<2x256x64xf32>
    %41 = arith.mulf %33, %40 : vector<2x256x64xf32>
    %42 = arith.truncf %41 : vector<2x256x64xf32> to vector<2x256x64xbf16>
    %43 = vector.shape_cast %42 : vector<2x256x64xbf16> to vector<2x16x16x64xbf16>
    %44 = vector.extract_strided_slice %43 {offsets = [0, 0, 0, 0], sizes = [2, 16, 15, 64], strides = [1, 1, 1, 1]} : vector<2x16x16x64xbf16> to vector<2x16x15x64xbf16>
    %c0_33 = arith.constant 0 : index
    %c1_34 = arith.constant 1 : index
    %c1_35 = arith.constant 1 : index
    %c0_36 = arith.constant 0 : index
    %45 = vector.load %arg7[%c0_33, %c1_34, %c1_35, %c0_36] : memref<2x18x16x192xbf16, #tpu.memory_space<vmem>>, vector<2x16x15x64xbf16>
    tpu.vector_store %arg7[%c0_33, %c1_34, %c1_35, %c0_36], %44 {strides = array<i32>} : memref<2x18x16x192xbf16, #tpu.memory_space<vmem>>, vector<2x16x15x64xbf16>,
    %c0_37 = arith.constant 0 : index
    %c1_38 = arith.constant 1 : index
    %c0_39 = arith.constant 0 : index
    %c64 = arith.constant 64 : index
    %46 = vector.load %arg7[%c0_37, %c1_38, %c0_39, %c64] : memref<2x18x16x192xbf16, #tpu.memory_space<vmem>>, vector<2x16x16x64xbf16>
    tpu.vector_store %arg7[%c0_37, %c1_38, %c0_39, %c64], %43 {strides = array<i32>} : memref<2x18x16x192xbf16, #tpu.memory_space<vmem>>, vector<2x16x16x64xbf16>,
    %47 = vector.extract_strided_slice %43 {offsets = [0, 0, 1, 0], sizes = [2, 16, 15, 64], strides = [1, 1, 1, 1]} : vector<2x16x16x64xbf16> to vector<2x16x15x64xbf16>
    %c0_40 = arith.constant 0 : index
    %c1_41 = arith.constant 1 : index
    %c0_42 = arith.constant 0 : index
    %c128_43 = arith.constant 128 : index
    %48 = vector.load %arg7[%c0_40, %c1_41, %c0_42, %c128_43] : memref<2x18x16x192xbf16, #tpu.memory_space<vmem>>, vector<2x16x15x64xbf16>
    tpu.vector_store %arg7[%c0_40, %c1_41, %c0_42, %c128_43], %47 {strides = array<i32>} : memref<2x18x16x192xbf16, #tpu.memory_space<vmem>>, vector<2x16x15x64xbf16>,
    %c0_44 = arith.constant 0 : index
    %c0_45 = arith.constant 0 : index
    %c0_46 = arith.constant 0 : index
    %c0_47 = arith.constant 0 : index
    %49 = vector.load %arg7[%c0_44, %c0_45, %c0_46, %c0_47] : memref<2x18x16x192xbf16, #tpu.memory_space<vmem>>, vector<2x16x16x192xbf16>
    %50 = vector.shape_cast %49 : vector<2x16x16x192xbf16> to vector<512x192xbf16>
    %c0_48 = arith.constant 0 : index
    %c0_49 = arith.constant 0 : index
    %c0_50 = arith.constant 0 : index
    %51 = vector.load %arg4[%c0_48, %c0_49, %c0_50] : memref<3x192x64xbf16, #tpu.memory_space<vmem>>, vector<1x192x64xbf16>
    %52 = vector.shape_cast %51 : vector<1x192x64xbf16> to vector<192x64xbf16>
    %cst_51 = arith.constant dense<0.000000e+00> : vector<512x64xf32>
    %53 = tpu.matmul %50, %52, %cst_51 {dimension_numbers = #tpu.dot_dimension_numbers<[1], [0], [0], [1], [0, 0, 1, 1], [], []>} : vector<512x192xbf16>, vector<192x64xbf16>, vector<512x64xf32> -> vector<512x64xf32>
    %c0_52 = arith.constant 0 : index
    %c1_53 = arith.constant 1 : index
    %c0_54 = arith.constant 0 : index
    %c0_55 = arith.constant 0 : index
    %54 = vector.load %arg7[%c0_52, %c1_53, %c0_54, %c0_55] : memref<2x18x16x192xbf16, #tpu.memory_space<vmem>>, vector<2x16x16x192xbf16>
    %55 = vector.shape_cast %54 : vector<2x16x16x192xbf16> to vector<512x192xbf16>
    %c1_56 = arith.constant 1 : index
    %c0_57 = arith.constant 0 : index
    %c0_58 = arith.constant 0 : index
    %56 = vector.load %arg4[%c1_56, %c0_57, %c0_58] : memref<3x192x64xbf16, #tpu.memory_space<vmem>>, vector<1x192x64xbf16>
    %57 = vector.shape_cast %56 : vector<1x192x64xbf16> to vector<192x64xbf16>
    %cst_59 = arith.constant dense<0.000000e+00> : vector<512x64xf32>
    %58 = tpu.matmul %55, %57, %cst_59 {dimension_numbers = #tpu.dot_dimension_numbers<[1], [0], [0], [1], [0, 0, 1, 1], [], []>} : vector<512x192xbf16>, vector<192x64xbf16>, vector<512x64xf32> -> vector<512x64xf32>
    %59 = arith.addf %53, %58 : vector<512x64xf32>
    %c0_60 = arith.constant 0 : index
    %c2_61 = arith.constant 2 : index
    %c0_62 = arith.constant 0 : index
    %c0_63 = arith.constant 0 : index
    %60 = vector.load %arg7[%c0_60, %c2_61, %c0_62, %c0_63] : memref<2x18x16x192xbf16, #tpu.memory_space<vmem>>, vector<2x16x16x192xbf16>
    %61 = vector.shape_cast %60 : vector<2x16x16x192xbf16> to vector<512x192xbf16>
    %c2_64 = arith.constant 2 : index
    %c0_65 = arith.constant 0 : index
    %c0_66 = arith.constant 0 : index
    %62 = vector.load %arg4[%c2_64, %c0_65, %c0_66] : memref<3x192x64xbf16, #tpu.memory_space<vmem>>, vector<1x192x64xbf16>
    %63 = vector.shape_cast %62 : vector<1x192x64xbf16> to vector<192x64xbf16>
    %cst_67 = arith.constant dense<0.000000e+00> : vector<512x64xf32>
    %64 = tpu.matmul %61, %63, %cst_67 {dimension_numbers = #tpu.dot_dimension_numbers<[1], [0], [0], [1], [0, 0, 1, 1], [], []>} : vector<512x192xbf16>, vector<192x64xbf16>, vector<512x64xf32> -> vector<512x64xf32>
    %65 = arith.addf %59, %64 : vector<512x64xf32>
    %66 = vector.broadcast %10 : vector<1x64xf32> to vector<512x64xf32>
    %67 = arith.addf %65, %66 : vector<512x64xf32>
    %68 = vector.shape_cast %67 : vector<512x64xf32> to vector<2x256x64xf32>
    %cst_68 = arith.constant dense<0.000000e+00> : vector<2x64xf32>
    %69 = vector.multi_reduction <add>, %68, %cst_68 [1] : vector<2x256x64xf32> to vector<2x64xf32>
    %cst_69 = arith.constant dense<0.000000e+00> : vector<2x64xf32>
    %70 = tpu.matmul %69, %1, %cst_69 {dimension_numbers = #tpu.dot_dimension_numbers<[1], [0], [0], [1], [0, 0, 1, 1], [], []>} : vector<2x64xf32>, vector<64x64xf32>, vector<2x64xf32> -> vector<2x64xf32>
    %71 = vector.shape_cast %70 : vector<2x64xf32> to vector<2x1x64xf32>
    %72 = vector.broadcast %71 : vector<2x1x64xf32> to vector<2x256x64xf32>
    %73 = arith.subf %68, %72 : vector<2x256x64xf32>
    %74 = arith.mulf %73, %73 : vector<2x256x64xf32>
    %cst_70 = arith.constant dense<0.000000e+00> : vector<2x64xf32>
    %75 = vector.multi_reduction <add>, %74, %cst_70 [1] : vector<2x256x64xf32> to vector<2x64xf32>
    %cst_71 = arith.constant dense<0.000000e+00> : vector<2x64xf32>
    %76 = tpu.matmul %75, %1, %cst_71 {dimension_numbers = #tpu.dot_dimension_numbers<[1], [0], [0], [1], [0, 0, 1, 1], [], []>} : vector<2x64xf32>, vector<64x64xf32>, vector<2x64xf32> -> vector<2x64xf32>
    %cst_72 = arith.constant 9.99999974E-6 : f32
    %77 = vector.broadcast %cst_72 : f32 to vector<2x64xf32>
    %78 = arith.addf %76, %77 : vector<2x64xf32>
    %79 = math.rsqrt %78 : vector<2x64xf32>
    %80 = vector.shape_cast %79 : vector<2x64xf32> to vector<2x1x64xf32>
    %81 = vector.broadcast %80 : vector<2x1x64xf32> to vector<2x256x64xf32>
    %82 = arith.mulf %73, %81 : vector<2x256x64xf32>
    %83 = vector.shape_cast %11 : vector<1x64xf32> to vector<1x1x64xf32>
    %84 = vector.broadcast %83 : vector<1x1x64xf32> to vector<2x256x64xf32>
    %85 = arith.mulf %82, %84 : vector<2x256x64xf32>
    %86 = vector.shape_cast %12 : vector<1x64xf32> to vector<1x1x64xf32>
    %87 = vector.broadcast %86 : vector<1x1x64xf32> to vector<2x256x64xf32>
    %88 = arith.addf %85, %87 : vector<2x256x64xf32>
    %cst_73 = arith.constant 5.000000e-01 : f32
    %89 = vector.broadcast %cst_73 : f32 to vector<2x256x64xf32>
    %90 = arith.mulf %89, %88 : vector<2x256x64xf32>
    %91 = math.tanh %90 : vector<2x256x64xf32>
    %cst_74 = arith.constant 1.000000e+00 : f32
    %92 = vector.broadcast %cst_74 : f32 to vector<2x256x64xf32>
    %93 = arith.addf %91, %92 : vector<2x256x64xf32>
    %cst_75 = arith.constant 5.000000e-01 : f32
    %94 = vector.broadcast %cst_75 : f32 to vector<2x256x64xf32>
    %95 = arith.mulf %94, %93 : vector<2x256x64xf32>
    %96 = arith.mulf %88, %95 : vector<2x256x64xf32>
    %97 = arith.truncf %96 : vector<2x256x64xf32> to vector<2x256x64xbf16>
    %98 = vector.shape_cast %97 : vector<2x256x64xbf16> to vector<2x16x16x64xbf16>
    %99 = vector.extract_strided_slice %98 {offsets = [0, 0, 0, 0], sizes = [2, 16, 15, 64], strides = [1, 1, 1, 1]} : vector<2x16x16x64xbf16> to vector<2x16x15x64xbf16>
    %c0_76 = arith.constant 0 : index
    %c1_77 = arith.constant 1 : index
    %c1_78 = arith.constant 1 : index
    %c0_79 = arith.constant 0 : index
    %100 = vector.load %arg7[%c0_76, %c1_77, %c1_78, %c0_79] : memref<2x18x16x192xbf16, #tpu.memory_space<vmem>>, vector<2x16x15x64xbf16>
    tpu.vector_store %arg7[%c0_76, %c1_77, %c1_78, %c0_79], %99 {strides = array<i32>} : memref<2x18x16x192xbf16, #tpu.memory_space<vmem>>, vector<2x16x15x64xbf16>,
    %c0_80 = arith.constant 0 : index
    %c1_81 = arith.constant 1 : index
    %c0_82 = arith.constant 0 : index
    %c64_83 = arith.constant 64 : index
    %101 = vector.load %arg7[%c0_80, %c1_81, %c0_82, %c64_83] : memref<2x18x16x192xbf16, #tpu.memory_space<vmem>>, vector<2x16x16x64xbf16>
    tpu.vector_store %arg7[%c0_80, %c1_81, %c0_82, %c64_83], %98 {strides = array<i32>} : memref<2x18x16x192xbf16, #tpu.memory_space<vmem>>, vector<2x16x16x64xbf16>,
    %102 = vector.extract_strided_slice %98 {offsets = [0, 0, 1, 0], sizes = [2, 16, 15, 64], strides = [1, 1, 1, 1]} : vector<2x16x16x64xbf16> to vector<2x16x15x64xbf16>
    %c0_84 = arith.constant 0 : index
    %c1_85 = arith.constant 1 : index
    %c0_86 = arith.constant 0 : index
    %c128_87 = arith.constant 128 : index
    %103 = vector.load %arg7[%c0_84, %c1_85, %c0_86, %c128_87] : memref<2x18x16x192xbf16, #tpu.memory_space<vmem>>, vector<2x16x15x64xbf16>
    tpu.vector_store %arg7[%c0_84, %c1_85, %c0_86, %c128_87], %102 {strides = array<i32>} : memref<2x18x16x192xbf16, #tpu.memory_space<vmem>>, vector<2x16x15x64xbf16>,
    %c0_88 = arith.constant 0 : index
    %c0_89 = arith.constant 0 : index
    %c0_90 = arith.constant 0 : index
    %c0_91 = arith.constant 0 : index
    %104 = vector.load %arg7[%c0_88, %c0_89, %c0_90, %c0_91] : memref<2x18x16x192xbf16, #tpu.memory_space<vmem>>, vector<2x16x16x192xbf16>
    %105 = vector.shape_cast %104 : vector<2x16x16x192xbf16> to vector<512x192xbf16>
    %c0_92 = arith.constant 0 : index
    %c0_93 = arith.constant 0 : index
    %c0_94 = arith.constant 0 : index
    %106 = vector.load %arg5[%c0_92, %c0_93, %c0_94] : memref<3x192x64xbf16, #tpu.memory_space<vmem>>, vector<1x192x64xbf16>
    %107 = vector.shape_cast %106 : vector<1x192x64xbf16> to vector<192x64xbf16>
    %cst_95 = arith.constant dense<0.000000e+00> : vector<512x64xf32>
    %108 = tpu.matmul %105, %107, %cst_95 {dimension_numbers = #tpu.dot_dimension_numbers<[1], [0], [0], [1], [0, 0, 1, 1], [], []>} : vector<512x192xbf16>, vector<192x64xbf16>, vector<512x64xf32> -> vector<512x64xf32>
    %c0_96 = arith.constant 0 : index
    %c1_97 = arith.constant 1 : index
    %c0_98 = arith.constant 0 : index
    %c0_99 = arith.constant 0 : index
    %109 = vector.load %arg7[%c0_96, %c1_97, %c0_98, %c0_99] : memref<2x18x16x192xbf16, #tpu.memory_space<vmem>>, vector<2x16x16x192xbf16>
    %110 = vector.shape_cast %109 : vector<2x16x16x192xbf16> to vector<512x192xbf16>
    %c1_100 = arith.constant 1 : index
    %c0_101 = arith.constant 0 : index
    %c0_102 = arith.constant 0 : index
    %111 = vector.load %arg5[%c1_100, %c0_101, %c0_102] : memref<3x192x64xbf16, #tpu.memory_space<vmem>>, vector<1x192x64xbf16>
    %112 = vector.shape_cast %111 : vector<1x192x64xbf16> to vector<192x64xbf16>
    %cst_103 = arith.constant dense<0.000000e+00> : vector<512x64xf32>
    %113 = tpu.matmul %110, %112, %cst_103 {dimension_numbers = #tpu.dot_dimension_numbers<[1], [0], [0], [1], [0, 0, 1, 1], [], []>} : vector<512x192xbf16>, vector<192x64xbf16>, vector<512x64xf32> -> vector<512x64xf32>
    %114 = arith.addf %108, %113 : vector<512x64xf32>
    %c0_104 = arith.constant 0 : index
    %c2_105 = arith.constant 2 : index
    %c0_106 = arith.constant 0 : index
    %c0_107 = arith.constant 0 : index
    %115 = vector.load %arg7[%c0_104, %c2_105, %c0_106, %c0_107] : memref<2x18x16x192xbf16, #tpu.memory_space<vmem>>, vector<2x16x16x192xbf16>
    %116 = vector.shape_cast %115 : vector<2x16x16x192xbf16> to vector<512x192xbf16>
    %c2_108 = arith.constant 2 : index
    %c0_109 = arith.constant 0 : index
    %c0_110 = arith.constant 0 : index
    %117 = vector.load %arg5[%c2_108, %c0_109, %c0_110] : memref<3x192x64xbf16, #tpu.memory_space<vmem>>, vector<1x192x64xbf16>
    %118 = vector.shape_cast %117 : vector<1x192x64xbf16> to vector<192x64xbf16>
    %cst_111 = arith.constant dense<0.000000e+00> : vector<512x64xf32>
    %119 = tpu.matmul %116, %118, %cst_111 {dimension_numbers = #tpu.dot_dimension_numbers<[1], [0], [0], [1], [0, 0, 1, 1], [], []>} : vector<512x192xbf16>, vector<192x64xbf16>, vector<512x64xf32> -> vector<512x64xf32>
    %120 = arith.addf %114, %119 : vector<512x64xf32>
    %121 = vector.broadcast %13 : vector<1x64xf32> to vector<512x64xf32>
    %122 = arith.addf %120, %121 : vector<512x64xf32>
    %123 = vector.shape_cast %122 : vector<512x64xf32> to vector<2x256x64xf32>
    %124 = arith.addf %0, %123 : vector<2x256x64xf32>
    %c0_112 = arith.constant 0 : index
    %c0_113 = arith.constant 0 : index
    %c0_114 = arith.constant 0 : index
    %125 = vector.load %arg6[%c0_112, %c0_113, %c0_114] : memref<2x256x64xf32, #tpu.memory_space<vmem>>, vector<2x256x64xf32>
    tpu.vector_store %arg6[%c0_112, %c0_113, %c0_114], %124 {strides = array<i32>} : memref<2x256x64xf32, #tpu.memory_space<vmem>>, vector<2x256x64xf32>,
    return
  }
  func.func @transform_0(%arg0: i32) -> (i32, i32, i32) {
    %c0_i32 = arith.constant 0 : i32
    %c0_i32_0 = arith.constant 0 : i32
    %c0_i32_1 = arith.constant 0 : i32
    return %arg0, %c0_i32, %c0_i32_0 : i32, i32, i32
  }
  func.func @transform_1(%arg0: i32) -> (i32, i32) {
    %c0_i32 = arith.constant 0 : i32
    %c0_i32_0 = arith.constant 0 : i32
    %c0_i32_1 = arith.constant 0 : i32
    return %c0_i32, %c0_i32_0 : i32, i32
  }
  func.func @transform_2(%arg0: i32) -> (i32, i32) {
    %c0_i32 = arith.constant 0 : i32
    %c0_i32_0 = arith.constant 0 : i32
    %c0_i32_1 = arith.constant 0 : i32
    return %c0_i32, %c0_i32_0 : i32, i32
  }
  func.func @transform_3(%arg0: i32) -> (i32, i32, i32) {
    %c0_i32 = arith.constant 0 : i32
    %c0_i32_0 = arith.constant 0 : i32
    %c0_i32_1 = arith.constant 0 : i32
    %c0_i32_2 = arith.constant 0 : i32
    return %c0_i32, %c0_i32_0, %c0_i32_1 : i32, i32, i32
  }
  func.func @transform_4(%arg0: i32) -> (i32, i32, i32) {
    %c0_i32 = arith.constant 0 : i32
    %c0_i32_0 = arith.constant 0 : i32
    %c0_i32_1 = arith.constant 0 : i32
    %c0_i32_2 = arith.constant 0 : i32
    return %c0_i32, %c0_i32_0, %c0_i32_1 : i32, i32, i32
  }
  func.func @transform_5(%arg0: i32) -> (i32, i32, i32) {
    %c0_i32 = arith.constant 0 : i32
    %c0_i32_0 = arith.constant 0 : i32
    %c0_i32_1 = arith.constant 0 : i32
    return %arg0, %c0_i32, %c0_i32_0 : i32, i32, i32
  }
}

</mosaic_0001>

<llo_original>
// kernel: tpu_custom_call.1
$region0: #{tpu_custom_call.1}
  #allocation0 [shape = 'u32[]', space=smem, size = 0x4, offset = 0x4, fixed_abs, tag = 'smem constant byte address 0x4 - core index']
  #allocation1 [shape = 'u32[144,128]{1,0:T(1,128)}', space=vmem, size = 0x12000, scoped, tag = 'internal scratch']
  #allocation2 [shape = 'bf16[2,18,16,192]{3,2,1,0:T(16,128)(2,1)}', space=vmem, size = 0x48000, scoped, tag = 'scratch operand']
  %s0 = inlined_call_operand.vmem [shape: f32[2,256,64], index: 0, kind: input, shape index: {}]
  %s1 = inlined_call_operand.vmem [shape: f32[8,64], index: 1, kind: input, shape index: {}]
  %s2 = inlined_call_operand.vmem [shape: f32[64,64], index: 2, kind: input, shape index: {}]
  %s3 = inlined_call_operand.vmem [shape: bf16[3,192,64], index: 3, kind: input, shape index: {}]
  %s4 = inlined_call_operand.vmem [shape: bf16[3,192,64], index: 4, kind: input, shape index: {}]
  %s5 = inlined_call_operand.vmem [shape: f32[2,256,64], index: 5, kind: output, shape index: {}]
  %s6 = sld [smem:[#allocation0]]
  $region30: #{tpu_custom_call.1} parent=0
    _
  %s8 = ssub.s32 1, %s6
  %s9 = scalar_select 0, %s8, %s6
  // Predicated region
  $region2: #{tpu_custom_call.1} parent=0 // pred_check
    _
  $region3: #{tpu_custom_call.1} parent=0 // pred_check_branch
    %11 = sbr.rel (0) target = $region5
  $region4: #{tpu_custom_call.1} parent=0 // pred_region
    _
  $region5: #{tpu_custom_call.1} parent=0 // pred_fallthru
    _
  // Predicated region
  $region6: #{tpu_custom_call.1} parent=0 // pred_check
    _
  $region7: #{tpu_custom_call.1} parent=0 // pred_check_branch
    %13 = sbr.rel (0) target = $region9
  $region8: #{tpu_custom_call.1} parent=0 // pred_region
    _
  $region9: #{tpu_custom_call.1} parent=0 // pred_fallthru
    _
  // Predicated region
  $region10: #{tpu_custom_call.1} parent=0 // pred_check
    _
  $region11: #{tpu_custom_call.1} parent=0 // pred_check_branch
    %15 = sbr.rel (0) target = $region13
  $region12: #{tpu_custom_call.1} parent=0 // pred_region
    _
  $region13: #{tpu_custom_call.1} parent=0 // pred_fallthru
    _
  // Predicated region
  $region14: #{tpu_custom_call.1} parent=0 // pred_check
    _
  $region15: #{tpu_custom_call.1} parent=0 // pred_check_branch
    %17 = sbr.rel (0) target = $region17
  $region16: #{tpu_custom_call.1} parent=0 // pred_region
    _
  $region17: #{tpu_custom_call.1} parent=0 // pred_fallthru
    _
  // Predicated region
  $region18: #{tpu_custom_call.1} parent=0 // pred_check
    _
  $region19: #{tpu_custom_call.1} parent=0 // pred_check_branch
    %19 = sbr.rel (0) target = $region21
  $region20: #{tpu_custom_call.1} parent=0 // pred_region
    _
  $region21: #{tpu_custom_call.1} parent=0 // pred_fallthru
    _
  %v21 = vld [vmem:[%s0] sm:$0xff]
  %v22 = vld [vmem:[%s0 + $0x8] sm:$0xff]
  %v23 = vld [vmem:[%s0 + $0x10] sm:$0xff]
  %v24 = vld [vmem:[%s0 + $0x18] sm:$0xff]
  %v25 = vld [vmem:[%s0 + $0x20] sm:$0xff]
  %v26 = vld [vmem:[%s0 + $0x28] sm:$0xff]
  %v27 = vld [vmem:[%s0 + $0x30] sm:$0xff]
  %v28 = vld [vmem:[%s0 + $0x38] sm:$0xff]
  %v29 = vld [vmem:[%s0 + $0x40] sm:$0xff]
  %v30 = vld [vmem:[%s0 + $0x48] sm:$0xff]
  %v31 = vld [vmem:[%s0 + $0x50] sm:$0xff]
  %v32 = vld [vmem:[%s0 + $0x58] sm:$0xff]
  %v33 = vld [vmem:[%s0 + $0x60] sm:$0xff]
  %v34 = vld [vmem:[%s0 + $0x68] sm:$0xff]
  %v35 = vld [vmem:[%s0 + $0x70] sm:$0xff]
  %v36 = vld [vmem:[%s0 + $0x78] sm:$0xff]
  %v37 = vld [vmem:[%s0 + $0x80] sm:$0xff]
  %v38 = vld [vmem:[%s0 + $0x88] sm:$0xff]
  %v39 = vld [vmem:[%s0 + $0x90] sm:$0xff]
  %v40 = vld [vmem:[%s0 + $0x98] sm:$0xff]
  %v41 = vld [vmem:[%s0 + $0xa0] sm:$0xff]
  %v42 = vld [vmem:[%s0 + $0xa8] sm:$0xff]
  %v43 = vld [vmem:[%s0 + $0xb0] sm:$0xff]
  %v44 = vld [vmem:[%s0 + $0xb8] sm:$0xff]
  %v45 = vld [vmem:[%s0 + $0xc0] sm:$0xff]
  %v46 = vld [vmem:[%s0 + $0xc8] sm:$0xff]
  %v47 = vld [vmem:[%s0 + $0xd0] sm:$0xff]
  %v48 = vld [vmem:[%s0 + $0xd8] sm:$0xff]
  %v49 = vld [vmem:[%s0 + $0xe0] sm:$0xff]
  %v50 = vld [vmem:[%s0 + $0xe8] sm:$0xff]
  %v51 = vld [vmem:[%s0 + $0xf0] sm:$0xff]
  %v52 = vld [vmem:[%s0 + $0xf8] sm:$0xff]
  %v53 = vld [vmem:[%s0 + $0x100] sm:$0xff]
  %v54 = vld [vmem:[%s0 + $0x108] sm:$0xff]
  %v55 = vld [vmem:[%s0 + $0x110] sm:$0xff]
  %v56 = vld [vmem:[%s0 + $0x118] sm:$0xff]
  %v57 = vld [vmem:[%s0 + $0x120] sm:$0xff]
  %v58 = vld [vmem:[%s0 + $0x128] sm:$0xff]
  %v59 = vld [vmem:[%s0 + $0x130] sm:$0xff]
  %v60 = vld [vmem:[%s0 + $0x138] sm:$0xff]
  %v61 = vld [vmem:[%s0 + $0x140] sm:$0xff]
  %v62 = vld [vmem:[%s0 + $0x148] sm:$0xff]
  %v63 = vld [vmem:[%s0 + $0x150] sm:$0xff]
  %v64 = vld [vmem:[%s0 + $0x158] sm:$0xff]
  %v65 = vld [vmem:[%s0 + $0x160] sm:$0xff]
  %v66 = vld [vmem:[%s0 + $0x168] sm:$0xff]
  %v67 = vld [vmem:[%s0 + $0x170] sm:$0xff]
  %v68 = vld [vmem:[%s0 + $0x178] sm:$0xff]
  %v69 = vld [vmem:[%s0 + $0x180] sm:$0xff]
  %v70 = vld [vmem:[%s0 + $0x188] sm:$0xff]
  %v71 = vld [vmem:[%s0 + $0x190] sm:$0xff]
  %v72 = vld [vmem:[%s0 + $0x198] sm:$0xff]
  %v73 = vld [vmem:[%s0 + $0x1a0] sm:$0xff]
  %v74 = vld [vmem:[%s0 + $0x1a8] sm:$0xff]
  %v75 = vld [vmem:[%s0 + $0x1b0] sm:$0xff]
  %v76 = vld [vmem:[%s0 + $0x1b8] sm:$0xff]
  %v77 = vld [vmem:[%s0 + $0x1c0] sm:$0xff]
  %v78 = vld [vmem:[%s0 + $0x1c8] sm:$0xff]
  %v79 = vld [vmem:[%s0 + $0x1d0] sm:$0xff]
  %v80 = vld [vmem:[%s0 + $0x1d8] sm:$0xff]
  %v81 = vld [vmem:[%s0 + $0x1e0] sm:$0xff]
  %v82 = vld [vmem:[%s0 + $0x1e8] sm:$0xff]
  %v83 = vld [vmem:[%s0 + $0x1f0] sm:$0xff]
  %v84 = vld [vmem:[%s0 + $0x1f8] sm:$0xff]
  %v85 = vld [vmem:[%s2] sm:$0xff]
  %v86 = vld [vmem:[%s2 + $0x8] sm:$0xff]
  %v87 = vld [vmem:[%s2 + $0x10] sm:$0xff]
  %v88 = vld [vmem:[%s2 + $0x18] sm:$0xff]
  %v89 = vld [vmem:[%s2 + $0x20] sm:$0xff]
  %v90 = vld [vmem:[%s2 + $0x28] sm:$0xff]
  %v91 = vld [vmem:[%s2 + $0x30] sm:$0xff]
  %v92 = vld [vmem:[%s2 + $0x38] sm:$0xff]
  %93 = vst [vmem:[#allocation2] sm:$0xff] 0
  %vm94 = vcmask 523264
  %95 = vst.msk [vmem:[#allocation2 + $0x8] sm:$0xff] %vm94, 0
  %96 = vst [vmem:[#allocation2 + $0x120] sm:$0xff] 0
  %97 = vst.msk [vmem:[#allocation2 + $0x128] sm:$0xff] %vm94, 0
  %s98 = scalar_lea.vmem [#allocation2], 272
  %99 = vst [vmem:[%s98] sm:$0xff] 0
  %100 = vst.msk [vmem:[%s98 + $0x8] sm:$0xff] %vm94, 0
  %101 = vst [vmem:[%s98 + $0x120] sm:$0xff] 0
  %102 = vst.msk [vmem:[%s98 + $0x128] sm:$0xff] %vm94, 0
  %vm103 = vcmask 516096
  %vm104 = vsmask.f32 256
  %vm105 = vmand %vm103, %vm104
  %v106 = vld [vmem:[#allocation2] sm:$0x1]
  %v107 = vsel %vm105, 0, %v106
  %108 = vst [vmem:[#allocation2] sm:$0x1] %v107
  %v109 = vld [vmem:[#allocation2 + $0x10] sm:$0x1]
  %v110 = vsel %vm105, 0, %v109
  %111 = vst [vmem:[#allocation2 + $0x10] sm:$0x1] %v110
  %v112 = vld [vmem:[#allocation2 + $0x20] sm:$0x1]
  %v113 = vsel %vm105, 0, %v112
  %114 = vst [vmem:[#allocation2 + $0x20] sm:$0x1] %v113
  %v115 = vld [vmem:[#allocation2 + $0x30] sm:$0x1]
  %v116 = vsel %vm105, 0, %v115
  %117 = vst [vmem:[#allocation2 + $0x30] sm:$0x1] %v116
  %v118 = vld [vmem:[#allocation2 + $0x40] sm:$0x1]
  %v119 = vsel %vm105, 0, %v118
  %120 = vst [vmem:[#allocation2 + $0x40] sm:$0x1] %v119
  %v121 = vld [vmem:[#allocation2 + $0x50] sm:$0x1]
  %v122 = vsel %vm105, 0, %v121
  %123 = vst [vmem:[#allocation2 + $0x50] sm:$0x1] %v122
  %v124 = vld [vmem:[#allocation2 + $0x60] sm:$0x1]
  %v125 = vsel %vm105, 0, %v124
  %126 = vst [vmem:[#allocation2 + $0x60] sm:$0x1] %v125
  %v127 = vld [vmem:[#allocation2 + $0x70] sm:$0x1]
  %v128 = vsel %vm105, 0, %v127
  %129 = vst [vmem:[#allocation2 + $0x70] sm:$0x1] %v128
  %v130 = vld [vmem:[#allocation2 + $0x80] sm:$0x1]
  %v131 = vsel %vm105, 0, %v130
  %132 = vst [vmem:[#allocation2 + $0x80] sm:$0x1] %v131
  %v133 = vld [vmem:[#allocation2 + $0x90] sm:$0x1]
  %v134 = vsel %vm105, 0, %v133
  %135 = vst [vmem:[#allocation2 + $0x90] sm:$0x1] %v134
  %v136 = vld [vmem:[#allocation2 + $0xa0] sm:$0x1]
  %v137 = vsel %vm105, 0, %v136
  %138 = vst [vmem:[#allocation2 + $0xa0] sm:$0x1] %v137
  %v139 = vld [vmem:[#allocation2 + $0xb0] sm:$0x1]
  %v140 = vsel %vm105, 0, %v139
  %141 = vst [vmem:[#allocation2 + $0xb0] sm:$0x1] %v140
  %v142 = vld [vmem:[#allocation2 + $0xc0] sm:$0x1]
  %v143 = vsel %vm105, 0, %v142
  %144 = vst [vmem:[#allocation2 + $0xc0] sm:$0x1] %v143
  %v145 = vld [vmem:[#allocation2 + $0xd0] sm:$0x1]
  %v146 = vsel %vm105, 0, %v145
  %147 = vst [vmem:[#allocation2 + $0xd0] sm:$0x1] %v146
  %v148 = vld [vmem:[#allocation2 + $0xe0] sm:$0x1]
  %v149 = vsel %vm105, 0, %v148
  %150 = vst [vmem:[#allocation2 + $0xe0] sm:$0x1] %v149
  %v151 = vld [vmem:[#allocation2 + $0xf0] sm:$0x1]
  %v152 = vsel %vm105, 0, %v151
  %153 = vst [vmem:[#allocation2 + $0xf0] sm:$0x1] %v152
  %v154 = vld [vmem:[#allocation2 + $0x100] sm:$0x1]
  %v155 = vsel %vm105, 0, %v154
  %156 = vst [vmem:[#allocation2 + $0x100] sm:$0x1] %v155
  %v157 = vld [vmem:[#allocation2 + $0x110] sm:$0x1]
  %v158 = vsel %vm105, 0, %v157
  %159 = vst [vmem:[#allocation2 + $0x110] sm:$0x1] %v158
  %v160 = vld [vmem:[#allocation2 + $0x120] sm:$0x1]
  %v161 = vsel %vm105, 0, %v160
  %162 = vst [vmem:[#allocation2 + $0x120] sm:$0x1] %v161
  %v163 = vld [vmem:[#allocation2 + $0x130] sm:$0x1]
  %v164 = vsel %vm105, 0, %v163
  %165 = vst [vmem:[#allocation2 + $0x130] sm:$0x1] %v164
  %v166 = vld [vmem:[#allocation2 + $0x140] sm:$0x1]
  %v167 = vsel %vm105, 0, %v166
  %168 = vst [vmem:[#allocation2 + $0x140] sm:$0x1] %v167
  %v169 = vld [vmem:[#allocation2 + $0x150] sm:$0x1]
  %v170 = vsel %vm105, 0, %v169
  %171 = vst [vmem:[#allocation2 + $0x150] sm:$0x1] %v170
  %v172 = vld [vmem:[#allocation2 + $0x160] sm:$0x1]
  %v173 = vsel %vm105, 0, %v172
  %174 = vst [vmem:[#allocation2 + $0x160] sm:$0x1] %v173
  %v175 = vld [vmem:[#allocation2 + $0x170] sm:$0x1]
  %v176 = vsel %vm105, 0, %v175
  %177 = vst [vmem:[#allocation2 + $0x170] sm:$0x1] %v176
  %v178 = vld [vmem:[#allocation2 + $0x180] sm:$0x1]
  %v179 = vsel %vm105, 0, %v178
  %180 = vst [vmem:[#allocation2 + $0x180] sm:$0x1] %v179
  %v181 = vld [vmem:[#allocation2 + $0x190] sm:$0x1]
  %v182 = vsel %vm105, 0, %v181
  %183 = vst [vmem:[#allocation2 + $0x190] sm:$0x1] %v182
  %v184 = vld [vmem:[#allocation2 + $0x1a0] sm:$0x1]
  %v185 = vsel %vm105, 0, %v184
  %186 = vst [vmem:[#allocation2 + $0x1a0] sm:$0x1] %v185
  %v187 = vld [vmem:[#allocation2 + $0x1b0] sm:$0x1]
  %v188 = vsel %vm105, 0, %v187
  %189 = vst [vmem:[#allocation2 + $0x1b0] sm:$0x1] %v188
  %v190 = vld [vmem:[#allocation2 + $0x1c0] sm:$0x1]
  %v191 = vsel %vm105, 0, %v190
  %192 = vst [vmem:[#allocation2 + $0x1c0] sm:$0x1] %v191
  %v193 = vld [vmem:[#allocation2 + $0x1d0] sm:$0x1]
  %v194 = vsel %vm105, 0, %v193
  %195 = vst [vmem:[#allocation2 + $0x1d0] sm:$0x1] %v194
  %v196 = vld [vmem:[#allocation2 + $0x1e0] sm:$0x1]
  %v197 = vsel %vm105, 0, %v196
  %198 = vst [vmem:[#allocation2 + $0x1e0] sm:$0x1] %v197
  %v199 = vld [vmem:[#allocation2 + $0x1f0] sm:$0x1]
  %v200 = vsel %vm105, 0, %v199
  %201 = vst [vmem:[#allocation2 + $0x1f0] sm:$0x1] %v200
  %v202 = vld [vmem:[#allocation2 + $0x200] sm:$0x1]
  %v203 = vsel %vm105, 0, %v202
  %204 = vst [vmem:[#allocation2 + $0x200] sm:$0x1] %v203
  %v205 = vld [vmem:[#allocation2 + $0x210] sm:$0x1]
  %v206 = vsel %vm105, 0, %v205
  %207 = vst [vmem:[#allocation2 + $0x210] sm:$0x1] %v206
  %v208 = vld [vmem:[#allocation2 + $0x220] sm:$0x1]
  %v209 = vsel %vm105, 0, %v208
  %210 = vst [vmem:[#allocation2 + $0x220] sm:$0x1] %v209
  %v211 = vld [vmem:[#allocation2 + $0x230] sm:$0x1]
  %v212 = vsel %vm105, 0, %v211
  %213 = vst [vmem:[#allocation2 + $0x230] sm:$0x1] %v212
  %vm214 = vcmask 523271
  %vm215 = vsmask.f32 7966
  %vm216 = vmand %vm214, %vm215
  %v217 = vld [vmem:[#allocation2 + $0x8] sm:$0x80]
  %v218 = vsel %vm216, 0, %v217
  %219 = vst [vmem:[#allocation2 + $0x8] sm:$0x80] %v218
  %v220 = vld [vmem:[#allocation2 + $0x18] sm:$0x80]
  %v221 = vsel %vm216, 0, %v220
  %222 = vst [vmem:[#allocation2 + $0x18] sm:$0x80] %v221
  %v223 = vld [vmem:[#allocation2 + $0x28] sm:$0x80]
  %v224 = vsel %vm216, 0, %v223
  %225 = vst [vmem:[#allocation2 + $0x28] sm:$0x80] %v224
  %v226 = vld [vmem:[#allocation2 + $0x38] sm:$0x80]
  %v227 = vsel %vm216, 0, %v226
  %228 = vst [vmem:[#allocation2 + $0x38] sm:$0x80] %v227
  %v229 = vld [vmem:[#allocation2 + $0x48] sm:$0x80]
  %v230 = vsel %vm216, 0, %v229
  %231 = vst [vmem:[#allocation2 + $0x48] sm:$0x80] %v230
  %v232 = vld [vmem:[#allocation2 + $0x58] sm:$0x80]
  %v233 = vsel %vm216, 0, %v232
  %234 = vst [vmem:[#allocation2 + $0x58] sm:$0x80] %v233
  %v235 = vld [vmem:[#allocation2 + $0x68] sm:$0x80]
  %v236 = vsel %vm216, 0, %v235
  %237 = vst [vmem:[#allocation2 + $0x68] sm:$0x80] %v236
  %v238 = vld [vmem:[#allocation2 + $0x78] sm:$0x80]
  %v239 = vsel %vm216, 0, %v238
  %240 = vst [vmem:[#allocation2 + $0x78] sm:$0x80] %v239
  %v241 = vld [vmem:[#allocation2 + $0x88] sm:$0x80]
  %v242 = vsel %vm216, 0, %v241
  %243 = vst [vmem:[#allocation2 + $0x88] sm:$0x80] %v242
  %v244 = vld [vmem:[#allocation2 + $0x98] sm:$0x80]
  %v245 = vsel %vm216, 0, %v244
  %246 = vst [vmem:[#allocation2 + $0x98] sm:$0x80] %v245
  %v247 = vld [vmem:[#allocation2 + $0xa8] sm:$0x80]
  %v248 = vsel %vm216, 0, %v247
  %249 = vst [vmem:[#allocation2 + $0xa8] sm:$0x80] %v248
  %v250 = vld [vmem:[#allocation2 + $0xb8] sm:$0x80]
  %v251 = vsel %vm216, 0, %v250
  %252 = vst [vmem:[#allocation2 + $0xb8] sm:$0x80] %v251
  %v253 = vld [vmem:[#allocation2 + $0xc8] sm:$0x80]
  %v254 = vsel %vm216, 0, %v253
  %255 = vst [vmem:[#allocation2 + $0xc8] sm:$0x80] %v254
  %v256 = vld [vmem:[#allocation2 + $0xd8] sm:$0x80]
  %v257 = vsel %vm216, 0, %v256
  %258 = vst [vmem:[#allocation2 + $0xd8] sm:$0x80] %v257
  %v259 = vld [vmem:[#allocation2 + $0xe8] sm:$0x80]
  %v260 = vsel %vm216, 0, %v259
  %261 = vst [vmem:[#allocation2 + $0xe8] sm:$0x80] %v260
  %v262 = vld [vmem:[#allocation2 + $0xf8] sm:$0x80]
  %v263 = vsel %vm216, 0, %v262
  %264 = vst [vmem:[#allocation2 + $0xf8] sm:$0x80] %v263
  %v265 = vld [vmem:[#allocation2 + $0x108] sm:$0x80]
  %v266 = vsel %vm216, 0, %v265
  %267 = vst [vmem:[#allocation2 + $0x108] sm:$0x80] %v266
  %v268 = vld [vmem:[#allocation2 + $0x118] sm:$0x80]
  %v269 = vsel %vm216, 0, %v268
  %270 = vst [vmem:[#allocation2 + $0x118] sm:$0x80] %v269
  %v271 = vld [vmem:[#allocation2 + $0x128] sm:$0x80]
  %v272 = vsel %vm216, 0, %v271
  %273 = vst [vmem:[#allocation2 + $0x128] sm:$0x80] %v272
  %v274 = vld [vmem:[#allocation2 + $0x138] sm:$0x80]
  %v275 = vsel %vm216, 0, %v274
  %276 = vst [vmem:[#allocation2 + $0x138] sm:$0x80] %v275
  %v277 = vld [vmem:[#allocation2 + $0x148] sm:$0x80]
  %v278 = vsel %vm216, 0, %v277
  %279 = vst [vmem:[#allocation2 + $0x148] sm:$0x80] %v278
  %v280 = vld [vmem:[#allocation2 + $0x158] sm:$0x80]
  %v281 = vsel %vm216, 0, %v280
  %282 = vst [vmem:[#allocation2 + $0x158] sm:$0x80] %v281
  %v283 = vld [vmem:[#allocation2 + $0x168] sm:$0x80]
  %v284 = vsel %vm216, 0, %v283
  %285 = vst [vmem:[#allocation2 + $0x168] sm:$0x80] %v284
  %v286 = vld [vmem:[#allocation2 + $0x178] sm:$0x80]
  %v287 = vsel %vm216, 0, %v286
  %288 = vst [vmem:[#allocation2 + $0x178] sm:$0x80] %v287
  %v289 = vld [vmem:[#allocation2 + $0x188] sm:$0x80]
  %v290 = vsel %vm216, 0, %v289
  %291 = vst [vmem:[#allocation2 + $0x188] sm:$0x80] %v290
  %v292 = vld [vmem:[#allocation2 + $0x198] sm:$0x80]
  %v293 = vsel %vm216, 0, %v292
  %294 = vst [vmem:[#allocation2 + $0x198] sm:$0x80] %v293
  %v295 = vld [vmem:[#allocation2 + $0x1a8] sm:$0x80]
  %v296 = vsel %vm216, 0, %v295
  %297 = vst [vmem:[#allocation2 + $0x1a8] sm:$0x80] %v296
  %v298 = vld [vmem:[#allocation2 + $0x1b8] sm:$0x80]
  %v299 = vsel %vm216, 0, %v298
  %300 = vst [vmem:[#allocation2 + $0x1b8] sm:$0x80] %v299
  %v301 = vld [vmem:[#allocation2 + $0x1c8] sm:$0x80]
  %v302 = vsel %vm216, 0, %v301
  %303 = vst [vmem:[#allocation2 + $0x1c8] sm:$0x80] %v302
  %v304 = vld [vmem:[#allocation2 + $0x1d8] sm:$0x80]
  %v305 = vsel %vm216, 0, %v304
  %306 = vst [vmem:[#allocation2 + $0x1d8] sm:$0x80] %v305
  %v307 = vld [vmem:[#allocation2 + $0x1e8] sm:$0x80]
  %v308 = vsel %vm216, 0, %v307
  %309 = vst [vmem:[#allocation2 + $0x1e8] sm:$0x80] %v308
  %v310 = vld [vmem:[#allocation2 + $0x1f8] sm:$0x80]
  %v311 = vsel %vm216, 0, %v310
  %312 = vst [vmem:[#allocation2 + $0x1f8] sm:$0x80] %v311
  %v313 = vld [vmem:[#allocation2 + $0x208] sm:$0x80]
  %v314 = vsel %vm216, 0, %v313
  %315 = vst [vmem:[#allocation2 + $0x208] sm:$0x80] %v314
  %v316 = vld [vmem:[#allocation2 + $0x218] sm:$0x80]
  %v317 = vsel %vm216, 0, %v316
  %318 = vst [vmem:[#allocation2 + $0x218] sm:$0x80] %v317
  %v319 = vld [vmem:[#allocation2 + $0x228] sm:$0x80]
  %v320 = vsel %vm216, 0, %v319
  %321 = vst [vmem:[#allocation2 + $0x228] sm:$0x80] %v320
  %v322 = vld [vmem:[#allocation2 + $0x238] sm:$0x80]
  %v323 = vsel %vm216, 0, %v322
  %324 = vst [vmem:[#allocation2 + $0x238] sm:$0x80] %v323
  %v325 = vld [vmem:[%s1] sm:$0x1]
  %v326 = vld [vmem:[%s1 + $0x1] sm:$0x1]
  %v327 = vld [vmem:[%s1 + $0x2] sm:$0x1]
  %v328 = vld [vmem:[%s1 + $0x3] sm:$0x1]
  %v329 = vld [vmem:[%s1 + $0x4] sm:$0x1]
  %v330 = vld [vmem:[%s1 + $0x5] sm:$0x1]
  %v331 = vsel %vm94, %v21, 0.0
  %v332 = vsel %vm94, %v22, 0.0
  %v333 = vadd.f32 %v331, %v332
  %v334 = vsel %vm94, %v23, 0.0
  %v335 = vadd.f32 %v333, %v334
  %v336 = vsel %vm94, %v24, 0.0
  %v337 = vadd.f32 %v335, %v336
  %v338 = vsel %vm94, %v25, 0.0
  %v339 = vadd.f32 %v337, %v338
  %v340 = vsel %vm94, %v26, 0.0
  %v341 = vadd.f32 %v339, %v340
  %v342 = vsel %vm94, %v27, 0.0
  %v343 = vadd.f32 %v341, %v342
  %v344 = vsel %vm94, %v28, 0.0
  %v345 = vadd.f32 %v343, %v344
  %v346 = vsel %vm94, %v29, 0.0
  %v347 = vadd.f32 %v345, %v346
  %v348 = vsel %vm94, %v30, 0.0
  %v349 = vadd.f32 %v347, %v348
  %v350 = vsel %vm94, %v31, 0.0
  %v351 = vadd.f32 %v349, %v350
  %v352 = vsel %vm94, %v32, 0.0
  %v353 = vadd.f32 %v351, %v352
  %v354 = vsel %vm94, %v33, 0.0
  %v355 = vadd.f32 %v353, %v354
  %v356 = vsel %vm94, %v34, 0.0
  %v357 = vadd.f32 %v355, %v356
  %v358 = vsel %vm94, %v35, 0.0
  %v359 = vadd.f32 %v357, %v358
  %v360 = vsel %vm94, %v36, 0.0
  %v361 = vadd.f32 %v359, %v360
  %v362 = vsel %vm94, %v37, 0.0
  %v363 = vadd.f32 %v361, %v362
  %v364 = vsel %vm94, %v38, 0.0
  %v365 = vadd.f32 %v363, %v364
  %v366 = vsel %vm94, %v39, 0.0
  %v367 = vadd.f32 %v365, %v366
  %v368 = vsel %vm94, %v40, 0.0
  %v369 = vadd.f32 %v367, %v368
  %v370 = vsel %vm94, %v41, 0.0
  %v371 = vadd.f32 %v369, %v370
  %v372 = vsel %vm94, %v42, 0.0
  %v373 = vadd.f32 %v371, %v372
  %v374 = vsel %vm94, %v43, 0.0
  %v375 = vadd.f32 %v373, %v374
  %v376 = vsel %vm94, %v44, 0.0
  %v377 = vadd.f32 %v375, %v376
  %v378 = vsel %vm94, %v45, 0.0
  %v379 = vadd.f32 %v377, %v378
  %v380 = vsel %vm94, %v46, 0.0
  %v381 = vadd.f32 %v379, %v380
  %v382 = vsel %vm94, %v47, 0.0
  %v383 = vadd.f32 %v381, %v382
  %v384 = vsel %vm94, %v48, 0.0
  %v385 = vadd.f32 %v383, %v384
  %v386 = vsel %vm94, %v49, 0.0
  %v387 = vadd.f32 %v385, %v386
  %v388 = vsel %vm94, %v50, 0.0
  %v389 = vadd.f32 %v387, %v388
  %v390 = vsel %vm94, %v51, 0.0
  %v391 = vadd.f32 %v389, %v390
  %v392 = vsel %vm94, %v52, 0.0
  %v393 = vadd.f32 %v391, %v392
  %v394 = vrot.slane %v393, 4
  %v395 = vadd.f32 %v393, %v394
  %v396 = vrot.slane %v395, 2
  %v397 = vadd.f32 %v395, %v396
  %v398 = vrot.slane %v397, 1
  %v399 = vadd.f32 %v397, %v398
  %v400 = vsel %vm94, %v53, 0.0
  %v401 = vsel %vm94, %v54, 0.0
  %v402 = vadd.f32 %v400, %v401
  %v403 = vsel %vm94, %v55, 0.0
  %v404 = vadd.f32 %v402, %v403
  %v405 = vsel %vm94, %v56, 0.0
  %v406 = vadd.f32 %v404, %v405
  %v407 = vsel %vm94, %v57, 0.0
  %v408 = vadd.f32 %v406, %v407
  %v409 = vsel %vm94, %v58, 0.0
  %v410 = vadd.f32 %v408, %v409
  %v411 = vsel %vm94, %v59, 0.0
  %v412 = vadd.f32 %v410, %v411
  %v413 = vsel %vm94, %v60, 0.0
  %v414 = vadd.f32 %v412, %v413
  %v415 = vsel %vm94, %v61, 0.0
  %v416 = vadd.f32 %v414, %v415
  %v417 = vsel %vm94, %v62, 0.0
  %v418 = vadd.f32 %v416, %v417
  %v419 = vsel %vm94, %v63, 0.0
  %v420 = vadd.f32 %v418, %v419
  %v421 = vsel %vm94, %v64, 0.0
  %v422 = vadd.f32 %v420, %v421
  %v423 = vsel %vm94, %v65, 0.0
  %v424 = vadd.f32 %v422, %v423
  %v425 = vsel %vm94, %v66, 0.0
  %v426 = vadd.f32 %v424, %v425
  %v427 = vsel %vm94, %v67, 0.0
  %v428 = vadd.f32 %v426, %v427
  %v429 = vsel %vm94, %v68, 0.0
  %v430 = vadd.f32 %v428, %v429
  %v431 = vsel %vm94, %v69, 0.0
  %v432 = vadd.f32 %v430, %v431
  %v433 = vsel %vm94, %v70, 0.0
  %v434 = vadd.f32 %v432, %v433
  %v435 = vsel %vm94, %v71, 0.0
  %v436 = vadd.f32 %v434, %v435
  %v437 = vsel %vm94, %v72, 0.0
  %v438 = vadd.f32 %v436, %v437
  %v439 = vsel %vm94, %v73, 0.0
  %v440 = vadd.f32 %v438, %v439
  %v441 = vsel %vm94, %v74, 0.0
  %v442 = vadd.f32 %v440, %v441
  %v443 = vsel %vm94, %v75, 0.0
  %v444 = vadd.f32 %v442, %v443
  %v445 = vsel %vm94, %v76, 0.0
  %v446 = vadd.f32 %v444, %v445
  %v447 = vsel %vm94, %v77, 0.0
  %v448 = vadd.f32 %v446, %v447
  %v449 = vsel %vm94, %v78, 0.0
  %v450 = vadd.f32 %v448, %v449
  %v451 = vsel %vm94, %v79, 0.0
  %v452 = vadd.f32 %v450, %v451
  %v453 = vsel %vm94, %v80, 0.0
  %v454 = vadd.f32 %v452, %v453
  %v455 = vsel %vm94, %v81, 0.0
  %v456 = vadd.f32 %v454, %v455
  %v457 = vsel %vm94, %v82, 0.0
  %v458 = vadd.f32 %v456, %v457
  %v459 = vsel %vm94, %v83, 0.0
  %v460 = vadd.f32 %v458, %v459
  %v461 = vsel %vm94, %v84, 0.0
  %v462 = vadd.f32 %v460, %v461
  %v463 = vrot.slane %v462, 4
  %v464 = vadd.f32 %v462, %v463
  %v465 = vrot.slane %v464, 2
  %v466 = vadd.f32 %v464, %v465
  %v467 = vrot.slane %v466, 1
  %v468 = vadd.f32 %v466, %v467
  %vm471 = vcmask 1041409
  %v472 = vsel %vm471, %v468, %v399
  %v473 = vsel %vm94, %v472, 0
  %475 = vmatprep.subr.mxu0 0.0
  %476 = vmatpush1.msra.mxu0 %v85
  %477 = vmatprep.subr.mxu0 0.0
  %478 = vmatpush1.msra.mxu0 %v86
  %479 = vmatprep.subr.mxu0 0.0
  %480 = vmatpush1.msra.mxu0 %v87
  %481 = vmatprep.subr.mxu0 0.0
  %482 = vmatpush1.msra.mxu0 %v88
  %483 = vmatprep.subr.mxu0 0.0
  %484 = vmatpush1.msra.mxu0 %v89
  %485 = vmatprep.subr.mxu0 0.0
  %486 = vmatpush1.msra.mxu0 %v90
  %487 = vmatprep.subr.mxu0 0.0
  %488 = vmatpush1.msra.mxu0 %v91
  %489 = vmatprep.subr.mxu0 0.0
  %490 = vmatpush1.msra.mxu0 %v92
  %491 = vmatprep.subr.mxu0 0.0
  %492 = vmatpush1.msra.mxu0 0.0
  %493 = vmatprep.subr.mxu0 0.0
  %494 = vmatpush1.msra.mxu0 0.0
  %495 = vmatprep.subr.mxu0 0.0
  %496 = vmatpush1.msra.mxu0 0.0
  %497 = vmatprep.subr.mxu0 0.0
  %498 = vmatpush1.msra.mxu0 0.0
  %499 = vmatprep.subr.mxu0 0.0
  %500 = vmatpush1.msra.mxu0 0.0
  %501 = vmatprep.subr.mxu0 0.0
  %502 = vmatpush1.msra.mxu0 0.0
  %503 = vmatprep.subr.mxu0 0.0
  %504 = vmatpush1.msra.mxu0 0.0
  %505 = vmatprep.subr.mxu0 0.0
  %506 = vmatpush1.msra.mxu0 0.0
  %507 = vmatprep.subr.mxu0 0.0
  %508 = vmatpush1.msra.mxu0 0.0
  %509 = vmatprep.subr.mxu0 0.0
  %510 = vmatpush1.msra.mxu0 0.0
  %511 = vmatprep.subr.mxu0 0.0
  %512 = vmatpush1.msra.mxu0 0.0
  %513 = vmatprep.subr.mxu0 0.0
  %514 = vmatpush1.msra.mxu0 0.0
  %515 = vmatprep.subr.mxu0 0.0
  %516 = vmatpush1.msra.mxu0 0.0
  %517 = vmatprep.subr.mxu0 0.0
  %518 = vmatpush1.msra.mxu0 0.0
  %519 = vmatprep.subr.mxu0 0.0
  %520 = vmatpush1.msra.mxu0 0.0
  %521 = vmatprep.subr.mxu0 0.0
  %522 = vmatpush1.msra.mxu0 0.0
  %523 = vmatprep.subr.mxu0 0.0
  %524 = vmatpush1.msra.mxu0 0.0
  %525 = vmatprep.subr.mxu0 0.0
  %526 = vmatpush1.msra.mxu0 0.0
  %527 = vmatprep.subr.mxu0 0.0
  %528 = vmatpush1.msra.mxu0 0.0
  %529 = vmatprep.subr.mxu0 0.0
  %530 = vmatpush1.msra.mxu0 0.0
  %531 = vmatprep.subr.mxu0 0.0
  %532 = vmatpush1.msra.mxu0 0.0
  %533 = vmatprep.subr.mxu0 0.0
  %534 = vmatpush1.msra.mxu0 0.0
  %535 = vmatprep.subr.mxu0 0.0
  %536 = vmatpush1.msra.mxu0 0.0
  %537 = vmatprep.subr.mxu0 0.0
  %538 = vmatpush1.msra.mxu0 0.0
  %539 = vmatprep.mubr.f32.mxu0 0.0
  %540 = vmatmul.mubr.f32.gmra.mrb[0].mxu0 %v473
  %v541 = vpop.f32.mrb[0].mxu0
  %v542 = vadd.f32 0.0, %v541
  %v543 = vpop.f32.mrb[0].mxu0
  %544 = vdwg.mxu0
  %v547 = vunpack.c.l.s4 1966171168
  %v548 = vunpack.c.0.s8 %v547
  %v549 = vlaneseq
  %v550 = vshrl.u32 %v549, 7
  %v551 = vsub.s32 %v548, %v550
  %v552 = vrot.slane %v542, %v551
  %v553 = vcombine.high %v552, %v552
  %v555 = vunpack.c.l.s4 1966171168
  %v556 = vunpack.c.0.s8 %v555
  %v557 = vlaneseq
  %v558 = vshrl.u32 %v557, 7
  %v559 = vsub.s32 %v556, %v558
  %v560 = vrot.slane %v552, %v559
  %v562 = vunpack.c.l.s4 1966171168
  %v563 = vunpack.c.0.s8 %v562
  %v564 = vlaneseq
  %v565 = vshrl.u32 %v564, 7
  %v566 = vsub.s32 %v563, %v565
  %v567 = vrot.slane %v553, %v566
  %v568 = vlaneseq
  %v569 = vshrl.u32 %v568, 7
  %v570 = vsub.s32 0, %v569
  %v571 = vrot.slane %v560, %v570
  %v572 = vlaneseq
  %v573 = vshrl.u32 %v572, 7
  %v574 = vsub.s32 0, %v573
  %v575 = vrot.slane %v567, %v574
  %v578 = vsub.f32 %v21, %v571
  %v579 = vsub.f32 %v22, %v571
  %v580 = vsub.f32 %v23, %v571
  %v581 = vsub.f32 %v24, %v571
  %v582 = vsub.f32 %v25, %v571
  %v583 = vsub.f32 %v26, %v571
  %v584 = vsub.f32 %v27, %v571
  %v585 = vsub.f32 %v28, %v571
  %v586 = vsub.f32 %v29, %v571
  %v587 = vsub.f32 %v30, %v571
  %v588 = vsub.f32 %v31, %v571
  %v589 = vsub.f32 %v32, %v571
  %v590 = vsub.f32 %v33, %v571
  %v591 = vsub.f32 %v34, %v571
  %v592 = vsub.f32 %v35, %v571
  %v593 = vsub.f32 %v36, %v571
  %v594 = vsub.f32 %v37, %v571
  %v595 = vsub.f32 %v38, %v571
  %v596 = vsub.f32 %v39, %v571
  %v597 = vsub.f32 %v40, %v571
  %v598 = vsub.f32 %v41, %v571
  %v599 = vsub.f32 %v42, %v571
  %v600 = vsub.f32 %v43, %v571
  %v601 = vsub.f32 %v44, %v571
  %v602 = vsub.f32 %v45, %v571
  %v603 = vsub.f32 %v46, %v571
  %v604 = vsub.f32 %v47, %v571
  %v605 = vsub.f32 %v48, %v571
  %v606 = vsub.f32 %v49, %v571
  %v607 = vsub.f32 %v50, %v571
  %v608 = vsub.f32 %v51, %v571
  %v609 = vsub.f32 %v52, %v571
  %v610 = vsub.f32 %v53, %v575
  %v611 = vsub.f32 %v54, %v575
  %v612 = vsub.f32 %v55, %v575
  %v613 = vsub.f32 %v56, %v575
  %v614 = vsub.f32 %v57, %v575
  %v615 = vsub.f32 %v58, %v575
  %v616 = vsub.f32 %v59, %v575
  %v617 = vsub.f32 %v60, %v575
  %v618 = vsub.f32 %v61, %v575
  %v619 = vsub.f32 %v62, %v575
  %v620 = vsub.f32 %v63, %v575
  %v621 = vsub.f32 %v64, %v575
  %v622 = vsub.f32 %v65, %v575
  %v623 = vsub.f32 %v66, %v575
  %v624 = vsub.f32 %v67, %v575
  %v625 = vsub.f32 %v68, %v575
  %v626 = vsub.f32 %v69, %v575
  %v627 = vsub.f32 %v70, %v575
  %v628 = vsub.f32 %v71, %v575
  %v629 = vsub.f32 %v72, %v575
  %v630 = vsub.f32 %v73, %v575
  %v631 = vsub.f32 %v74, %v575
  %v632 = vsub.f32 %v75, %v575
  %v633 = vsub.f32 %v76, %v575
  %v634 = vsub.f32 %v77, %v575
  %v635 = vsub.f32 %v78, %v575
  %v636 = vsub.f32 %v79, %v575
  %v637 = vsub.f32 %v80, %v575
  %v638 = vsub.f32 %v81, %v575
  %v639 = vsub.f32 %v82, %v575
  %v640 = vsub.f32 %v83, %v575
  %v641 = vsub.f32 %v84, %v575
  %v642 = vmul.f32 %v578, %v578
  %v643 = vmul.f32 %v579, %v579
  %v644 = vmul.f32 %v580, %v580
  %v645 = vmul.f32 %v581, %v581
  %v646 = vmul.f32 %v582, %v582
  %v647 = vmul.f32 %v583, %v583
  %v648 = vmul.f32 %v584, %v584
  %v649 = vmul.f32 %v585, %v585
  %v650 = vmul.f32 %v586, %v586
  %v651 = vmul.f32 %v587, %v587
  %v652 = vmul.f32 %v588, %v588
  %v653 = vmul.f32 %v589, %v589
  %v654 = vmul.f32 %v590, %v590
  %v655 = vmul.f32 %v591, %v591
  %v656 = vmul.f32 %v592, %v592
  %v657 = vmul.f32 %v593, %v593
  %v658 = vmul.f32 %v594, %v594
  %v659 = vmul.f32 %v595, %v595
  %v660 = vmul.f32 %v596, %v596
  %v661 = vmul.f32 %v597, %v597
  %v662 = vmul.f32 %v598, %v598
  %v663 = vmul.f32 %v599, %v599
  %v664 = vmul.f32 %v600, %v600
  %v665 = vmul.f32 %v601, %v601
  %v666 = vmul.f32 %v602, %v602
  %v667 = vmul.f32 %v603, %v603
  %v668 = vmul.f32 %v604, %v604
  %v669 = vmul.f32 %v605, %v605
  %v670 = vmul.f32 %v606, %v606
  %v671 = vmul.f32 %v607, %v607
  %v672 = vmul.f32 %v608, %v608
  %v673 = vmul.f32 %v609, %v609
  %v674 = vmul.f32 %v610, %v610
  %v675 = vmul.f32 %v611, %v611
  %v676 = vmul.f32 %v612, %v612
  %v677 = vmul.f32 %v613, %v613
  %v678 = vmul.f32 %v614, %v614
  %v679 = vmul.f32 %v615, %v615
  %v680 = vmul.f32 %v616, %v616
  %v681 = vmul.f32 %v617, %v617
  %v682 = vmul.f32 %v618, %v618
  %v683 = vmul.f32 %v619, %v619
  %v684 = vmul.f32 %v620, %v620
  %v685 = vmul.f32 %v621, %v621
  %v686 = vmul.f32 %v622, %v622
  %v687 = vmul.f32 %v623, %v623
  %v688 = vmul.f32 %v624, %v624
  %v689 = vmul.f32 %v625, %v625
  %v690 = vmul.f32 %v626, %v626
  %v691 = vmul.f32 %v627, %v627
  %v692 = vmul.f32 %v628, %v628
  %v693 = vmul.f32 %v629, %v629
  %v694 = vmul.f32 %v630, %v630
  %v695 = vmul.f32 %v631, %v631
  %v696 = vmul.f32 %v632, %v632
  %v697 = vmul.f32 %v633, %v633
  %v698 = vmul.f32 %v634, %v634
  %v699 = vmul.f32 %v635, %v635
  %v700 = vmul.f32 %v636, %v636
  %v701 = vmul.f32 %v637, %v637
  %v702 = vmul.f32 %v638, %v638
  %v703 = vmul.f32 %v639, %v639
  %v704 = vmul.f32 %v640, %v640
  %v705 = vmul.f32 %v641, %v641
  %v706 = vsel %vm94, %v642, 0.0
  %v707 = vsel %vm94, %v643, 0.0
  %v708 = vadd.f32 %v706, %v707
  %v709 = vsel %vm94, %v644, 0.0
  %v710 = vadd.f32 %v708, %v709
  %v711 = vsel %vm94, %v645, 0.0
  %v712 = vadd.f32 %v710, %v711
  %v713 = vsel %vm94, %v646, 0.0
  %v714 = vadd.f32 %v712, %v713
  %v715 = vsel %vm94, %v647, 0.0
  %v716 = vadd.f32 %v714, %v715
  %v717 = vsel %vm94, %v648, 0.0
  %v718 = vadd.f32 %v716, %v717
  %v719 = vsel %vm94, %v649, 0.0
  %v720 = vadd.f32 %v718, %v719
  %v721 = vsel %vm94, %v650, 0.0
  %v722 = vadd.f32 %v720, %v721
  %v723 = vsel %vm94, %v651, 0.0
  %v724 = vadd.f32 %v722, %v723
  %v725 = vsel %vm94, %v652, 0.0
  %v726 = vadd.f32 %v724, %v725
  %v727 = vsel %vm94, %v653, 0.0
  %v728 = vadd.f32 %v726, %v727
  %v729 = vsel %vm94, %v654, 0.0
  %v730 = vadd.f32 %v728, %v729
  %v731 = vsel %vm94, %v655, 0.0
  %v732 = vadd.f32 %v730, %v731
  %v733 = vsel %vm94, %v656, 0.0
  %v734 = vadd.f32 %v732, %v733
  %v735 = vsel %vm94, %v657, 0.0
  %v736 = vadd.f32 %v734, %v735
  %v737 = vsel %vm94, %v658, 0.0
  %v738 = vadd.f32 %v736, %v737
  %v739 = vsel %vm94, %v659, 0.0
  %v740 = vadd.f32 %v738, %v739
  %v741 = vsel %vm94, %v660, 0.0
  %v742 = vadd.f32 %v740, %v741
  %v743 = vsel %vm94, %v661, 0.0
  %v744 = vadd.f32 %v742, %v743
  %v745 = vsel %vm94, %v662, 0.0
  %v746 = vadd.f32 %v744, %v745
  %v747 = vsel %vm94, %v663, 0.0
  %v748 = vadd.f32 %v746, %v747
  %v749 = vsel %vm94, %v664, 0.0
  %v750 = vadd.f32 %v748, %v749
  %v751 = vsel %vm94, %v665, 0.0
  %v752 = vadd.f32 %v750, %v751
  %v753 = vsel %vm94, %v666, 0.0
  %v754 = vadd.f32 %v752, %v753
  %v755 = vsel %vm94, %v667, 0.0
  %v756 = vadd.f32 %v754, %v755
  %v757 = vsel %vm94, %v668, 0.0
  %v758 = vadd.f32 %v756, %v757
  %v759 = vsel %vm94, %v669, 0.0
  %v760 = vadd.f32 %v758, %v759
  %v761 = vsel %vm94, %v670, 0.0
  %v762 = vadd.f32 %v760, %v761
  %v763 = vsel %vm94, %v671, 0.0
  %v764 = vadd.f32 %v762, %v763
  %v765 = vsel %vm94, %v672, 0.0
  %v766 = vadd.f32 %v764, %v765
  %v767 = vsel %vm94, %v673, 0.0
  %v768 = vadd.f32 %v766, %v767
  %v769 = vrot.slane %v768, 4
  %v770 = vadd.f32 %v768, %v769
  %v771 = vrot.slane %v770, 2
  %v772 = vadd.f32 %v770, %v771
  %v773 = vrot.slane %v772, 1
  %v774 = vadd.f32 %v772, %v773
  %v775 = vsel %vm94, %v674, 0.0
  %v776 = vsel %vm94, %v675, 0.0
  %v777 = vadd.f32 %v775, %v776
  %v778 = vsel %vm94, %v676, 0.0
  %v779 = vadd.f32 %v777, %v778
  %v780 = vsel %vm94, %v677, 0.0
  %v781 = vadd.f32 %v779, %v780
  %v782 = vsel %vm94, %v678, 0.0
  %v783 = vadd.f32 %v781, %v782
  %v784 = vsel %vm94, %v679, 0.0
  %v785 = vadd.f32 %v783, %v784
  %v786 = vsel %vm94, %v680, 0.0
  %v787 = vadd.f32 %v785, %v786
  %v788 = vsel %vm94, %v681, 0.0
  %v789 = vadd.f32 %v787, %v788
  %v790 = vsel %vm94, %v682, 0.0
  %v791 = vadd.f32 %v789, %v790
  %v792 = vsel %vm94, %v683, 0.0
  %v793 = vadd.f32 %v791, %v792
  %v794 = vsel %vm94, %v684, 0.0
  %v795 = vadd.f32 %v793, %v794
  %v796 = vsel %vm94, %v685, 0.0
  %v797 = vadd.f32 %v795, %v796
  %v798 = vsel %vm94, %v686, 0.0
  %v799 = vadd.f32 %v797, %v798
  %v800 = vsel %vm94, %v687, 0.0
  %v801 = vadd.f32 %v799, %v800
  %v802 = vsel %vm94, %v688, 0.0
  %v803 = vadd.f32 %v801, %v802
  %v804 = vsel %vm94, %v689, 0.0
  %v805 = vadd.f32 %v803, %v804
  %v806 = vsel %vm94, %v690, 0.0
  %v807 = vadd.f32 %v805, %v806
  %v808 = vsel %vm94, %v691, 0.0
  %v809 = vadd.f32 %v807, %v808
  %v810 = vsel %vm94, %v692, 0.0
  %v811 = vadd.f32 %v809, %v810
  %v812 = vsel %vm94, %v693, 0.0
  %v813 = vadd.f32 %v811, %v812
  %v814 = vsel %vm94, %v694, 0.0
  %v815 = vadd.f32 %v813, %v814
  %v816 = vsel %vm94, %v695, 0.0
  %v817 = vadd.f32 %v815, %v816
  %v818 = vsel %vm94, %v696, 0.0
  %v819 = vadd.f32 %v817, %v818
  %v820 = vsel %vm94, %v697, 0.0
  %v821 = vadd.f32 %v819, %v820
  %v822 = vsel %vm94, %v698, 0.0
  %v823 = vadd.f32 %v821, %v822
  %v824 = vsel %vm94, %v699, 0.0
  %v825 = vadd.f32 %v823, %v824
  %v826 = vsel %vm94, %v700, 0.0
  %v827 = vadd.f32 %v825, %v826
  %v828 = vsel %vm94, %v701, 0.0
  %v829 = vadd.f32 %v827, %v828
  %v830 = vsel %vm94, %v702, 0.0
  %v831 = vadd.f32 %v829, %v830
  %v832 = vsel %vm94, %v703, 0.0
  %v833 = vadd.f32 %v831, %v832
  %v834 = vsel %vm94, %v704, 0.0
  %v835 = vadd.f32 %v833, %v834
  %v836 = vsel %vm94, %v705, 0.0
  %v837 = vadd.f32 %v835, %v836
  %v838 = vrot.slane %v837, 4
  %v839 = vadd.f32 %v837, %v838
  %v840 = vrot.slane %v839, 2
  %v841 = vadd.f32 %v839, %v840
  %v842 = vrot.slane %v841, 1
  %v843 = vadd.f32 %v841, %v842
  %v846 = vsel %vm471, %v843, %v774
  %v847 = vsel %vm94, %v846, 0
  %849 = vmatprep.subr.mxu0 0.0
  %850 = vmatpush1.msra.mxu0 %v85
  %851 = vmatprep.subr.mxu0 0.0
  %852 = vmatpush1.msra.mxu0 %v86
  %853 = vmatprep.subr.mxu0 0.0
  %854 = vmatpush1.msra.mxu0 %v87
  %855 = vmatprep.subr.mxu0 0.0
  %856 = vmatpush1.msra.mxu0 %v88
  %857 = vmatprep.subr.mxu0 0.0
  %858 = vmatpush1.msra.mxu0 %v89
  %859 = vmatprep.subr.mxu0 0.0
  %860 = vmatpush1.msra.mxu0 %v90
  %861 = vmatprep.subr.mxu0 0.0
  %862 = vmatpush1.msra.mxu0 %v91
  %863 = vmatprep.subr.mxu0 0.0
  %864 = vmatpush1.msra.mxu0 %v92
  %865 = vmatprep.subr.mxu0 0.0
  %866 = vmatpush1.msra.mxu0 0.0
  %867 = vmatprep.subr.mxu0 0.0
  %868 = vmatpush1.msra.mxu0 0.0
  %869 = vmatprep.subr.mxu0 0.0
  %870 = vmatpush1.msra.mxu0 0.0
  %871 = vmatprep.subr.mxu0 0.0
  %872 = vmatpush1.msra.mxu0 0.0
  %873 = vmatprep.subr.mxu0 0.0
  %874 = vmatpush1.msra.mxu0 0.0
  %875 = vmatprep.subr.mxu0 0.0
  %876 = vmatpush1.msra.mxu0 0.0
  %877 = vmatprep.subr.mxu0 0.0
  %878 = vmatpush1.msra.mxu0 0.0
  %879 = vmatprep.subr.mxu0 0.0
  %880 = vmatpush1.msra.mxu0 0.0
  %881 = vmatprep.subr.mxu0 0.0
  %882 = vmatpush1.msra.mxu0 0.0
  %883 = vmatprep.subr.mxu0 0.0
  %884 = vmatpush1.msra.mxu0 0.0
  %885 = vmatprep.subr.mxu0 0.0
  %886 = vmatpush1.msra.mxu0 0.0
  %887 = vmatprep.subr.mxu0 0.0
  %888 = vmatpush1.msra.mxu0 0.0
  %889 = vmatprep.subr.mxu0 0.0
  %890 = vmatpush1.msra.mxu0 0.0
  %891 = vmatprep.subr.mxu0 0.0
  %892 = vmatpush1.msra.mxu0 0.0
  %893 = vmatprep.subr.mxu0 0.0
  %894 = vmatpush1.msra.mxu0 0.0
  %895 = vmatprep.subr.mxu0 0.0
  %896 = vmatpush1.msra.mxu0 0.0
  %897 = vmatprep.subr.mxu0 0.0
  %898 = vmatpush1.msra.mxu0 0.0
  %899 = vmatprep.subr.mxu0 0.0
  %900 = vmatpush1.msra.mxu0 0.0
  %901 = vmatprep.subr.mxu0 0.0
  %902 = vmatpush1.msra.mxu0 0.0
  %903 = vmatprep.subr.mxu0 0.0
  %904 = vmatpush1.msra.mxu0 0.0
  %905 = vmatprep.subr.mxu0 0.0
  %906 = vmatpush1.msra.mxu0 0.0
  %907 = vmatprep.subr.mxu0 0.0
  %908 = vmatpush1.msra.mxu0 0.0
  %909 = vmatprep.subr.mxu0 0.0
  %910 = vmatpush1.msra.mxu0 0.0
  %911 = vmatprep.subr.mxu0 0.0
  %912 = vmatpush1.msra.mxu0 0.0
  %913 = vmatprep.mubr.f32.mxu0 0.0
  %914 = vmatmul.mubr.f32.gmra.mrb[0].mxu0 %v847
  %v915 = vpop.f32.mrb[0].mxu0
  %v916 = vadd.f32 1e-05, %v915
  %v917 = vpop.f32.mrb[0].mxu0
  %918 = vdwg.mxu0
  %v919 = vrsqrt.pop %v916
  %v922 = vunpack.c.l.s4 1966171168
  %v923 = vunpack.c.0.s8 %v922
  %v924 = vlaneseq
  %v925 = vshrl.u32 %v924, 7
  %v926 = vsub.s32 %v923, %v925
  %v927 = vrot.slane %v919, %v926
  %v928 = vcombine.high %v927, %v927
  %v930 = vunpack.c.l.s4 1966171168
  %v931 = vunpack.c.0.s8 %v930
  %v932 = vlaneseq
  %v933 = vshrl.u32 %v932, 7
  %v934 = vsub.s32 %v931, %v933
  %v935 = vrot.slane %v927, %v934
  %v937 = vunpack.c.l.s4 1966171168
  %v938 = vunpack.c.0.s8 %v937
  %v939 = vlaneseq
  %v940 = vshrl.u32 %v939, 7
  %v941 = vsub.s32 %v938, %v940
  %v942 = vrot.slane %v928, %v941
  %v943 = vlaneseq
  %v944 = vshrl.u32 %v943, 7
  %v945 = vsub.s32 0, %v944
  %v946 = vrot.slane %v935, %v945
  %v947 = vlaneseq
  %v948 = vshrl.u32 %v947, 7
  %v949 = vsub.s32 0, %v948
  %v950 = vrot.slane %v942, %v949
  %v953 = vmul.f32 %v578, %v946
  %v954 = vmul.f32 %v579, %v946
  %v955 = vmul.f32 %v580, %v946
  %v956 = vmul.f32 %v581, %v946
  %v957 = vmul.f32 %v582, %v946
  %v958 = vmul.f32 %v583, %v946
  %v959 = vmul.f32 %v584, %v946
  %v960 = vmul.f32 %v585, %v946
  %v961 = vmul.f32 %v586, %v946
  %v962 = vmul.f32 %v587, %v946
  %v963 = vmul.f32 %v588, %v946
  %v964 = vmul.f32 %v589, %v946
  %v965 = vmul.f32 %v590, %v946
  %v966 = vmul.f32 %v591, %v946
  %v967 = vmul.f32 %v592, %v946
  %v968 = vmul.f32 %v593, %v946
  %v969 = vmul.f32 %v594, %v946
  %v970 = vmul.f32 %v595, %v946
  %v971 = vmul.f32 %v596, %v946
  %v972 = vmul.f32 %v597, %v946
  %v973 = vmul.f32 %v598, %v946
  %v974 = vmul.f32 %v599, %v946
  %v975 = vmul.f32 %v600, %v946
  %v976 = vmul.f32 %v601, %v946
  %v977 = vmul.f32 %v602, %v946
  %v978 = vmul.f32 %v603, %v946
  %v979 = vmul.f32 %v604, %v946
  %v980 = vmul.f32 %v605, %v946
  %v981 = vmul.f32 %v606, %v946
  %v982 = vmul.f32 %v607, %v946
  %v983 = vmul.f32 %v608, %v946
  %v984 = vmul.f32 %v609, %v946
  %v985 = vmul.f32 %v610, %v950
  %v986 = vmul.f32 %v611, %v950
  %v987 = vmul.f32 %v612, %v950
  %v988 = vmul.f32 %v613, %v950
  %v989 = vmul.f32 %v614, %v950
  %v990 = vmul.f32 %v615, %v950
  %v991 = vmul.f32 %v616, %v950
  %v992 = vmul.f32 %v617, %v950
  %v993 = vmul.f32 %v618, %v950
  %v994 = vmul.f32 %v619, %v950
  %v995 = vmul.f32 %v620, %v950
  %v996 = vmul.f32 %v621, %v950
  %v997 = vmul.f32 %v622, %v950
  %v998 = vmul.f32 %v623, %v950
  %v999 = vmul.f32 %v624, %v950
  %v1000 = vmul.f32 %v625, %v950
  %v1001 = vmul.f32 %v626, %v950
  %v1002 = vmul.f32 %v627, %v950
  %v1003 = vmul.f32 %v628, %v950
  %v1004 = vmul.f32 %v629, %v950
  %v1005 = vmul.f32 %v630, %v950
  %v1006 = vmul.f32 %v631, %v950
  %v1007 = vmul.f32 %v632, %v950
  %v1008 = vmul.f32 %v633, %v950
  %v1009 = vmul.f32 %v634, %v950
  %v1010 = vmul.f32 %v635, %v950
  %v1011 = vmul.f32 %v636, %v950
  %v1012 = vmul.f32 %v637, %v950
  %v1013 = vmul.f32 %v638, %v950
  %v1014 = vmul.f32 %v639, %v950
  %v1015 = vmul.f32 %v640, %v950
  %v1016 = vmul.f32 %v641, %v950
  %v1017 = vlaneseq
  %v1018 = vshrl.u32 %v1017, 7
  %v1019 = vsub.s32 0, %v1018
  %v1020 = vrot.slane %v325, %v1019
  %v1021 = vmul.f32 %v953, %v1020
  %v1022 = vmul.f32 %v954, %v1020
  %v1023 = vmul.f32 %v955, %v1020
  %v1024 = vmul.f32 %v956, %v1020
  %v1025 = vmul.f32 %v957, %v1020
  %v1026 = vmul.f32 %v958, %v1020
  %v1027 = vmul.f32 %v959, %v1020
  %v1028 = vmul.f32 %v960, %v1020
  %v1029 = vmul.f32 %v961, %v1020
  %v1030 = vmul.f32 %v962, %v1020
  %v1031 = vmul.f32 %v963, %v1020
  %v1032 = vmul.f32 %v964, %v1020
  %v1033 = vmul.f32 %v965, %v1020
  %v1034 = vmul.f32 %v966, %v1020
  %v1035 = vmul.f32 %v967, %v1020
  %v1036 = vmul.f32 %v968, %v1020
  %v1037 = vmul.f32 %v969, %v1020
  %v1038 = vmul.f32 %v970, %v1020
  %v1039 = vmul.f32 %v971, %v1020
  %v1040 = vmul.f32 %v972, %v1020
  %v1041 = vmul.f32 %v973, %v1020
  %v1042 = vmul.f32 %v974, %v1020
  %v1043 = vmul.f32 %v975, %v1020
  %v1044 = vmul.f32 %v976, %v1020
  %v1045 = vmul.f32 %v977, %v1020
  %v1046 = vmul.f32 %v978, %v1020
  %v1047 = vmul.f32 %v979, %v1020
  %v1048 = vmul.f32 %v980, %v1020
  %v1049 = vmul.f32 %v981, %v1020
  %v1050 = vmul.f32 %v982, %v1020
  %v1051 = vmul.f32 %v983, %v1020
  %v1052 = vmul.f32 %v984, %v1020
  %v1053 = vmul.f32 %v985, %v1020
  %v1054 = vmul.f32 %v986, %v1020
  %v1055 = vmul.f32 %v987, %v1020
  %v1056 = vmul.f32 %v988, %v1020
  %v1057 = vmul.f32 %v989, %v1020
  %v1058 = vmul.f32 %v990, %v1020
  %v1059 = vmul.f32 %v991, %v1020
  %v1060 = vmul.f32 %v992, %v1020
  %v1061 = vmul.f32 %v993, %v1020
  %v1062 = vmul.f32 %v994, %v1020
  %v1063 = vmul.f32 %v995, %v1020
  %v1064 = vmul.f32 %v996, %v1020
  %v1065 = vmul.f32 %v997, %v1020
  %v1066 = vmul.f32 %v998, %v1020
  %v1067 = vmul.f32 %v999, %v1020
  %v1068 = vmul.f32 %v1000, %v1020
  %v1069 = vmul.f32 %v1001, %v1020
  %v1070 = vmul.f32 %v1002, %v1020
  %v1071 = vmul.f32 %v1003, %v1020
  %v1072 = vmul.f32 %v1004, %v1020
  %v1073 = vmul.f32 %v1005, %v1020
  %v1074 = vmul.f32 %v1006, %v1020
  %v1075 = vmul.f32 %v1007, %v1020
  %v1076 = vmul.f32 %v1008, %v1020
  %v1077 = vmul.f32 %v1009, %v1020
  %v1078 = vmul.f32 %v1010, %v1020
  %v1079 = vmul.f32 %v1011, %v1020
  %v1080 = vmul.f32 %v1012, %v1020
  %v1081 = vmul.f32 %v1013, %v1020
  %v1082 = vmul.f32 %v1014, %v1020
  %v1083 = vmul.f32 %v1015, %v1020
  %v1084 = vmul.f32 %v1016, %v1020
  %v1085 = vlaneseq
  %v1086 = vshrl.u32 %v1085, 7
  %v1087 = vsub.s32 0, %v1086
  %v1088 = vrot.slane %v326, %v1087
  %v1089 = vadd.f32 %v1021, %v1088
  %v1090 = vadd.f32 %v1022, %v1088
  %v1091 = vadd.f32 %v1023, %v1088
  %v1092 = vadd.f32 %v1024, %v1088
  %v1093 = vadd.f32 %v1025, %v1088
  %v1094 = vadd.f32 %v1026, %v1088
  %v1095 = vadd.f32 %v1027, %v1088
  %v1096 = vadd.f32 %v1028, %v1088
  %v1097 = vadd.f32 %v1029, %v1088
  %v1098 = vadd.f32 %v1030, %v1088
  %v1099 = vadd.f32 %v1031, %v1088
  %v1100 = vadd.f32 %v1032, %v1088
  %v1101 = vadd.f32 %v1033, %v1088
  %v1102 = vadd.f32 %v1034, %v1088
  %v1103 = vadd.f32 %v1035, %v1088
  %v1104 = vadd.f32 %v1036, %v1088
  %v1105 = vadd.f32 %v1037, %v1088
  %v1106 = vadd.f32 %v1038, %v1088
  %v1107 = vadd.f32 %v1039, %v1088
  %v1108 = vadd.f32 %v1040, %v1088
  %v1109 = vadd.f32 %v1041, %v1088
  %v1110 = vadd.f32 %v1042, %v1088
  %v1111 = vadd.f32 %v1043, %v1088
  %v1112 = vadd.f32 %v1044, %v1088
  %v1113 = vadd.f32 %v1045, %v1088
  %v1114 = vadd.f32 %v1046, %v1088
  %v1115 = vadd.f32 %v1047, %v1088
  %v1116 = vadd.f32 %v1048, %v1088
  %v1117 = vadd.f32 %v1049, %v1088
  %v1118 = vadd.f32 %v1050, %v1088
  %v1119 = vadd.f32 %v1051, %v1088
  %v1120 = vadd.f32 %v1052, %v1088
  %v1121 = vadd.f32 %v1053, %v1088
  %v1122 = vadd.f32 %v1054, %v1088
  %v1123 = vadd.f32 %v1055, %v1088
  %v1124 = vadd.f32 %v1056, %v1088
  %v1125 = vadd.f32 %v1057, %v1088
  %v1126 = vadd.f32 %v1058, %v1088
  %v1127 = vadd.f32 %v1059, %v1088
  %v1128 = vadd.f32 %v1060, %v1088
  %v1129 = vadd.f32 %v1061, %v1088
  %v1130 = vadd.f32 %v1062, %v1088
  %v1131 = vadd.f32 %v1063, %v1088
  %v1132 = vadd.f32 %v1064, %v1088
  %v1133 = vadd.f32 %v1065, %v1088
  %v1134 = vadd.f32 %v1066, %v1088
  %v1135 = vadd.f32 %v1067, %v1088
  %v1136 = vadd.f32 %v1068, %v1088
  %v1137 = vadd.f32 %v1069, %v1088
  %v1138 = vadd.f32 %v1070, %v1088
  %v1139 = vadd.f32 %v1071, %v1088
  %v1140 = vadd.f32 %v1072, %v1088
  %v1141 = vadd.f32 %v1073, %v1088
  %v1142 = vadd.f32 %v1074, %v1088
  %v1143 = vadd.f32 %v1075, %v1088
  %v1144 = vadd.f32 %v1076, %v1088
  %v1145 = vadd.f32 %v1077, %v1088
  %v1146 = vadd.f32 %v1078, %v1088
  %v1147 = vadd.f32 %v1079, %v1088
  %v1148 = vadd.f32 %v1080, %v1088
  %v1149 = vadd.f32 %v1081, %v1088
  %v1150 = vadd.f32 %v1082, %v1088
  %v1151 = vadd.f32 %v1083, %v1088
  %v1152 = vadd.f32 %v1084, %v1088
  %v1153 = vmul.f32 %v1089, 0.5
  %v1154 = vmul.f32 %v1090, 0.5
  %v1155 = vmul.f32 %v1091, 0.5
  %v1156 = vmul.f32 %v1092, 0.5
  %v1157 = vmul.f32 %v1093, 0.5
  %v1158 = vmul.f32 %v1094, 0.5
  %v1159 = vmul.f32 %v1095, 0.5
  %v1160 = vmul.f32 %v1096, 0.5
  %v1161 = vmul.f32 %v1097, 0.5
  %v1162 = vmul.f32 %v1098, 0.5
  %v1163 = vmul.f32 %v1099, 0.5
  %v1164 = vmul.f32 %v1100, 0.5
  %v1165 = vmul.f32 %v1101, 0.5
  %v1166 = vmul.f32 %v1102, 0.5
  %v1167 = vmul.f32 %v1103, 0.5
  %v1168 = vmul.f32 %v1104, 0.5
  %v1169 = vmul.f32 %v1105, 0.5
  %v1170 = vmul.f32 %v1106, 0.5
  %v1171 = vmul.f32 %v1107, 0.5
  %v1172 = vmul.f32 %v1108, 0.5
  %v1173 = vmul.f32 %v1109, 0.5
  %v1174 = vmul.f32 %v1110, 0.5
  %v1175 = vmul.f32 %v1111, 0.5
  %v1176 = vmul.f32 %v1112, 0.5
  %v1177 = vmul.f32 %v1113, 0.5
  %v1178 = vmul.f32 %v1114, 0.5
  %v1179 = vmul.f32 %v1115, 0.5
  %v1180 = vmul.f32 %v1116, 0.5
  %v1181 = vmul.f32 %v1117, 0.5
  %v1182 = vmul.f32 %v1118, 0.5
  %v1183 = vmul.f32 %v1119, 0.5
  %v1184 = vmul.f32 %v1120, 0.5
  %v1185 = vmul.f32 %v1121, 0.5
  %v1186 = vmul.f32 %v1122, 0.5
  %v1187 = vmul.f32 %v1123, 0.5
  %v1188 = vmul.f32 %v1124, 0.5
  %v1189 = vmul.f32 %v1125, 0.5
  %v1190 = vmul.f32 %v1126, 0.5
  %v1191 = vmul.f32 %v1127, 0.5
  %v1192 = vmul.f32 %v1128, 0.5
  %v1193 = vmul.f32 %v1129, 0.5
  %v1194 = vmul.f32 %v1130, 0.5
  %v1195 = vmul.f32 %v1131, 0.5
  %v1196 = vmul.f32 %v1132, 0.5
  %v1197 = vmul.f32 %v1133, 0.5
  %v1198 = vmul.f32 %v1134, 0.5
  %v1199 = vmul.f32 %v1135, 0.5
  %v1200 = vmul.f32 %v1136, 0.5
  %v1201 = vmul.f32 %v1137, 0.5
  %v1202 = vmul.f32 %v1138, 0.5
  %v1203 = vmul.f32 %v1139, 0.5
  %v1204 = vmul.f32 %v1140, 0.5
  %v1205 = vmul.f32 %v1141, 0.5
  %v1206 = vmul.f32 %v1142, 0.5
  %v1207 = vmul.f32 %v1143, 0.5
  %v1208 = vmul.f32 %v1144, 0.5
  %v1209 = vmul.f32 %v1145, 0.5
  %v1210 = vmul.f32 %v1146, 0.5
  %v1211 = vmul.f32 %v1147, 0.5
  %v1212 = vmul.f32 %v1148, 0.5
  %v1213 = vmul.f32 %v1149, 0.5
  %v1214 = vmul.f32 %v1150, 0.5
  %v1215 = vmul.f32 %v1151, 0.5
  %v1216 = vmul.f32 %v1152, 0.5
  %v1217 = vtanh.pop %v1153
  %v1218 = vtanh.pop %v1154
  %v1219 = vtanh.pop %v1155
  %v1220 = vtanh.pop %v1156
  %v1221 = vtanh.pop %v1157
  %v1222 = vtanh.pop %v1158
  %v1223 = vtanh.pop %v1159
  %v1224 = vtanh.pop %v1160
  %v1225 = vtanh.pop %v1161
  %v1226 = vtanh.pop %v1162
  %v1227 = vtanh.pop %v1163
  %v1228 = vtanh.pop %v1164
  %v1229 = vtanh.pop %v1165
  %v1230 = vtanh.pop %v1166
  %v1231 = vtanh.pop %v1167
  %v1232 = vtanh.pop %v1168
  %v1233 = vtanh.pop %v1169
  %v1234 = vtanh.pop %v1170
  %v1235 = vtanh.pop %v1171
  %v1236 = vtanh.pop %v1172
  %v1237 = vtanh.pop %v1173
  %v1238 = vtanh.pop %v1174
  %v1239 = vtanh.pop %v1175
  %v1240 = vtanh.pop %v1176
  %v1241 = vtanh.pop %v1177
  %v1242 = vtanh.pop %v1178
  %v1243 = vtanh.pop %v1179
  %v1244 = vtanh.pop %v1180
  %v1245 = vtanh.pop %v1181
  %v1246 = vtanh.pop %v1182
  %v1247 = vtanh.pop %v1183
  %v1248 = vtanh.pop %v1184
  %v1249 = vtanh.pop %v1185
  %v1250 = vtanh.pop %v1186
  %v1251 = vtanh.pop %v1187
  %v1252 = vtanh.pop %v1188
  %v1253 = vtanh.pop %v1189
  %v1254 = vtanh.pop %v1190
  %v1255 = vtanh.pop %v1191
  %v1256 = vtanh.pop %v1192
  %v1257 = vtanh.pop %v1193
  %v1258 = vtanh.pop %v1194
  %v1259 = vtanh.pop %v1195
  %v1260 = vtanh.pop %v1196
  %v1261 = vtanh.pop %v1197
  %v1262 = vtanh.pop %v1198
  %v1263 = vtanh.pop %v1199
  %v1264 = vtanh.pop %v1200
  %v1265 = vtanh.pop %v1201
  %v1266 = vtanh.pop %v1202
  %v1267 = vtanh.pop %v1203
  %v1268 = vtanh.pop %v1204
  %v1269 = vtanh.pop %v1205
  %v1270 = vtanh.pop %v1206
  %v1271 = vtanh.pop %v1207
  %v1272 = vtanh.pop %v1208
  %v1273 = vtanh.pop %v1209
  %v1274 = vtanh.pop %v1210
  %v1275 = vtanh.pop %v1211
  %v1276 = vtanh.pop %v1212
  %v1277 = vtanh.pop %v1213
  %v1278 = vtanh.pop %v1214
  %v1279 = vtanh.pop %v1215
  %v1280 = vtanh.pop %v1216
  %v1281 = vadd.f32 %v1217, 1.0
  %v1282 = vadd.f32 %v1218, 1.0
  %v1283 = vadd.f32 %v1219, 1.0
  %v1284 = vadd.f32 %v1220, 1.0
  %v1285 = vadd.f32 %v1221, 1.0
  %v1286 = vadd.f32 %v1222, 1.0
  %v1287 = vadd.f32 %v1223, 1.0
  %v1288 = vadd.f32 %v1224, 1.0
  %v1289 = vadd.f32 %v1225, 1.0
  %v1290 = vadd.f32 %v1226, 1.0
  %v1291 = vadd.f32 %v1227, 1.0
  %v1292 = vadd.f32 %v1228, 1.0
  %v1293 = vadd.f32 %v1229, 1.0
  %v1294 = vadd.f32 %v1230, 1.0
  %v1295 = vadd.f32 %v1231, 1.0
  %v1296 = vadd.f32 %v1232, 1.0
  %v1297 = vadd.f32 %v1233, 1.0
  %v1298 = vadd.f32 %v1234, 1.0
  %v1299 = vadd.f32 %v1235, 1.0
  %v1300 = vadd.f32 %v1236, 1.0
  %v1301 = vadd.f32 %v1237, 1.0
  %v1302 = vadd.f32 %v1238, 1.0
  %v1303 = vadd.f32 %v1239, 1.0
  %v1304 = vadd.f32 %v1240, 1.0
  %v1305 = vadd.f32 %v1241, 1.0
  %v1306 = vadd.f32 %v1242, 1.0
  %v1307 = vadd.f32 %v1243, 1.0
  %v1308 = vadd.f32 %v1244, 1.0
  %v1309 = vadd.f32 %v1245, 1.0
  %v1310 = vadd.f32 %v1246, 1.0
  %v1311 = vadd.f32 %v1247, 1.0
  %v1312 = vadd.f32 %v1248, 1.0
  %v1313 = vadd.f32 %v1249, 1.0
  %v1314 = vadd.f32 %v1250, 1.0
  %v1315 = vadd.f32 %v1251, 1.0
  %v1316 = vadd.f32 %v1252, 1.0
  %v1317 = vadd.f32 %v1253, 1.0
  %v1318 = vadd.f32 %v1254, 1.0
  %v1319 = vadd.f32 %v1255, 1.0
  %v1320 = vadd.f32 %v1256, 1.0
  %v1321 = vadd.f32 %v1257, 1.0
  %v1322 = vadd.f32 %v1258, 1.0
  %v1323 = vadd.f32 %v1259, 1.0
  %v1324 = vadd.f32 %v1260, 1.0
  %v1325 = vadd.f32 %v1261, 1.0
  %v1326 = vadd.f32 %v1262, 1.0
  %v1327 = vadd.f32 %v1263, 1.0
  %v1328 = vadd.f32 %v1264, 1.0
  %v1329 = vadd.f32 %v1265, 1.0
  %v1330 = vadd.f32 %v1266, 1.0
  %v1331 = vadd.f32 %v1267, 1.0
  %v1332 = vadd.f32 %v1268, 1.0
  %v1333 = vadd.f32 %v1269, 1.0
  %v1334 = vadd.f32 %v1270, 1.0
  %v1335 = vadd.f32 %v1271, 1.0
  %v1336 = vadd.f32 %v1272, 1.0
  %v1337 = vadd.f32 %v1273, 1.0
  %v1338 = vadd.f32 %v1274, 1.0
  %v1339 = vadd.f32 %v1275, 1.0
  %v1340 = vadd.f32 %v1276, 1.0
  %v1341 = vadd.f32 %v1277, 1.0
  %v1342 = vadd.f32 %v1278, 1.0
  %v1343 = vadd.f32 %v1279, 1.0
  %v1344 = vadd.f32 %v1280, 1.0
  %v1345 = vmul.f32 %v1281, 0.5
  %v1346 = vmul.f32 %v1282, 0.5
  %v1347 = vmul.f32 %v1283, 0.5
  %v1348 = vmul.f32 %v1284, 0.5
  %v1349 = vmul.f32 %v1285, 0.5
  %v1350 = vmul.f32 %v1286, 0.5
  %v1351 = vmul.f32 %v1287, 0.5
  %v1352 = vmul.f32 %v1288, 0.5
  %v1353 = vmul.f32 %v1289, 0.5
  %v1354 = vmul.f32 %v1290, 0.5
  %v1355 = vmul.f32 %v1291, 0.5
  %v1356 = vmul.f32 %v1292, 0.5
  %v1357 = vmul.f32 %v1293, 0.5
  %v1358 = vmul.f32 %v1294, 0.5
  %v1359 = vmul.f32 %v1295, 0.5
  %v1360 = vmul.f32 %v1296, 0.5
  %v1361 = vmul.f32 %v1297, 0.5
  %v1362 = vmul.f32 %v1298, 0.5
  %v1363 = vmul.f32 %v1299, 0.5
  %v1364 = vmul.f32 %v1300, 0.5
  %v1365 = vmul.f32 %v1301, 0.5
  %v1366 = vmul.f32 %v1302, 0.5
  %v1367 = vmul.f32 %v1303, 0.5
  %v1368 = vmul.f32 %v1304, 0.5
  %v1369 = vmul.f32 %v1305, 0.5
  %v1370 = vmul.f32 %v1306, 0.5
  %v1371 = vmul.f32 %v1307, 0.5
  %v1372 = vmul.f32 %v1308, 0.5
  %v1373 = vmul.f32 %v1309, 0.5
  %v1374 = vmul.f32 %v1310, 0.5
  %v1375 = vmul.f32 %v1311, 0.5
  %v1376 = vmul.f32 %v1312, 0.5
  %v1377 = vmul.f32 %v1313, 0.5
  %v1378 = vmul.f32 %v1314, 0.5
  %v1379 = vmul.f32 %v1315, 0.5
  %v1380 = vmul.f32 %v1316, 0.5
  %v1381 = vmul.f32 %v1317, 0.5
  %v1382 = vmul.f32 %v1318, 0.5
  %v1383 = vmul.f32 %v1319, 0.5
  %v1384 = vmul.f32 %v1320, 0.5
  %v1385 = vmul.f32 %v1321, 0.5
  %v1386 = vmul.f32 %v1322, 0.5
  %v1387 = vmul.f32 %v1323, 0.5
  %v1388 = vmul.f32 %v1324, 0.5
  %v1389 = vmul.f32 %v1325, 0.5
  %v1390 = vmul.f32 %v1326, 0.5
  %v1391 = vmul.f32 %v1327, 0.5
  %v1392 = vmul.f32 %v1328, 0.5
  %v1393 = vmul.f32 %v1329, 0.5
  %v1394 = vmul.f32 %v1330, 0.5
  %v1395 = vmul.f32 %v1331, 0.5
  %v1396 = vmul.f32 %v1332, 0.5
  %v1397 = vmul.f32 %v1333, 0.5
  %v1398 = vmul.f32 %v1334, 0.5
  %v1399 = vmul.f32 %v1335, 0.5
  %v1400 = vmul.f32 %v1336, 0.5
  %v1401 = vmul.f32 %v1337, 0.5
  %v1402 = vmul.f32 %v1338, 0.5
  %v1403 = vmul.f32 %v1339, 0.5
  %v1404 = vmul.f32 %v1340, 0.5
  %v1405 = vmul.f32 %v1341, 0.5
  %v1406 = vmul.f32 %v1342, 0.5
  %v1407 = vmul.f32 %v1343, 0.5
  %v1408 = vmul.f32 %v1344, 0.5
  %v1409 = vmul.f32 %v1089, %v1345
  %v1410 = vmul.f32 %v1090, %v1346
  %v1411 = vmul.f32 %v1091, %v1347
  %v1412 = vmul.f32 %v1092, %v1348
  %v1413 = vmul.f32 %v1093, %v1349
  %v1414 = vmul.f32 %v1094, %v1350
  %v1415 = vmul.f32 %v1095, %v1351
  %v1416 = vmul.f32 %v1096, %v1352
  %v1417 = vmul.f32 %v1097, %v1353
  %v1418 = vmul.f32 %v1098, %v1354
  %v1419 = vmul.f32 %v1099, %v1355
  %v1420 = vmul.f32 %v1100, %v1356
  %v1421 = vmul.f32 %v1101, %v1357
  %v1422 = vmul.f32 %v1102, %v1358
  %v1423 = vmul.f32 %v1103, %v1359
  %v1424 = vmul.f32 %v1104, %v1360
  %v1425 = vmul.f32 %v1105, %v1361
  %v1426 = vmul.f32 %v1106, %v1362
  %v1427 = vmul.f32 %v1107, %v1363
  %v1428 = vmul.f32 %v1108, %v1364
  %v1429 = vmul.f32 %v1109, %v1365
  %v1430 = vmul.f32 %v1110, %v1366
  %v1431 = vmul.f32 %v1111, %v1367
  %v1432 = vmul.f32 %v1112, %v1368
  %v1433 = vmul.f32 %v1113, %v1369
  %v1434 = vmul.f32 %v1114, %v1370
  %v1435 = vmul.f32 %v1115, %v1371
  %v1436 = vmul.f32 %v1116, %v1372
  %v1437 = vmul.f32 %v1117, %v1373
  %v1438 = vmul.f32 %v1118, %v1374
  %v1439 = vmul.f32 %v1119, %v1375
  %v1440 = vmul.f32 %v1120, %v1376
  %v1441 = vmul.f32 %v1121, %v1377
  %v1442 = vmul.f32 %v1122, %v1378
  %v1443 = vmul.f32 %v1123, %v1379
  %v1444 = vmul.f32 %v1124, %v1380
  %v1445 = vmul.f32 %v1125, %v1381
  %v1446 = vmul.f32 %v1126, %v1382
  %v1447 = vmul.f32 %v1127, %v1383
  %v1448 = vmul.f32 %v1128, %v1384
  %v1449 = vmul.f32 %v1129, %v1385
  %v1450 = vmul.f32 %v1130, %v1386
  %v1451 = vmul.f32 %v1131, %v1387
  %v1452 = vmul.f32 %v1132, %v1388
  %v1453 = vmul.f32 %v1133, %v1389
  %v1454 = vmul.f32 %v1134, %v1390
  %v1455 = vmul.f32 %v1135, %v1391
  %v1456 = vmul.f32 %v1136, %v1392
  %v1457 = vmul.f32 %v1137, %v1393
  %v1458 = vmul.f32 %v1138, %v1394
  %v1459 = vmul.f32 %v1139, %v1395
  %v1460 = vmul.f32 %v1140, %v1396
  %v1461 = vmul.f32 %v1141, %v1397
  %v1462 = vmul.f32 %v1142, %v1398
  %v1463 = vmul.f32 %v1143, %v1399
  %v1464 = vmul.f32 %v1144, %v1400
  %v1465 = vmul.f32 %v1145, %v1401
  %v1466 = vmul.f32 %v1146, %v1402
  %v1467 = vmul.f32 %v1147, %v1403
  %v1468 = vmul.f32 %v1148, %v1404
  %v1469 = vmul.f32 %v1149, %v1405
  %v1470 = vmul.f32 %v1150, %v1406
  %v1471 = vmul.f32 %v1151, %v1407
  %v1472 = vmul.f32 %v1152, %v1408
  %v1473 = vpack.c.bf16 %v1410, %v1409
  %v1474 = vpack.c.bf16 %v1412, %v1411
  %v1475 = vpack.c.bf16 %v1414, %v1413
  %v1476 = vpack.c.bf16 %v1416, %v1415
  %v1477 = vpack.c.bf16 %v1418, %v1417
  %v1478 = vpack.c.bf16 %v1420, %v1419
  %v1479 = vpack.c.bf16 %v1422, %v1421
  %v1480 = vpack.c.bf16 %v1424, %v1423
  %v1481 = vpack.c.bf16 %v1426, %v1425
  %v1482 = vpack.c.bf16 %v1428, %v1427
  %v1483 = vpack.c.bf16 %v1430, %v1429
  %v1484 = vpack.c.bf16 %v1432, %v1431
  %v1485 = vpack.c.bf16 %v1434, %v1433
  %v1486 = vpack.c.bf16 %v1436, %v1435
  %v1487 = vpack.c.bf16 %v1438, %v1437
  %v1488 = vpack.c.bf16 %v1440, %v1439
  %v1489 = vpack.c.bf16 %v1442, %v1441
  %v1490 = vpack.c.bf16 %v1444, %v1443
  %v1491 = vpack.c.bf16 %v1446, %v1445
  %v1492 = vpack.c.bf16 %v1448, %v1447
  %v1493 = vpack.c.bf16 %v1450, %v1449
  %v1494 = vpack.c.bf16 %v1452, %v1451
  %v1495 = vpack.c.bf16 %v1454, %v1453
  %v1496 = vpack.c.bf16 %v1456, %v1455
  %v1497 = vpack.c.bf16 %v1458, %v1457
  %v1498 = vpack.c.bf16 %v1460, %v1459
  %v1499 = vpack.c.bf16 %v1462, %v1461
  %v1500 = vpack.c.bf16 %v1464, %v1463
  %v1501 = vpack.c.bf16 %v1466, %v1465
  %v1502 = vpack.c.bf16 %v1468, %v1467
  %v1503 = vpack.c.bf16 %v1470, %v1469
  %v1504 = vpack.c.bf16 %v1472, %v1471
  %v1506 = vshrl.u32 %v1473, 16
  %v1508 = vrot.slane %v1506, 7
  %v1509 = vshll.u32 %v1473, 16
  %v1511 = vor.u32 %v1508, %v1509
  %v1513 = vshrl.u32 %v1474, 16
  %v1515 = vrot.slane %v1513, 7
  %v1516 = vshll.u32 %v1474, 16
  %v1518 = vor.u32 %v1515, %v1516
  %v1520 = vshrl.u32 %v1475, 16
  %v1522 = vrot.slane %v1520, 7
  %v1523 = vshll.u32 %v1475, 16
  %v1525 = vor.u32 %v1522, %v1523
  %v1527 = vshrl.u32 %v1476, 16
  %v1529 = vrot.slane %v1527, 7
  %v1530 = vshll.u32 %v1476, 16
  %v1532 = vor.u32 %v1529, %v1530
  %v1534 = vshrl.u32 %v1477, 16
  %v1536 = vrot.slane %v1534, 7
  %v1537 = vshll.u32 %v1477, 16
  %v1539 = vor.u32 %v1536, %v1537
  %v1541 = vshrl.u32 %v1478, 16
  %v1543 = vrot.slane %v1541, 7
  %v1544 = vshll.u32 %v1478, 16
  %v1546 = vor.u32 %v1543, %v1544
  %v1548 = vshrl.u32 %v1479, 16
  %v1550 = vrot.slane %v1548, 7
  %v1551 = vshll.u32 %v1479, 16
  %v1553 = vor.u32 %v1550, %v1551
  %v1555 = vshrl.u32 %v1480, 16
  %v1557 = vrot.slane %v1555, 7
  %v1558 = vshll.u32 %v1480, 16
  %v1560 = vor.u32 %v1557, %v1558
  %v1562 = vshrl.u32 %v1481, 16
  %v1564 = vrot.slane %v1562, 7
  %v1565 = vshll.u32 %v1481, 16
  %v1567 = vor.u32 %v1564, %v1565
  %v1569 = vshrl.u32 %v1482, 16
  %v1571 = vrot.slane %v1569, 7
  %v1572 = vshll.u32 %v1482, 16
  %v1574 = vor.u32 %v1571, %v1572
  %v1576 = vshrl.u32 %v1483, 16
  %v1578 = vrot.slane %v1576, 7
  %v1579 = vshll.u32 %v1483, 16
  %v1581 = vor.u32 %v1578, %v1579
  %v1583 = vshrl.u32 %v1484, 16
  %v1585 = vrot.slane %v1583, 7
  %v1586 = vshll.u32 %v1484, 16
  %v1588 = vor.u32 %v1585, %v1586
  %v1590 = vshrl.u32 %v1485, 16
  %v1592 = vrot.slane %v1590, 7
  %v1593 = vshll.u32 %v1485, 16
  %v1595 = vor.u32 %v1592, %v1593
  %v1597 = vshrl.u32 %v1486, 16
  %v1599 = vrot.slane %v1597, 7
  %v1600 = vshll.u32 %v1486, 16
  %v1602 = vor.u32 %v1599, %v1600
  %v1604 = vshrl.u32 %v1487, 16
  %v1606 = vrot.slane %v1604, 7
  %v1607 = vshll.u32 %v1487, 16
  %v1609 = vor.u32 %v1606, %v1607
  %v1611 = vshrl.u32 %v1488, 16
  %v1613 = vrot.slane %v1611, 7
  %v1614 = vshll.u32 %v1488, 16
  %v1616 = vor.u32 %v1613, %v1614
  %v1618 = vshrl.u32 %v1489, 16
  %v1620 = vrot.slane %v1618, 7
  %v1621 = vshll.u32 %v1489, 16
  %v1623 = vor.u32 %v1620, %v1621
  %v1625 = vshrl.u32 %v1490, 16
  %v1627 = vrot.slane %v1625, 7
  %v1628 = vshll.u32 %v1490, 16
  %v1630 = vor.u32 %v1627, %v1628
  %v1632 = vshrl.u32 %v1491, 16
  %v1634 = vrot.slane %v1632, 7
  %v1635 = vshll.u32 %v1491, 16
  %v1637 = vor.u32 %v1634, %v1635
  %v1639 = vshrl.u32 %v1492, 16
  %v1641 = vrot.slane %v1639, 7
  %v1642 = vshll.u32 %v1492, 16
  %v1644 = vor.u32 %v1641, %v1642
  %v1646 = vshrl.u32 %v1493, 16
  %v1648 = vrot.slane %v1646, 7
  %v1649 = vshll.u32 %v1493, 16
  %v1651 = vor.u32 %v1648, %v1649
  %v1653 = vshrl.u32 %v1494, 16
  %v1655 = vrot.slane %v1653, 7
  %v1656 = vshll.u32 %v1494, 16
  %v1658 = vor.u32 %v1655, %v1656
  %v1660 = vshrl.u32 %v1495, 16
  %v1662 = vrot.slane %v1660, 7
  %v1663 = vshll.u32 %v1495, 16
  %v1665 = vor.u32 %v1662, %v1663
  %v1667 = vshrl.u32 %v1496, 16
  %v1669 = vrot.slane %v1667, 7
  %v1670 = vshll.u32 %v1496, 16
  %v1672 = vor.u32 %v1669, %v1670
  %v1674 = vshrl.u32 %v1497, 16
  %v1676 = vrot.slane %v1674, 7
  %v1677 = vshll.u32 %v1497, 16
  %v1679 = vor.u32 %v1676, %v1677
  %v1681 = vshrl.u32 %v1498, 16
  %v1683 = vrot.slane %v1681, 7
  %v1684 = vshll.u32 %v1498, 16
  %v1686 = vor.u32 %v1683, %v1684
  %v1688 = vshrl.u32 %v1499, 16
  %v1690 = vrot.slane %v1688, 7
  %v1691 = vshll.u32 %v1499, 16
  %v1693 = vor.u32 %v1690, %v1691
  %v1695 = vshrl.u32 %v1500, 16
  %v1697 = vrot.slane %v1695, 7
  %v1698 = vshll.u32 %v1500, 16
  %v1700 = vor.u32 %v1697, %v1698
  %v1702 = vshrl.u32 %v1501, 16
  %v1704 = vrot.slane %v1702, 7
  %v1705 = vshll.u32 %v1501, 16
  %v1707 = vor.u32 %v1704, %v1705
  %v1709 = vshrl.u32 %v1502, 16
  %v1711 = vrot.slane %v1709, 7
  %v1712 = vshll.u32 %v1502, 16
  %v1714 = vor.u32 %v1711, %v1712
  %v1716 = vshrl.u32 %v1503, 16
  %v1718 = vrot.slane %v1716, 7
  %v1719 = vshll.u32 %v1503, 16
  %v1721 = vor.u32 %v1718, %v1719
  %v1723 = vshrl.u32 %v1504, 16
  %v1725 = vrot.slane %v1723, 7
  %v1726 = vshll.u32 %v1504, 16
  %v1728 = vor.u32 %v1725, %v1726
  %s1761 = scalar_lea.vmem [#allocation2], 16
  %vm1762 = vcmask 523264
  %vm1763 = vsmask.f32 7938
  %vm1764 = vmand %vm1762, %vm1763
  %v1765 = vld [vmem:[%s1761] sm:$0xff]
  %v1766 = vsel %vm1764, %v1511, %v1765
  %1767 = vst [vmem:[%s1761] sm:$0xff] %v1766
  %v1768 = vld [vmem:[%s1761 + $0x10] sm:$0xff]
  %v1769 = vsel %vm1764, %v1518, %v1768
  %1770 = vst [vmem:[%s1761 + $0x10] sm:$0xff] %v1769
  %v1771 = vld [vmem:[%s1761 + $0x20] sm:$0xff]
  %v1772 = vsel %vm1764, %v1525, %v1771
  %1773 = vst [vmem:[%s1761 + $0x20] sm:$0xff] %v1772
  %v1774 = vld [vmem:[%s1761 + $0x30] sm:$0xff]
  %v1775 = vsel %vm1764, %v1532, %v1774
  %1776 = vst [vmem:[%s1761 + $0x30] sm:$0xff] %v1775
  %v1777 = vld [vmem:[%s1761 + $0x40] sm:$0xff]
  %v1778 = vsel %vm1764, %v1539, %v1777
  %1779 = vst [vmem:[%s1761 + $0x40] sm:$0xff] %v1778
  %v1780 = vld [vmem:[%s1761 + $0x50] sm:$0xff]
  %v1781 = vsel %vm1764, %v1546, %v1780
  %1782 = vst [vmem:[%s1761 + $0x50] sm:$0xff] %v1781
  %v1783 = vld [vmem:[%s1761 + $0x60] sm:$0xff]
  %v1784 = vsel %vm1764, %v1553, %v1783
  %1785 = vst [vmem:[%s1761 + $0x60] sm:$0xff] %v1784
  %v1786 = vld [vmem:[%s1761 + $0x70] sm:$0xff]
  %v1787 = vsel %vm1764, %v1560, %v1786
  %1788 = vst [vmem:[%s1761 + $0x70] sm:$0xff] %v1787
  %v1789 = vld [vmem:[%s1761 + $0x80] sm:$0xff]
  %v1790 = vsel %vm1764, %v1567, %v1789
  %1791 = vst [vmem:[%s1761 + $0x80] sm:$0xff] %v1790
  %v1792 = vld [vmem:[%s1761 + $0x90] sm:$0xff]
  %v1793 = vsel %vm1764, %v1574, %v1792
  %1794 = vst [vmem:[%s1761 + $0x90] sm:$0xff] %v1793
  %v1795 = vld [vmem:[%s1761 + $0xa0] sm:$0xff]
  %v1796 = vsel %vm1764, %v1581, %v1795
  %1797 = vst [vmem:[%s1761 + $0xa0] sm:$0xff] %v1796
  %v1798 = vld [vmem:[%s1761 + $0xb0] sm:$0xff]
  %v1799 = vsel %vm1764, %v1588, %v1798
  %1800 = vst [vmem:[%s1761 + $0xb0] sm:$0xff] %v1799
  %v1801 = vld [vmem:[%s1761 + $0xc0] sm:$0xff]
  %v1802 = vsel %vm1764, %v1595, %v1801
  %1803 = vst [vmem:[%s1761 + $0xc0] sm:$0xff] %v1802
  %v1804 = vld [vmem:[%s1761 + $0xd0] sm:$0xff]
  %v1805 = vsel %vm1764, %v1602, %v1804
  %1806 = vst [vmem:[%s1761 + $0xd0] sm:$0xff] %v1805
  %v1807 = vld [vmem:[%s1761 + $0xe0] sm:$0xff]
  %v1808 = vsel %vm1764, %v1609, %v1807
  %1809 = vst [vmem:[%s1761 + $0xe0] sm:$0xff] %v1808
  %v1810 = vld [vmem:[%s1761 + $0xf0] sm:$0xff]
  %v1811 = vsel %vm1764, %v1616, %v1810
  %1812 = vst [vmem:[%s1761 + $0xf0] sm:$0xff] %v1811
  %v1813 = vld [vmem:[%s1761 + $0x120] sm:$0xff]
  %v1814 = vsel %vm1764, %v1623, %v1813
  %1815 = vst [vmem:[%s1761 + $0x120] sm:$0xff] %v1814
  %v1816 = vld [vmem:[%s1761 + $0x130] sm:$0xff]
  %v1817 = vsel %vm1764, %v1630, %v1816
  %1818 = vst [vmem:[%s1761 + $0x130] sm:$0xff] %v1817
  %v1819 = vld [vmem:[%s1761 + $0x140] sm:$0xff]
  %v1820 = vsel %vm1764, %v1637, %v1819
  %1821 = vst [vmem:[%s1761 + $0x140] sm:$0xff] %v1820
  %v1822 = vld [vmem:[%s1761 + $0x150] sm:$0xff]
  %v1823 = vsel %vm1764, %v1644, %v1822
  %1824 = vst [vmem:[%s1761 + $0x150] sm:$0xff] %v1823
  %v1825 = vld [vmem:[%s1761 + $0x160] sm:$0xff]
  %v1826 = vsel %vm1764, %v1651, %v1825
  %1827 = vst [vmem:[%s1761 + $0x160] sm:$0xff] %v1826
  %v1828 = vld [vmem:[%s1761 + $0x170] sm:$0xff]
  %v1829 = vsel %vm1764, %v1658, %v1828
  %1830 = vst [vmem:[%s1761 + $0x170] sm:$0xff] %v1829
  %v1831 = vld [vmem:[%s1761 + $0x180] sm:$0xff]
  %v1832 = vsel %vm1764, %v1665, %v1831
  %1833 = vst [vmem:[%s1761 + $0x180] sm:$0xff] %v1832
  %v1834 = vld [vmem:[%s1761 + $0x190] sm:$0xff]
  %v1835 = vsel %vm1764, %v1672, %v1834
  %1836 = vst [vmem:[%s1761 + $0x190] sm:$0xff] %v1835
  %v1837 = vld [vmem:[%s1761 + $0x1a0] sm:$0xff]
  %v1838 = vsel %vm1764, %v1679, %v1837
  %1839 = vst [vmem:[%s1761 + $0x1a0] sm:$0xff] %v1838
  %v1840 = vld [vmem:[%s1761 + $0x1b0] sm:$0xff]
  %v1841 = vsel %vm1764, %v1686, %v1840
  %1842 = vst [vmem:[%s1761 + $0x1b0] sm:$0xff] %v1841
  %v1843 = vld [vmem:[%s1761 + $0x1c0] sm:$0xff]
  %v1844 = vsel %vm1764, %v1693, %v1843
  %1845 = vst [vmem:[%s1761 + $0x1c0] sm:$0xff] %v1844
  %v1846 = vld [vmem:[%s1761 + $0x1d0] sm:$0xff]
  %v1847 = vsel %vm1764, %v1700, %v1846
  %1848 = vst [vmem:[%s1761 + $0x1d0] sm:$0xff] %v1847
  %v1849 = vld [vmem:[%s1761 + $0x1e0] sm:$0xff]
  %v1850 = vsel %vm1764, %v1707, %v1849
  %1851 = vst [vmem:[%s1761 + $0x1e0] sm:$0xff] %v1850
  %v1852 = vld [vmem:[%s1761 + $0x1f0] sm:$0xff]
  %v1853 = vsel %vm1764, %v1714, %v1852
  %1854 = vst [vmem:[%s1761 + $0x1f0] sm:$0xff] %v1853
  %v1855 = vld [vmem:[%s1761 + $0x200] sm:$0xff]
  %v1856 = vsel %vm1764, %v1721, %v1855
  %1857 = vst [vmem:[%s1761 + $0x200] sm:$0xff] %v1856
  %v1858 = vld [vmem:[%s1761 + $0x210] sm:$0xff]
  %v1859 = vsel %vm1764, %v1728, %v1858
  %1860 = vst [vmem:[%s1761 + $0x210] sm:$0xff] %v1859
  %1893 = vrot.lane.b32.xlu0 %v1473, 64
  %v1894 = vpop.permute.xlu0 %1893
  %1895 = vrot.lane.b32.xlu0 %v1474, 64
  %v1896 = vpop.permute.xlu0 %1895
  %1897 = vrot.lane.b32.xlu0 %v1475, 64
  %v1898 = vpop.permute.xlu0 %1897
  %1899 = vrot.lane.b32.xlu0 %v1476, 64
  %v1900 = vpop.permute.xlu0 %1899
  %1901 = vrot.lane.b32.xlu0 %v1477, 64
  %v1902 = vpop.permute.xlu0 %1901
  %1903 = vrot.lane.b32.xlu0 %v1478, 64
  %v1904 = vpop.permute.xlu0 %1903
  %1905 = vrot.lane.b32.xlu0 %v1479, 64
  %v1906 = vpop.permute.xlu0 %1905
  %1907 = vrot.lane.b32.xlu0 %v1480, 64
  %v1908 = vpop.permute.xlu0 %1907
  %1909 = vrot.lane.b32.xlu0 %v1481, 64
  %v1910 = vpop.permute.xlu0 %1909
  %1911 = vrot.lane.b32.xlu0 %v1482, 64
  %v1912 = vpop.permute.xlu0 %1911
  %1913 = vrot.lane.b32.xlu0 %v1483, 64
  %v1914 = vpop.permute.xlu0 %1913
  %1915 = vrot.lane.b32.xlu0 %v1484, 64
  %v1916 = vpop.permute.xlu0 %1915
  %1917 = vrot.lane.b32.xlu0 %v1485, 64
  %v1918 = vpop.permute.xlu0 %1917
  %1919 = vrot.lane.b32.xlu0 %v1486, 64
  %v1920 = vpop.permute.xlu0 %1919
  %1921 = vrot.lane.b32.xlu0 %v1487, 64
  %v1922 = vpop.permute.xlu0 %1921
  %1923 = vrot.lane.b32.xlu0 %v1488, 64
  %v1924 = vpop.permute.xlu0 %1923
  %1925 = vrot.lane.b32.xlu0 %v1489, 64
  %v1926 = vpop.permute.xlu0 %1925
  %1927 = vrot.lane.b32.xlu0 %v1490, 64
  %v1928 = vpop.permute.xlu0 %1927
  %1929 = vrot.lane.b32.xlu0 %v1491, 64
  %v1930 = vpop.permute.xlu0 %1929
  %1931 = vrot.lane.b32.xlu0 %v1492, 64
  %v1932 = vpop.permute.xlu0 %1931
  %1933 = vrot.lane.b32.xlu0 %v1493, 64
  %v1934 = vpop.permute.xlu0 %1933
  %1935 = vrot.lane.b32.xlu0 %v1494, 64
  %v1936 = vpop.permute.xlu0 %1935
  %1937 = vrot.lane.b32.xlu0 %v1495, 64
  %v1938 = vpop.permute.xlu0 %1937
  %1939 = vrot.lane.b32.xlu0 %v1496, 64
  %v1940 = vpop.permute.xlu0 %1939
  %1941 = vrot.lane.b32.xlu0 %v1497, 64
  %v1942 = vpop.permute.xlu0 %1941
  %1943 = vrot.lane.b32.xlu0 %v1498, 64
  %v1944 = vpop.permute.xlu0 %1943
  %1945 = vrot.lane.b32.xlu0 %v1499, 64
  %v1946 = vpop.permute.xlu0 %1945
  %1947 = vrot.lane.b32.xlu0 %v1500, 64
  %v1948 = vpop.permute.xlu0 %1947
  %1949 = vrot.lane.b32.xlu0 %v1501, 64
  %v1950 = vpop.permute.xlu0 %1949
  %1951 = vrot.lane.b32.xlu0 %v1502, 64
  %v1952 = vpop.permute.xlu0 %1951
  %1953 = vrot.lane.b32.xlu0 %v1503, 64
  %v1954 = vpop.permute.xlu0 %1953
  %1955 = vrot.lane.b32.xlu0 %v1504, 64
  %v1956 = vpop.permute.xlu0 %1955
  %vm1989 = vcmask 1048064
  %1990 = vst.msk [vmem:[%s1761] sm:$0xff] %vm1989, %v1894
  %1991 = vst.msk [vmem:[%s1761 + $0x10] sm:$0xff] %vm1989, %v1896
  %1992 = vst.msk [vmem:[%s1761 + $0x20] sm:$0xff] %vm1989, %v1898
  %1993 = vst.msk [vmem:[%s1761 + $0x30] sm:$0xff] %vm1989, %v1900
  %1994 = vst.msk [vmem:[%s1761 + $0x40] sm:$0xff] %vm1989, %v1902
  %1995 = vst.msk [vmem:[%s1761 + $0x50] sm:$0xff] %vm1989, %v1904
  %1996 = vst.msk [vmem:[%s1761 + $0x60] sm:$0xff] %vm1989, %v1906
  %1997 = vst.msk [vmem:[%s1761 + $0x70] sm:$0xff] %vm1989, %v1908
  %1998 = vst.msk [vmem:[%s1761 + $0x80] sm:$0xff] %vm1989, %v1910
  %1999 = vst.msk [vmem:[%s1761 + $0x90] sm:$0xff] %vm1989, %v1912
  %2000 = vst.msk [vmem:[%s1761 + $0xa0] sm:$0xff] %vm1989, %v1914
  %2001 = vst.msk [vmem:[%s1761 + $0xb0] sm:$0xff] %vm1989, %v1916
  %2002 = vst.msk [vmem:[%s1761 + $0xc0] sm:$0xff] %vm1989, %v1918
  %2003 = vst.msk [vmem:[%s1761 + $0xd0] sm:$0xff] %vm1989, %v1920
  %2004 = vst.msk [vmem:[%s1761 + $0xe0] sm:$0xff] %vm1989, %v1922
  %2005 = vst.msk [vmem:[%s1761 + $0xf0] sm:$0xff] %vm1989, %v1924
  %2006 = vst.msk [vmem:[%s1761 + $0x120] sm:$0xff] %vm1989, %v1926
  %2007 = vst.msk [vmem:[%s1761 + $0x130] sm:$0xff] %vm1989, %v1928
  %2008 = vst.msk [vmem:[%s1761 + $0x140] sm:$0xff] %vm1989, %v1930
  %2009 = vst.msk [vmem:[%s1761 + $0x150] sm:$0xff] %vm1989, %v1932
  %2010 = vst.msk [vmem:[%s1761 + $0x160] sm:$0xff] %vm1989, %v1934
  %2011 = vst.msk [vmem:[%s1761 + $0x170] sm:$0xff] %vm1989, %v1936
  %2012 = vst.msk [vmem:[%s1761 + $0x180] sm:$0xff] %vm1989, %v1938
  %2013 = vst.msk [vmem:[%s1761 + $0x190] sm:$0xff] %vm1989, %v1940
  %2014 = vst.msk [vmem:[%s1761 + $0x1a0] sm:$0xff] %vm1989, %v1942
  %2015 = vst.msk [vmem:[%s1761 + $0x1b0] sm:$0xff] %vm1989, %v1944
  %2016 = vst.msk [vmem:[%s1761 + $0x1c0] sm:$0xff] %vm1989, %v1946
  %2017 = vst.msk [vmem:[%s1761 + $0x1d0] sm:$0xff] %vm1989, %v1948
  %2018 = vst.msk [vmem:[%s1761 + $0x1e0] sm:$0xff] %vm1989, %v1950
  %2019 = vst.msk [vmem:[%s1761 + $0x1f0] sm:$0xff] %vm1989, %v1952
  %2020 = vst.msk [vmem:[%s1761 + $0x200] sm:$0xff] %vm1989, %v1954
  %2021 = vst.msk [vmem:[%s1761 + $0x210] sm:$0xff] %vm1989, %v1956
  %v2022 = vrot.slane %v1509, 1
  %v2023 = vor.u32 %v1506, %v2022
  %v2024 = vrot.slane %v1516, 1
  %v2025 = vor.u32 %v1513, %v2024
  %v2026 = vrot.slane %v1523, 1
  %v2027 = vor.u32 %v1520, %v2026
  %v2028 = vrot.slane %v1530, 1
  %v2029 = vor.u32 %v1527, %v2028
  %v2030 = vrot.slane %v1537, 1
  %v2031 = vor.u32 %v1534, %v2030
  %v2032 = vrot.slane %v1544, 1
  %v2033 = vor.u32 %v1541, %v2032
  %v2034 = vrot.slane %v1551, 1
  %v2035 = vor.u32 %v1548, %v2034
  %v2036 = vrot.slane %v1558, 1
  %v2037 = vor.u32 %v1555, %v2036
  %v2038 = vrot.slane %v1565, 1
  %v2039 = vor.u32 %v1562, %v2038
  %v2040 = vrot.slane %v1572, 1
  %v2041 = vor.u32 %v1569, %v2040
  %v2042 = vrot.slane %v1579, 1
  %v2043 = vor.u32 %v1576, %v2042
  %v2044 = vrot.slane %v1586, 1
  %v2045 = vor.u32 %v1583, %v2044
  %v2046 = vrot.slane %v1593, 1
  %v2047 = vor.u32 %v1590, %v2046
  %v2048 = vrot.slane %v1600, 1
  %v2049 = vor.u32 %v1597, %v2048
  %v2050 = vrot.slane %v1607, 1
  %v2051 = vor.u32 %v1604, %v2050
  %v2052 = vrot.slane %v1614, 1
  %v2053 = vor.u32 %v1611, %v2052
  %v2054 = vrot.slane %v1621, 1
  %v2055 = vor.u32 %v1618, %v2054
  %v2056 = vrot.slane %v1628, 1
  %v2057 = vor.u32 %v1625, %v2056
  %v2058 = vrot.slane %v1635, 1
  %v2059 = vor.u32 %v1632, %v2058
  %v2060 = vrot.slane %v1642, 1
  %v2061 = vor.u32 %v1639, %v2060
  %v2062 = vrot.slane %v1649, 1
  %v2063 = vor.u32 %v1646, %v2062
  %v2064 = vrot.slane %v1656, 1
  %v2065 = vor.u32 %v1653, %v2064
  %v2066 = vrot.slane %v1663, 1
  %v2067 = vor.u32 %v1660, %v2066
  %v2068 = vrot.slane %v1670, 1
  %v2069 = vor.u32 %v1667, %v2068
  %v2070 = vrot.slane %v1677, 1
  %v2071 = vor.u32 %v1674, %v2070
  %v2072 = vrot.slane %v1684, 1
  %v2073 = vor.u32 %v1681, %v2072
  %v2074 = vrot.slane %v1691, 1
  %v2075 = vor.u32 %v1688, %v2074
  %v2076 = vrot.slane %v1698, 1
  %v2077 = vor.u32 %v1695, %v2076
  %v2078 = vrot.slane %v1705, 1
  %v2079 = vor.u32 %v1702, %v2078
  %v2080 = vrot.slane %v1712, 1
  %v2081 = vor.u32 %v1709, %v2080
  %v2082 = vrot.slane %v1719, 1
  %v2083 = vor.u32 %v1716, %v2082
  %v2084 = vrot.slane %v1726, 1
  %v2085 = vor.u32 %v1723, %v2084
  %vm2118 = vsmask.f32 7424
  %vm2119 = vmand %vm1762, %vm2118
  %v2120 = vld [vmem:[%s1761 + $0x8] sm:$0xff]
  %v2121 = vsel %vm2119, %v2023, %v2120
  %2122 = vst [vmem:[%s1761 + $0x8] sm:$0xff] %v2121
  %v2123 = vld [vmem:[%s1761 + $0x18] sm:$0xff]
  %v2124 = vsel %vm2119, %v2025, %v2123
  %2125 = vst [vmem:[%s1761 + $0x18] sm:$0xff] %v2124
  %v2126 = vld [vmem:[%s1761 + $0x28] sm:$0xff]
  %v2127 = vsel %vm2119, %v2027, %v2126
  %2128 = vst [vmem:[%s1761 + $0x28] sm:$0xff] %v2127
  %v2129 = vld [vmem:[%s1761 + $0x38] sm:$0xff]
  %v2130 = vsel %vm2119, %v2029, %v2129
  %2131 = vst [vmem:[%s1761 + $0x38] sm:$0xff] %v2130
  %v2132 = vld [vmem:[%s1761 + $0x48] sm:$0xff]
  %v2133 = vsel %vm2119, %v2031, %v2132
  %2134 = vst [vmem:[%s1761 + $0x48] sm:$0xff] %v2133
  %v2135 = vld [vmem:[%s1761 + $0x58] sm:$0xff]
  %v2136 = vsel %vm2119, %v2033, %v2135
  %2137 = vst [vmem:[%s1761 + $0x58] sm:$0xff] %v2136
  %v2138 = vld [vmem:[%s1761 + $0x68] sm:$0xff]
  %v2139 = vsel %vm2119, %v2035, %v2138
  %2140 = vst [vmem:[%s1761 + $0x68] sm:$0xff] %v2139
  %v2141 = vld [vmem:[%s1761 + $0x78] sm:$0xff]
  %v2142 = vsel %vm2119, %v2037, %v2141
  %2143 = vst [vmem:[%s1761 + $0x78] sm:$0xff] %v2142
  %v2144 = vld [vmem:[%s1761 + $0x88] sm:$0xff]
  %v2145 = vsel %vm2119, %v2039, %v2144
  %2146 = vst [vmem:[%s1761 + $0x88] sm:$0xff] %v2145
  %v2147 = vld [vmem:[%s1761 + $0x98] sm:$0xff]
  %v2148 = vsel %vm2119, %v2041, %v2147
  %2149 = vst [vmem:[%s1761 + $0x98] sm:$0xff] %v2148
  %v2150 = vld [vmem:[%s1761 + $0xa8] sm:$0xff]
  %v2151 = vsel %vm2119, %v2043, %v2150
  %2152 = vst [vmem:[%s1761 + $0xa8] sm:$0xff] %v2151
  %v2153 = vld [vmem:[%s1761 + $0xb8] sm:$0xff]
  %v2154 = vsel %vm2119, %v2045, %v2153
  %2155 = vst [vmem:[%s1761 + $0xb8] sm:$0xff] %v2154
  %v2156 = vld [vmem:[%s1761 + $0xc8] sm:$0xff]
  %v2157 = vsel %vm2119, %v2047, %v2156
  %2158 = vst [vmem:[%s1761 + $0xc8] sm:$0xff] %v2157
  %v2159 = vld [vmem:[%s1761 + $0xd8] sm:$0xff]
  %v2160 = vsel %vm2119, %v2049, %v2159
  %2161 = vst [vmem:[%s1761 + $0xd8] sm:$0xff] %v2160
  %v2162 = vld [vmem:[%s1761 + $0xe8] sm:$0xff]
  %v2163 = vsel %vm2119, %v2051, %v2162
  %2164 = vst [vmem:[%s1761 + $0xe8] sm:$0xff] %v2163
  %v2165 = vld [vmem:[%s1761 + $0xf8] sm:$0xff]
  %v2166 = vsel %vm2119, %v2053, %v2165
  %2167 = vst [vmem:[%s1761 + $0xf8] sm:$0xff] %v2166
  %v2168 = vld [vmem:[%s1761 + $0x128] sm:$0xff]
  %v2169 = vsel %vm2119, %v2055, %v2168
  %2170 = vst [vmem:[%s1761 + $0x128] sm:$0xff] %v2169
  %v2171 = vld [vmem:[%s1761 + $0x138] sm:$0xff]
  %v2172 = vsel %vm2119, %v2057, %v2171
  %2173 = vst [vmem:[%s1761 + $0x138] sm:$0xff] %v2172
  %v2174 = vld [vmem:[%s1761 + $0x148] sm:$0xff]
  %v2175 = vsel %vm2119, %v2059, %v2174
  %2176 = vst [vmem:[%s1761 + $0x148] sm:$0xff] %v2175
  %v2177 = vld [vmem:[%s1761 + $0x158] sm:$0xff]
  %v2178 = vsel %vm2119, %v2061, %v2177
  %2179 = vst [vmem:[%s1761 + $0x158] sm:$0xff] %v2178
  %v2180 = vld [vmem:[%s1761 + $0x168] sm:$0xff]
  %v2181 = vsel %vm2119, %v2063, %v2180
  %2182 = vst [vmem:[%s1761 + $0x168] sm:$0xff] %v2181
  %v2183 = vld [vmem:[%s1761 + $0x178] sm:$0xff]
  %v2184 = vsel %vm2119, %v2065, %v2183
  %2185 = vst [vmem:[%s1761 + $0x178] sm:$0xff] %v2184
  %v2186 = vld [vmem:[%s1761 + $0x188] sm:$0xff]
  %v2187 = vsel %vm2119, %v2067, %v2186
  %2188 = vst [vmem:[%s1761 + $0x188] sm:$0xff] %v2187
  %v2189 = vld [vmem:[%s1761 + $0x198] sm:$0xff]
  %v2190 = vsel %vm2119, %v2069, %v2189
  %2191 = vst [vmem:[%s1761 + $0x198] sm:$0xff] %v2190
  %v2192 = vld [vmem:[%s1761 + $0x1a8] sm:$0xff]
  %v2193 = vsel %vm2119, %v2071, %v2192
  %2194 = vst [vmem:[%s1761 + $0x1a8] sm:$0xff] %v2193
  %v2195 = vld [vmem:[%s1761 + $0x1b8] sm:$0xff]
  %v2196 = vsel %vm2119, %v2073, %v2195
  %2197 = vst [vmem:[%s1761 + $0x1b8] sm:$0xff] %v2196
  %v2198 = vld [vmem:[%s1761 + $0x1c8] sm:$0xff]
  %v2199 = vsel %vm2119, %v2075, %v2198
  %2200 = vst [vmem:[%s1761 + $0x1c8] sm:$0xff] %v2199
  %v2201 = vld [vmem:[%s1761 + $0x1d8] sm:$0xff]
  %v2202 = vsel %vm2119, %v2077, %v2201
  %2203 = vst [vmem:[%s1761 + $0x1d8] sm:$0xff] %v2202
  %v2204 = vld [vmem:[%s1761 + $0x1e8] sm:$0xff]
  %v2205 = vsel %vm2119, %v2079, %v2204
  %2206 = vst [vmem:[%s1761 + $0x1e8] sm:$0xff] %v2205
  %v2207 = vld [vmem:[%s1761 + $0x1f8] sm:$0xff]
  %v2208 = vsel %vm2119, %v2081, %v2207
  %2209 = vst [vmem:[%s1761 + $0x1f8] sm:$0xff] %v2208
  %v2210 = vld [vmem:[%s1761 + $0x208] sm:$0xff]
  %v2211 = vsel %vm2119, %v2083, %v2210
  %2212 = vst [vmem:[%s1761 + $0x208] sm:$0xff] %v2211
  %v2213 = vld [vmem:[%s1761 + $0x218] sm:$0xff]
  %v2214 = vsel %vm2119, %v2085, %v2213
  %2215 = vst [vmem:[%s1761 + $0x218] sm:$0xff] %v2214
  %v2216 = vld [vmem:[#allocation2] sm:$0xff]
  %v2217 = vld [vmem:[#allocation2 + $0x8] sm:$0xff]
  %v2218 = vld [vmem:[#allocation2 + $0x10] sm:$0xff]
  %v2219 = vld [vmem:[#allocation2 + $0x18] sm:$0xff]
  %v2220 = vld [vmem:[#allocation2 + $0x20] sm:$0xff]
  %v2221 = vld [vmem:[#allocation2 + $0x28] sm:$0xff]
  %v2222 = vld [vmem:[#allocation2 + $0x30] sm:$0xff]
  %v2223 = vld [vmem:[#allocation2 + $0x38] sm:$0xff]
  %v2224 = vld [vmem:[#allocation2 + $0x40] sm:$0xff]
  %v2225 = vld [vmem:[#allocation2 + $0x48] sm:$0xff]
  %v2226 = vld [vmem:[#allocation2 + $0x50] sm:$0xff]
  %v2227 = vld [vmem:[#allocation2 + $0x58] sm:$0xff]
  %v2228 = vld [vmem:[#allocation2 + $0x60] sm:$0xff]
  %v2229 = vld [vmem:[#allocation2 + $0x68] sm:$0xff]
  %v2230 = vld [vmem:[#allocation2 + $0x70] sm:$0xff]
  %v2231 = vld [vmem:[#allocation2 + $0x78] sm:$0xff]
  %v2232 = vld [vmem:[#allocation2 + $0x80] sm:$0xff]
  %v2233 = vld [vmem:[#allocation2 + $0x88] sm:$0xff]
  %v2234 = vld [vmem:[#allocation2 + $0x90] sm:$0xff]
  %v2235 = vld [vmem:[#allocation2 + $0x98] sm:$0xff]
  %v2236 = vld [vmem:[#allocation2 + $0xa0] sm:$0xff]
  %v2237 = vld [vmem:[#allocation2 + $0xa8] sm:$0xff]
  %v2238 = vld [vmem:[#allocation2 + $0xb0] sm:$0xff]
  %v2239 = vld [vmem:[#allocation2 + $0xb8] sm:$0xff]
  %v2240 = vld [vmem:[#allocation2 + $0xc0] sm:$0xff]
  %v2241 = vld [vmem:[#allocation2 + $0xc8] sm:$0xff]
  %v2242 = vld [vmem:[#allocation2 + $0xd0] sm:$0xff]
  %v2243 = vld [vmem:[#allocation2 + $0xd8] sm:$0xff]
  %v2244 = vld [vmem:[#allocation2 + $0xe0] sm:$0xff]
  %v2245 = vld [vmem:[#allocation2 + $0xe8] sm:$0xff]
  %v2246 = vld [vmem:[#allocation2 + $0xf0] sm:$0xff]
  %v2247 = vld [vmem:[#allocation2 + $0xf8] sm:$0xff]
  %v2248 = vld [vmem:[#allocation2 + $0x120] sm:$0xff]
  %v2249 = vld [vmem:[#allocation2 + $0x128] sm:$0xff]
  %v2250 = vld [vmem:[#allocation2 + $0x130] sm:$0xff]
  %v2251 = vld [vmem:[#allocation2 + $0x138] sm:$0xff]
  %v2252 = vld [vmem:[#allocation2 + $0x140] sm:$0xff]
  %v2253 = vld [vmem:[#allocation2 + $0x148] sm:$0xff]
  %v2254 = vld [vmem:[#allocation2 + $0x150] sm:$0xff]
  %v2255 = vld [vmem:[#allocation2 + $0x158] sm:$0xff]
  %v2256 = vld [vmem:[#allocation2 + $0x160] sm:$0xff]
  %v2257 = vld [vmem:[#allocation2 + $0x168] sm:$0xff]
  %v2258 = vld [vmem:[#allocation2 + $0x170] sm:$0xff]
  %v2259 = vld [vmem:[#allocation2 + $0x178] sm:$0xff]
  %v2260 = vld [vmem:[#allocation2 + $0x180] sm:$0xff]
  %v2261 = vld [vmem:[#allocation2 + $0x188] sm:$0xff]
  %v2262 = vld [vmem:[#allocation2 + $0x190] sm:$0xff]
  %v2263 = vld [vmem:[#allocation2 + $0x198] sm:$0xff]
  %v2264 = vld [vmem:[#allocation2 + $0x1a0] sm:$0xff]
  %v2265 = vld [vmem:[#allocation2 + $0x1a8] sm:$0xff]
  %v2266 = vld [vmem:[#allocation2 + $0x1b0] sm:$0xff]
  %v2267 = vld [vmem:[#allocation2 + $0x1b8] sm:$0xff]
  %v2268 = vld [vmem:[#allocation2 + $0x1c0] sm:$0xff]
  %v2269 = vld [vmem:[#allocation2 + $0x1c8] sm:$0xff]
  %v2270 = vld [vmem:[#allocation2 + $0x1d0] sm:$0xff]
  %v2271 = vld [vmem:[#allocation2 + $0x1d8] sm:$0xff]
  %v2272 = vld [vmem:[#allocation2 + $0x1e0] sm:$0xff]
  %v2273 = vld [vmem:[#allocation2 + $0x1e8] sm:$0xff]
  %v2274 = vld [vmem:[#allocation2 + $0x1f0] sm:$0xff]
  %v2275 = vld [vmem:[#allocation2 + $0x1f8] sm:$0xff]
  %v2276 = vld [vmem:[#allocation2 + $0x200] sm:$0xff]
  %v2277 = vld [vmem:[#allocation2 + $0x208] sm:$0xff]
  %v2278 = vld [vmem:[#allocation2 + $0x210] sm:$0xff]
  %v2279 = vld [vmem:[#allocation2 + $0x218] sm:$0xff]
  %v2280 = vld [vmem:[%s3] sm:$0xf]
  %v2281 = vld [vmem:[%s3 + $0x4] sm:$0xf]
  %v2282 = vld [vmem:[%s3 + $0x8] sm:$0xf]
  %v2283 = vld [vmem:[%s3 + $0xc] sm:$0xf]
  %v2284 = vld [vmem:[%s3 + $0x10] sm:$0xf]
  %v2285 = vld [vmem:[%s3 + $0x14] sm:$0xf]
  %v2286 = vld [vmem:[%s3 + $0x18] sm:$0xf]
  %v2287 = vld [vmem:[%s3 + $0x1c] sm:$0xf]
  %v2288 = vld [vmem:[%s3 + $0x20] sm:$0xf]
  %v2289 = vld [vmem:[%s3 + $0x24] sm:$0xf]
  %v2290 = vld [vmem:[%s3 + $0x28] sm:$0xf]
  %v2291 = vld [vmem:[%s3 + $0x2c] sm:$0xf]
  %v2292 = vld [vmem:[%s3 + $0x30] sm:$0xf]
  %v2293 = vld [vmem:[%s3 + $0x34] sm:$0xf]
  %v2294 = vld [vmem:[%s3 + $0x38] sm:$0xf]
  %v2295 = vld [vmem:[%s3 + $0x3c] sm:$0xf]
  %v2296 = vld [vmem:[%s3 + $0x40] sm:$0xf]
  %v2297 = vld [vmem:[%s3 + $0x44] sm:$0xf]
  %v2298 = vld [vmem:[%s3 + $0x48] sm:$0xf]
  %v2299 = vld [vmem:[%s3 + $0x4c] sm:$0xf]
  %v2300 = vld [vmem:[%s3 + $0x50] sm:$0xf]
  %v2301 = vld [vmem:[%s3 + $0x54] sm:$0xf]
  %v2302 = vld [vmem:[%s3 + $0x58] sm:$0xf]
  %v2303 = vld [vmem:[%s3 + $0x5c] sm:$0xf]
  %v2304 = vld [vmem:[%s1761] sm:$0xff]
  %v2305 = vld [vmem:[%s1761 + $0x8] sm:$0xff]
  %v2306 = vld [vmem:[%s1761 + $0x10] sm:$0xff]
  %v2307 = vld [vmem:[%s1761 + $0x18] sm:$0xff]
  %v2308 = vld [vmem:[%s1761 + $0x20] sm:$0xff]
  %v2309 = vld [vmem:[%s1761 + $0x28] sm:$0xff]
  %v2310 = vld [vmem:[%s1761 + $0x30] sm:$0xff]
  %v2311 = vld [vmem:[%s1761 + $0x38] sm:$0xff]
  %v2312 = vld [vmem:[%s1761 + $0x40] sm:$0xff]
  %v2313 = vld [vmem:[%s1761 + $0x48] sm:$0xff]
  %v2314 = vld [vmem:[%s1761 + $0x50] sm:$0xff]
  %v2315 = vld [vmem:[%s1761 + $0x58] sm:$0xff]
  %v2316 = vld [vmem:[%s1761 + $0x60] sm:$0xff]
  %v2317 = vld [vmem:[%s1761 + $0x68] sm:$0xff]
  %v2318 = vld [vmem:[%s1761 + $0x70] sm:$0xff]
  %v2319 = vld [vmem:[%s1761 + $0x78] sm:$0xff]
  %v2320 = vld [vmem:[%s1761 + $0x80] sm:$0xff]
  %v2321 = vld [vmem:[%s1761 + $0x88] sm:$0xff]
  %v2322 = vld [vmem:[%s1761 + $0x90] sm:$0xff]
  %v2323 = vld [vmem:[%s1761 + $0x98] sm:$0xff]
  %v2324 = vld [vmem:[%s1761 + $0xa0] sm:$0xff]
  %v2325 = vld [vmem:[%s1761 + $0xa8] sm:$0xff]
  %v2326 = vld [vmem:[%s1761 + $0xb0] sm:$0xff]
  %v2327 = vld [vmem:[%s1761 + $0xb8] sm:$0xff]
  %v2328 = vld [vmem:[%s1761 + $0xc0] sm:$0xff]
  %v2329 = vld [vmem:[%s1761 + $0xc8] sm:$0xff]
  %v2330 = vld [vmem:[%s1761 + $0xd0] sm:$0xff]
  %v2331 = vld [vmem:[%s1761 + $0xd8] sm:$0xff]
  %v2332 = vld [vmem:[%s1761 + $0xe0] sm:$0xff]
  %v2333 = vld [vmem:[%s1761 + $0xe8] sm:$0xff]
  %v2334 = vld [vmem:[%s1761 + $0xf0] sm:$0xff]
  %v2335 = vld [vmem:[%s1761 + $0xf8] sm:$0xff]
  %v2336 = vld [vmem:[%s1761 + $0x120] sm:$0xff]
  %v2337 = vld [vmem:[%s1761 + $0x128] sm:$0xff]
  %v2338 = vld [vmem:[%s1761 + $0x130] sm:$0xff]
  %v2339 = vld [vmem:[%s1761 + $0x138] sm:$0xff]
  %v2340 = vld [vmem:[%s1761 + $0x140] sm:$0xff]
  %v2341 = vld [vmem:[%s1761 + $0x148] sm:$0xff]
  %v2342 = vld [vmem:[%s1761 + $0x150] sm:$0xff]
  %v2343 = vld [vmem:[%s1761 + $0x158] sm:$0xff]
  %v2344 = vld [vmem:[%s1761 + $0x160] sm:$0xff]
  %v2345 = vld [vmem:[%s1761 + $0x168] sm:$0xff]
  %v2346 = vld [vmem:[%s1761 + $0x170] sm:$0xff]
  %v2347 = vld [vmem:[%s1761 + $0x178] sm:$0xff]
  %v2348 = vld [vmem:[%s1761 + $0x180] sm:$0xff]
  %v2349 = vld [vmem:[%s1761 + $0x188] sm:$0xff]
  %v2350 = vld [vmem:[%s1761 + $0x190] sm:$0xff]
  %v2351 = vld [vmem:[%s1761 + $0x198] sm:$0xff]
  %v2352 = vld [vmem:[%s1761 + $0x1a0] sm:$0xff]
  %v2353 = vld [vmem:[%s1761 + $0x1a8] sm:$0xff]
  %v2354 = vld [vmem:[%s1761 + $0x1b0] sm:$0xff]
  %v2355 = vld [vmem:[%s1761 + $0x1b8] sm:$0xff]
  %v2356 = vld [vmem:[%s1761 + $0x1c0] sm:$0xff]
  %v2357 = vld [vmem:[%s1761 + $0x1c8] sm:$0xff]
  %v2358 = vld [vmem:[%s1761 + $0x1d0] sm:$0xff]
  %v2359 = vld [vmem:[%s1761 + $0x1d8] sm:$0xff]
  %v2360 = vld [vmem:[%s1761 + $0x1e0] sm:$0xff]
  %v2361 = vld [vmem:[%s1761 + $0x1e8] sm:$0xff]
  %v2362 = vld [vmem:[%s1761 + $0x1f0] sm:$0xff]
  %v2363 = vld [vmem:[%s1761 + $0x1f8] sm:$0xff]
  %v2364 = vld [vmem:[%s1761 + $0x200] sm:$0xff]
  %v2365 = vld [vmem:[%s1761 + $0x208] sm:$0xff]
  %v2366 = vld [vmem:[%s1761 + $0x210] sm:$0xff]
  %v2367 = vld [vmem:[%s1761 + $0x218] sm:$0xff]
  %s2368 = scalar_lea.vmem %s3, 96
  %v2369 = vld [vmem:[%s2368] sm:$0xf]
  %v2370 = vld [vmem:[%s2368 + $0x4] sm:$0xf]
  %v2371 = vld [vmem:[%s2368 + $0x8] sm:$0xf]
  %v2372 = vld [vmem:[%s2368 + $0xc] sm:$0xf]
  %v2373 = vld [vmem:[%s2368 + $0x10] sm:$0xf]
  %v2374 = vld [vmem:[%s2368 + $0x14] sm:$0xf]
  %v2375 = vld [vmem:[%s2368 + $0x18] sm:$0xf]
  %v2376 = vld [vmem:[%s2368 + $0x1c] sm:$0xf]
  %v2377 = vld [vmem:[%s2368 + $0x20] sm:$0xf]
  %v2378 = vld [vmem:[%s2368 + $0x24] sm:$0xf]
  %v2379 = vld [vmem:[%s2368 + $0x28] sm:$0xf]
  %v2380 = vld [vmem:[%s2368 + $0x2c] sm:$0xf]
  %v2381 = vld [vmem:[%s2368 + $0x30] sm:$0xf]
  %v2382 = vld [vmem:[%s2368 + $0x34] sm:$0xf]
  %v2383 = vld [vmem:[%s2368 + $0x38] sm:$0xf]
  %v2384 = vld [vmem:[%s2368 + $0x3c] sm:$0xf]
  %v2385 = vld [vmem:[%s2368 + $0x40] sm:$0xf]
  %v2386 = vld [vmem:[%s2368 + $0x44] sm:$0xf]
  %v2387 = vld [vmem:[%s2368 + $0x48] sm:$0xf]
  %v2388 = vld [vmem:[%s2368 + $0x4c] sm:$0xf]
  %v2389 = vld [vmem:[%s2368 + $0x50] sm:$0xf]
  %v2390 = vld [vmem:[%s2368 + $0x54] sm:$0xf]
  %v2391 = vld [vmem:[%s2368 + $0x58] sm:$0xf]
  %v2392 = vld [vmem:[%s2368 + $0x5c] sm:$0xf]
  %v2417 = vunpack.c.l.b16 %v2369
  %v2418 = vunpack.c.l.b16 %v2370
  %v2419 = vunpack.c.l.b16 %v2371
  %v2420 = vunpack.c.l.b16 %v2372
  %v2421 = vunpack.c.l.b16 %v2373
  %v2422 = vunpack.c.l.b16 %v2374
  %v2423 = vunpack.c.l.b16 %v2375
  %v2424 = vunpack.c.l.b16 %v2376
  %v2425 = vunpack.c.l.b16 %v2377
  %v2426 = vunpack.c.l.b16 %v2378
  %v2427 = vunpack.c.l.b16 %v2379
  %v2428 = vunpack.c.l.b16 %v2380
  %v2429 = vunpack.c.l.b16 %v2381
  %v2430 = vunpack.c.l.b16 %v2382
  %v2431 = vunpack.c.l.b16 %v2383
  %v2432 = vunpack.c.l.b16 %v2384
  %v2433 = vunpack.c.l.b16 %v2385
  %v2434 = vunpack.c.l.b16 %v2386
  %v2435 = vunpack.c.l.b16 %v2387
  %v2436 = vunpack.c.l.b16 %v2388
  %v2437 = vunpack.c.l.b16 %v2389
  %v2438 = vunpack.c.l.b16 %v2390
  %v2439 = vunpack.c.l.b16 %v2391
  %v2440 = vunpack.c.l.b16 %v2392
  %v2441 = vpack.c.b16 %v2418, %v2417
  %v2442 = vpack.c.b16 %v2420, %v2419
  %v2443 = vpack.c.b16 %v2422, %v2421
  %v2444 = vpack.c.b16 %v2424, %v2423
  %v2445 = vpack.c.b16 %v2426, %v2425
  %v2446 = vpack.c.b16 %v2428, %v2427
  %v2447 = vpack.c.b16 %v2430, %v2429
  %v2448 = vpack.c.b16 %v2432, %v2431
  %v2449 = vpack.c.b16 %v2434, %v2433
  %v2450 = vpack.c.b16 %v2436, %v2435
  %v2451 = vpack.c.b16 %v2438, %v2437
  %v2452 = vpack.c.b16 %v2440, %v2439
  %v2466 = vsel %vm94, %v2305, 0
  %v2469 = vsel %vm94, %v2307, 0
  %v2472 = vsel %vm94, %v2309, 0
  %v2475 = vsel %vm94, %v2311, 0
  %v2478 = vsel %vm94, %v2313, 0
  %v2481 = vsel %vm94, %v2315, 0
  %v2484 = vsel %vm94, %v2317, 0
  %v2487 = vsel %vm94, %v2319, 0
  %v2490 = vsel %vm94, %v2321, 0
  %v2493 = vsel %vm94, %v2323, 0
  %v2496 = vsel %vm94, %v2325, 0
  %v2499 = vsel %vm94, %v2327, 0
  %v2502 = vsel %vm94, %v2329, 0
  %v2505 = vsel %vm94, %v2331, 0
  %v2508 = vsel %vm94, %v2333, 0
  %v2511 = vsel %vm94, %v2335, 0
  %v2514 = vsel %vm94, %v2337, 0
  %v2517 = vsel %vm94, %v2339, 0
  %v2520 = vsel %vm94, %v2341, 0
  %v2523 = vsel %vm94, %v2343, 0
  %v2526 = vsel %vm94, %v2345, 0
  %v2529 = vsel %vm94, %v2347, 0
  %v2532 = vsel %vm94, %v2349, 0
  %v2535 = vsel %vm94, %v2351, 0
  %v2538 = vsel %vm94, %v2353, 0
  %v2541 = vsel %vm94, %v2355, 0
  %v2544 = vsel %vm94, %v2357, 0
  %v2547 = vsel %vm94, %v2359, 0
  %v2550 = vsel %vm94, %v2361, 0
  %v2553 = vsel %vm94, %v2363, 0
  %v2556 = vsel %vm94, %v2365, 0
  %v2559 = vsel %vm94, %v2367, 0
  %2561 = vmatprep.subr.bf16.mxu0 0
  %2562 = vmatpush1.bf16.msra.mxu0 %v2441
  %2563 = vmatprep.subr.bf16.mxu0 0
  %2564 = vmatpush1.bf16.msra.mxu0 %v2442
  %2565 = vmatprep.subr.bf16.mxu0 0
  %2566 = vmatpush1.bf16.msra.mxu0 %v2443
  %2567 = vmatprep.subr.bf16.mxu0 0
  %2568 = vmatpush1.bf16.msra.mxu0 %v2444
  %2569 = vmatprep.subr.bf16.mxu0 0
  %2570 = vmatpush1.bf16.msra.mxu0 %v2445
  %2571 = vmatprep.subr.bf16.mxu0 0
  %2572 = vmatpush1.bf16.msra.mxu0 %v2446
  %2573 = vmatprep.subr.bf16.mxu0 0
  %2574 = vmatpush1.bf16.msra.mxu0 %v2447
  %2575 = vmatprep.subr.bf16.mxu0 0
  %2576 = vmatpush1.bf16.msra.mxu0 %v2448
  %2577 = vmatprep.subr.bf16.mxu0 0
  %2578 = vmatpush1.bf16.msra.mxu0 %v2449
  %2579 = vmatprep.subr.bf16.mxu0 0
  %2580 = vmatpush1.bf16.msra.mxu0 %v2450
  %2581 = vmatprep.subr.bf16.mxu0 0
  %2582 = vmatpush1.bf16.msra.mxu0 %v2451
  %2583 = vmatprep.subr.bf16.mxu0 0
  %2584 = vmatpush1.bf16.msra.mxu0 %v2452
  %2585 = vmatprep.subr.bf16.mxu0 0
  %2586 = vmatpush1.bf16.msra.mxu0 0
  %2587 = vmatprep.subr.bf16.mxu0 0
  %2588 = vmatpush1.bf16.msra.mxu0 0
  %2589 = vmatprep.subr.bf16.mxu0 0
  %2590 = vmatpush1.bf16.msra.mxu0 0
  %2591 = vmatprep.subr.bf16.mxu0 0
  %2592 = vmatpush1.bf16.msra.mxu0 0
  %2593 = vmatprep.mubr.bf16.mxu0 %v2466
  %2594 = vmatmul.mubr.bf16.gmra.mrb[0].mxu0 %v2304
  %v2595 = vpop.f32.mrb[0].mxu0
  %v2596 = vadd.f32 0.0, %v2595
  %v2597 = vpop.f32.mrb[0].mxu0
  %v2598 = vpop.f32.mrb[0].mxu0
  %v2599 = vadd.f32 0.0, %v2598
  %v2600 = vpop.f32.mrb[0].mxu0
  %2601 = vmatprep.mubr.bf16.mxu0 %v2469
  %2602 = vmatmul.mubr.bf16.gmra.mrb[0].mxu0 %v2306
  %v2603 = vpop.f32.mrb[0].mxu0
  %v2604 = vadd.f32 0.0, %v2603
  %v2605 = vpop.f32.mrb[0].mxu0
  %v2606 = vpop.f32.mrb[0].mxu0
  %v2607 = vadd.f32 0.0, %v2606
  %v2608 = vpop.f32.mrb[0].mxu0
  %2609 = vmatprep.mubr.bf16.mxu0 %v2472
  %2610 = vmatmul.mubr.bf16.gmra.mrb[0].mxu0 %v2308
  %v2611 = vpop.f32.mrb[0].mxu0
  %v2612 = vadd.f32 0.0, %v2611
  %v2613 = vpop.f32.mrb[0].mxu0
  %v2614 = vpop.f32.mrb[0].mxu0
  %v2615 = vadd.f32 0.0, %v2614
  %v2616 = vpop.f32.mrb[0].mxu0
  %2617 = vmatprep.mubr.bf16.mxu0 %v2475
  %2618 = vmatmul.mubr.bf16.gmra.mrb[0].mxu0 %v2310
  %v2619 = vpop.f32.mrb[0].mxu0
  %v2620 = vadd.f32 0.0, %v2619
  %v2621 = vpop.f32.mrb[0].mxu0
  %v2622 = vpop.f32.mrb[0].mxu0
  %v2623 = vadd.f32 0.0, %v2622
  %v2624 = vpop.f32.mrb[0].mxu0
  %2625 = vmatprep.mubr.bf16.mxu0 %v2478
  %2626 = vmatmul.mubr.bf16.gmra.mrb[0].mxu0 %v2312
  %v2627 = vpop.f32.mrb[0].mxu0
  %v2628 = vadd.f32 0.0, %v2627
  %v2629 = vpop.f32.mrb[0].mxu0
  %v2630 = vpop.f32.mrb[0].mxu0
  %v2631 = vadd.f32 0.0, %v2630
  %v2632 = vpop.f32.mrb[0].mxu0
  %2633 = vmatprep.mubr.bf16.mxu0 %v2481
  %2634 = vmatmul.mubr.bf16.gmra.mrb[0].mxu0 %v2314
  %v2635 = vpop.f32.mrb[0].mxu0
  %v2636 = vadd.f32 0.0, %v2635
  %v2637 = vpop.f32.mrb[0].mxu0
  %v2638 = vpop.f32.mrb[0].mxu0
  %v2639 = vadd.f32 0.0, %v2638
  %v2640 = vpop.f32.mrb[0].mxu0
  %2641 = vmatprep.mubr.bf16.mxu0 %v2484
  %2642 = vmatmul.mubr.bf16.gmra.mrb[0].mxu0 %v2316
  %v2643 = vpop.f32.mrb[0].mxu0
  %v2644 = vadd.f32 0.0, %v2643
  %v2645 = vpop.f32.mrb[0].mxu0
  %v2646 = vpop.f32.mrb[0].mxu0
  %v2647 = vadd.f32 0.0, %v2646
  %v2648 = vpop.f32.mrb[0].mxu0
  %2649 = vmatprep.mubr.bf16.mxu0 %v2487
  %2650 = vmatmul.mubr.bf16.gmra.mrb[0].mxu0 %v2318
  %v2651 = vpop.f32.mrb[0].mxu0
  %v2652 = vadd.f32 0.0, %v2651
  %v2653 = vpop.f32.mrb[0].mxu0
  %v2654 = vpop.f32.mrb[0].mxu0
  %v2655 = vadd.f32 0.0, %v2654
  %v2656 = vpop.f32.mrb[0].mxu0
  %2657 = vmatprep.mubr.bf16.mxu0 %v2490
  %2658 = vmatmul.mubr.bf16.gmra.mrb[0].mxu0 %v2320
  %v2659 = vpop.f32.mrb[0].mxu0
  %v2660 = vadd.f32 0.0, %v2659
  %v2661 = vpop.f32.mrb[0].mxu0
  %v2662 = vpop.f32.mrb[0].mxu0
  %v2663 = vadd.f32 0.0, %v2662
  %v2664 = vpop.f32.mrb[0].mxu0
  %2665 = vmatprep.mubr.bf16.mxu0 %v2493
  %2666 = vmatmul.mubr.bf16.gmra.mrb[0].mxu0 %v2322
  %v2667 = vpop.f32.mrb[0].mxu0
  %v2668 = vadd.f32 0.0, %v2667
  %v2669 = vpop.f32.mrb[0].mxu0
  %v2670 = vpop.f32.mrb[0].mxu0
  %v2671 = vadd.f32 0.0, %v2670
  %v2672 = vpop.f32.mrb[0].mxu0
  %2673 = vmatprep.mubr.bf16.mxu0 %v2496
  %2674 = vmatmul.mubr.bf16.gmra.mrb[0].mxu0 %v2324
  %v2675 = vpop.f32.mrb[0].mxu0
  %v2676 = vadd.f32 0.0, %v2675
  %v2677 = vpop.f32.mrb[0].mxu0
  %v2678 = vpop.f32.mrb[0].mxu0
  %v2679 = vadd.f32 0.0, %v2678
  %v2680 = vpop.f32.mrb[0].mxu0
  %2681 = vmatprep.mubr.bf16.mxu0 %v2499
  %2682 = vmatmul.mubr.bf16.gmra.mrb[0].mxu0 %v2326
  %v2683 = vpop.f32.mrb[0].mxu0
  %v2684 = vadd.f32 0.0, %v2683
  %v2685 = vpop.f32.mrb[0].mxu0
  %v2686 = vpop.f32.mrb[0].mxu0
  %v2687 = vadd.f32 0.0, %v2686
  %v2688 = vpop.f32.mrb[0].mxu0
  %2689 = vmatprep.mubr.bf16.mxu0 %v2502
  %2690 = vmatmul.mubr.bf16.gmra.mrb[0].mxu0 %v2328
  %v2691 = vpop.f32.mrb[0].mxu0
  %v2692 = vadd.f32 0.0, %v2691
  %v2693 = vpop.f32.mrb[0].mxu0
  %v2694 = vpop.f32.mrb[0].mxu0
  %v2695 = vadd.f32 0.0, %v2694
  %v2696 = vpop.f32.mrb[0].mxu0
  %2697 = vmatprep.mubr.bf16.mxu0 %v2505
  %2698 = vmatmul.mubr.bf16.gmra.mrb[0].mxu0 %v2330
  %v2699 = vpop.f32.mrb[0].mxu0
  %v2700 = vadd.f32 0.0, %v2699
  %v2701 = vpop.f32.mrb[0].mxu0
  %v2702 = vpop.f32.mrb[0].mxu0
  %v2703 = vadd.f32 0.0, %v2702
  %v2704 = vpop.f32.mrb[0].mxu0
  %2705 = vmatprep.mubr.bf16.mxu0 %v2508
  %2706 = vmatmul.mubr.bf16.gmra.mrb[0].mxu0 %v2332
  %v2707 = vpop.f32.mrb[0].mxu0
  %v2708 = vadd.f32 0.0, %v2707
  %v2709 = vpop.f32.mrb[0].mxu0
  %v2710 = vpop.f32.mrb[0].mxu0
  %v2711 = vadd.f32 0.0, %v2710
  %v2712 = vpop.f32.mrb[0].mxu0
  %2713 = vmatprep.mubr.bf16.mxu0 %v2511
  %2714 = vmatmul.mubr.bf16.gmra.mrb[0].mxu0 %v2334
  %v2715 = vpop.f32.mrb[0].mxu0
  %v2716 = vadd.f32 0.0, %v2715
  %v2717 = vpop.f32.mrb[0].mxu0
  %v2718 = vpop.f32.mrb[0].mxu0
  %v2719 = vadd.f32 0.0, %v2718
  %v2720 = vpop.f32.mrb[0].mxu0
  %2721 = vmatprep.mubr.bf16.mxu0 %v2514
  %2722 = vmatmul.mubr.bf16.gmra.mrb[0].mxu0 %v2336
  %v2723 = vpop.f32.mrb[0].mxu0
  %v2724 = vadd.f32 0.0, %v2723
  %v2725 = vpop.f32.mrb[0].mxu0
  %v2726 = vpop.f32.mrb[0].mxu0
  %v2727 = vadd.f32 0.0, %v2726
  %v2728 = vpop.f32.mrb[0].mxu0
  %2729 = vmatprep.mubr.bf16.mxu0 %v2517
  %2730 = vmatmul.mubr.bf16.gmra.mrb[0].mxu0 %v2338
  %v2731 = vpop.f32.mrb[0].mxu0
  %v2732 = vadd.f32 0.0, %v2731
  %v2733 = vpop.f32.mrb[0].mxu0
  %v2734 = vpop.f32.mrb[0].mxu0
  %v2735 = vadd.f32 0.0, %v2734
  %v2736 = vpop.f32.mrb[0].mxu0
  %2737 = vmatprep.mubr.bf16.mxu0 %v2520
  %2738 = vmatmul.mubr.bf16.gmra.mrb[0].mxu0 %v2340
  %v2739 = vpop.f32.mrb[0].mxu0
  %v2740 = vadd.f32 0.0, %v2739
  %v2741 = vpop.f32.mrb[0].mxu0
  %v2742 = vpop.f32.mrb[0].mxu0
  %v2743 = vadd.f32 0.0, %v2742
  %v2744 = vpop.f32.mrb[0].mxu0
  %2745 = vmatprep.mubr.bf16.mxu0 %v2523
  %2746 = vmatmul.mubr.bf16.gmra.mrb[0].mxu0 %v2342
  %v2747 = vpop.f32.mrb[0].mxu0
  %v2748 = vadd.f32 0.0, %v2747
  %v2749 = vpop.f32.mrb[0].mxu0
  %v2750 = vpop.f32.mrb[0].mxu0
  %v2751 = vadd.f32 0.0, %v2750
  %v2752 = vpop.f32.mrb[0].mxu0
  %2753 = vmatprep.mubr.bf16.mxu0 %v2526
  %2754 = vmatmul.mubr.bf16.gmra.mrb[0].mxu0 %v2344
  %v2755 = vpop.f32.mrb[0].mxu0
  %v2756 = vadd.f32 0.0, %v2755
  %v2757 = vpop.f32.mrb[0].mxu0
  %v2758 = vpop.f32.mrb[0].mxu0
  %v2759 = vadd.f32 0.0, %v2758
  %v2760 = vpop.f32.mrb[0].mxu0
  %2761 = vmatprep.mubr.bf16.mxu0 %v2529
  %2762 = vmatmul.mubr.bf16.gmra.mrb[0].mxu0 %v2346
  %v2763 = vpop.f32.mrb[0].mxu0
  %v2764 = vadd.f32 0.0, %v2763
  %v2765 = vpop.f32.mrb[0].mxu0
  %v2766 = vpop.f32.mrb[0].mxu0
  %v2767 = vadd.f32 0.0, %v2766
  %v2768 = vpop.f32.mrb[0].mxu0
  %2769 = vmatprep.mubr.bf16.mxu0 %v2532
  %2770 = vmatmul.mubr.bf16.gmra.mrb[0].mxu0 %v2348
  %v2771 = vpop.f32.mrb[0].mxu0
  %v2772 = vadd.f32 0.0, %v2771
  %v2773 = vpop.f32.mrb[0].mxu0
  %v2774 = vpop.f32.mrb[0].mxu0
  %v2775 = vadd.f32 0.0, %v2774
  %v2776 = vpop.f32.mrb[0].mxu0
  %2777 = vmatprep.mubr.bf16.mxu0 %v2535
  %2778 = vmatmul.mubr.bf16.gmra.mrb[0].mxu0 %v2350
  %v2779 = vpop.f32.mrb[0].mxu0
  %v2780 = vadd.f32 0.0, %v2779
  %v2781 = vpop.f32.mrb[0].mxu0
  %v2782 = vpop.f32.mrb[0].mxu0
  %v2783 = vadd.f32 0.0, %v2782
  %v2784 = vpop.f32.mrb[0].mxu0
  %2785 = vmatprep.mubr.bf16.mxu0 %v2538
  %2786 = vmatmul.mubr.bf16.gmra.mrb[0].mxu0 %v2352
  %v2787 = vpop.f32.mrb[0].mxu0
  %v2788 = vadd.f32 0.0, %v2787
  %v2789 = vpop.f32.mrb[0].mxu0
  %v2790 = vpop.f32.mrb[0].mxu0
  %v2791 = vadd.f32 0.0, %v2790
  %v2792 = vpop.f32.mrb[0].mxu0
  %2793 = vmatprep.mubr.bf16.mxu0 %v2541
  %2794 = vmatmul.mubr.bf16.gmra.mrb[0].mxu0 %v2354
  %v2795 = vpop.f32.mrb[0].mxu0
  %v2796 = vadd.f32 0.0, %v2795
  %v2797 = vpop.f32.mrb[0].mxu0
  %v2798 = vpop.f32.mrb[0].mxu0
  %v2799 = vadd.f32 0.0, %v2798
  %v2800 = vpop.f32.mrb[0].mxu0
  %2801 = vmatprep.mubr.bf16.mxu0 %v2544
  %2802 = vmatmul.mubr.bf16.gmra.mrb[0].mxu0 %v2356
  %v2803 = vpop.f32.mrb[0].mxu0
  %v2804 = vadd.f32 0.0, %v2803
  %v2805 = vpop.f32.mrb[0].mxu0
  %v2806 = vpop.f32.mrb[0].mxu0
  %v2807 = vadd.f32 0.0, %v2806
  %v2808 = vpop.f32.mrb[0].mxu0
  %2809 = vmatprep.mubr.bf16.mxu0 %v2547
  %2810 = vmatmul.mubr.bf16.gmra.mrb[0].mxu0 %v2358
  %v2811 = vpop.f32.mrb[0].mxu0
  %v2812 = vadd.f32 0.0, %v2811
  %v2813 = vpop.f32.mrb[0].mxu0
  %v2814 = vpop.f32.mrb[0].mxu0
  %v2815 = vadd.f32 0.0, %v2814
  %v2816 = vpop.f32.mrb[0].mxu0
  %2817 = vmatprep.mubr.bf16.mxu0 %v2550
  %2818 = vmatmul.mubr.bf16.gmra.mrb[0].mxu0 %v2360
  %v2819 = vpop.f32.mrb[0].mxu0
  %v2820 = vadd.f32 0.0, %v2819
  %v2821 = vpop.f32.mrb[0].mxu0
  %v2822 = vpop.f32.mrb[0].mxu0
  %v2823 = vadd.f32 0.0, %v2822
  %v2824 = vpop.f32.mrb[0].mxu0
  %2825 = vmatprep.mubr.bf16.mxu0 %v2553
  %2826 = vmatmul.mubr.bf16.gmra.mrb[0].mxu0 %v2362
  %v2827 = vpop.f32.mrb[0].mxu0
  %v2828 = vadd.f32 0.0, %v2827
  %v2829 = vpop.f32.mrb[0].mxu0
  %v2830 = vpop.f32.mrb[0].mxu0
  %v2831 = vadd.f32 0.0, %v2830
  %v2832 = vpop.f32.mrb[0].mxu0
  %2833 = vmatprep.mubr.bf16.mxu0 %v2556
  %2834 = vmatmul.mubr.bf16.gmra.mrb[0].mxu0 %v2364
  %v2835 = vpop.f32.mrb[0].mxu0
  %v2836 = vadd.f32 0.0, %v2835
  %v2837 = vpop.f32.mrb[0].mxu0
  %v2838 = vpop.f32.mrb[0].mxu0
  %v2839 = vadd.f32 0.0, %v2838
  %v2840 = vpop.f32.mrb[0].mxu0
  %2841 = vmatprep.mubr.bf16.mxu0 %v2559
  %2842 = vmatmul.mubr.bf16.gmra.mrb[0].mxu0 %v2366
  %v2843 = vpop.f32.mrb[0].mxu0
  %v2844 = vadd.f32 0.0, %v2843
  %v2845 = vpop.f32.mrb[0].mxu0
  %v2846 = vpop.f32.mrb[0].mxu0
  %v2847 = vadd.f32 0.0, %v2846
  %v2848 = vpop.f32.mrb[0].mxu0
  %2849 = vdwg.mxu0
  %v2874 = vunpack.c.l.b16 %v2280
  %v2875 = vunpack.c.l.b16 %v2281
  %v2876 = vunpack.c.l.b16 %v2282
  %v2877 = vunpack.c.l.b16 %v2283
  %v2878 = vunpack.c.l.b16 %v2284
  %v2879 = vunpack.c.l.b16 %v2285
  %v2880 = vunpack.c.l.b16 %v2286
  %v2881 = vunpack.c.l.b16 %v2287
  %v2882 = vunpack.c.l.b16 %v2288
  %v2883 = vunpack.c.l.b16 %v2289
  %v2884 = vunpack.c.l.b16 %v2290
  %v2885 = vunpack.c.l.b16 %v2291
  %v2886 = vunpack.c.l.b16 %v2292
  %v2887 = vunpack.c.l.b16 %v2293
  %v2888 = vunpack.c.l.b16 %v2294
  %v2889 = vunpack.c.l.b16 %v2295
  %v2890 = vunpack.c.l.b16 %v2296
  %v2891 = vunpack.c.l.b16 %v2297
  %v2892 = vunpack.c.l.b16 %v2298
  %v2893 = vunpack.c.l.b16 %v2299
  %v2894 = vunpack.c.l.b16 %v2300
  %v2895 = vunpack.c.l.b16 %v2301
  %v2896 = vunpack.c.l.b16 %v2302
  %v2897 = vunpack.c.l.b16 %v2303
  %v2898 = vpack.c.b16 %v2875, %v2874
  %v2899 = vpack.c.b16 %v2877, %v2876
  %v2900 = vpack.c.b16 %v2879, %v2878
  %v2901 = vpack.c.b16 %v2881, %v2880
  %v2902 = vpack.c.b16 %v2883, %v2882
  %v2903 = vpack.c.b16 %v2885, %v2884
  %v2904 = vpack.c.b16 %v2887, %v2886
  %v2905 = vpack.c.b16 %v2889, %v2888
  %v2906 = vpack.c.b16 %v2891, %v2890
  %v2907 = vpack.c.b16 %v2893, %v2892
  %v2908 = vpack.c.b16 %v2895, %v2894
  %v2909 = vpack.c.b16 %v2897, %v2896
  %v2923 = vsel %vm94, %v2217, 0
  %v2926 = vsel %vm94, %v2219, 0
  %v2929 = vsel %vm94, %v2221, 0
  %v2932 = vsel %vm94, %v2223, 0
  %v2935 = vsel %vm94, %v2225, 0
  %v2938 = vsel %vm94, %v2227, 0
  %v2941 = vsel %vm94, %v2229, 0
  %v2944 = vsel %vm94, %v2231, 0
  %v2947 = vsel %vm94, %v2233, 0
  %v2950 = vsel %vm94, %v2235, 0
  %v2953 = vsel %vm94, %v2237, 0
  %v2956 = vsel %vm94, %v2239, 0
  %v2959 = vsel %vm94, %v2241, 0
  %v2962 = vsel %vm94, %v2243, 0
  %v2965 = vsel %vm94, %v2245, 0
  %v2968 = vsel %vm94, %v2247, 0
  %v2971 = vsel %vm94, %v2249, 0
  %v2974 = vsel %vm94, %v2251, 0
  %v2977 = vsel %vm94, %v2253, 0
  %v2980 = vsel %vm94, %v2255, 0
  %v2983 = vsel %vm94, %v2257, 0
  %v2986 = vsel %vm94, %v2259, 0
  %v2989 = vsel %vm94, %v2261, 0
  %v2992 = vsel %vm94, %v2263, 0
  %v2995 = vsel %vm94, %v2265, 0
  %v2998 = vsel %vm94, %v2267, 0
  %v3001 = vsel %vm94, %v2269, 0
  %v3004 = vsel %vm94, %v2271, 0
  %v3007 = vsel %vm94, %v2273, 0
  %v3010 = vsel %vm94, %v2275, 0
  %v3013 = vsel %vm94, %v2277, 0
  %v3016 = vsel %vm94, %v2279, 0
  %3018 = vmatprep.subr.bf16.mxu0 0
  %3019 = vmatpush1.bf16.msra.mxu0 %v2898
  %3020 = vmatprep.subr.bf16.mxu0 0
  %3021 = vmatpush1.bf16.msra.mxu0 %v2899
  %3022 = vmatprep.subr.bf16.mxu0 0
  %3023 = vmatpush1.bf16.msra.mxu0 %v2900
  %3024 = vmatprep.subr.bf16.mxu0 0
  %3025 = vmatpush1.bf16.msra.mxu0 %v2901
  %3026 = vmatprep.subr.bf16.mxu0 0
  %3027 = vmatpush1.bf16.msra.mxu0 %v2902
  %3028 = vmatprep.subr.bf16.mxu0 0
  %3029 = vmatpush1.bf16.msra.mxu0 %v2903
  %3030 = vmatprep.subr.bf16.mxu0 0
  %3031 = vmatpush1.bf16.msra.mxu0 %v2904
  %3032 = vmatprep.subr.bf16.mxu0 0
  %3033 = vmatpush1.bf16.msra.mxu0 %v2905
  %3034 = vmatprep.subr.bf16.mxu0 0
  %3035 = vmatpush1.bf16.msra.mxu0 %v2906
  %3036 = vmatprep.subr.bf16.mxu0 0
  %3037 = vmatpush1.bf16.msra.mxu0 %v2907
  %3038 = vmatprep.subr.bf16.mxu0 0
  %3039 = vmatpush1.bf16.msra.mxu0 %v2908
  %3040 = vmatprep.subr.bf16.mxu0 0
  %3041 = vmatpush1.bf16.msra.mxu0 %v2909
  %3042 = vmatprep.subr.bf16.mxu0 0
  %3043 = vmatpush1.bf16.msra.mxu0 0
  %3044 = vmatprep.subr.bf16.mxu0 0
  %3045 = vmatpush1.bf16.msra.mxu0 0
  %3046 = vmatprep.subr.bf16.mxu0 0
  %3047 = vmatpush1.bf16.msra.mxu0 0
  %3048 = vmatprep.subr.bf16.mxu0 0
  %3049 = vmatpush1.bf16.msra.mxu0 0
  %3050 = vmatprep.mubr.bf16.mxu0 %v2923
  %3051 = vmatmul.mubr.bf16.gmra.mrb[0].mxu0 %v2216
  %v3052 = vpop.f32.mrb[0].mxu0
  %v3053 = vadd.f32 %v2596, %v3052
  %v3054 = vpop.f32.mrb[0].mxu0
  %v3055 = vpop.f32.mrb[0].mxu0
  %v3056 = vadd.f32 %v2599, %v3055
  %v3057 = vpop.f32.mrb[0].mxu0
  %3058 = vmatprep.mubr.bf16.mxu0 %v2926
  %3059 = vmatmul.mubr.bf16.gmra.mrb[0].mxu0 %v2218
  %v3060 = vpop.f32.mrb[0].mxu0
  %v3061 = vadd.f32 %v2604, %v3060
  %v3062 = vpop.f32.mrb[0].mxu0
  %v3063 = vpop.f32.mrb[0].mxu0
  %v3064 = vadd.f32 %v2607, %v3063
  %v3065 = vpop.f32.mrb[0].mxu0
  %3066 = vmatprep.mubr.bf16.mxu0 %v2929
  %3067 = vmatmul.mubr.bf16.gmra.mrb[0].mxu0 %v2220
  %v3068 = vpop.f32.mrb[0].mxu0
  %v3069 = vadd.f32 %v2612, %v3068
  %v3070 = vpop.f32.mrb[0].mxu0
  %v3071 = vpop.f32.mrb[0].mxu0
  %v3072 = vadd.f32 %v2615, %v3071
  %v3073 = vpop.f32.mrb[0].mxu0
  %3074 = vmatprep.mubr.bf16.mxu0 %v2932
  %3075 = vmatmul.mubr.bf16.gmra.mrb[0].mxu0 %v2222
  %v3076 = vpop.f32.mrb[0].mxu0
  %v3077 = vadd.f32 %v2620, %v3076
  %v3078 = vpop.f32.mrb[0].mxu0
  %v3079 = vpop.f32.mrb[0].mxu0
  %v3080 = vadd.f32 %v2623, %v3079
  %v3081 = vpop.f32.mrb[0].mxu0
  %3082 = vmatprep.mubr.bf16.mxu0 %v2935
  %3083 = vmatmul.mubr.bf16.gmra.mrb[0].mxu0 %v2224
  %v3084 = vpop.f32.mrb[0].mxu0
  %v3085 = vadd.f32 %v2628, %v3084
  %v3086 = vpop.f32.mrb[0].mxu0
  %v3087 = vpop.f32.mrb[0].mxu0
  %v3088 = vadd.f32 %v2631, %v3087
  %v3089 = vpop.f32.mrb[0].mxu0
  %3090 = vmatprep.mubr.bf16.mxu0 %v2938
  %3091 = vmatmul.mubr.bf16.gmra.mrb[0].mxu0 %v2226
  %v3092 = vpop.f32.mrb[0].mxu0
  %v3093 = vadd.f32 %v2636, %v3092
  %v3094 = vpop.f32.mrb[0].mxu0
  %v3095 = vpop.f32.mrb[0].mxu0
  %v3096 = vadd.f32 %v2639, %v3095
  %v3097 = vpop.f32.mrb[0].mxu0
  %3098 = vmatprep.mubr.bf16.mxu0 %v2941
  %3099 = vmatmul.mubr.bf16.gmra.mrb[0].mxu0 %v2228
  %v3100 = vpop.f32.mrb[0].mxu0
  %v3101 = vadd.f32 %v2644, %v3100
  %v3102 = vpop.f32.mrb[0].mxu0
  %v3103 = vpop.f32.mrb[0].mxu0
  %v3104 = vadd.f32 %v2647, %v3103
  %v3105 = vpop.f32.mrb[0].mxu0
  %3106 = vmatprep.mubr.bf16.mxu0 %v2944
  %3107 = vmatmul.mubr.bf16.gmra.mrb[0].mxu0 %v2230
  %v3108 = vpop.f32.mrb[0].mxu0
  %v3109 = vadd.f32 %v2652, %v3108
  %v3110 = vpop.f32.mrb[0].mxu0
  %v3111 = vpop.f32.mrb[0].mxu0
  %v3112 = vadd.f32 %v2655, %v3111
  %v3113 = vpop.f32.mrb[0].mxu0
  %3114 = vmatprep.mubr.bf16.mxu0 %v2947
  %3115 = vmatmul.mubr.bf16.gmra.mrb[0].mxu0 %v2232
  %v3116 = vpop.f32.mrb[0].mxu0
  %v3117 = vadd.f32 %v2660, %v3116
  %v3118 = vpop.f32.mrb[0].mxu0
  %v3119 = vpop.f32.mrb[0].mxu0
  %v3120 = vadd.f32 %v2663, %v3119
  %v3121 = vpop.f32.mrb[0].mxu0
  %3122 = vmatprep.mubr.bf16.mxu0 %v2950
  %3123 = vmatmul.mubr.bf16.gmra.mrb[0].mxu0 %v2234
  %v3124 = vpop.f32.mrb[0].mxu0
  %v3125 = vadd.f32 %v2668, %v3124
  %v3126 = vpop.f32.mrb[0].mxu0
  %v3127 = vpop.f32.mrb[0].mxu0
  %v3128 = vadd.f32 %v2671, %v3127
  %v3129 = vpop.f32.mrb[0].mxu0
  %3130 = vmatprep.mubr.bf16.mxu0 %v2953
  %3131 = vmatmul.mubr.bf16.gmra.mrb[0].mxu0 %v2236
  %v3132 = vpop.f32.mrb[0].mxu0
  %v3133 = vadd.f32 %v2676, %v3132
  %v3134 = vpop.f32.mrb[0].mxu0
  %v3135 = vpop.f32.mrb[0].mxu0
  %v3136 = vadd.f32 %v2679, %v3135
  %v3137 = vpop.f32.mrb[0].mxu0
  %3138 = vmatprep.mubr.bf16.mxu0 %v2956
  %3139 = vmatmul.mubr.bf16.gmra.mrb[0].mxu0 %v2238
  %v3140 = vpop.f32.mrb[0].mxu0
  %v3141 = vadd.f32 %v2684, %v3140
  %v3142 = vpop.f32.mrb[0].mxu0
  %v3143 = vpop.f32.mrb[0].mxu0
  %v3144 = vadd.f32 %v2687, %v3143
  %v3145 = vpop.f32.mrb[0].mxu0
  %3146 = vmatprep.mubr.bf16.mxu0 %v2959
  %3147 = vmatmul.mubr.bf16.gmra.mrb[0].mxu0 %v2240
  %v3148 = vpop.f32.mrb[0].mxu0
  %v3149 = vadd.f32 %v2692, %v3148
  %v3150 = vpop.f32.mrb[0].mxu0
  %v3151 = vpop.f32.mrb[0].mxu0
  %v3152 = vadd.f32 %v2695, %v3151
  %v3153 = vpop.f32.mrb[0].mxu0
  %3154 = vmatprep.mubr.bf16.mxu0 %v2962
  %3155 = vmatmul.mubr.bf16.gmra.mrb[0].mxu0 %v2242
  %v3156 = vpop.f32.mrb[0].mxu0
  %v3157 = vadd.f32 %v2700, %v3156
  %v3158 = vpop.f32.mrb[0].mxu0
  %v3159 = vpop.f32.mrb[0].mxu0
  %v3160 = vadd.f32 %v2703, %v3159
  %v3161 = vpop.f32.mrb[0].mxu0
  %3162 = vmatprep.mubr.bf16.mxu0 %v2965
  %3163 = vmatmul.mubr.bf16.gmra.mrb[0].mxu0 %v2244
  %v3164 = vpop.f32.mrb[0].mxu0
  %v3165 = vadd.f32 %v2708, %v3164
  %v3166 = vpop.f32.mrb[0].mxu0
  %v3167 = vpop.f32.mrb[0].mxu0
  %v3168 = vadd.f32 %v2711, %v3167
  %v3169 = vpop.f32.mrb[0].mxu0
  %3170 = vmatprep.mubr.bf16.mxu0 %v2968
  %3171 = vmatmul.mubr.bf16.gmra.mrb[0].mxu0 %v2246
  %v3172 = vpop.f32.mrb[0].mxu0
  %v3173 = vadd.f32 %v2716, %v3172
  %v3174 = vpop.f32.mrb[0].mxu0
  %v3175 = vpop.f32.mrb[0].mxu0
  %v3176 = vadd.f32 %v2719, %v3175
  %v3177 = vpop.f32.mrb[0].mxu0
  %3178 = vmatprep.mubr.bf16.mxu0 %v2971
  %3179 = vmatmul.mubr.bf16.gmra.mrb[0].mxu0 %v2248
  %v3180 = vpop.f32.mrb[0].mxu0
  %v3181 = vadd.f32 %v2724, %v3180
  %v3182 = vpop.f32.mrb[0].mxu0
  %v3183 = vpop.f32.mrb[0].mxu0
  %v3184 = vadd.f32 %v2727, %v3183
  %v3185 = vpop.f32.mrb[0].mxu0
  %3186 = vmatprep.mubr.bf16.mxu0 %v2974
  %3187 = vmatmul.mubr.bf16.gmra.mrb[0].mxu0 %v2250
  %v3188 = vpop.f32.mrb[0].mxu0
  %v3189 = vadd.f32 %v2732, %v3188
  %v3190 = vpop.f32.mrb[0].mxu0
  %v3191 = vpop.f32.mrb[0].mxu0
  %v3192 = vadd.f32 %v2735, %v3191
  %v3193 = vpop.f32.mrb[0].mxu0
  %3194 = vmatprep.mubr.bf16.mxu0 %v2977
  %3195 = vmatmul.mubr.bf16.gmra.mrb[0].mxu0 %v2252
  %v3196 = vpop.f32.mrb[0].mxu0
  %v3197 = vadd.f32 %v2740, %v3196
  %v3198 = vpop.f32.mrb[0].mxu0
  %v3199 = vpop.f32.mrb[0].mxu0
  %v3200 = vadd.f32 %v2743, %v3199
  %v3201 = vpop.f32.mrb[0].mxu0
  %3202 = vmatprep.mubr.bf16.mxu0 %v2980
  %3203 = vmatmul.mubr.bf16.gmra.mrb[0].mxu0 %v2254
  %v3204 = vpop.f32.mrb[0].mxu0
  %v3205 = vadd.f32 %v2748, %v3204
  %v3206 = vpop.f32.mrb[0].mxu0
  %v3207 = vpop.f32.mrb[0].mxu0
  %v3208 = vadd.f32 %v2751, %v3207
  %v3209 = vpop.f32.mrb[0].mxu0
  %3210 = vmatprep.mubr.bf16.mxu0 %v2983
  %3211 = vmatmul.mubr.bf16.gmra.mrb[0].mxu0 %v2256
  %v3212 = vpop.f32.mrb[0].mxu0
  %v3213 = vadd.f32 %v2756, %v3212
  %v3214 = vpop.f32.mrb[0].mxu0
  %v3215 = vpop.f32.mrb[0].mxu0
  %v3216 = vadd.f32 %v2759, %v3215
  %v3217 = vpop.f32.mrb[0].mxu0
  %3218 = vmatprep.mubr.bf16.mxu0 %v2986
  %3219 = vmatmul.mubr.bf16.gmra.mrb[0].mxu0 %v2258
  %v3220 = vpop.f32.mrb[0].mxu0
  %v3221 = vadd.f32 %v2764, %v3220
  %v3222 = vpop.f32.mrb[0].mxu0
  %v3223 = vpop.f32.mrb[0].mxu0
  %v3224 = vadd.f32 %v2767, %v3223
  %v3225 = vpop.f32.mrb[0].mxu0
  %3226 = vmatprep.mubr.bf16.mxu0 %v2989
  %3227 = vmatmul.mubr.bf16.gmra.mrb[0].mxu0 %v2260
  %v3228 = vpop.f32.mrb[0].mxu0
  %v3229 = vadd.f32 %v2772, %v3228
  %v3230 = vpop.f32.mrb[0].mxu0
  %v3231 = vpop.f32.mrb[0].mxu0
  %v3232 = vadd.f32 %v2775, %v3231
  %v3233 = vpop.f32.mrb[0].mxu0
  %3234 = vmatprep.mubr.bf16.mxu0 %v2992
  %3235 = vmatmul.mubr.bf16.gmra.mrb[0].mxu0 %v2262
  %v3236 = vpop.f32.mrb[0].mxu0
  %v3237 = vadd.f32 %v2780, %v3236
  %v3238 = vpop.f32.mrb[0].mxu0
  %v3239 = vpop.f32.mrb[0].mxu0
  %v3240 = vadd.f32 %v2783, %v3239
  %v3241 = vpop.f32.mrb[0].mxu0
  %3242 = vmatprep.mubr.bf16.mxu0 %v2995
  %3243 = vmatmul.mubr.bf16.gmra.mrb[0].mxu0 %v2264
  %v3244 = vpop.f32.mrb[0].mxu0
  %v3245 = vadd.f32 %v2788, %v3244
  %v3246 = vpop.f32.mrb[0].mxu0
  %v3247 = vpop.f32.mrb[0].mxu0
  %v3248 = vadd.f32 %v2791, %v3247
  %v3249 = vpop.f32.mrb[0].mxu0
  %3250 = vmatprep.mubr.bf16.mxu0 %v2998
  %3251 = vmatmul.mubr.bf16.gmra.mrb[0].mxu0 %v2266
  %v3252 = vpop.f32.mrb[0].mxu0
  %v3253 = vadd.f32 %v2796, %v3252
  %v3254 = vpop.f32.mrb[0].mxu0
  %v3255 = vpop.f32.mrb[0].mxu0
  %v3256 = vadd.f32 %v2799, %v3255
  %v3257 = vpop.f32.mrb[0].mxu0
  %3258 = vmatprep.mubr.bf16.mxu0 %v3001
  %3259 = vmatmul.mubr.bf16.gmra.mrb[0].mxu0 %v2268
  %v3260 = vpop.f32.mrb[0].mxu0
  %v3261 = vadd.f32 %v2804, %v3260
  %v3262 = vpop.f32.mrb[0].mxu0
  %v3263 = vpop.f32.mrb[0].mxu0
  %v3264 = vadd.f32 %v2807, %v3263
  %v3265 = vpop.f32.mrb[0].mxu0
  %3266 = vmatprep.mubr.bf16.mxu0 %v3004
  %3267 = vmatmul.mubr.bf16.gmra.mrb[0].mxu0 %v2270
  %v3268 = vpop.f32.mrb[0].mxu0
  %v3269 = vadd.f32 %v2812, %v3268
  %v3270 = vpop.f32.mrb[0].mxu0
  %v3271 = vpop.f32.mrb[0].mxu0
  %v3272 = vadd.f32 %v2815, %v3271
  %v3273 = vpop.f32.mrb[0].mxu0
  %3274 = vmatprep.mubr.bf16.mxu0 %v3007
  %3275 = vmatmul.mubr.bf16.gmra.mrb[0].mxu0 %v2272
  %v3276 = vpop.f32.mrb[0].mxu0
  %v3277 = vadd.f32 %v2820, %v3276
  %v3278 = vpop.f32.mrb[0].mxu0
  %v3279 = vpop.f32.mrb[0].mxu0
  %v3280 = vadd.f32 %v2823, %v3279
  %v3281 = vpop.f32.mrb[0].mxu0
  %3282 = vmatprep.mubr.bf16.mxu0 %v3010
  %3283 = vmatmul.mubr.bf16.gmra.mrb[0].mxu0 %v2274
  %v3284 = vpop.f32.mrb[0].mxu0
  %v3285 = vadd.f32 %v2828, %v3284
  %v3286 = vpop.f32.mrb[0].mxu0
  %v3287 = vpop.f32.mrb[0].mxu0
  %v3288 = vadd.f32 %v2831, %v3287
  %v3289 = vpop.f32.mrb[0].mxu0
  %3290 = vmatprep.mubr.bf16.mxu0 %v3013
  %3291 = vmatmul.mubr.bf16.gmra.mrb[0].mxu0 %v2276
  %v3292 = vpop.f32.mrb[0].mxu0
  %v3293 = vadd.f32 %v2836, %v3292
  %v3294 = vpop.f32.mrb[0].mxu0
  %v3295 = vpop.f32.mrb[0].mxu0
  %v3296 = vadd.f32 %v2839, %v3295
  %v3297 = vpop.f32.mrb[0].mxu0
  %3298 = vmatprep.mubr.bf16.mxu0 %v3016
  %3299 = vmatmul.mubr.bf16.gmra.mrb[0].mxu0 %v2278
  %v3300 = vpop.f32.mrb[0].mxu0
  %v3301 = vadd.f32 %v2844, %v3300
  %v3302 = vpop.f32.mrb[0].mxu0
  %v3303 = vpop.f32.mrb[0].mxu0
  %v3304 = vadd.f32 %v2847, %v3303
  %v3305 = vpop.f32.mrb[0].mxu0
  %3306 = vdwg.mxu0
  %s3307 = scalar_lea.vmem [#allocation2], 32
  %v3308 = vld [vmem:[%s3307] sm:$0xff]
  %v3309 = vld [vmem:[%s3307 + $0x8] sm:$0xff]
  %v3310 = vld [vmem:[%s3307 + $0x10] sm:$0xff]
  %v3311 = vld [vmem:[%s3307 + $0x18] sm:$0xff]
  %v3312 = vld [vmem:[%s3307 + $0x20] sm:$0xff]
  %v3313 = vld [vmem:[%s3307 + $0x28] sm:$0xff]
  %v3314 = vld [vmem:[%s3307 + $0x30] sm:$0xff]
  %v3315 = vld [vmem:[%s3307 + $0x38] sm:$0xff]
  %v3316 = vld [vmem:[%s3307 + $0x40] sm:$0xff]
  %v3317 = vld [vmem:[%s3307 + $0x48] sm:$0xff]
  %v3318 = vld [vmem:[%s3307 + $0x50] sm:$0xff]
  %v3319 = vld [vmem:[%s3307 + $0x58] sm:$0xff]
  %v3320 = vld [vmem:[%s3307 + $0x60] sm:$0xff]
  %v3321 = vld [vmem:[%s3307 + $0x68] sm:$0xff]
  %v3322 = vld [vmem:[%s3307 + $0x70] sm:$0xff]
  %v3323 = vld [vmem:[%s3307 + $0x78] sm:$0xff]
  %v3324 = vld [vmem:[%s3307 + $0x80] sm:$0xff]
  %v3325 = vld [vmem:[%s3307 + $0x88] sm:$0xff]
  %v3326 = vld [vmem:[%s3307 + $0x90] sm:$0xff]
  %v3327 = vld [vmem:[%s3307 + $0x98] sm:$0xff]
  %v3328 = vld [vmem:[%s3307 + $0xa0] sm:$0xff]
  %v3329 = vld [vmem:[%s3307 + $0xa8] sm:$0xff]
  %v3330 = vld [vmem:[%s3307 + $0xb0] sm:$0xff]
  %v3331 = vld [vmem:[%s3307 + $0xb8] sm:$0xff]
  %v3332 = vld [vmem:[%s3307 + $0xc0] sm:$0xff]
  %v3333 = vld [vmem:[%s3307 + $0xc8] sm:$0xff]
  %v3334 = vld [vmem:[%s3307 + $0xd0] sm:$0xff]
  %v3335 = vld [vmem:[%s3307 + $0xd8] sm:$0xff]
  %v3336 = vld [vmem:[%s3307 + $0xe0] sm:$0xff]
  %v3337 = vld [vmem:[%s3307 + $0xe8] sm:$0xff]
  %v3338 = vld [vmem:[%s3307 + $0xf0] sm:$0xff]
  %v3339 = vld [vmem:[%s3307 + $0xf8] sm:$0xff]
  %v3340 = vld [vmem:[%s3307 + $0x120] sm:$0xff]
  %v3341 = vld [vmem:[%s3307 + $0x128] sm:$0xff]
  %v3342 = vld [vmem:[%s3307 + $0x130] sm:$0xff]
  %v3343 = vld [vmem:[%s3307 + $0x138] sm:$0xff]
  %v3344 = vld [vmem:[%s3307 + $0x140] sm:$0xff]
  %v3345 = vld [vmem:[%s3307 + $0x148] sm:$0xff]
  %v3346 = vld [vmem:[%s3307 + $0x150] sm:$0xff]
  %v3347 = vld [vmem:[%s3307 + $0x158] sm:$0xff]
  %v3348 = vld [vmem:[%s3307 + $0x160] sm:$0xff]
  %v3349 = vld [vmem:[%s3307 + $0x168] sm:$0xff]
  %v3350 = vld [vmem:[%s3307 + $0x170] sm:$0xff]
  %v3351 = vld [vmem:[%s3307 + $0x178] sm:$0xff]
  %v3352 = vld [vmem:[%s3307 + $0x180] sm:$0xff]
  %v3353 = vld [vmem:[%s3307 + $0x188] sm:$0xff]
  %v3354 = vld [vmem:[%s3307 + $0x190] sm:$0xff]
  %v3355 = vld [vmem:[%s3307 + $0x198] sm:$0xff]
  %v3356 = vld [vmem:[%s3307 + $0x1a0] sm:$0xff]
  %v3357 = vld [vmem:[%s3307 + $0x1a8] sm:$0xff]
  %v3358 = vld [vmem:[%s3307 + $0x1b0] sm:$0xff]
  %v3359 = vld [vmem:[%s3307 + $0x1b8] sm:$0xff]
  %v3360 = vld [vmem:[%s3307 + $0x1c0] sm:$0xff]
  %v3361 = vld [vmem:[%s3307 + $0x1c8] sm:$0xff]
  %v3362 = vld [vmem:[%s3307 + $0x1d0] sm:$0xff]
  %v3363 = vld [vmem:[%s3307 + $0x1d8] sm:$0xff]
  %v3364 = vld [vmem:[%s3307 + $0x1e0] sm:$0xff]
  %v3365 = vld [vmem:[%s3307 + $0x1e8] sm:$0xff]
  %v3366 = vld [vmem:[%s3307 + $0x1f0] sm:$0xff]
  %v3367 = vld [vmem:[%s3307 + $0x1f8] sm:$0xff]
  %v3368 = vld [vmem:[%s3307 + $0x200] sm:$0xff]
  %v3369 = vld [vmem:[%s3307 + $0x208] sm:$0xff]
  %v3370 = vld [vmem:[%s3307 + $0x210] sm:$0xff]
  %v3371 = vld [vmem:[%s3307 + $0x218] sm:$0xff]
  %s3372 = scalar_lea.vmem %s3, 192
  %v3373 = vld [vmem:[%s3372] sm:$0xf]
  %v3374 = vld [vmem:[%s3372 + $0x4] sm:$0xf]
  %v3375 = vld [vmem:[%s3372 + $0x8] sm:$0xf]
  %v3376 = vld [vmem:[%s3372 + $0xc] sm:$0xf]
  %v3377 = vld [vmem:[%s3372 + $0x10] sm:$0xf]
  %v3378 = vld [vmem:[%s3372 + $0x14] sm:$0xf]
  %v3379 = vld [vmem:[%s3372 + $0x18] sm:$0xf]
  %v3380 = vld [vmem:[%s3372 + $0x1c] sm:$0xf]
  %v3381 = vld [vmem:[%s3372 + $0x20] sm:$0xf]
  %v3382 = vld [vmem:[%s3372 + $0x24] sm:$0xf]
  %v3383 = vld [vmem:[%s3372 + $0x28] sm:$0xf]
  %v3384 = vld [vmem:[%s3372 + $0x2c] sm:$0xf]
  %v3385 = vld [vmem:[%s3372 + $0x30] sm:$0xf]
  %v3386 = vld [vmem:[%s3372 + $0x34] sm:$0xf]
  %v3387 = vld [vmem:[%s3372 + $0x38] sm:$0xf]
  %v3388 = vld [vmem:[%s3372 + $0x3c] sm:$0xf]
  %v3389 = vld [vmem:[%s3372 + $0x40] sm:$0xf]
  %v3390 = vld [vmem:[%s3372 + $0x44] sm:$0xf]
  %v3391 = vld [vmem:[%s3372 + $0x48] sm:$0xf]
  %v3392 = vld [vmem:[%s3372 + $0x4c] sm:$0xf]
  %v3393 = vld [vmem:[%s3372 + $0x50] sm:$0xf]
  %v3394 = vld [vmem:[%s3372 + $0x54] sm:$0xf]
  %v3395 = vld [vmem:[%s3372 + $0x58] sm:$0xf]
  %v3396 = vld [vmem:[%s3372 + $0x5c] sm:$0xf]
  %v3421 = vunpack.c.l.b16 %v3373
  %v3422 = vunpack.c.l.b16 %v3374
  %v3423 = vunpack.c.l.b16 %v3375
  %v3424 = vunpack.c.l.b16 %v3376
  %v3425 = vunpack.c.l.b16 %v3377
  %v3426 = vunpack.c.l.b16 %v3378
  %v3427 = vunpack.c.l.b16 %v3379
  %v3428 = vunpack.c.l.b16 %v3380
  %v3429 = vunpack.c.l.b16 %v3381
  %v3430 = vunpack.c.l.b16 %v3382
  %v3431 = vunpack.c.l.b16 %v3383
  %v3432 = vunpack.c.l.b16 %v3384
  %v3433 = vunpack.c.l.b16 %v3385
  %v3434 = vunpack.c.l.b16 %v3386
  %v3435 = vunpack.c.l.b16 %v3387
  %v3436 = vunpack.c.l.b16 %v3388
  %v3437 = vunpack.c.l.b16 %v3389
  %v3438 = vunpack.c.l.b16 %v3390
  %v3439 = vunpack.c.l.b16 %v3391
  %v3440 = vunpack.c.l.b16 %v3392
  %v3441 = vunpack.c.l.b16 %v3393
  %v3442 = vunpack.c.l.b16 %v3394
  %v3443 = vunpack.c.l.b16 %v3395
  %v3444 = vunpack.c.l.b16 %v3396
  %v3445 = vpack.c.b16 %v3422, %v3421
  %v3446 = vpack.c.b16 %v3424, %v3423
  %v3447 = vpack.c.b16 %v3426, %v3425
  %v3448 = vpack.c.b16 %v3428, %v3427
  %v3449 = vpack.c.b16 %v3430, %v3429
  %v3450 = vpack.c.b16 %v3432, %v3431
  %v3451 = vpack.c.b16 %v3434, %v3433
  %v3452 = vpack.c.b16 %v3436, %v3435
  %v3453 = vpack.c.b16 %v3438, %v3437
  %v3454 = vpack.c.b16 %v3440, %v3439
  %v3455 = vpack.c.b16 %v3442, %v3441
  %v3456 = vpack.c.b16 %v3444, %v3443
  %v3470 = vsel %vm94, %v3309, 0
  %v3473 = vsel %vm94, %v3311, 0
  %v3476 = vsel %vm94, %v3313, 0
  %v3479 = vsel %vm94, %v3315, 0
  %v3482 = vsel %vm94, %v3317, 0
  %v3485 = vsel %vm94, %v3319, 0
  %v3488 = vsel %vm94, %v3321, 0
  %v3491 = vsel %vm94, %v3323, 0
  %v3494 = vsel %vm94, %v3325, 0
  %v3497 = vsel %vm94, %v3327, 0
  %v3500 = vsel %vm94, %v3329, 0
  %v3503 = vsel %vm94, %v3331, 0
  %v3506 = vsel %vm94, %v3333, 0
  %v3509 = vsel %vm94, %v3335, 0
  %v3512 = vsel %vm94, %v3337, 0
  %v3515 = vsel %vm94, %v3339, 0
  %v3518 = vsel %vm94, %v3341, 0
  %v3521 = vsel %vm94, %v3343, 0
  %v3524 = vsel %vm94, %v3345, 0
  %v3527 = vsel %vm94, %v3347, 0
  %v3530 = vsel %vm94, %v3349, 0
  %v3533 = vsel %vm94, %v3351, 0
  %v3536 = vsel %vm94, %v3353, 0
  %v3539 = vsel %vm94, %v3355, 0
  %v3542 = vsel %vm94, %v3357, 0
  %v3545 = vsel %vm94, %v3359, 0
  %v3548 = vsel %vm94, %v3361, 0
  %v3551 = vsel %vm94, %v3363, 0
  %v3554 = vsel %vm94, %v3365, 0
  %v3557 = vsel %vm94, %v3367, 0
  %v3560 = vsel %vm94, %v3369, 0
  %v3563 = vsel %vm94, %v3371, 0
  %3565 = vmatprep.subr.bf16.mxu0 0
  %3566 = vmatpush1.bf16.msra.mxu0 %v3445
  %3567 = vmatprep.subr.bf16.mxu0 0
  %3568 = vmatpush1.bf16.msra.mxu0 %v3446
  %3569 = vmatprep.subr.bf16.mxu0 0
  %3570 = vmatpush1.bf16.msra.mxu0 %v3447
  %3571 = vmatprep.subr.bf16.mxu0 0
  %3572 = vmatpush1.bf16.msra.mxu0 %v3448
  %3573 = vmatprep.subr.bf16.mxu0 0
  %3574 = vmatpush1.bf16.msra.mxu0 %v3449
  %3575 = vmatprep.subr.bf16.mxu0 0
  %3576 = vmatpush1.bf16.msra.mxu0 %v3450
  %3577 = vmatprep.subr.bf16.mxu0 0
  %3578 = vmatpush1.bf16.msra.mxu0 %v3451
  %3579 = vmatprep.subr.bf16.mxu0 0
  %3580 = vmatpush1.bf16.msra.mxu0 %v3452
  %3581 = vmatprep.subr.bf16.mxu0 0
  %3582 = vmatpush1.bf16.msra.mxu0 %v3453
  %3583 = vmatprep.subr.bf16.mxu0 0
  %3584 = vmatpush1.bf16.msra.mxu0 %v3454
  %3585 = vmatprep.subr.bf16.mxu0 0
  %3586 = vmatpush1.bf16.msra.mxu0 %v3455
  %3587 = vmatprep.subr.bf16.mxu0 0
  %3588 = vmatpush1.bf16.msra.mxu0 %v3456
  %3589 = vmatprep.subr.bf16.mxu0 0
  %3590 = vmatpush1.bf16.msra.mxu0 0
  %3591 = vmatprep.subr.bf16.mxu0 0
  %3592 = vmatpush1.bf16.msra.mxu0 0
  %3593 = vmatprep.subr.bf16.mxu0 0
  %3594 = vmatpush1.bf16.msra.mxu0 0
  %3595 = vmatprep.subr.bf16.mxu0 0
  %3596 = vmatpush1.bf16.msra.mxu0 0
  %3597 = vmatprep.mubr.bf16.mxu0 %v3470
  %3598 = vmatmul.mubr.bf16.gmra.mrb[0].mxu0 %v3308
  %v3599 = vpop.f32.mrb[0].mxu0
  %v3600 = vadd.f32 0.0, %v3599
  %v3601 = vpop.f32.mrb[0].mxu0
  %v3602 = vpop.f32.mrb[0].mxu0
  %v3603 = vadd.f32 0.0, %v3602
  %v3604 = vpop.f32.mrb[0].mxu0
  %3605 = vmatprep.mubr.bf16.mxu0 %v3473
  %3606 = vmatmul.mubr.bf16.gmra.mrb[0].mxu0 %v3310
  %v3607 = vpop.f32.mrb[0].mxu0
  %v3608 = vadd.f32 0.0, %v3607
  %v3609 = vpop.f32.mrb[0].mxu0
  %v3610 = vpop.f32.mrb[0].mxu0
  %v3611 = vadd.f32 0.0, %v3610
  %v3612 = vpop.f32.mrb[0].mxu0
  %3613 = vmatprep.mubr.bf16.mxu0 %v3476
  %3614 = vmatmul.mubr.bf16.gmra.mrb[0].mxu0 %v3312
  %v3615 = vpop.f32.mrb[0].mxu0
  %v3616 = vadd.f32 0.0, %v3615
  %v3617 = vpop.f32.mrb[0].mxu0
  %v3618 = vpop.f32.mrb[0].mxu0
  %v3619 = vadd.f32 0.0, %v3618
  %v3620 = vpop.f32.mrb[0].mxu0
  %3621 = vmatprep.mubr.bf16.mxu0 %v3479
  %3622 = vmatmul.mubr.bf16.gmra.mrb[0].mxu0 %v3314
  %v3623 = vpop.f32.mrb[0].mxu0
  %v3624 = vadd.f32 0.0, %v3623
  %v3625 = vpop.f32.mrb[0].mxu0
  %v3626 = vpop.f32.mrb[0].mxu0
  %v3627 = vadd.f32 0.0, %v3626
  %v3628 = vpop.f32.mrb[0].mxu0
  %3629 = vmatprep.mubr.bf16.mxu0 %v3482
  %3630 = vmatmul.mubr.bf16.gmra.mrb[0].mxu0 %v3316
  %v3631 = vpop.f32.mrb[0].mxu0
  %v3632 = vadd.f32 0.0, %v3631
  %v3633 = vpop.f32.mrb[0].mxu0
  %v3634 = vpop.f32.mrb[0].mxu0
  %v3635 = vadd.f32 0.0, %v3634
  %v3636 = vpop.f32.mrb[0].mxu0
  %3637 = vmatprep.mubr.bf16.mxu0 %v3485
  %3638 = vmatmul.mubr.bf16.gmra.mrb[0].mxu0 %v3318
  %v3639 = vpop.f32.mrb[0].mxu0
  %v3640 = vadd.f32 0.0, %v3639
  %v3641 = vpop.f32.mrb[0].mxu0
  %v3642 = vpop.f32.mrb[0].mxu0
  %v3643 = vadd.f32 0.0, %v3642
  %v3644 = vpop.f32.mrb[0].mxu0
  %3645 = vmatprep.mubr.bf16.mxu0 %v3488
  %3646 = vmatmul.mubr.bf16.gmra.mrb[0].mxu0 %v3320
  %v3647 = vpop.f32.mrb[0].mxu0
  %v3648 = vadd.f32 0.0, %v3647
  %v3649 = vpop.f32.mrb[0].mxu0
  %v3650 = vpop.f32.mrb[0].mxu0
  %v3651 = vadd.f32 0.0, %v3650
  %v3652 = vpop.f32.mrb[0].mxu0
  %3653 = vmatprep.mubr.bf16.mxu0 %v3491
  %3654 = vmatmul.mubr.bf16.gmra.mrb[0].mxu0 %v3322
  %v3655 = vpop.f32.mrb[0].mxu0
  %v3656 = vadd.f32 0.0, %v3655
  %v3657 = vpop.f32.mrb[0].mxu0
  %v3658 = vpop.f32.mrb[0].mxu0
  %v3659 = vadd.f32 0.0, %v3658
  %v3660 = vpop.f32.mrb[0].mxu0
  %3661 = vmatprep.mubr.bf16.mxu0 %v3494
  %3662 = vmatmul.mubr.bf16.gmra.mrb[0].mxu0 %v3324
  %v3663 = vpop.f32.mrb[0].mxu0
  %v3664 = vadd.f32 0.0, %v3663
  %v3665 = vpop.f32.mrb[0].mxu0
  %v3666 = vpop.f32.mrb[0].mxu0
  %v3667 = vadd.f32 0.0, %v3666
  %v3668 = vpop.f32.mrb[0].mxu0
  %3669 = vmatprep.mubr.bf16.mxu0 %v3497
  %3670 = vmatmul.mubr.bf16.gmra.mrb[0].mxu0 %v3326
  %v3671 = vpop.f32.mrb[0].mxu0
  %v3672 = vadd.f32 0.0, %v3671
  %v3673 = vpop.f32.mrb[0].mxu0
  %v3674 = vpop.f32.mrb[0].mxu0
  %v3675 = vadd.f32 0.0, %v3674
  %v3676 = vpop.f32.mrb[0].mxu0
  %3677 = vmatprep.mubr.bf16.mxu0 %v3500
  %3678 = vmatmul.mubr.bf16.gmra.mrb[0].mxu0 %v3328
  %v3679 = vpop.f32.mrb[0].mxu0
  %v3680 = vadd.f32 0.0, %v3679
  %v3681 = vpop.f32.mrb[0].mxu0
  %v3682 = vpop.f32.mrb[0].mxu0
  %v3683 = vadd.f32 0.0, %v3682
  %v3684 = vpop.f32.mrb[0].mxu0
  %3685 = vmatprep.mubr.bf16.mxu0 %v3503
  %3686 = vmatmul.mubr.bf16.gmra.mrb[0].mxu0 %v3330
  %v3687 = vpop.f32.mrb[0].mxu0
  %v3688 = vadd.f32 0.0, %v3687
  %v3689 = vpop.f32.mrb[0].mxu0
  %v3690 = vpop.f32.mrb[0].mxu0
  %v3691 = vadd.f32 0.0, %v3690
  %v3692 = vpop.f32.mrb[0].mxu0
  %3693 = vmatprep.mubr.bf16.mxu0 %v3506
  %3694 = vmatmul.mubr.bf16.gmra.mrb[0].mxu0 %v3332
  %v3695 = vpop.f32.mrb[0].mxu0
  %v3696 = vadd.f32 0.0, %v3695
  %v3697 = vpop.f32.mrb[0].mxu0
  %v3698 = vpop.f32.mrb[0].mxu0
  %v3699 = vadd.f32 0.0, %v3698
  %v3700 = vpop.f32.mrb[0].mxu0
  %3701 = vmatprep.mubr.bf16.mxu0 %v3509
  %3702 = vmatmul.mubr.bf16.gmra.mrb[0].mxu0 %v3334
  %v3703 = vpop.f32.mrb[0].mxu0
  %v3704 = vadd.f32 0.0, %v3703
  %v3705 = vpop.f32.mrb[0].mxu0
  %v3706 = vpop.f32.mrb[0].mxu0
  %v3707 = vadd.f32 0.0, %v3706
  %v3708 = vpop.f32.mrb[0].mxu0
  %3709 = vmatprep.mubr.bf16.mxu0 %v3512
  %3710 = vmatmul.mubr.bf16.gmra.mrb[0].mxu0 %v3336
  %v3711 = vpop.f32.mrb[0].mxu0
  %v3712 = vadd.f32 0.0, %v3711
  %v3713 = vpop.f32.mrb[0].mxu0
  %v3714 = vpop.f32.mrb[0].mxu0
  %v3715 = vadd.f32 0.0, %v3714
  %v3716 = vpop.f32.mrb[0].mxu0
  %3717 = vmatprep.mubr.bf16.mxu0 %v3515
  %3718 = vmatmul.mubr.bf16.gmra.mrb[0].mxu0 %v3338
  %v3719 = vpop.f32.mrb[0].mxu0
  %v3720 = vadd.f32 0.0, %v3719
  %v3721 = vpop.f32.mrb[0].mxu0
  %v3722 = vpop.f32.mrb[0].mxu0
  %v3723 = vadd.f32 0.0, %v3722
  %v3724 = vpop.f32.mrb[0].mxu0
  %3725 = vmatprep.mubr.bf16.mxu0 %v3518
  %3726 = vmatmul.mubr.bf16.gmra.mrb[0].mxu0 %v3340
  %v3727 = vpop.f32.mrb[0].mxu0
  %v3728 = vadd.f32 0.0, %v3727
  %v3729 = vpop.f32.mrb[0].mxu0
  %v3730 = vpop.f32.mrb[0].mxu0
  %v3731 = vadd.f32 0.0, %v3730
  %v3732 = vpop.f32.mrb[0].mxu0
  %3733 = vmatprep.mubr.bf16.mxu0 %v3521
  %3734 = vmatmul.mubr.bf16.gmra.mrb[0].mxu0 %v3342
  %v3735 = vpop.f32.mrb[0].mxu0
  %v3736 = vadd.f32 0.0, %v3735
  %v3737 = vpop.f32.mrb[0].mxu0
  %v3738 = vpop.f32.mrb[0].mxu0
  %v3739 = vadd.f32 0.0, %v3738
  %v3740 = vpop.f32.mrb[0].mxu0
  %3741 = vmatprep.mubr.bf16.mxu0 %v3524
  %3742 = vmatmul.mubr.bf16.gmra.mrb[0].mxu0 %v3344
  %v3743 = vpop.f32.mrb[0].mxu0
  %v3744 = vadd.f32 0.0, %v3743
  %v3745 = vpop.f32.mrb[0].mxu0
  %v3746 = vpop.f32.mrb[0].mxu0
  %v3747 = vadd.f32 0.0, %v3746
  %v3748 = vpop.f32.mrb[0].mxu0
  %3749 = vmatprep.mubr.bf16.mxu0 %v3527
  %3750 = vmatmul.mubr.bf16.gmra.mrb[0].mxu0 %v3346
  %v3751 = vpop.f32.mrb[0].mxu0
  %v3752 = vadd.f32 0.0, %v3751
  %v3753 = vpop.f32.mrb[0].mxu0
  %v3754 = vpop.f32.mrb[0].mxu0
  %v3755 = vadd.f32 0.0, %v3754
  %v3756 = vpop.f32.mrb[0].mxu0
  %3757 = vmatprep.mubr.bf16.mxu0 %v3530
  %3758 = vmatmul.mubr.bf16.gmra.mrb[0].mxu0 %v3348
  %v3759 = vpop.f32.mrb[0].mxu0
  %v3760 = vadd.f32 0.0, %v3759
  %v3761 = vpop.f32.mrb[0].mxu0
  %v3762 = vpop.f32.mrb[0].mxu0
  %v3763 = vadd.f32 0.0, %v3762
  %v3764 = vpop.f32.mrb[0].mxu0
  %3765 = vmatprep.mubr.bf16.mxu0 %v3533
  %3766 = vmatmul.mubr.bf16.gmra.mrb[0].mxu0 %v3350
  %v3767 = vpop.f32.mrb[0].mxu0
  %v3768 = vadd.f32 0.0, %v3767
  %v3769 = vpop.f32.mrb[0].mxu0
  %v3770 = vpop.f32.mrb[0].mxu0
  %v3771 = vadd.f32 0.0, %v3770
  %v3772 = vpop.f32.mrb[0].mxu0
  %3773 = vmatprep.mubr.bf16.mxu0 %v3536
  %3774 = vmatmul.mubr.bf16.gmra.mrb[0].mxu0 %v3352
  %v3775 = vpop.f32.mrb[0].mxu0
  %v3776 = vadd.f32 0.0, %v3775
  %v3777 = vpop.f32.mrb[0].mxu0
  %v3778 = vpop.f32.mrb[0].mxu0
  %v3779 = vadd.f32 0.0, %v3778
  %v3780 = vpop.f32.mrb[0].mxu0
  %3781 = vmatprep.mubr.bf16.mxu0 %v3539
  %3782 = vmatmul.mubr.bf16.gmra.mrb[0].mxu0 %v3354
  %v3783 = vpop.f32.mrb[0].mxu0
  %v3784 = vadd.f32 0.0, %v3783
  %v3785 = vpop.f32.mrb[0].mxu0
  %v3786 = vpop.f32.mrb[0].mxu0
  %v3787 = vadd.f32 0.0, %v3786
  %v3788 = vpop.f32.mrb[0].mxu0
  %3789 = vmatprep.mubr.bf16.mxu0 %v3542
  %3790 = vmatmul.mubr.bf16.gmra.mrb[0].mxu0 %v3356
  %v3791 = vpop.f32.mrb[0].mxu0
  %v3792 = vadd.f32 0.0, %v3791
  %v3793 = vpop.f32.mrb[0].mxu0
  %v3794 = vpop.f32.mrb[0].mxu0
  %v3795 = vadd.f32 0.0, %v3794
  %v3796 = vpop.f32.mrb[0].mxu0
  %3797 = vmatprep.mubr.bf16.mxu0 %v3545
  %3798 = vmatmul.mubr.bf16.gmra.mrb[0].mxu0 %v3358
  %v3799 = vpop.f32.mrb[0].mxu0
  %v3800 = vadd.f32 0.0, %v3799
  %v3801 = vpop.f32.mrb[0].mxu0
  %v3802 = vpop.f32.mrb[0].mxu0
  %v3803 = vadd.f32 0.0, %v3802
  %v3804 = vpop.f32.mrb[0].mxu0
  %3805 = vmatprep.mubr.bf16.mxu0 %v3548
  %3806 = vmatmul.mubr.bf16.gmra.mrb[0].mxu0 %v3360
  %v3807 = vpop.f32.mrb[0].mxu0
  %v3808 = vadd.f32 0.0, %v3807
  %v3809 = vpop.f32.mrb[0].mxu0
  %v3810 = vpop.f32.mrb[0].mxu0
  %v3811 = vadd.f32 0.0, %v3810
  %v3812 = vpop.f32.mrb[0].mxu0
  %3813 = vmatprep.mubr.bf16.mxu0 %v3551
  %3814 = vmatmul.mubr.bf16.gmra.mrb[0].mxu0 %v3362
  %v3815 = vpop.f32.mrb[0].mxu0
  %v3816 = vadd.f32 0.0, %v3815
  %v3817 = vpop.f32.mrb[0].mxu0
  %v3818 = vpop.f32.mrb[0].mxu0
  %v3819 = vadd.f32 0.0, %v3818
  %v3820 = vpop.f32.mrb[0].mxu0
  %3821 = vmatprep.mubr.bf16.mxu0 %v3554
  %3822 = vmatmul.mubr.bf16.gmra.mrb[0].mxu0 %v3364
  %v3823 = vpop.f32.mrb[0].mxu0
  %v3824 = vadd.f32 0.0, %v3823
  %v3825 = vpop.f32.mrb[0].mxu0
  %v3826 = vpop.f32.mrb[0].mxu0
  %v3827 = vadd.f32 0.0, %v3826
  %v3828 = vpop.f32.mrb[0].mxu0
  %3829 = vmatprep.mubr.bf16.mxu0 %v3557
  %3830 = vmatmul.mubr.bf16.gmra.mrb[0].mxu0 %v3366
  %v3831 = vpop.f32.mrb[0].mxu0
  %v3832 = vadd.f32 0.0, %v3831
  %v3833 = vpop.f32.mrb[0].mxu0
  %v3834 = vpop.f32.mrb[0].mxu0
  %v3835 = vadd.f32 0.0, %v3834
  %v3836 = vpop.f32.mrb[0].mxu0
  %3837 = vmatprep.mubr.bf16.mxu0 %v3560
  %3838 = vmatmul.mubr.bf16.gmra.mrb[0].mxu0 %v3368
  %v3839 = vpop.f32.mrb[0].mxu0
  %v3840 = vadd.f32 0.0, %v3839
  %v3841 = vpop.f32.mrb[0].mxu0
  %v3842 = vpop.f32.mrb[0].mxu0
  %v3843 = vadd.f32 0.0, %v3842
  %v3844 = vpop.f32.mrb[0].mxu0
  %3845 = vmatprep.mubr.bf16.mxu0 %v3563
  %3846 = vmatmul.mubr.bf16.gmra.mrb[0].mxu0 %v3370
  %v3847 = vpop.f32.mrb[0].mxu0
  %v3848 = vadd.f32 0.0, %v3847
  %v3849 = vpop.f32.mrb[0].mxu0
  %v3850 = vpop.f32.mrb[0].mxu0
  %v3851 = vadd.f32 0.0, %v3850
  %v3852 = vpop.f32.mrb[0].mxu0
  %3853 = vdwg.mxu0
  %v3854 = vadd.f32 %v3053, %v3600
  %v3855 = vadd.f32 %v3056, %v3603
  %v3856 = vadd.f32 %v3061, %v3608
  %v3857 = vadd.f32 %v3064, %v3611
  %v3858 = vadd.f32 %v3069, %v3616
  %v3859 = vadd.f32 %v3072, %v3619
  %v3860 = vadd.f32 %v3077, %v3624
  %v3861 = vadd.f32 %v3080, %v3627
  %v3862 = vadd.f32 %v3085, %v3632
  %v3863 = vadd.f32 %v3088, %v3635
  %v3864 = vadd.f32 %v3093, %v3640
  %v3865 = vadd.f32 %v3096, %v3643
  %v3866 = vadd.f32 %v3101, %v3648
  %v3867 = vadd.f32 %v3104, %v3651
  %v3868 = vadd.f32 %v3109, %v3656
  %v3869 = vadd.f32 %v3112, %v3659
  %v3870 = vadd.f32 %v3117, %v3664
  %v3871 = vadd.f32 %v3120, %v3667
  %v3872 = vadd.f32 %v3125, %v3672
  %v3873 = vadd.f32 %v3128, %v3675
  %v3874 = vadd.f32 %v3133, %v3680
  %v3875 = vadd.f32 %v3136, %v3683
  %v3876 = vadd.f32 %v3141, %v3688
  %v3877 = vadd.f32 %v3144, %v3691
  %v3878 = vadd.f32 %v3149, %v3696
  %v3879 = vadd.f32 %v3152, %v3699
  %v3880 = vadd.f32 %v3157, %v3704
  %v3881 = vadd.f32 %v3160, %v3707
  %v3882 = vadd.f32 %v3165, %v3712
  %v3883 = vadd.f32 %v3168, %v3715
  %v3884 = vadd.f32 %v3173, %v3720
  %v3885 = vadd.f32 %v3176, %v3723
  %v3886 = vadd.f32 %v3181, %v3728
  %v3887 = vadd.f32 %v3184, %v3731
  %v3888 = vadd.f32 %v3189, %v3736
  %v3889 = vadd.f32 %v3192, %v3739
  %v3890 = vadd.f32 %v3197, %v3744
  %v3891 = vadd.f32 %v3200, %v3747
  %v3892 = vadd.f32 %v3205, %v3752
  %v3893 = vadd.f32 %v3208, %v3755
  %v3894 = vadd.f32 %v3213, %v3760
  %v3895 = vadd.f32 %v3216, %v3763
  %v3896 = vadd.f32 %v3221, %v3768
  %v3897 = vadd.f32 %v3224, %v3771
  %v3898 = vadd.f32 %v3229, %v3776
  %v3899 = vadd.f32 %v3232, %v3779
  %v3900 = vadd.f32 %v3237, %v3784
  %v3901 = vadd.f32 %v3240, %v3787
  %v3902 = vadd.f32 %v3245, %v3792
  %v3903 = vadd.f32 %v3248, %v3795
  %v3904 = vadd.f32 %v3253, %v3800
  %v3905 = vadd.f32 %v3256, %v3803
  %v3906 = vadd.f32 %v3261, %v3808
  %v3907 = vadd.f32 %v3264, %v3811
  %v3908 = vadd.f32 %v3269, %v3816
  %v3909 = vadd.f32 %v3272, %v3819
  %v3910 = vadd.f32 %v3277, %v3824
  %v3911 = vadd.f32 %v3280, %v3827
  %v3912 = vadd.f32 %v3285, %v3832
  %v3913 = vadd.f32 %v3288, %v3835
  %v3914 = vadd.f32 %v3293, %v3840
  %v3915 = vadd.f32 %v3296, %v3843
  %v3916 = vadd.f32 %v3301, %v3848
  %v3917 = vadd.f32 %v3304, %v3851
  %v3918 = vlaneseq
  %v3919 = vshrl.u32 %v3918, 7
  %v3920 = vsub.s32 0, %v3919
  %v3921 = vrot.slane %v327, %v3920
  %v3922 = vadd.f32 %v3854, %v3921
  %v3923 = vadd.f32 %v3855, %v3921
  %v3924 = vadd.f32 %v3856, %v3921
  %v3925 = vadd.f32 %v3857, %v3921
  %v3926 = vadd.f32 %v3858, %v3921
  %v3927 = vadd.f32 %v3859, %v3921
  %v3928 = vadd.f32 %v3860, %v3921
  %v3929 = vadd.f32 %v3861, %v3921
  %v3930 = vadd.f32 %v3862, %v3921
  %v3931 = vadd.f32 %v3863, %v3921
  %v3932 = vadd.f32 %v3864, %v3921
  %v3933 = vadd.f32 %v3865, %v3921
  %v3934 = vadd.f32 %v3866, %v3921
  %v3935 = vadd.f32 %v3867, %v3921
  %v3936 = vadd.f32 %v3868, %v3921
  %v3937 = vadd.f32 %v3869, %v3921
  %v3938 = vadd.f32 %v3870, %v3921
  %v3939 = vadd.f32 %v3871, %v3921
  %v3940 = vadd.f32 %v3872, %v3921
  %v3941 = vadd.f32 %v3873, %v3921
  %v3942 = vadd.f32 %v3874, %v3921
  %v3943 = vadd.f32 %v3875, %v3921
  %v3944 = vadd.f32 %v3876, %v3921
  %v3945 = vadd.f32 %v3877, %v3921
  %v3946 = vadd.f32 %v3878, %v3921
  %v3947 = vadd.f32 %v3879, %v3921
  %v3948 = vadd.f32 %v3880, %v3921
  %v3949 = vadd.f32 %v3881, %v3921
  %v3950 = vadd.f32 %v3882, %v3921
  %v3951 = vadd.f32 %v3883, %v3921
  %v3952 = vadd.f32 %v3884, %v3921
  %v3953 = vadd.f32 %v3885, %v3921
  %v3954 = vadd.f32 %v3886, %v3921
  %v3955 = vadd.f32 %v3887, %v3921
  %v3956 = vadd.f32 %v3888, %v3921
  %v3957 = vadd.f32 %v3889, %v3921
  %v3958 = vadd.f32 %v3890, %v3921
  %v3959 = vadd.f32 %v3891, %v3921
  %v3960 = vadd.f32 %v3892, %v3921
  %v3961 = vadd.f32 %v3893, %v3921
  %v3962 = vadd.f32 %v3894, %v3921
  %v3963 = vadd.f32 %v3895, %v3921
  %v3964 = vadd.f32 %v3896, %v3921
  %v3965 = vadd.f32 %v3897, %v3921
  %v3966 = vadd.f32 %v3898, %v3921
  %v3967 = vadd.f32 %v3899, %v3921
  %v3968 = vadd.f32 %v3900, %v3921
  %v3969 = vadd.f32 %v3901, %v3921
  %v3970 = vadd.f32 %v3902, %v3921
  %v3971 = vadd.f32 %v3903, %v3921
  %v3972 = vadd.f32 %v3904, %v3921
  %v3973 = vadd.f32 %v3905, %v3921
  %v3974 = vadd.f32 %v3906, %v3921
  %v3975 = vadd.f32 %v3907, %v3921
  %v3976 = vadd.f32 %v3908, %v3921
  %v3977 = vadd.f32 %v3909, %v3921
  %v3978 = vadd.f32 %v3910, %v3921
  %v3979 = vadd.f32 %v3911, %v3921
  %v3980 = vadd.f32 %v3912, %v3921
  %v3981 = vadd.f32 %v3913, %v3921
  %v3982 = vadd.f32 %v3914, %v3921
  %v3983 = vadd.f32 %v3915, %v3921
  %v3984 = vadd.f32 %v3916, %v3921
  %v3985 = vadd.f32 %v3917, %v3921
  %v3986 = vsel %vm94, %v3922, 0.0
  %v3987 = vsel %vm94, %v3923, 0.0
  %v3988 = vadd.f32 %v3986, %v3987
  %v3989 = vsel %vm94, %v3924, 0.0
  %v3990 = vadd.f32 %v3988, %v3989
  %v3991 = vsel %vm94, %v3925, 0.0
  %v3992 = vadd.f32 %v3990, %v3991
  %v3993 = vsel %vm94, %v3926, 0.0
  %v3994 = vadd.f32 %v3992, %v3993
  %v3995 = vsel %vm94, %v3927, 0.0
  %v3996 = vadd.f32 %v3994, %v3995
  %v3997 = vsel %vm94, %v3928, 0.0
  %v3998 = vadd.f32 %v3996, %v3997
  %v3999 = vsel %vm94, %v3929, 0.0
  %v4000 = vadd.f32 %v3998, %v3999
  %v4001 = vsel %vm94, %v3930, 0.0
  %v4002 = vadd.f32 %v4000, %v4001
  %v4003 = vsel %vm94, %v3931, 0.0
  %v4004 = vadd.f32 %v4002, %v4003
  %v4005 = vsel %vm94, %v3932, 0.0
  %v4006 = vadd.f32 %v4004, %v4005
  %v4007 = vsel %vm94, %v3933, 0.0
  %v4008 = vadd.f32 %v4006, %v4007
  %v4009 = vsel %vm94, %v3934, 0.0
  %v4010 = vadd.f32 %v4008, %v4009
  %v4011 = vsel %vm94, %v3935, 0.0
  %v4012 = vadd.f32 %v4010, %v4011
  %v4013 = vsel %vm94, %v3936, 0.0
  %v4014 = vadd.f32 %v4012, %v4013
  %v4015 = vsel %vm94, %v3937, 0.0
  %v4016 = vadd.f32 %v4014, %v4015
  %v4017 = vsel %vm94, %v3938, 0.0
  %v4018 = vadd.f32 %v4016, %v4017
  %v4019 = vsel %vm94, %v3939, 0.0
  %v4020 = vadd.f32 %v4018, %v4019
  %v4021 = vsel %vm94, %v3940, 0.0
  %v4022 = vadd.f32 %v4020, %v4021
  %v4023 = vsel %vm94, %v3941, 0.0
  %v4024 = vadd.f32 %v4022, %v4023
  %v4025 = vsel %vm94, %v3942, 0.0
  %v4026 = vadd.f32 %v4024, %v4025
  %v4027 = vsel %vm94, %v3943, 0.0
  %v4028 = vadd.f32 %v4026, %v4027
  %v4029 = vsel %vm94, %v3944, 0.0
  %v4030 = vadd.f32 %v4028, %v4029
  %v4031 = vsel %vm94, %v3945, 0.0
  %v4032 = vadd.f32 %v4030, %v4031
  %v4033 = vsel %vm94, %v3946, 0.0
  %v4034 = vadd.f32 %v4032, %v4033
  %v4035 = vsel %vm94, %v3947, 0.0
  %v4036 = vadd.f32 %v4034, %v4035
  %v4037 = vsel %vm94, %v3948, 0.0
  %v4038 = vadd.f32 %v4036, %v4037
  %v4039 = vsel %vm94, %v3949, 0.0
  %v4040 = vadd.f32 %v4038, %v4039
  %v4041 = vsel %vm94, %v3950, 0.0
  %v4042 = vadd.f32 %v4040, %v4041
  %v4043 = vsel %vm94, %v3951, 0.0
  %v4044 = vadd.f32 %v4042, %v4043
  %v4045 = vsel %vm94, %v3952, 0.0
  %v4046 = vadd.f32 %v4044, %v4045
  %v4047 = vsel %vm94, %v3953, 0.0
  %v4048 = vadd.f32 %v4046, %v4047
  %v4049 = vrot.slane %v4048, 4
  %v4050 = vadd.f32 %v4048, %v4049
  %v4051 = vrot.slane %v4050, 2
  %v4052 = vadd.f32 %v4050, %v4051
  %v4053 = vrot.slane %v4052, 1
  %v4054 = vadd.f32 %v4052, %v4053
  %v4055 = vsel %vm94, %v3954, 0.0
  %v4056 = vsel %vm94, %v3955, 0.0
  %v4057 = vadd.f32 %v4055, %v4056
  %v4058 = vsel %vm94, %v3956, 0.0
  %v4059 = vadd.f32 %v4057, %v4058
  %v4060 = vsel %vm94, %v3957, 0.0
  %v4061 = vadd.f32 %v4059, %v4060
  %v4062 = vsel %vm94, %v3958, 0.0
  %v4063 = vadd.f32 %v4061, %v4062
  %v4064 = vsel %vm94, %v3959, 0.0
  %v4065 = vadd.f32 %v4063, %v4064
  %v4066 = vsel %vm94, %v3960, 0.0
  %v4067 = vadd.f32 %v4065, %v4066
  %v4068 = vsel %vm94, %v3961, 0.0
  %v4069 = vadd.f32 %v4067, %v4068
  %v4070 = vsel %vm94, %v3962, 0.0
  %v4071 = vadd.f32 %v4069, %v4070
  %v4072 = vsel %vm94, %v3963, 0.0
  %v4073 = vadd.f32 %v4071, %v4072
  %v4074 = vsel %vm94, %v3964, 0.0
  %v4075 = vadd.f32 %v4073, %v4074
  %v4076 = vsel %vm94, %v3965, 0.0
  %v4077 = vadd.f32 %v4075, %v4076
  %v4078 = vsel %vm94, %v3966, 0.0
  %v4079 = vadd.f32 %v4077, %v4078
  %v4080 = vsel %vm94, %v3967, 0.0
  %v4081 = vadd.f32 %v4079, %v4080
  %v4082 = vsel %vm94, %v3968, 0.0
  %v4083 = vadd.f32 %v4081, %v4082
  %v4084 = vsel %vm94, %v3969, 0.0
  %v4085 = vadd.f32 %v4083, %v4084
  %v4086 = vsel %vm94, %v3970, 0.0
  %v4087 = vadd.f32 %v4085, %v4086
  %v4088 = vsel %vm94, %v3971, 0.0
  %v4089 = vadd.f32 %v4087, %v4088
  %v4090 = vsel %vm94, %v3972, 0.0
  %v4091 = vadd.f32 %v4089, %v4090
  %v4092 = vsel %vm94, %v3973, 0.0
  %v4093 = vadd.f32 %v4091, %v4092
  %v4094 = vsel %vm94, %v3974, 0.0
  %v4095 = vadd.f32 %v4093, %v4094
  %v4096 = vsel %vm94, %v3975, 0.0
  %v4097 = vadd.f32 %v4095, %v4096
  %v4098 = vsel %vm94, %v3976, 0.0
  %v4099 = vadd.f32 %v4097, %v4098
  %v4100 = vsel %vm94, %v3977, 0.0
  %v4101 = vadd.f32 %v4099, %v4100
  %v4102 = vsel %vm94, %v3978, 0.0
  %v4103 = vadd.f32 %v4101, %v4102
  %v4104 = vsel %vm94, %v3979, 0.0
  %v4105 = vadd.f32 %v4103, %v4104
  %v4106 = vsel %vm94, %v3980, 0.0
  %v4107 = vadd.f32 %v4105, %v4106
  %v4108 = vsel %vm94, %v3981, 0.0
  %v4109 = vadd.f32 %v4107, %v4108
  %v4110 = vsel %vm94, %v3982, 0.0
  %v4111 = vadd.f32 %v4109, %v4110
  %v4112 = vsel %vm94, %v3983, 0.0
  %v4113 = vadd.f32 %v4111, %v4112
  %v4114 = vsel %vm94, %v3984, 0.0
  %v4115 = vadd.f32 %v4113, %v4114
  %v4116 = vsel %vm94, %v3985, 0.0
  %v4117 = vadd.f32 %v4115, %v4116
  %v4118 = vrot.slane %v4117, 4
  %v4119 = vadd.f32 %v4117, %v4118
  %v4120 = vrot.slane %v4119, 2
  %v4121 = vadd.f32 %v4119, %v4120
  %v4122 = vrot.slane %v4121, 1
  %v4123 = vadd.f32 %v4121, %v4122
  %v4126 = vsel %vm471, %v4123, %v4054
  %v4127 = vsel %vm94, %v4126, 0
  %4129 = vmatprep.subr.mxu0 0.0
  %4130 = vmatpush1.msra.mxu0 %v85
  %4131 = vmatprep.subr.mxu0 0.0
  %4132 = vmatpush1.msra.mxu0 %v86
  %4133 = vmatprep.subr.mxu0 0.0
  %4134 = vmatpush1.msra.mxu0 %v87
  %4135 = vmatprep.subr.mxu0 0.0
  %4136 = vmatpush1.msra.mxu0 %v88
  %4137 = vmatprep.subr.mxu0 0.0
  %4138 = vmatpush1.msra.mxu0 %v89
  %4139 = vmatprep.subr.mxu0 0.0
  %4140 = vmatpush1.msra.mxu0 %v90
  %4141 = vmatprep.subr.mxu0 0.0
  %4142 = vmatpush1.msra.mxu0 %v91
  %4143 = vmatprep.subr.mxu0 0.0
  %4144 = vmatpush1.msra.mxu0 %v92
  %4145 = vmatprep.subr.mxu0 0.0
  %4146 = vmatpush1.msra.mxu0 0.0
  %4147 = vmatprep.subr.mxu0 0.0
  %4148 = vmatpush1.msra.mxu0 0.0
  %4149 = vmatprep.subr.mxu0 0.0
  %4150 = vmatpush1.msra.mxu0 0.0
  %4151 = vmatprep.subr.mxu0 0.0
  %4152 = vmatpush1.msra.mxu0 0.0
  %4153 = vmatprep.subr.mxu0 0.0
  %4154 = vmatpush1.msra.mxu0 0.0
  %4155 = vmatprep.subr.mxu0 0.0
  %4156 = vmatpush1.msra.mxu0 0.0
  %4157 = vmatprep.subr.mxu0 0.0
  %4158 = vmatpush1.msra.mxu0 0.0
  %4159 = vmatprep.subr.mxu0 0.0
  %4160 = vmatpush1.msra.mxu0 0.0
  %4161 = vmatprep.subr.mxu0 0.0
  %4162 = vmatpush1.msra.mxu0 0.0
  %4163 = vmatprep.subr.mxu0 0.0
  %4164 = vmatpush1.msra.mxu0 0.0
  %4165 = vmatprep.subr.mxu0 0.0
  %4166 = vmatpush1.msra.mxu0 0.0
  %4167 = vmatprep.subr.mxu0 0.0
  %4168 = vmatpush1.msra.mxu0 0.0
  %4169 = vmatprep.subr.mxu0 0.0
  %4170 = vmatpush1.msra.mxu0 0.0
  %4171 = vmatprep.subr.mxu0 0.0
  %4172 = vmatpush1.msra.mxu0 0.0
  %4173 = vmatprep.subr.mxu0 0.0
  %4174 = vmatpush1.msra.mxu0 0.0
  %4175 = vmatprep.subr.mxu0 0.0
  %4176 = vmatpush1.msra.mxu0 0.0
  %4177 = vmatprep.subr.mxu0 0.0
  %4178 = vmatpush1.msra.mxu0 0.0
  %4179 = vmatprep.subr.mxu0 0.0
  %4180 = vmatpush1.msra.mxu0 0.0
  %4181 = vmatprep.subr.mxu0 0.0
  %4182 = vmatpush1.msra.mxu0 0.0
  %4183 = vmatprep.subr.mxu0 0.0
  %4184 = vmatpush1.msra.mxu0 0.0
  %4185 = vmatprep.subr.mxu0 0.0
  %4186 = vmatpush1.msra.mxu0 0.0
  %4187 = vmatprep.subr.mxu0 0.0
  %4188 = vmatpush1.msra.mxu0 0.0
  %4189 = vmatprep.subr.mxu0 0.0
  %4190 = vmatpush1.msra.mxu0 0.0
  %4191 = vmatprep.subr.mxu0 0.0
  %4192 = vmatpush1.msra.mxu0 0.0
  %4193 = vmatprep.mubr.f32.mxu0 0.0
  %4194 = vmatmul.mubr.f32.gmra.mrb[0].mxu0 %v4127
  %v4195 = vpop.f32.mrb[0].mxu0
  %v4196 = vadd.f32 0.0, %v4195
  %v4197 = vpop.f32.mrb[0].mxu0
  %4198 = vdwg.mxu0
  %v4201 = vunpack.c.l.s4 1966171168
  %v4202 = vunpack.c.0.s8 %v4201
  %v4203 = vlaneseq
  %v4204 = vshrl.u32 %v4203, 7
  %v4205 = vsub.s32 %v4202, %v4204
  %v4206 = vrot.slane %v4196, %v4205
  %v4207 = vcombine.high %v4206, %v4206
  %v4209 = vunpack.c.l.s4 1966171168
  %v4210 = vunpack.c.0.s8 %v4209
  %v4211 = vlaneseq
  %v4212 = vshrl.u32 %v4211, 7
  %v4213 = vsub.s32 %v4210, %v4212
  %v4214 = vrot.slane %v4206, %v4213
  %v4216 = vunpack.c.l.s4 1966171168
  %v4217 = vunpack.c.0.s8 %v4216
  %v4218 = vlaneseq
  %v4219 = vshrl.u32 %v4218, 7
  %v4220 = vsub.s32 %v4217, %v4219
  %v4221 = vrot.slane %v4207, %v4220
  %v4222 = vlaneseq
  %v4223 = vshrl.u32 %v4222, 7
  %v4224 = vsub.s32 0, %v4223
  %v4225 = vrot.slane %v4214, %v4224
  %v4226 = vlaneseq
  %v4227 = vshrl.u32 %v4226, 7
  %v4228 = vsub.s32 0, %v4227
  %v4229 = vrot.slane %v4221, %v4228
  %v4232 = vsub.f32 %v3922, %v4225
  %v4233 = vsub.f32 %v3923, %v4225
  %v4234 = vsub.f32 %v3924, %v4225
  %v4235 = vsub.f32 %v3925, %v4225
  %v4236 = vsub.f32 %v3926, %v4225
  %v4237 = vsub.f32 %v3927, %v4225
  %v4238 = vsub.f32 %v3928, %v4225
  %v4239 = vsub.f32 %v3929, %v4225
  %v4240 = vsub.f32 %v3930, %v4225
  %v4241 = vsub.f32 %v3931, %v4225
  %v4242 = vsub.f32 %v3932, %v4225
  %v4243 = vsub.f32 %v3933, %v4225
  %v4244 = vsub.f32 %v3934, %v4225
  %v4245 = vsub.f32 %v3935, %v4225
  %v4246 = vsub.f32 %v3936, %v4225
  %v4247 = vsub.f32 %v3937, %v4225
  %v4248 = vsub.f32 %v3938, %v4225
  %v4249 = vsub.f32 %v3939, %v4225
  %v4250 = vsub.f32 %v3940, %v4225
  %v4251 = vsub.f32 %v3941, %v4225
  %v4252 = vsub.f32 %v3942, %v4225
  %v4253 = vsub.f32 %v3943, %v4225
  %v4254 = vsub.f32 %v3944, %v4225
  %v4255 = vsub.f32 %v3945, %v4225
  %v4256 = vsub.f32 %v3946, %v4225
  %v4257 = vsub.f32 %v3947, %v4225
  %v4258 = vsub.f32 %v3948, %v4225
  %v4259 = vsub.f32 %v3949, %v4225
  %v4260 = vsub.f32 %v3950, %v4225
  %v4261 = vsub.f32 %v3951, %v4225
  %v4262 = vsub.f32 %v3952, %v4225
  %v4263 = vsub.f32 %v3953, %v4225
  %v4264 = vsub.f32 %v3954, %v4229
  %v4265 = vsub.f32 %v3955, %v4229
  %v4266 = vsub.f32 %v3956, %v4229
  %v4267 = vsub.f32 %v3957, %v4229
  %v4268 = vsub.f32 %v3958, %v4229
  %v4269 = vsub.f32 %v3959, %v4229
  %v4270 = vsub.f32 %v3960, %v4229
  %v4271 = vsub.f32 %v3961, %v4229
  %v4272 = vsub.f32 %v3962, %v4229
  %v4273 = vsub.f32 %v3963, %v4229
  %v4274 = vsub.f32 %v3964, %v4229
  %v4275 = vsub.f32 %v3965, %v4229
  %v4276 = vsub.f32 %v3966, %v4229
  %v4277 = vsub.f32 %v3967, %v4229
  %v4278 = vsub.f32 %v3968, %v4229
  %v4279 = vsub.f32 %v3969, %v4229
  %v4280 = vsub.f32 %v3970, %v4229
  %v4281 = vsub.f32 %v3971, %v4229
  %v4282 = vsub.f32 %v3972, %v4229
  %v4283 = vsub.f32 %v3973, %v4229
  %v4284 = vsub.f32 %v3974, %v4229
  %v4285 = vsub.f32 %v3975, %v4229
  %v4286 = vsub.f32 %v3976, %v4229
  %v4287 = vsub.f32 %v3977, %v4229
  %v4288 = vsub.f32 %v3978, %v4229
  %v4289 = vsub.f32 %v3979, %v4229
  %v4290 = vsub.f32 %v3980, %v4229
  %v4291 = vsub.f32 %v3981, %v4229
  %v4292 = vsub.f32 %v3982, %v4229
  %v4293 = vsub.f32 %v3983, %v4229
  %v4294 = vsub.f32 %v3984, %v4229
  %v4295 = vsub.f32 %v3985, %v4229
  %v4296 = vmul.f32 %v4232, %v4232
  %v4297 = vmul.f32 %v4233, %v4233
  %v4298 = vmul.f32 %v4234, %v4234
  %v4299 = vmul.f32 %v4235, %v4235
  %v4300 = vmul.f32 %v4236, %v4236
  %v4301 = vmul.f32 %v4237, %v4237
  %v4302 = vmul.f32 %v4238, %v4238
  %v4303 = vmul.f32 %v4239, %v4239
  %v4304 = vmul.f32 %v4240, %v4240
  %v4305 = vmul.f32 %v4241, %v4241
  %v4306 = vmul.f32 %v4242, %v4242
  %v4307 = vmul.f32 %v4243, %v4243
  %v4308 = vmul.f32 %v4244, %v4244
  %v4309 = vmul.f32 %v4245, %v4245
  %v4310 = vmul.f32 %v4246, %v4246
  %v4311 = vmul.f32 %v4247, %v4247
  %v4312 = vmul.f32 %v4248, %v4248
  %v4313 = vmul.f32 %v4249, %v4249
  %v4314 = vmul.f32 %v4250, %v4250
  %v4315 = vmul.f32 %v4251, %v4251
  %v4316 = vmul.f32 %v4252, %v4252
  %v4317 = vmul.f32 %v4253, %v4253
  %v4318 = vmul.f32 %v4254, %v4254
  %v4319 = vmul.f32 %v4255, %v4255
  %v4320 = vmul.f32 %v4256, %v4256
  %v4321 = vmul.f32 %v4257, %v4257
  %v4322 = vmul.f32 %v4258, %v4258
  %v4323 = vmul.f32 %v4259, %v4259
  %v4324 = vmul.f32 %v4260, %v4260
  %v4325 = vmul.f32 %v4261, %v4261
  %v4326 = vmul.f32 %v4262, %v4262
  %v4327 = vmul.f32 %v4263, %v4263
  %v4328 = vmul.f32 %v4264, %v4264
  %v4329 = vmul.f32 %v4265, %v4265
  %v4330 = vmul.f32 %v4266, %v4266
  %v4331 = vmul.f32 %v4267, %v4267
  %v4332 = vmul.f32 %v4268, %v4268
  %v4333 = vmul.f32 %v4269, %v4269
  %v4334 = vmul.f32 %v4270, %v4270
  %v4335 = vmul.f32 %v4271, %v4271
  %v4336 = vmul.f32 %v4272, %v4272
  %v4337 = vmul.f32 %v4273, %v4273
  %v4338 = vmul.f32 %v4274, %v4274
  %v4339 = vmul.f32 %v4275, %v4275
  %v4340 = vmul.f32 %v4276, %v4276
  %v4341 = vmul.f32 %v4277, %v4277
  %v4342 = vmul.f32 %v4278, %v4278
  %v4343 = vmul.f32 %v4279, %v4279
  %v4344 = vmul.f32 %v4280, %v4280
  %v4345 = vmul.f32 %v4281, %v4281
  %v4346 = vmul.f32 %v4282, %v4282
  %v4347 = vmul.f32 %v4283, %v4283
  %v4348 = vmul.f32 %v4284, %v4284
  %v4349 = vmul.f32 %v4285, %v4285
  %v4350 = vmul.f32 %v4286, %v4286
  %v4351 = vmul.f32 %v4287, %v4287
  %v4352 = vmul.f32 %v4288, %v4288
  %v4353 = vmul.f32 %v4289, %v4289
  %v4354 = vmul.f32 %v4290, %v4290
  %v4355 = vmul.f32 %v4291, %v4291
  %v4356 = vmul.f32 %v4292, %v4292
  %v4357 = vmul.f32 %v4293, %v4293
  %v4358 = vmul.f32 %v4294, %v4294
  %v4359 = vmul.f32 %v4295, %v4295
  %v4360 = vsel %vm94, %v4296, 0.0
  %v4361 = vsel %vm94, %v4297, 0.0
  %v4362 = vadd.f32 %v4360, %v4361
  %v4363 = vsel %vm94, %v4298, 0.0
  %v4364 = vadd.f32 %v4362, %v4363
  %v4365 = vsel %vm94, %v4299, 0.0
  %v4366 = vadd.f32 %v4364, %v4365
  %v4367 = vsel %vm94, %v4300, 0.0
  %v4368 = vadd.f32 %v4366, %v4367
  %v4369 = vsel %vm94, %v4301, 0.0
  %v4370 = vadd.f32 %v4368, %v4369
  %v4371 = vsel %vm94, %v4302, 0.0
  %v4372 = vadd.f32 %v4370, %v4371
  %v4373 = vsel %vm94, %v4303, 0.0
  %v4374 = vadd.f32 %v4372, %v4373
  %v4375 = vsel %vm94, %v4304, 0.0
  %v4376 = vadd.f32 %v4374, %v4375
  %v4377 = vsel %vm94, %v4305, 0.0
  %v4378 = vadd.f32 %v4376, %v4377
  %v4379 = vsel %vm94, %v4306, 0.0
  %v4380 = vadd.f32 %v4378, %v4379
  %v4381 = vsel %vm94, %v4307, 0.0
  %v4382 = vadd.f32 %v4380, %v4381
  %v4383 = vsel %vm94, %v4308, 0.0
  %v4384 = vadd.f32 %v4382, %v4383
  %v4385 = vsel %vm94, %v4309, 0.0
  %v4386 = vadd.f32 %v4384, %v4385
  %v4387 = vsel %vm94, %v4310, 0.0
  %v4388 = vadd.f32 %v4386, %v4387
  %v4389 = vsel %vm94, %v4311, 0.0
  %v4390 = vadd.f32 %v4388, %v4389
  %v4391 = vsel %vm94, %v4312, 0.0
  %v4392 = vadd.f32 %v4390, %v4391
  %v4393 = vsel %vm94, %v4313, 0.0
  %v4394 = vadd.f32 %v4392, %v4393
  %v4395 = vsel %vm94, %v4314, 0.0
  %v4396 = vadd.f32 %v4394, %v4395
  %v4397 = vsel %vm94, %v4315, 0.0
  %v4398 = vadd.f32 %v4396, %v4397
  %v4399 = vsel %vm94, %v4316, 0.0
  %v4400 = vadd.f32 %v4398, %v4399
  %v4401 = vsel %vm94, %v4317, 0.0
  %v4402 = vadd.f32 %v4400, %v4401
  %v4403 = vsel %vm94, %v4318, 0.0
  %v4404 = vadd.f32 %v4402, %v4403
  %v4405 = vsel %vm94, %v4319, 0.0
  %v4406 = vadd.f32 %v4404, %v4405
  %v4407 = vsel %vm94, %v4320, 0.0
  %v4408 = vadd.f32 %v4406, %v4407
  %v4409 = vsel %vm94, %v4321, 0.0
  %v4410 = vadd.f32 %v4408, %v4409
  %v4411 = vsel %vm94, %v4322, 0.0
  %v4412 = vadd.f32 %v4410, %v4411
  %v4413 = vsel %vm94, %v4323, 0.0
  %v4414 = vadd.f32 %v4412, %v4413
  %v4415 = vsel %vm94, %v4324, 0.0
  %v4416 = vadd.f32 %v4414, %v4415
  %v4417 = vsel %vm94, %v4325, 0.0
  %v4418 = vadd.f32 %v4416, %v4417
  %v4419 = vsel %vm94, %v4326, 0.0
  %v4420 = vadd.f32 %v4418, %v4419
  %v4421 = vsel %vm94, %v4327, 0.0
  %v4422 = vadd.f32 %v4420, %v4421
  %v4423 = vrot.slane %v4422, 4
  %v4424 = vadd.f32 %v4422, %v4423
  %v4425 = vrot.slane %v4424, 2
  %v4426 = vadd.f32 %v4424, %v4425
  %v4427 = vrot.slane %v4426, 1
  %v4428 = vadd.f32 %v4426, %v4427
  %v4429 = vsel %vm94, %v4328, 0.0
  %v4430 = vsel %vm94, %v4329, 0.0
  %v4431 = vadd.f32 %v4429, %v4430
  %v4432 = vsel %vm94, %v4330, 0.0
  %v4433 = vadd.f32 %v4431, %v4432
  %v4434 = vsel %vm94, %v4331, 0.0
  %v4435 = vadd.f32 %v4433, %v4434
  %v4436 = vsel %vm94, %v4332, 0.0
  %v4437 = vadd.f32 %v4435, %v4436
  %v4438 = vsel %vm94, %v4333, 0.0
  %v4439 = vadd.f32 %v4437, %v4438
  %v4440 = vsel %vm94, %v4334, 0.0
  %v4441 = vadd.f32 %v4439, %v4440
  %v4442 = vsel %vm94, %v4335, 0.0
  %v4443 = vadd.f32 %v4441, %v4442
  %v4444 = vsel %vm94, %v4336, 0.0
  %v4445 = vadd.f32 %v4443, %v4444
  %v4446 = vsel %vm94, %v4337, 0.0
  %v4447 = vadd.f32 %v4445, %v4446
  %v4448 = vsel %vm94, %v4338, 0.0
  %v4449 = vadd.f32 %v4447, %v4448
  %v4450 = vsel %vm94, %v4339, 0.0
  %v4451 = vadd.f32 %v4449, %v4450
  %v4452 = vsel %vm94, %v4340, 0.0
  %v4453 = vadd.f32 %v4451, %v4452
  %v4454 = vsel %vm94, %v4341, 0.0
  %v4455 = vadd.f32 %v4453, %v4454
  %v4456 = vsel %vm94, %v4342, 0.0
  %v4457 = vadd.f32 %v4455, %v4456
  %v4458 = vsel %vm94, %v4343, 0.0
  %v4459 = vadd.f32 %v4457, %v4458
  %v4460 = vsel %vm94, %v4344, 0.0
  %v4461 = vadd.f32 %v4459, %v4460
  %v4462 = vsel %vm94, %v4345, 0.0
  %v4463 = vadd.f32 %v4461, %v4462
  %v4464 = vsel %vm94, %v4346, 0.0
  %v4465 = vadd.f32 %v4463, %v4464
  %v4466 = vsel %vm94, %v4347, 0.0
  %v4467 = vadd.f32 %v4465, %v4466
  %v4468 = vsel %vm94, %v4348, 0.0
  %v4469 = vadd.f32 %v4467, %v4468
  %v4470 = vsel %vm94, %v4349, 0.0
  %v4471 = vadd.f32 %v4469, %v4470
  %v4472 = vsel %vm94, %v4350, 0.0
  %v4473 = vadd.f32 %v4471, %v4472
  %v4474 = vsel %vm94, %v4351, 0.0
  %v4475 = vadd.f32 %v4473, %v4474
  %v4476 = vsel %vm94, %v4352, 0.0
  %v4477 = vadd.f32 %v4475, %v4476
  %v4478 = vsel %vm94, %v4353, 0.0
  %v4479 = vadd.f32 %v4477, %v4478
  %v4480 = vsel %vm94, %v4354, 0.0
  %v4481 = vadd.f32 %v4479, %v4480
  %v4482 = vsel %vm94, %v4355, 0.0
  %v4483 = vadd.f32 %v4481, %v4482
  %v4484 = vsel %vm94, %v4356, 0.0
  %v4485 = vadd.f32 %v4483, %v4484
  %v4486 = vsel %vm94, %v4357, 0.0
  %v4487 = vadd.f32 %v4485, %v4486
  %v4488 = vsel %vm94, %v4358, 0.0
  %v4489 = vadd.f32 %v4487, %v4488
  %v4490 = vsel %vm94, %v4359, 0.0
  %v4491 = vadd.f32 %v4489, %v4490
  %v4492 = vrot.slane %v4491, 4
  %v4493 = vadd.f32 %v4491, %v4492
  %v4494 = vrot.slane %v4493, 2
  %v4495 = vadd.f32 %v4493, %v4494
  %v4496 = vrot.slane %v4495, 1
  %v4497 = vadd.f32 %v4495, %v4496
  %v4500 = vsel %vm471, %v4497, %v4428
  %v4501 = vsel %vm94, %v4500, 0
  %4503 = vmatprep.subr.mxu0 0.0
  %4504 = vmatpush1.msra.mxu0 %v85
  %4505 = vmatprep.subr.mxu0 0.0
  %4506 = vmatpush1.msra.mxu0 %v86
  %4507 = vmatprep.subr.mxu0 0.0
  %4508 = vmatpush1.msra.mxu0 %v87
  %4509 = vmatprep.subr.mxu0 0.0
  %4510 = vmatpush1.msra.mxu0 %v88
  %4511 = vmatprep.subr.mxu0 0.0
  %4512 = vmatpush1.msra.mxu0 %v89
  %4513 = vmatprep.subr.mxu0 0.0
  %4514 = vmatpush1.msra.mxu0 %v90
  %4515 = vmatprep.subr.mxu0 0.0
  %4516 = vmatpush1.msra.mxu0 %v91
  %4517 = vmatprep.subr.mxu0 0.0
  %4518 = vmatpush1.msra.mxu0 %v92
  %4519 = vmatprep.subr.mxu0 0.0
  %4520 = vmatpush1.msra.mxu0 0.0
  %4521 = vmatprep.subr.mxu0 0.0
  %4522 = vmatpush1.msra.mxu0 0.0
  %4523 = vmatprep.subr.mxu0 0.0
  %4524 = vmatpush1.msra.mxu0 0.0
  %4525 = vmatprep.subr.mxu0 0.0
  %4526 = vmatpush1.msra.mxu0 0.0
  %4527 = vmatprep.subr.mxu0 0.0
  %4528 = vmatpush1.msra.mxu0 0.0
  %4529 = vmatprep.subr.mxu0 0.0
  %4530 = vmatpush1.msra.mxu0 0.0
  %4531 = vmatprep.subr.mxu0 0.0
  %4532 = vmatpush1.msra.mxu0 0.0
  %4533 = vmatprep.subr.mxu0 0.0
  %4534 = vmatpush1.msra.mxu0 0.0
  %4535 = vmatprep.subr.mxu0 0.0
  %4536 = vmatpush1.msra.mxu0 0.0
  %4537 = vmatprep.subr.mxu0 0.0
  %4538 = vmatpush1.msra.mxu0 0.0
  %4539 = vmatprep.subr.mxu0 0.0
  %4540 = vmatpush1.msra.mxu0 0.0
  %4541 = vmatprep.subr.mxu0 0.0
  %4542 = vmatpush1.msra.mxu0 0.0
  %4543 = vmatprep.subr.mxu0 0.0
  %4544 = vmatpush1.msra.mxu0 0.0
  %4545 = vmatprep.subr.mxu0 0.0
  %4546 = vmatpush1.msra.mxu0 0.0
  %4547 = vmatprep.subr.mxu0 0.0
  %4548 = vmatpush1.msra.mxu0 0.0
  %4549 = vmatprep.subr.mxu0 0.0
  %4550 = vmatpush1.msra.mxu0 0.0
  %4551 = vmatprep.subr.mxu0 0.0
  %4552 = vmatpush1.msra.mxu0 0.0
  %4553 = vmatprep.subr.mxu0 0.0
  %4554 = vmatpush1.msra.mxu0 0.0
  %4555 = vmatprep.subr.mxu0 0.0
  %4556 = vmatpush1.msra.mxu0 0.0
  %4557 = vmatprep.subr.mxu0 0.0
  %4558 = vmatpush1.msra.mxu0 0.0
  %4559 = vmatprep.subr.mxu0 0.0
  %4560 = vmatpush1.msra.mxu0 0.0
  %4561 = vmatprep.subr.mxu0 0.0
  %4562 = vmatpush1.msra.mxu0 0.0
  %4563 = vmatprep.subr.mxu0 0.0
  %4564 = vmatpush1.msra.mxu0 0.0
  %4565 = vmatprep.subr.mxu0 0.0
  %4566 = vmatpush1.msra.mxu0 0.0
  %4567 = vmatprep.mubr.f32.mxu0 0.0
  %4568 = vmatmul.mubr.f32.gmra.mrb[0].mxu0 %v4501
  %v4569 = vpop.f32.mrb[0].mxu0
  %v4570 = vadd.f32 1e-05, %v4569
  %v4571 = vpop.f32.mrb[0].mxu0
  %4572 = vdwg.mxu0
  %v4573 = vrsqrt.pop %v4570
  %v4576 = vunpack.c.l.s4 1966171168
  %v4577 = vunpack.c.0.s8 %v4576
  %v4578 = vlaneseq
  %v4579 = vshrl.u32 %v4578, 7
  %v4580 = vsub.s32 %v4577, %v4579
  %v4581 = vrot.slane %v4573, %v4580
  %v4582 = vcombine.high %v4581, %v4581
  %v4584 = vunpack.c.l.s4 1966171168
  %v4585 = vunpack.c.0.s8 %v4584
  %v4586 = vlaneseq
  %v4587 = vshrl.u32 %v4586, 7
  %v4588 = vsub.s32 %v4585, %v4587
  %v4589 = vrot.slane %v4581, %v4588
  %v4591 = vunpack.c.l.s4 1966171168
  %v4592 = vunpack.c.0.s8 %v4591
  %v4593 = vlaneseq
  %v4594 = vshrl.u32 %v4593, 7
  %v4595 = vsub.s32 %v4592, %v4594
  %v4596 = vrot.slane %v4582, %v4595
  %v4597 = vlaneseq
  %v4598 = vshrl.u32 %v4597, 7
  %v4599 = vsub.s32 0, %v4598
  %v4600 = vrot.slane %v4589, %v4599
  %v4601 = vlaneseq
  %v4602 = vshrl.u32 %v4601, 7
  %v4603 = vsub.s32 0, %v4602
  %v4604 = vrot.slane %v4596, %v4603
  %v4607 = vmul.f32 %v4232, %v4600
  %v4608 = vmul.f32 %v4233, %v4600
  %v4609 = vmul.f32 %v4234, %v4600
  %v4610 = vmul.f32 %v4235, %v4600
  %v4611 = vmul.f32 %v4236, %v4600
  %v4612 = vmul.f32 %v4237, %v4600
  %v4613 = vmul.f32 %v4238, %v4600
  %v4614 = vmul.f32 %v4239, %v4600
  %v4615 = vmul.f32 %v4240, %v4600
  %v4616 = vmul.f32 %v4241, %v4600
  %v4617 = vmul.f32 %v4242, %v4600
  %v4618 = vmul.f32 %v4243, %v4600
  %v4619 = vmul.f32 %v4244, %v4600
  %v4620 = vmul.f32 %v4245, %v4600
  %v4621 = vmul.f32 %v4246, %v4600
  %v4622 = vmul.f32 %v4247, %v4600
  %v4623 = vmul.f32 %v4248, %v4600
  %v4624 = vmul.f32 %v4249, %v4600
  %v4625 = vmul.f32 %v4250, %v4600
  %v4626 = vmul.f32 %v4251, %v4600
  %v4627 = vmul.f32 %v4252, %v4600
  %v4628 = vmul.f32 %v4253, %v4600
  %v4629 = vmul.f32 %v4254, %v4600
  %v4630 = vmul.f32 %v4255, %v4600
  %v4631 = vmul.f32 %v4256, %v4600
  %v4632 = vmul.f32 %v4257, %v4600
  %v4633 = vmul.f32 %v4258, %v4600
  %v4634 = vmul.f32 %v4259, %v4600
  %v4635 = vmul.f32 %v4260, %v4600
  %v4636 = vmul.f32 %v4261, %v4600
  %v4637 = vmul.f32 %v4262, %v4600
  %v4638 = vmul.f32 %v4263, %v4600
  %v4639 = vmul.f32 %v4264, %v4604
  %v4640 = vmul.f32 %v4265, %v4604
  %v4641 = vmul.f32 %v4266, %v4604
  %v4642 = vmul.f32 %v4267, %v4604
  %v4643 = vmul.f32 %v4268, %v4604
  %v4644 = vmul.f32 %v4269, %v4604
  %v4645 = vmul.f32 %v4270, %v4604
  %v4646 = vmul.f32 %v4271, %v4604
  %v4647 = vmul.f32 %v4272, %v4604
  %v4648 = vmul.f32 %v4273, %v4604
  %v4649 = vmul.f32 %v4274, %v4604
  %v4650 = vmul.f32 %v4275, %v4604
  %v4651 = vmul.f32 %v4276, %v4604
  %v4652 = vmul.f32 %v4277, %v4604
  %v4653 = vmul.f32 %v4278, %v4604
  %v4654 = vmul.f32 %v4279, %v4604
  %v4655 = vmul.f32 %v4280, %v4604
  %v4656 = vmul.f32 %v4281, %v4604
  %v4657 = vmul.f32 %v4282, %v4604
  %v4658 = vmul.f32 %v4283, %v4604
  %v4659 = vmul.f32 %v4284, %v4604
  %v4660 = vmul.f32 %v4285, %v4604
  %v4661 = vmul.f32 %v4286, %v4604
  %v4662 = vmul.f32 %v4287, %v4604
  %v4663 = vmul.f32 %v4288, %v4604
  %v4664 = vmul.f32 %v4289, %v4604
  %v4665 = vmul.f32 %v4290, %v4604
  %v4666 = vmul.f32 %v4291, %v4604
  %v4667 = vmul.f32 %v4292, %v4604
  %v4668 = vmul.f32 %v4293, %v4604
  %v4669 = vmul.f32 %v4294, %v4604
  %v4670 = vmul.f32 %v4295, %v4604
  %v4671 = vlaneseq
  %v4672 = vshrl.u32 %v4671, 7
  %v4673 = vsub.s32 0, %v4672
  %v4674 = vrot.slane %v328, %v4673
  %v4675 = vmul.f32 %v4607, %v4674
  %v4676 = vmul.f32 %v4608, %v4674
  %v4677 = vmul.f32 %v4609, %v4674
  %v4678 = vmul.f32 %v4610, %v4674
  %v4679 = vmul.f32 %v4611, %v4674
  %v4680 = vmul.f32 %v4612, %v4674
  %v4681 = vmul.f32 %v4613, %v4674
  %v4682 = vmul.f32 %v4614, %v4674
  %v4683 = vmul.f32 %v4615, %v4674
  %v4684 = vmul.f32 %v4616, %v4674
  %v4685 = vmul.f32 %v4617, %v4674
  %v4686 = vmul.f32 %v4618, %v4674
  %v4687 = vmul.f32 %v4619, %v4674
  %v4688 = vmul.f32 %v4620, %v4674
  %v4689 = vmul.f32 %v4621, %v4674
  %v4690 = vmul.f32 %v4622, %v4674
  %v4691 = vmul.f32 %v4623, %v4674
  %v4692 = vmul.f32 %v4624, %v4674
  %v4693 = vmul.f32 %v4625, %v4674
  %v4694 = vmul.f32 %v4626, %v4674
  %v4695 = vmul.f32 %v4627, %v4674
  %v4696 = vmul.f32 %v4628, %v4674
  %v4697 = vmul.f32 %v4629, %v4674
  %v4698 = vmul.f32 %v4630, %v4674
  %v4699 = vmul.f32 %v4631, %v4674
  %v4700 = vmul.f32 %v4632, %v4674
  %v4701 = vmul.f32 %v4633, %v4674
  %v4702 = vmul.f32 %v4634, %v4674
  %v4703 = vmul.f32 %v4635, %v4674
  %v4704 = vmul.f32 %v4636, %v4674
  %v4705 = vmul.f32 %v4637, %v4674
  %v4706 = vmul.f32 %v4638, %v4674
  %v4707 = vmul.f32 %v4639, %v4674
  %v4708 = vmul.f32 %v4640, %v4674
  %v4709 = vmul.f32 %v4641, %v4674
  %v4710 = vmul.f32 %v4642, %v4674
  %v4711 = vmul.f32 %v4643, %v4674
  %v4712 = vmul.f32 %v4644, %v4674
  %v4713 = vmul.f32 %v4645, %v4674
  %v4714 = vmul.f32 %v4646, %v4674
  %v4715 = vmul.f32 %v4647, %v4674
  %v4716 = vmul.f32 %v4648, %v4674
  %v4717 = vmul.f32 %v4649, %v4674
  %v4718 = vmul.f32 %v4650, %v4674
  %v4719 = vmul.f32 %v4651, %v4674
  %v4720 = vmul.f32 %v4652, %v4674
  %v4721 = vmul.f32 %v4653, %v4674
  %v4722 = vmul.f32 %v4654, %v4674
  %v4723 = vmul.f32 %v4655, %v4674
  %v4724 = vmul.f32 %v4656, %v4674
  %v4725 = vmul.f32 %v4657, %v4674
  %v4726 = vmul.f32 %v4658, %v4674
  %v4727 = vmul.f32 %v4659, %v4674
  %v4728 = vmul.f32 %v4660, %v4674
  %v4729 = vmul.f32 %v4661, %v4674
  %v4730 = vmul.f32 %v4662, %v4674
  %v4731 = vmul.f32 %v4663, %v4674
  %v4732 = vmul.f32 %v4664, %v4674
  %v4733 = vmul.f32 %v4665, %v4674
  %v4734 = vmul.f32 %v4666, %v4674
  %v4735 = vmul.f32 %v4667, %v4674
  %v4736 = vmul.f32 %v4668, %v4674
  %v4737 = vmul.f32 %v4669, %v4674
  %v4738 = vmul.f32 %v4670, %v4674
  %v4739 = vlaneseq
  %v4740 = vshrl.u32 %v4739, 7
  %v4741 = vsub.s32 0, %v4740
  %v4742 = vrot.slane %v329, %v4741
  %v4743 = vadd.f32 %v4675, %v4742
  %v4744 = vadd.f32 %v4676, %v4742
  %v4745 = vadd.f32 %v4677, %v4742
  %v4746 = vadd.f32 %v4678, %v4742
  %v4747 = vadd.f32 %v4679, %v4742
  %v4748 = vadd.f32 %v4680, %v4742
  %v4749 = vadd.f32 %v4681, %v4742
  %v4750 = vadd.f32 %v4682, %v4742
  %v4751 = vadd.f32 %v4683, %v4742
  %v4752 = vadd.f32 %v4684, %v4742
  %v4753 = vadd.f32 %v4685, %v4742
  %v4754 = vadd.f32 %v4686, %v4742
  %v4755 = vadd.f32 %v4687, %v4742
  %v4756 = vadd.f32 %v4688, %v4742
  %v4757 = vadd.f32 %v4689, %v4742
  %v4758 = vadd.f32 %v4690, %v4742
  %v4759 = vadd.f32 %v4691, %v4742
  %v4760 = vadd.f32 %v4692, %v4742
  %v4761 = vadd.f32 %v4693, %v4742
  %v4762 = vadd.f32 %v4694, %v4742
  %v4763 = vadd.f32 %v4695, %v4742
  %v4764 = vadd.f32 %v4696, %v4742
  %v4765 = vadd.f32 %v4697, %v4742
  %v4766 = vadd.f32 %v4698, %v4742
  %v4767 = vadd.f32 %v4699, %v4742
  %v4768 = vadd.f32 %v4700, %v4742
  %v4769 = vadd.f32 %v4701, %v4742
  %v4770 = vadd.f32 %v4702, %v4742
  %v4771 = vadd.f32 %v4703, %v4742
  %v4772 = vadd.f32 %v4704, %v4742
  %v4773 = vadd.f32 %v4705, %v4742
  %v4774 = vadd.f32 %v4706, %v4742
  %v4775 = vadd.f32 %v4707, %v4742
  %v4776 = vadd.f32 %v4708, %v4742
  %v4777 = vadd.f32 %v4709, %v4742
  %v4778 = vadd.f32 %v4710, %v4742
  %v4779 = vadd.f32 %v4711, %v4742
  %v4780 = vadd.f32 %v4712, %v4742
  %v4781 = vadd.f32 %v4713, %v4742
  %v4782 = vadd.f32 %v4714, %v4742
  %v4783 = vadd.f32 %v4715, %v4742
  %v4784 = vadd.f32 %v4716, %v4742
  %v4785 = vadd.f32 %v4717, %v4742
  %v4786 = vadd.f32 %v4718, %v4742
  %v4787 = vadd.f32 %v4719, %v4742
  %v4788 = vadd.f32 %v4720, %v4742
  %v4789 = vadd.f32 %v4721, %v4742
  %v4790 = vadd.f32 %v4722, %v4742
  %v4791 = vadd.f32 %v4723, %v4742
  %v4792 = vadd.f32 %v4724, %v4742
  %v4793 = vadd.f32 %v4725, %v4742
  %v4794 = vadd.f32 %v4726, %v4742
  %v4795 = vadd.f32 %v4727, %v4742
  %v4796 = vadd.f32 %v4728, %v4742
  %v4797 = vadd.f32 %v4729, %v4742
  %v4798 = vadd.f32 %v4730, %v4742
  %v4799 = vadd.f32 %v4731, %v4742
  %v4800 = vadd.f32 %v4732, %v4742
  %v4801 = vadd.f32 %v4733, %v4742
  %v4802 = vadd.f32 %v4734, %v4742
  %v4803 = vadd.f32 %v4735, %v4742
  %v4804 = vadd.f32 %v4736, %v4742
  %v4805 = vadd.f32 %v4737, %v4742
  %v4806 = vadd.f32 %v4738, %v4742
  %v4807 = vmul.f32 %v4743, 0.5
  %v4808 = vmul.f32 %v4744, 0.5
  %v4809 = vmul.f32 %v4745, 0.5
  %v4810 = vmul.f32 %v4746, 0.5
  %v4811 = vmul.f32 %v4747, 0.5
  %v4812 = vmul.f32 %v4748, 0.5
  %v4813 = vmul.f32 %v4749, 0.5
  %v4814 = vmul.f32 %v4750, 0.5
  %v4815 = vmul.f32 %v4751, 0.5
  %v4816 = vmul.f32 %v4752, 0.5
  %v4817 = vmul.f32 %v4753, 0.5
  %v4818 = vmul.f32 %v4754, 0.5
  %v4819 = vmul.f32 %v4755, 0.5
  %v4820 = vmul.f32 %v4756, 0.5
  %v4821 = vmul.f32 %v4757, 0.5
  %v4822 = vmul.f32 %v4758, 0.5
  %v4823 = vmul.f32 %v4759, 0.5
  %v4824 = vmul.f32 %v4760, 0.5
  %v4825 = vmul.f32 %v4761, 0.5
  %v4826 = vmul.f32 %v4762, 0.5
  %v4827 = vmul.f32 %v4763, 0.5
  %v4828 = vmul.f32 %v4764, 0.5
  %v4829 = vmul.f32 %v4765, 0.5
  %v4830 = vmul.f32 %v4766, 0.5
  %v4831 = vmul.f32 %v4767, 0.5
  %v4832 = vmul.f32 %v4768, 0.5
  %v4833 = vmul.f32 %v4769, 0.5
  %v4834 = vmul.f32 %v4770, 0.5
  %v4835 = vmul.f32 %v4771, 0.5
  %v4836 = vmul.f32 %v4772, 0.5
  %v4837 = vmul.f32 %v4773, 0.5
  %v4838 = vmul.f32 %v4774, 0.5
  %v4839 = vmul.f32 %v4775, 0.5
  %v4840 = vmul.f32 %v4776, 0.5
  %v4841 = vmul.f32 %v4777, 0.5
  %v4842 = vmul.f32 %v4778, 0.5
  %v4843 = vmul.f32 %v4779, 0.5
  %v4844 = vmul.f32 %v4780, 0.5
  %v4845 = vmul.f32 %v4781, 0.5
  %v4846 = vmul.f32 %v4782, 0.5
  %v4847 = vmul.f32 %v4783, 0.5
  %v4848 = vmul.f32 %v4784, 0.5
  %v4849 = vmul.f32 %v4785, 0.5
  %v4850 = vmul.f32 %v4786, 0.5
  %v4851 = vmul.f32 %v4787, 0.5
  %v4852 = vmul.f32 %v4788, 0.5
  %v4853 = vmul.f32 %v4789, 0.5
  %v4854 = vmul.f32 %v4790, 0.5
  %v4855 = vmul.f32 %v4791, 0.5
  %v4856 = vmul.f32 %v4792, 0.5
  %v4857 = vmul.f32 %v4793, 0.5
  %v4858 = vmul.f32 %v4794, 0.5
  %v4859 = vmul.f32 %v4795, 0.5
  %v4860 = vmul.f32 %v4796, 0.5
  %v4861 = vmul.f32 %v4797, 0.5
  %v4862 = vmul.f32 %v4798, 0.5
  %v4863 = vmul.f32 %v4799, 0.5
  %v4864 = vmul.f32 %v4800, 0.5
  %v4865 = vmul.f32 %v4801, 0.5
  %v4866 = vmul.f32 %v4802, 0.5
  %v4867 = vmul.f32 %v4803, 0.5
  %v4868 = vmul.f32 %v4804, 0.5
  %v4869 = vmul.f32 %v4805, 0.5
  %v4870 = vmul.f32 %v4806, 0.5
  %v4871 = vtanh.pop %v4807
  %v4872 = vtanh.pop %v4808
  %v4873 = vtanh.pop %v4809
  %v4874 = vtanh.pop %v4810
  %v4875 = vtanh.pop %v4811
  %v4876 = vtanh.pop %v4812
  %v4877 = vtanh.pop %v4813
  %v4878 = vtanh.pop %v4814
  %v4879 = vtanh.pop %v4815
  %v4880 = vtanh.pop %v4816
  %v4881 = vtanh.pop %v4817
  %v4882 = vtanh.pop %v4818
  %v4883 = vtanh.pop %v4819
  %v4884 = vtanh.pop %v4820
  %v4885 = vtanh.pop %v4821
  %v4886 = vtanh.pop %v4822
  %v4887 = vtanh.pop %v4823
  %v4888 = vtanh.pop %v4824
  %v4889 = vtanh.pop %v4825
  %v4890 = vtanh.pop %v4826
  %v4891 = vtanh.pop %v4827
  %v4892 = vtanh.pop %v4828
  %v4893 = vtanh.pop %v4829
  %v4894 = vtanh.pop %v4830
  %v4895 = vtanh.pop %v4831
  %v4896 = vtanh.pop %v4832
  %v4897 = vtanh.pop %v4833
  %v4898 = vtanh.pop %v4834
  %v4899 = vtanh.pop %v4835
  %v4900 = vtanh.pop %v4836
  %v4901 = vtanh.pop %v4837
  %v4902 = vtanh.pop %v4838
  %v4903 = vtanh.pop %v4839
  %v4904 = vtanh.pop %v4840
  %v4905 = vtanh.pop %v4841
  %v4906 = vtanh.pop %v4842
  %v4907 = vtanh.pop %v4843
  %v4908 = vtanh.pop %v4844
  %v4909 = vtanh.pop %v4845
  %v4910 = vtanh.pop %v4846
  %v4911 = vtanh.pop %v4847
  %v4912 = vtanh.pop %v4848
  %v4913 = vtanh.pop %v4849
  %v4914 = vtanh.pop %v4850
  %v4915 = vtanh.pop %v4851
  %v4916 = vtanh.pop %v4852
  %v4917 = vtanh.pop %v4853
  %v4918 = vtanh.pop %v4854
  %v4919 = vtanh.pop %v4855
  %v4920 = vtanh.pop %v4856
  %v4921 = vtanh.pop %v4857
  %v4922 = vtanh.pop %v4858
  %v4923 = vtanh.pop %v4859
  %v4924 = vtanh.pop %v4860
  %v4925 = vtanh.pop %v4861
  %v4926 = vtanh.pop %v4862
  %v4927 = vtanh.pop %v4863
  %v4928 = vtanh.pop %v4864
  %v4929 = vtanh.pop %v4865
  %v4930 = vtanh.pop %v4866
  %v4931 = vtanh.pop %v4867
  %v4932 = vtanh.pop %v4868
  %v4933 = vtanh.pop %v4869
  %v4934 = vtanh.pop %v4870
  %v4935 = vadd.f32 %v4871, 1.0
  %v4936 = vadd.f32 %v4872, 1.0
  %v4937 = vadd.f32 %v4873, 1.0
  %v4938 = vadd.f32 %v4874, 1.0
  %v4939 = vadd.f32 %v4875, 1.0
  %v4940 = vadd.f32 %v4876, 1.0
  %v4941 = vadd.f32 %v4877, 1.0
  %v4942 = vadd.f32 %v4878, 1.0
  %v4943 = vadd.f32 %v4879, 1.0
  %v4944 = vadd.f32 %v4880, 1.0
  %v4945 = vadd.f32 %v4881, 1.0
  %v4946 = vadd.f32 %v4882, 1.0
  %v4947 = vadd.f32 %v4883, 1.0
  %v4948 = vadd.f32 %v4884, 1.0
  %v4949 = vadd.f32 %v4885, 1.0
  %v4950 = vadd.f32 %v4886, 1.0
  %v4951 = vadd.f32 %v4887, 1.0
  %v4952 = vadd.f32 %v4888, 1.0
  %v4953 = vadd.f32 %v4889, 1.0
  %v4954 = vadd.f32 %v4890, 1.0
  %v4955 = vadd.f32 %v4891, 1.0
  %v4956 = vadd.f32 %v4892, 1.0
  %v4957 = vadd.f32 %v4893, 1.0
  %v4958 = vadd.f32 %v4894, 1.0
  %v4959 = vadd.f32 %v4895, 1.0
  %v4960 = vadd.f32 %v4896, 1.0
  %v4961 = vadd.f32 %v4897, 1.0
  %v4962 = vadd.f32 %v4898, 1.0
  %v4963 = vadd.f32 %v4899, 1.0
  %v4964 = vadd.f32 %v4900, 1.0
  %v4965 = vadd.f32 %v4901, 1.0
  %v4966 = vadd.f32 %v4902, 1.0
  %v4967 = vadd.f32 %v4903, 1.0
  %v4968 = vadd.f32 %v4904, 1.0
  %v4969 = vadd.f32 %v4905, 1.0
  %v4970 = vadd.f32 %v4906, 1.0
  %v4971 = vadd.f32 %v4907, 1.0
  %v4972 = vadd.f32 %v4908, 1.0
  %v4973 = vadd.f32 %v4909, 1.0
  %v4974 = vadd.f32 %v4910, 1.0
  %v4975 = vadd.f32 %v4911, 1.0
  %v4976 = vadd.f32 %v4912, 1.0
  %v4977 = vadd.f32 %v4913, 1.0
  %v4978 = vadd.f32 %v4914, 1.0
  %v4979 = vadd.f32 %v4915, 1.0
  %v4980 = vadd.f32 %v4916, 1.0
  %v4981 = vadd.f32 %v4917, 1.0
  %v4982 = vadd.f32 %v4918, 1.0
  %v4983 = vadd.f32 %v4919, 1.0
  %v4984 = vadd.f32 %v4920, 1.0
  %v4985 = vadd.f32 %v4921, 1.0
  %v4986 = vadd.f32 %v4922, 1.0
  %v4987 = vadd.f32 %v4923, 1.0
  %v4988 = vadd.f32 %v4924, 1.0
  %v4989 = vadd.f32 %v4925, 1.0
  %v4990 = vadd.f32 %v4926, 1.0
  %v4991 = vadd.f32 %v4927, 1.0
  %v4992 = vadd.f32 %v4928, 1.0
  %v4993 = vadd.f32 %v4929, 1.0
  %v4994 = vadd.f32 %v4930, 1.0
  %v4995 = vadd.f32 %v4931, 1.0
  %v4996 = vadd.f32 %v4932, 1.0
  %v4997 = vadd.f32 %v4933, 1.0
  %v4998 = vadd.f32 %v4934, 1.0
  %v4999 = vmul.f32 %v4935, 0.5
  %v5000 = vmul.f32 %v4936, 0.5
  %v5001 = vmul.f32 %v4937, 0.5
  %v5002 = vmul.f32 %v4938, 0.5
  %v5003 = vmul.f32 %v4939, 0.5
  %v5004 = vmul.f32 %v4940, 0.5
  %v5005 = vmul.f32 %v4941, 0.5
  %v5006 = vmul.f32 %v4942, 0.5
  %v5007 = vmul.f32 %v4943, 0.5
  %v5008 = vmul.f32 %v4944, 0.5
  %v5009 = vmul.f32 %v4945, 0.5
  %v5010 = vmul.f32 %v4946, 0.5
  %v5011 = vmul.f32 %v4947, 0.5
  %v5012 = vmul.f32 %v4948, 0.5
  %v5013 = vmul.f32 %v4949, 0.5
  %v5014 = vmul.f32 %v4950, 0.5
  %v5015 = vmul.f32 %v4951, 0.5
  %v5016 = vmul.f32 %v4952, 0.5
  %v5017 = vmul.f32 %v4953, 0.5
  %v5018 = vmul.f32 %v4954, 0.5
  %v5019 = vmul.f32 %v4955, 0.5
  %v5020 = vmul.f32 %v4956, 0.5
  %v5021 = vmul.f32 %v4957, 0.5
  %v5022 = vmul.f32 %v4958, 0.5
  %v5023 = vmul.f32 %v4959, 0.5
  %v5024 = vmul.f32 %v4960, 0.5
  %v5025 = vmul.f32 %v4961, 0.5
  %v5026 = vmul.f32 %v4962, 0.5
  %v5027 = vmul.f32 %v4963, 0.5
  %v5028 = vmul.f32 %v4964, 0.5
  %v5029 = vmul.f32 %v4965, 0.5
  %v5030 = vmul.f32 %v4966, 0.5
  %v5031 = vmul.f32 %v4967, 0.5
  %v5032 = vmul.f32 %v4968, 0.5
  %v5033 = vmul.f32 %v4969, 0.5
  %v5034 = vmul.f32 %v4970, 0.5
  %v5035 = vmul.f32 %v4971, 0.5
  %v5036 = vmul.f32 %v4972, 0.5
  %v5037 = vmul.f32 %v4973, 0.5
  %v5038 = vmul.f32 %v4974, 0.5
  %v5039 = vmul.f32 %v4975, 0.5
  %v5040 = vmul.f32 %v4976, 0.5
  %v5041 = vmul.f32 %v4977, 0.5
  %v5042 = vmul.f32 %v4978, 0.5
  %v5043 = vmul.f32 %v4979, 0.5
  %v5044 = vmul.f32 %v4980, 0.5
  %v5045 = vmul.f32 %v4981, 0.5
  %v5046 = vmul.f32 %v4982, 0.5
  %v5047 = vmul.f32 %v4983, 0.5
  %v5048 = vmul.f32 %v4984, 0.5
  %v5049 = vmul.f32 %v4985, 0.5
  %v5050 = vmul.f32 %v4986, 0.5
  %v5051 = vmul.f32 %v4987, 0.5
  %v5052 = vmul.f32 %v4988, 0.5
  %v5053 = vmul.f32 %v4989, 0.5
  %v5054 = vmul.f32 %v4990, 0.5
  %v5055 = vmul.f32 %v4991, 0.5
  %v5056 = vmul.f32 %v4992, 0.5
  %v5057 = vmul.f32 %v4993, 0.5
  %v5058 = vmul.f32 %v4994, 0.5
  %v5059 = vmul.f32 %v4995, 0.5
  %v5060 = vmul.f32 %v4996, 0.5
  %v5061 = vmul.f32 %v4997, 0.5
  %v5062 = vmul.f32 %v4998, 0.5
  %v5063 = vmul.f32 %v4743, %v4999
  %v5064 = vmul.f32 %v4744, %v5000
  %v5065 = vmul.f32 %v4745, %v5001
  %v5066 = vmul.f32 %v4746, %v5002
  %v5067 = vmul.f32 %v4747, %v5003
  %v5068 = vmul.f32 %v4748, %v5004
  %v5069 = vmul.f32 %v4749, %v5005
  %v5070 = vmul.f32 %v4750, %v5006
  %v5071 = vmul.f32 %v4751, %v5007
  %v5072 = vmul.f32 %v4752, %v5008
  %v5073 = vmul.f32 %v4753, %v5009
  %v5074 = vmul.f32 %v4754, %v5010
  %v5075 = vmul.f32 %v4755, %v5011
  %v5076 = vmul.f32 %v4756, %v5012
  %v5077 = vmul.f32 %v4757, %v5013
  %v5078 = vmul.f32 %v4758, %v5014
  %v5079 = vmul.f32 %v4759, %v5015
  %v5080 = vmul.f32 %v4760, %v5016
  %v5081 = vmul.f32 %v4761, %v5017
  %v5082 = vmul.f32 %v4762, %v5018
  %v5083 = vmul.f32 %v4763, %v5019
  %v5084 = vmul.f32 %v4764, %v5020
  %v5085 = vmul.f32 %v4765, %v5021
  %v5086 = vmul.f32 %v4766, %v5022
  %v5087 = vmul.f32 %v4767, %v5023
  %v5088 = vmul.f32 %v4768, %v5024
  %v5089 = vmul.f32 %v4769, %v5025
  %v5090 = vmul.f32 %v4770, %v5026
  %v5091 = vmul.f32 %v4771, %v5027
  %v5092 = vmul.f32 %v4772, %v5028
  %v5093 = vmul.f32 %v4773, %v5029
  %v5094 = vmul.f32 %v4774, %v5030
  %v5095 = vmul.f32 %v4775, %v5031
  %v5096 = vmul.f32 %v4776, %v5032
  %v5097 = vmul.f32 %v4777, %v5033
  %v5098 = vmul.f32 %v4778, %v5034
  %v5099 = vmul.f32 %v4779, %v5035
  %v5100 = vmul.f32 %v4780, %v5036
  %v5101 = vmul.f32 %v4781, %v5037
  %v5102 = vmul.f32 %v4782, %v5038
  %v5103 = vmul.f32 %v4783, %v5039
  %v5104 = vmul.f32 %v4784, %v5040
  %v5105 = vmul.f32 %v4785, %v5041
  %v5106 = vmul.f32 %v4786, %v5042
  %v5107 = vmul.f32 %v4787, %v5043
  %v5108 = vmul.f32 %v4788, %v5044
  %v5109 = vmul.f32 %v4789, %v5045
  %v5110 = vmul.f32 %v4790, %v5046
  %v5111 = vmul.f32 %v4791, %v5047
  %v5112 = vmul.f32 %v4792, %v5048
  %v5113 = vmul.f32 %v4793, %v5049
  %v5114 = vmul.f32 %v4794, %v5050
  %v5115 = vmul.f32 %v4795, %v5051
  %v5116 = vmul.f32 %v4796, %v5052
  %v5117 = vmul.f32 %v4797, %v5053
  %v5118 = vmul.f32 %v4798, %v5054
  %v5119 = vmul.f32 %v4799, %v5055
  %v5120 = vmul.f32 %v4800, %v5056
  %v5121 = vmul.f32 %v4801, %v5057
  %v5122 = vmul.f32 %v4802, %v5058
  %v5123 = vmul.f32 %v4803, %v5059
  %v5124 = vmul.f32 %v4804, %v5060
  %v5125 = vmul.f32 %v4805, %v5061
  %v5126 = vmul.f32 %v4806, %v5062
  %v5127 = vpack.c.bf16 %v5064, %v5063
  %v5128 = vpack.c.bf16 %v5066, %v5065
  %v5129 = vpack.c.bf16 %v5068, %v5067
  %v5130 = vpack.c.bf16 %v5070, %v5069
  %v5131 = vpack.c.bf16 %v5072, %v5071
  %v5132 = vpack.c.bf16 %v5074, %v5073
  %v5133 = vpack.c.bf16 %v5076, %v5075
  %v5134 = vpack.c.bf16 %v5078, %v5077
  %v5135 = vpack.c.bf16 %v5080, %v5079
  %v5136 = vpack.c.bf16 %v5082, %v5081
  %v5137 = vpack.c.bf16 %v5084, %v5083
  %v5138 = vpack.c.bf16 %v5086, %v5085
  %v5139 = vpack.c.bf16 %v5088, %v5087
  %v5140 = vpack.c.bf16 %v5090, %v5089
  %v5141 = vpack.c.bf16 %v5092, %v5091
  %v5142 = vpack.c.bf16 %v5094, %v5093
  %v5143 = vpack.c.bf16 %v5096, %v5095
  %v5144 = vpack.c.bf16 %v5098, %v5097
  %v5145 = vpack.c.bf16 %v5100, %v5099
  %v5146 = vpack.c.bf16 %v5102, %v5101
  %v5147 = vpack.c.bf16 %v5104, %v5103
  %v5148 = vpack.c.bf16 %v5106, %v5105
  %v5149 = vpack.c.bf16 %v5108, %v5107
  %v5150 = vpack.c.bf16 %v5110, %v5109
  %v5151 = vpack.c.bf16 %v5112, %v5111
  %v5152 = vpack.c.bf16 %v5114, %v5113
  %v5153 = vpack.c.bf16 %v5116, %v5115
  %v5154 = vpack.c.bf16 %v5118, %v5117
  %v5155 = vpack.c.bf16 %v5120, %v5119
  %v5156 = vpack.c.bf16 %v5122, %v5121
  %v5157 = vpack.c.bf16 %v5124, %v5123
  %v5158 = vpack.c.bf16 %v5126, %v5125
  %v5160 = vshrl.u32 %v5127, 16
  %v5162 = vrot.slane %v5160, 7
  %v5163 = vshll.u32 %v5127, 16
  %v5165 = vor.u32 %v5162, %v5163
  %v5167 = vshrl.u32 %v5128, 16
  %v5169 = vrot.slane %v5167, 7
  %v5170 = vshll.u32 %v5128, 16
  %v5172 = vor.u32 %v5169, %v5170
  %v5174 = vshrl.u32 %v5129, 16
  %v5176 = vrot.slane %v5174, 7
  %v5177 = vshll.u32 %v5129, 16
  %v5179 = vor.u32 %v5176, %v5177
  %v5181 = vshrl.u32 %v5130, 16
  %v5183 = vrot.slane %v5181, 7
  %v5184 = vshll.u32 %v5130, 16
  %v5186 = vor.u32 %v5183, %v5184
  %v5188 = vshrl.u32 %v5131, 16
  %v5190 = vrot.slane %v5188, 7
  %v5191 = vshll.u32 %v5131, 16
  %v5193 = vor.u32 %v5190, %v5191
  %v5195 = vshrl.u32 %v5132, 16
  %v5197 = vrot.slane %v5195, 7
  %v5198 = vshll.u32 %v5132, 16
  %v5200 = vor.u32 %v5197, %v5198
  %v5202 = vshrl.u32 %v5133, 16
  %v5204 = vrot.slane %v5202, 7
  %v5205 = vshll.u32 %v5133, 16
  %v5207 = vor.u32 %v5204, %v5205
  %v5209 = vshrl.u32 %v5134, 16
  %v5211 = vrot.slane %v5209, 7
  %v5212 = vshll.u32 %v5134, 16
  %v5214 = vor.u32 %v5211, %v5212
  %v5216 = vshrl.u32 %v5135, 16
  %v5218 = vrot.slane %v5216, 7
  %v5219 = vshll.u32 %v5135, 16
  %v5221 = vor.u32 %v5218, %v5219
  %v5223 = vshrl.u32 %v5136, 16
  %v5225 = vrot.slane %v5223, 7
  %v5226 = vshll.u32 %v5136, 16
  %v5228 = vor.u32 %v5225, %v5226
  %v5230 = vshrl.u32 %v5137, 16
  %v5232 = vrot.slane %v5230, 7
  %v5233 = vshll.u32 %v5137, 16
  %v5235 = vor.u32 %v5232, %v5233
  %v5237 = vshrl.u32 %v5138, 16
  %v5239 = vrot.slane %v5237, 7
  %v5240 = vshll.u32 %v5138, 16
  %v5242 = vor.u32 %v5239, %v5240
  %v5244 = vshrl.u32 %v5139, 16
  %v5246 = vrot.slane %v5244, 7
  %v5247 = vshll.u32 %v5139, 16
  %v5249 = vor.u32 %v5246, %v5247
  %v5251 = vshrl.u32 %v5140, 16
  %v5253 = vrot.slane %v5251, 7
  %v5254 = vshll.u32 %v5140, 16
  %v5256 = vor.u32 %v5253, %v5254
  %v5258 = vshrl.u32 %v5141, 16
  %v5260 = vrot.slane %v5258, 7
  %v5261 = vshll.u32 %v5141, 16
  %v5263 = vor.u32 %v5260, %v5261
  %v5265 = vshrl.u32 %v5142, 16
  %v5267 = vrot.slane %v5265, 7
  %v5268 = vshll.u32 %v5142, 16
  %v5270 = vor.u32 %v5267, %v5268
  %v5272 = vshrl.u32 %v5143, 16
  %v5274 = vrot.slane %v5272, 7
  %v5275 = vshll.u32 %v5143, 16
  %v5277 = vor.u32 %v5274, %v5275
  %v5279 = vshrl.u32 %v5144, 16
  %v5281 = vrot.slane %v5279, 7
  %v5282 = vshll.u32 %v5144, 16
  %v5284 = vor.u32 %v5281, %v5282
  %v5286 = vshrl.u32 %v5145, 16
  %v5288 = vrot.slane %v5286, 7
  %v5289 = vshll.u32 %v5145, 16
  %v5291 = vor.u32 %v5288, %v5289
  %v5293 = vshrl.u32 %v5146, 16
  %v5295 = vrot.slane %v5293, 7
  %v5296 = vshll.u32 %v5146, 16
  %v5298 = vor.u32 %v5295, %v5296
  %v5300 = vshrl.u32 %v5147, 16
  %v5302 = vrot.slane %v5300, 7
  %v5303 = vshll.u32 %v5147, 16
  %v5305 = vor.u32 %v5302, %v5303
  %v5307 = vshrl.u32 %v5148, 16
  %v5309 = vrot.slane %v5307, 7
  %v5310 = vshll.u32 %v5148, 16
  %v5312 = vor.u32 %v5309, %v5310
  %v5314 = vshrl.u32 %v5149, 16
  %v5316 = vrot.slane %v5314, 7
  %v5317 = vshll.u32 %v5149, 16
  %v5319 = vor.u32 %v5316, %v5317
  %v5321 = vshrl.u32 %v5150, 16
  %v5323 = vrot.slane %v5321, 7
  %v5324 = vshll.u32 %v5150, 16
  %v5326 = vor.u32 %v5323, %v5324
  %v5328 = vshrl.u32 %v5151, 16
  %v5330 = vrot.slane %v5328, 7
  %v5331 = vshll.u32 %v5151, 16
  %v5333 = vor.u32 %v5330, %v5331
  %v5335 = vshrl.u32 %v5152, 16
  %v5337 = vrot.slane %v5335, 7
  %v5338 = vshll.u32 %v5152, 16
  %v5340 = vor.u32 %v5337, %v5338
  %v5342 = vshrl.u32 %v5153, 16
  %v5344 = vrot.slane %v5342, 7
  %v5345 = vshll.u32 %v5153, 16
  %v5347 = vor.u32 %v5344, %v5345
  %v5349 = vshrl.u32 %v5154, 16
  %v5351 = vrot.slane %v5349, 7
  %v5352 = vshll.u32 %v5154, 16
  %v5354 = vor.u32 %v5351, %v5352
  %v5356 = vshrl.u32 %v5155, 16
  %v5358 = vrot.slane %v5356, 7
  %v5359 = vshll.u32 %v5155, 16
  %v5361 = vor.u32 %v5358, %v5359
  %v5363 = vshrl.u32 %v5156, 16
  %v5365 = vrot.slane %v5363, 7
  %v5366 = vshll.u32 %v5156, 16
  %v5368 = vor.u32 %v5365, %v5366
  %v5370 = vshrl.u32 %v5157, 16
  %v5372 = vrot.slane %v5370, 7
  %v5373 = vshll.u32 %v5157, 16
  %v5375 = vor.u32 %v5372, %v5373
  %v5377 = vshrl.u32 %v5158, 16
  %v5379 = vrot.slane %v5377, 7
  %v5380 = vshll.u32 %v5158, 16
  %v5382 = vor.u32 %v5379, %v5380
  %v5415 = vld [vmem:[%s1761] sm:$0xff]
  %v5416 = vsel %vm1764, %v5165, %v5415
  %5417 = vst [vmem:[%s1761] sm:$0xff] %v5416
  %v5418 = vld [vmem:[%s1761 + $0x10] sm:$0xff]
  %v5419 = vsel %vm1764, %v5172, %v5418
  %5420 = vst [vmem:[%s1761 + $0x10] sm:$0xff] %v5419
  %v5421 = vld [vmem:[%s1761 + $0x20] sm:$0xff]
  %v5422 = vsel %vm1764, %v5179, %v5421
  %5423 = vst [vmem:[%s1761 + $0x20] sm:$0xff] %v5422
  %v5424 = vld [vmem:[%s1761 + $0x30] sm:$0xff]
  %v5425 = vsel %vm1764, %v5186, %v5424
  %5426 = vst [vmem:[%s1761 + $0x30] sm:$0xff] %v5425
  %v5427 = vld [vmem:[%s1761 + $0x40] sm:$0xff]
  %v5428 = vsel %vm1764, %v5193, %v5427
  %5429 = vst [vmem:[%s1761 + $0x40] sm:$0xff] %v5428
  %v5430 = vld [vmem:[%s1761 + $0x50] sm:$0xff]
  %v5431 = vsel %vm1764, %v5200, %v5430
  %5432 = vst [vmem:[%s1761 + $0x50] sm:$0xff] %v5431
  %v5433 = vld [vmem:[%s1761 + $0x60] sm:$0xff]
  %v5434 = vsel %vm1764, %v5207, %v5433
  %5435 = vst [vmem:[%s1761 + $0x60] sm:$0xff] %v5434
  %v5436 = vld [vmem:[%s1761 + $0x70] sm:$0xff]
  %v5437 = vsel %vm1764, %v5214, %v5436
  %5438 = vst [vmem:[%s1761 + $0x70] sm:$0xff] %v5437
  %v5439 = vld [vmem:[%s1761 + $0x80] sm:$0xff]
  %v5440 = vsel %vm1764, %v5221, %v5439
  %5441 = vst [vmem:[%s1761 + $0x80] sm:$0xff] %v5440
  %v5442 = vld [vmem:[%s1761 + $0x90] sm:$0xff]
  %v5443 = vsel %vm1764, %v5228, %v5442
  %5444 = vst [vmem:[%s1761 + $0x90] sm:$0xff] %v5443
  %v5445 = vld [vmem:[%s1761 + $0xa0] sm:$0xff]
  %v5446 = vsel %vm1764, %v5235, %v5445
  %5447 = vst [vmem:[%s1761 + $0xa0] sm:$0xff] %v5446
  %v5448 = vld [vmem:[%s1761 + $0xb0] sm:$0xff]
  %v5449 = vsel %vm1764, %v5242, %v5448
  %5450 = vst [vmem:[%s1761 + $0xb0] sm:$0xff] %v5449
  %v5451 = vld [vmem:[%s1761 + $0xc0] sm:$0xff]
  %v5452 = vsel %vm1764, %v5249, %v5451
  %5453 = vst [vmem:[%s1761 + $0xc0] sm:$0xff] %v5452
  %v5454 = vld [vmem:[%s1761 + $0xd0] sm:$0xff]
  %v5455 = vsel %vm1764, %v5256, %v5454
  %5456 = vst [vmem:[%s1761 + $0xd0] sm:$0xff] %v5455
  %v5457 = vld [vmem:[%s1761 + $0xe0] sm:$0xff]
  %v5458 = vsel %vm1764, %v5263, %v5457
  %5459 = vst [vmem:[%s1761 + $0xe0] sm:$0xff] %v5458
  %v5460 = vld [vmem:[%s1761 + $0xf0] sm:$0xff]
  %v5461 = vsel %vm1764, %v5270, %v5460
  %5462 = vst [vmem:[%s1761 + $0xf0] sm:$0xff] %v5461
  %v5463 = vld [vmem:[%s1761 + $0x120] sm:$0xff]
  %v5464 = vsel %vm1764, %v5277, %v5463
  %5465 = vst [vmem:[%s1761 + $0x120] sm:$0xff] %v5464
  %v5466 = vld [vmem:[%s1761 + $0x130] sm:$0xff]
  %v5467 = vsel %vm1764, %v5284, %v5466
  %5468 = vst [vmem:[%s1761 + $0x130] sm:$0xff] %v5467
  %v5469 = vld [vmem:[%s1761 + $0x140] sm:$0xff]
  %v5470 = vsel %vm1764, %v5291, %v5469
  %5471 = vst [vmem:[%s1761 + $0x140] sm:$0xff] %v5470
  %v5472 = vld [vmem:[%s1761 + $0x150] sm:$0xff]
  %v5473 = vsel %vm1764, %v5298, %v5472
  %5474 = vst [vmem:[%s1761 + $0x150] sm:$0xff] %v5473
  %v5475 = vld [vmem:[%s1761 + $0x160] sm:$0xff]
  %v5476 = vsel %vm1764, %v5305, %v5475
  %5477 = vst [vmem:[%s1761 + $0x160] sm:$0xff] %v5476
  %v5478 = vld [vmem:[%s1761 + $0x170] sm:$0xff]
  %v5479 = vsel %vm1764, %v5312, %v5478
  %5480 = vst [vmem:[%s1761 + $0x170] sm:$0xff] %v5479
  %v5481 = vld [vmem:[%s1761 + $0x180] sm:$0xff]
  %v5482 = vsel %vm1764, %v5319, %v5481
  %5483 = vst [vmem:[%s1761 + $0x180] sm:$0xff] %v5482
  %v5484 = vld [vmem:[%s1761 + $0x190] sm:$0xff]
  %v5485 = vsel %vm1764, %v5326, %v5484
  %5486 = vst [vmem:[%s1761 + $0x190] sm:$0xff] %v5485
  %v5487 = vld [vmem:[%s1761 + $0x1a0] sm:$0xff]
  %v5488 = vsel %vm1764, %v5333, %v5487
  %5489 = vst [vmem:[%s1761 + $0x1a0] sm:$0xff] %v5488
  %v5490 = vld [vmem:[%s1761 + $0x1b0] sm:$0xff]
  %v5491 = vsel %vm1764, %v5340, %v5490
  %5492 = vst [vmem:[%s1761 + $0x1b0] sm:$0xff] %v5491
  %v5493 = vld [vmem:[%s1761 + $0x1c0] sm:$0xff]
  %v5494 = vsel %vm1764, %v5347, %v5493
  %5495 = vst [vmem:[%s1761 + $0x1c0] sm:$0xff] %v5494
  %v5496 = vld [vmem:[%s1761 + $0x1d0] sm:$0xff]
  %v5497 = vsel %vm1764, %v5354, %v5496
  %5498 = vst [vmem:[%s1761 + $0x1d0] sm:$0xff] %v5497
  %v5499 = vld [vmem:[%s1761 + $0x1e0] sm:$0xff]
  %v5500 = vsel %vm1764, %v5361, %v5499
  %5501 = vst [vmem:[%s1761 + $0x1e0] sm:$0xff] %v5500
  %v5502 = vld [vmem:[%s1761 + $0x1f0] sm:$0xff]
  %v5503 = vsel %vm1764, %v5368, %v5502
  %5504 = vst [vmem:[%s1761 + $0x1f0] sm:$0xff] %v5503
  %v5505 = vld [vmem:[%s1761 + $0x200] sm:$0xff]
  %v5506 = vsel %vm1764, %v5375, %v5505
  %5507 = vst [vmem:[%s1761 + $0x200] sm:$0xff] %v5506
  %v5508 = vld [vmem:[%s1761 + $0x210] sm:$0xff]
  %v5509 = vsel %vm1764, %v5382, %v5508
  %5510 = vst [vmem:[%s1761 + $0x210] sm:$0xff] %v5509
  %5543 = vrot.lane.b32.xlu0 %v5127, 64
  %v5544 = vpop.permute.xlu0 %5543
  %5545 = vrot.lane.b32.xlu0 %v5128, 64
  %v5546 = vpop.permute.xlu0 %5545
  %5547 = vrot.lane.b32.xlu0 %v5129, 64
  %v5548 = vpop.permute.xlu0 %5547
  %5549 = vrot.lane.b32.xlu0 %v5130, 64
  %v5550 = vpop.permute.xlu0 %5549
  %5551 = vrot.lane.b32.xlu0 %v5131, 64
  %v5552 = vpop.permute.xlu0 %5551
  %5553 = vrot.lane.b32.xlu0 %v5132, 64
  %v5554 = vpop.permute.xlu0 %5553
  %5555 = vrot.lane.b32.xlu0 %v5133, 64
  %v5556 = vpop.permute.xlu0 %5555
  %5557 = vrot.lane.b32.xlu0 %v5134, 64
  %v5558 = vpop.permute.xlu0 %5557
  %5559 = vrot.lane.b32.xlu0 %v5135, 64
  %v5560 = vpop.permute.xlu0 %5559
  %5561 = vrot.lane.b32.xlu0 %v5136, 64
  %v5562 = vpop.permute.xlu0 %5561
  %5563 = vrot.lane.b32.xlu0 %v5137, 64
  %v5564 = vpop.permute.xlu0 %5563
  %5565 = vrot.lane.b32.xlu0 %v5138, 64
  %v5566 = vpop.permute.xlu0 %5565
  %5567 = vrot.lane.b32.xlu0 %v5139, 64
  %v5568 = vpop.permute.xlu0 %5567
  %5569 = vrot.lane.b32.xlu0 %v5140, 64
  %v5570 = vpop.permute.xlu0 %5569
  %5571 = vrot.lane.b32.xlu0 %v5141, 64
  %v5572 = vpop.permute.xlu0 %5571
  %5573 = vrot.lane.b32.xlu0 %v5142, 64
  %v5574 = vpop.permute.xlu0 %5573
  %5575 = vrot.lane.b32.xlu0 %v5143, 64
  %v5576 = vpop.permute.xlu0 %5575
  %5577 = vrot.lane.b32.xlu0 %v5144, 64
  %v5578 = vpop.permute.xlu0 %5577
  %5579 = vrot.lane.b32.xlu0 %v5145, 64
  %v5580 = vpop.permute.xlu0 %5579
  %5581 = vrot.lane.b32.xlu0 %v5146, 64
  %v5582 = vpop.permute.xlu0 %5581
  %5583 = vrot.lane.b32.xlu0 %v5147, 64
  %v5584 = vpop.permute.xlu0 %5583
  %5585 = vrot.lane.b32.xlu0 %v5148, 64
  %v5586 = vpop.permute.xlu0 %5585
  %5587 = vrot.lane.b32.xlu0 %v5149, 64
  %v5588 = vpop.permute.xlu0 %5587
  %5589 = vrot.lane.b32.xlu0 %v5150, 64
  %v5590 = vpop.permute.xlu0 %5589
  %5591 = vrot.lane.b32.xlu0 %v5151, 64
  %v5592 = vpop.permute.xlu0 %5591
  %5593 = vrot.lane.b32.xlu0 %v5152, 64
  %v5594 = vpop.permute.xlu0 %5593
  %5595 = vrot.lane.b32.xlu0 %v5153, 64
  %v5596 = vpop.permute.xlu0 %5595
  %5597 = vrot.lane.b32.xlu0 %v5154, 64
  %v5598 = vpop.permute.xlu0 %5597
  %5599 = vrot.lane.b32.xlu0 %v5155, 64
  %v5600 = vpop.permute.xlu0 %5599
  %5601 = vrot.lane.b32.xlu0 %v5156, 64
  %v5602 = vpop.permute.xlu0 %5601
  %5603 = vrot.lane.b32.xlu0 %v5157, 64
  %v5604 = vpop.permute.xlu0 %5603
  %5605 = vrot.lane.b32.xlu0 %v5158, 64
  %v5606 = vpop.permute.xlu0 %5605
  %5639 = vst.msk [vmem:[%s1761] sm:$0xff] %vm1989, %v5544
  %5640 = vst.msk [vmem:[%s1761 + $0x10] sm:$0xff] %vm1989, %v5546
  %5641 = vst.msk [vmem:[%s1761 + $0x20] sm:$0xff] %vm1989, %v5548
  %5642 = vst.msk [vmem:[%s1761 + $0x30] sm:$0xff] %vm1989, %v5550
  %5643 = vst.msk [vmem:[%s1761 + $0x40] sm:$0xff] %vm1989, %v5552
  %5644 = vst.msk [vmem:[%s1761 + $0x50] sm:$0xff] %vm1989, %v5554
  %5645 = vst.msk [vmem:[%s1761 + $0x60] sm:$0xff] %vm1989, %v5556
  %5646 = vst.msk [vmem:[%s1761 + $0x70] sm:$0xff] %vm1989, %v5558
  %5647 = vst.msk [vmem:[%s1761 + $0x80] sm:$0xff] %vm1989, %v5560
  %5648 = vst.msk [vmem:[%s1761 + $0x90] sm:$0xff] %vm1989, %v5562
  %5649 = vst.msk [vmem:[%s1761 + $0xa0] sm:$0xff] %vm1989, %v5564
  %5650 = vst.msk [vmem:[%s1761 + $0xb0] sm:$0xff] %vm1989, %v5566
  %5651 = vst.msk [vmem:[%s1761 + $0xc0] sm:$0xff] %vm1989, %v5568
  %5652 = vst.msk [vmem:[%s1761 + $0xd0] sm:$0xff] %vm1989, %v5570
  %5653 = vst.msk [vmem:[%s1761 + $0xe0] sm:$0xff] %vm1989, %v5572
  %5654 = vst.msk [vmem:[%s1761 + $0xf0] sm:$0xff] %vm1989, %v5574
  %5655 = vst.msk [vmem:[%s1761 + $0x120] sm:$0xff] %vm1989, %v5576
  %5656 = vst.msk [vmem:[%s1761 + $0x130] sm:$0xff] %vm1989, %v5578
  %5657 = vst.msk [vmem:[%s1761 + $0x140] sm:$0xff] %vm1989, %v5580
  %5658 = vst.msk [vmem:[%s1761 + $0x150] sm:$0xff] %vm1989, %v5582
  %5659 = vst.msk [vmem:[%s1761 + $0x160] sm:$0xff] %vm1989, %v5584
  %5660 = vst.msk [vmem:[%s1761 + $0x170] sm:$0xff] %vm1989, %v5586
  %5661 = vst.msk [vmem:[%s1761 + $0x180] sm:$0xff] %vm1989, %v5588
  %5662 = vst.msk [vmem:[%s1761 + $0x190] sm:$0xff] %vm1989, %v5590
  %5663 = vst.msk [vmem:[%s1761 + $0x1a0] sm:$0xff] %vm1989, %v5592
  %5664 = vst.msk [vmem:[%s1761 + $0x1b0] sm:$0xff] %vm1989, %v5594
  %5665 = vst.msk [vmem:[%s1761 + $0x1c0] sm:$0xff] %vm1989, %v5596
  %5666 = vst.msk [vmem:[%s1761 + $0x1d0] sm:$0xff] %vm1989, %v5598
  %5667 = vst.msk [vmem:[%s1761 + $0x1e0] sm:$0xff] %vm1989, %v5600
  %5668 = vst.msk [vmem:[%s1761 + $0x1f0] sm:$0xff] %vm1989, %v5602
  %5669 = vst.msk [vmem:[%s1761 + $0x200] sm:$0xff] %vm1989, %v5604
  %5670 = vst.msk [vmem:[%s1761 + $0x210] sm:$0xff] %vm1989, %v5606
  %v5671 = vrot.slane %v5163, 1
  %v5672 = vor.u32 %v5160, %v5671
  %v5673 = vrot.slane %v5170, 1
  %v5674 = vor.u32 %v5167, %v5673
  %v5675 = vrot.slane %v5177, 1
  %v5676 = vor.u32 %v5174, %v5675
  %v5677 = vrot.slane %v5184, 1
  %v5678 = vor.u32 %v5181, %v5677
  %v5679 = vrot.slane %v5191, 1
  %v5680 = vor.u32 %v5188, %v5679
  %v5681 = vrot.slane %v5198, 1
  %v5682 = vor.u32 %v5195, %v5681
  %v5683 = vrot.slane %v5205, 1
  %v5684 = vor.u32 %v5202, %v5683
  %v5685 = vrot.slane %v5212, 1
  %v5686 = vor.u32 %v5209, %v5685
  %v5687 = vrot.slane %v5219, 1
  %v5688 = vor.u32 %v5216, %v5687
  %v5689 = vrot.slane %v5226, 1
  %v5690 = vor.u32 %v5223, %v5689
  %v5691 = vrot.slane %v5233, 1
  %v5692 = vor.u32 %v5230, %v5691
  %v5693 = vrot.slane %v5240, 1
  %v5694 = vor.u32 %v5237, %v5693
  %v5695 = vrot.slane %v5247, 1
  %v5696 = vor.u32 %v5244, %v5695
  %v5697 = vrot.slane %v5254, 1
  %v5698 = vor.u32 %v5251, %v5697
  %v5699 = vrot.slane %v5261, 1
  %v5700 = vor.u32 %v5258, %v5699
  %v5701 = vrot.slane %v5268, 1
  %v5702 = vor.u32 %v5265, %v5701
  %v5703 = vrot.slane %v5275, 1
  %v5704 = vor.u32 %v5272, %v5703
  %v5705 = vrot.slane %v5282, 1
  %v5706 = vor.u32 %v5279, %v5705
  %v5707 = vrot.slane %v5289, 1
  %v5708 = vor.u32 %v5286, %v5707
  %v5709 = vrot.slane %v5296, 1
  %v5710 = vor.u32 %v5293, %v5709
  %v5711 = vrot.slane %v5303, 1
  %v5712 = vor.u32 %v5300, %v5711
  %v5713 = vrot.slane %v5310, 1
  %v5714 = vor.u32 %v5307, %v5713
  %v5715 = vrot.slane %v5317, 1
  %v5716 = vor.u32 %v5314, %v5715
  %v5717 = vrot.slane %v5324, 1
  %v5718 = vor.u32 %v5321, %v5717
  %v5719 = vrot.slane %v5331, 1
  %v5720 = vor.u32 %v5328, %v5719
  %v5721 = vrot.slane %v5338, 1
  %v5722 = vor.u32 %v5335, %v5721
  %v5723 = vrot.slane %v5345, 1
  %v5724 = vor.u32 %v5342, %v5723
  %v5725 = vrot.slane %v5352, 1
  %v5726 = vor.u32 %v5349, %v5725
  %v5727 = vrot.slane %v5359, 1
  %v5728 = vor.u32 %v5356, %v5727
  %v5729 = vrot.slane %v5366, 1
  %v5730 = vor.u32 %v5363, %v5729
  %v5731 = vrot.slane %v5373, 1
  %v5732 = vor.u32 %v5370, %v5731
  %v5733 = vrot.slane %v5380, 1
  %v5734 = vor.u32 %v5377, %v5733
  %v5767 = vld [vmem:[%s1761 + $0x8] sm:$0xff]
  %v5768 = vsel %vm2119, %v5672, %v5767
  %5769 = vst [vmem:[%s1761 + $0x8] sm:$0xff] %v5768
  %v5770 = vld [vmem:[%s1761 + $0x18] sm:$0xff]
  %v5771 = vsel %vm2119, %v5674, %v5770
  %5772 = vst [vmem:[%s1761 + $0x18] sm:$0xff] %v5771
  %v5773 = vld [vmem:[%s1761 + $0x28] sm:$0xff]
  %v5774 = vsel %vm2119, %v5676, %v5773
  %5775 = vst [vmem:[%s1761 + $0x28] sm:$0xff] %v5774
  %v5776 = vld [vmem:[%s1761 + $0x38] sm:$0xff]
  %v5777 = vsel %vm2119, %v5678, %v5776
  %5778 = vst [vmem:[%s1761 + $0x38] sm:$0xff] %v5777
  %v5779 = vld [vmem:[%s1761 + $0x48] sm:$0xff]
  %v5780 = vsel %vm2119, %v5680, %v5779
  %5781 = vst [vmem:[%s1761 + $0x48] sm:$0xff] %v5780
  %v5782 = vld [vmem:[%s1761 + $0x58] sm:$0xff]
  %v5783 = vsel %vm2119, %v5682, %v5782
  %5784 = vst [vmem:[%s1761 + $0x58] sm:$0xff] %v5783
  %v5785 = vld [vmem:[%s1761 + $0x68] sm:$0xff]
  %v5786 = vsel %vm2119, %v5684, %v5785
  %5787 = vst [vmem:[%s1761 + $0x68] sm:$0xff] %v5786
  %v5788 = vld [vmem:[%s1761 + $0x78] sm:$0xff]
  %v5789 = vsel %vm2119, %v5686, %v5788
  %5790 = vst [vmem:[%s1761 + $0x78] sm:$0xff] %v5789
  %v5791 = vld [vmem:[%s1761 + $0x88] sm:$0xff]
  %v5792 = vsel %vm2119, %v5688, %v5791
  %5793 = vst [vmem:[%s1761 + $0x88] sm:$0xff] %v5792
  %v5794 = vld [vmem:[%s1761 + $0x98] sm:$0xff]
  %v5795 = vsel %vm2119, %v5690, %v5794
  %5796 = vst [vmem:[%s1761 + $0x98] sm:$0xff] %v5795
  %v5797 = vld [vmem:[%s1761 + $0xa8] sm:$0xff]
  %v5798 = vsel %vm2119, %v5692, %v5797
  %5799 = vst [vmem:[%s1761 + $0xa8] sm:$0xff] %v5798
  %v5800 = vld [vmem:[%s1761 + $0xb8] sm:$0xff]
  %v5801 = vsel %vm2119, %v5694, %v5800
  %5802 = vst [vmem:[%s1761 + $0xb8] sm:$0xff] %v5801
  %v5803 = vld [vmem:[%s1761 + $0xc8] sm:$0xff]
  %v5804 = vsel %vm2119, %v5696, %v5803
  %5805 = vst [vmem:[%s1761 + $0xc8] sm:$0xff] %v5804
  %v5806 = vld [vmem:[%s1761 + $0xd8] sm:$0xff]
  %v5807 = vsel %vm2119, %v5698, %v5806
  %5808 = vst [vmem:[%s1761 + $0xd8] sm:$0xff] %v5807
  %v5809 = vld [vmem:[%s1761 + $0xe8] sm:$0xff]
  %v5810 = vsel %vm2119, %v5700, %v5809
  %5811 = vst [vmem:[%s1761 + $0xe8] sm:$0xff] %v5810
  %v5812 = vld [vmem:[%s1761 + $0xf8] sm:$0xff]
  %v5813 = vsel %vm2119, %v5702, %v5812
  %5814 = vst [vmem:[%s1761 + $0xf8] sm:$0xff] %v5813
  %v5815 = vld [vmem:[%s1761 + $0x128] sm:$0xff]
  %v5816 = vsel %vm2119, %v5704, %v5815
  %5817 = vst [vmem:[%s1761 + $0x128] sm:$0xff] %v5816
  %v5818 = vld [vmem:[%s1761 + $0x138] sm:$0xff]
  %v5819 = vsel %vm2119, %v5706, %v5818
  %5820 = vst [vmem:[%s1761 + $0x138] sm:$0xff] %v5819
  %v5821 = vld [vmem:[%s1761 + $0x148] sm:$0xff]
  %v5822 = vsel %vm2119, %v5708, %v5821
  %5823 = vst [vmem:[%s1761 + $0x148] sm:$0xff] %v5822
  %v5824 = vld [vmem:[%s1761 + $0x158] sm:$0xff]
  %v5825 = vsel %vm2119, %v5710, %v5824
  %5826 = vst [vmem:[%s1761 + $0x158] sm:$0xff] %v5825
  %v5827 = vld [vmem:[%s1761 + $0x168] sm:$0xff]
  %v5828 = vsel %vm2119, %v5712, %v5827
  %5829 = vst [vmem:[%s1761 + $0x168] sm:$0xff] %v5828
  %v5830 = vld [vmem:[%s1761 + $0x178] sm:$0xff]
  %v5831 = vsel %vm2119, %v5714, %v5830
  %5832 = vst [vmem:[%s1761 + $0x178] sm:$0xff] %v5831
  %v5833 = vld [vmem:[%s1761 + $0x188] sm:$0xff]
  %v5834 = vsel %vm2119, %v5716, %v5833
  %5835 = vst [vmem:[%s1761 + $0x188] sm:$0xff] %v5834
  %v5836 = vld [vmem:[%s1761 + $0x198] sm:$0xff]
  %v5837 = vsel %vm2119, %v5718, %v5836
  %5838 = vst [vmem:[%s1761 + $0x198] sm:$0xff] %v5837
  %v5839 = vld [vmem:[%s1761 + $0x1a8] sm:$0xff]
  %v5840 = vsel %vm2119, %v5720, %v5839
  %5841 = vst [vmem:[%s1761 + $0x1a8] sm:$0xff] %v5840
  %v5842 = vld [vmem:[%s1761 + $0x1b8] sm:$0xff]
  %v5843 = vsel %vm2119, %v5722, %v5842
  %5844 = vst [vmem:[%s1761 + $0x1b8] sm:$0xff] %v5843
  %v5845 = vld [vmem:[%s1761 + $0x1c8] sm:$0xff]
  %v5846 = vsel %vm2119, %v5724, %v5845
  %5847 = vst [vmem:[%s1761 + $0x1c8] sm:$0xff] %v5846
  %v5848 = vld [vmem:[%s1761 + $0x1d8] sm:$0xff]
  %v5849 = vsel %vm2119, %v5726, %v5848
  %5850 = vst [vmem:[%s1761 + $0x1d8] sm:$0xff] %v5849
  %v5851 = vld [vmem:[%s1761 + $0x1e8] sm:$0xff]
  %v5852 = vsel %vm2119, %v5728, %v5851
  %5853 = vst [vmem:[%s1761 + $0x1e8] sm:$0xff] %v5852
  %v5854 = vld [vmem:[%s1761 + $0x1f8] sm:$0xff]
  %v5855 = vsel %vm2119, %v5730, %v5854
  %5856 = vst [vmem:[%s1761 + $0x1f8] sm:$0xff] %v5855
  %v5857 = vld [vmem:[%s1761 + $0x208] sm:$0xff]
  %v5858 = vsel %vm2119, %v5732, %v5857
  %5859 = vst [vmem:[%s1761 + $0x208] sm:$0xff] %v5858
  %v5860 = vld [vmem:[%s1761 + $0x218] sm:$0xff]
  %v5861 = vsel %vm2119, %v5734, %v5860
  %5862 = vst [vmem:[%s1761 + $0x218] sm:$0xff] %v5861
  %v5863 = vld [vmem:[#allocation2] sm:$0xff]
  %v5864 = vld [vmem:[#allocation2 + $0x8] sm:$0xff]
  %v5865 = vld [vmem:[#allocation2 + $0x10] sm:$0xff]
  %v5866 = vld [vmem:[#allocation2 + $0x18] sm:$0xff]
  %v5867 = vld [vmem:[#allocation2 + $0x20] sm:$0xff]
  %v5868 = vld [vmem:[#allocation2 + $0x28] sm:$0xff]
  %v5869 = vld [vmem:[#allocation2 + $0x30] sm:$0xff]
  %v5870 = vld [vmem:[#allocation2 + $0x38] sm:$0xff]
  %v5871 = vld [vmem:[#allocation2 + $0x40] sm:$0xff]
  %v5872 = vld [vmem:[#allocation2 + $0x48] sm:$0xff]
  %v5873 = vld [vmem:[#allocation2 + $0x50] sm:$0xff]
  %v5874 = vld [vmem:[#allocation2 + $0x58] sm:$0xff]
  %v5875 = vld [vmem:[#allocation2 + $0x60] sm:$0xff]
  %v5876 = vld [vmem:[#allocation2 + $0x68] sm:$0xff]
  %v5877 = vld [vmem:[#allocation2 + $0x70] sm:$0xff]
  %v5878 = vld [vmem:[#allocation2 + $0x78] sm:$0xff]
  %v5879 = vld [vmem:[#allocation2 + $0x80] sm:$0xff]
  %v5880 = vld [vmem:[#allocation2 + $0x88] sm:$0xff]
  %v5881 = vld [vmem:[#allocation2 + $0x90] sm:$0xff]
  %v5882 = vld [vmem:[#allocation2 + $0x98] sm:$0xff]
  %v5883 = vld [vmem:[#allocation2 + $0xa0] sm:$0xff]
  %v5884 = vld [vmem:[#allocation2 + $0xa8] sm:$0xff]
  %v5885 = vld [vmem:[#allocation2 + $0xb0] sm:$0xff]
  %v5886 = vld [vmem:[#allocation2 + $0xb8] sm:$0xff]
  %v5887 = vld [vmem:[#allocation2 + $0xc0] sm:$0xff]
  %v5888 = vld [vmem:[#allocation2 + $0xc8] sm:$0xff]
  %v5889 = vld [vmem:[#allocation2 + $0xd0] sm:$0xff]
  %v5890 = vld [vmem:[#allocation2 + $0xd8] sm:$0xff]
  %v5891 = vld [vmem:[#allocation2 + $0xe0] sm:$0xff]
  %v5892 = vld [vmem:[#allocation2 + $0xe8] sm:$0xff]
  %v5893 = vld [vmem:[#allocation2 + $0xf0] sm:$0xff]
  %v5894 = vld [vmem:[#allocation2 + $0xf8] sm:$0xff]
  %v5895 = vld [vmem:[#allocation2 + $0x120] sm:$0xff]
  %v5896 = vld [vmem:[#allocation2 + $0x128] sm:$0xff]
  %v5897 = vld [vmem:[#allocation2 + $0x130] sm:$0xff]
  %v5898 = vld [vmem:[#allocation2 + $0x138] sm:$0xff]
  %v5899 = vld [vmem:[#allocation2 + $0x140] sm:$0xff]
  %v5900 = vld [vmem:[#allocation2 + $0x148] sm:$0xff]
  %v5901 = vld [vmem:[#allocation2 + $0x150] sm:$0xff]
  %v5902 = vld [vmem:[#allocation2 + $0x158] sm:$0xff]
  %v5903 = vld [vmem:[#allocation2 + $0x160] sm:$0xff]
  %v5904 = vld [vmem:[#allocation2 + $0x168] sm:$0xff]
  %v5905 = vld [vmem:[#allocation2 + $0x170] sm:$0xff]
  %v5906 = vld [vmem:[#allocation2 + $0x178] sm:$0xff]
  %v5907 = vld [vmem:[#allocation2 + $0x180] sm:$0xff]
  %v5908 = vld [vmem:[#allocation2 + $0x188] sm:$0xff]
  %v5909 = vld [vmem:[#allocation2 + $0x190] sm:$0xff]
  %v5910 = vld [vmem:[#allocation2 + $0x198] sm:$0xff]
  %v5911 = vld [vmem:[#allocation2 + $0x1a0] sm:$0xff]
  %v5912 = vld [vmem:[#allocation2 + $0x1a8] sm:$0xff]
  %v5913 = vld [vmem:[#allocation2 + $0x1b0] sm:$0xff]
  %v5914 = vld [vmem:[#allocation2 + $0x1b8] sm:$0xff]
  %v5915 = vld [vmem:[#allocation2 + $0x1c0] sm:$0xff]
  %v5916 = vld [vmem:[#allocation2 + $0x1c8] sm:$0xff]
  %v5917 = vld [vmem:[#allocation2 + $0x1d0] sm:$0xff]
  %v5918 = vld [vmem:[#allocation2 + $0x1d8] sm:$0xff]
  %v5919 = vld [vmem:[#allocation2 + $0x1e0] sm:$0xff]
  %v5920 = vld [vmem:[#allocation2 + $0x1e8] sm:$0xff]
  %v5921 = vld [vmem:[#allocation2 + $0x1f0] sm:$0xff]
  %v5922 = vld [vmem:[#allocation2 + $0x1f8] sm:$0xff]
  %v5923 = vld [vmem:[#allocation2 + $0x200] sm:$0xff]
  %v5924 = vld [vmem:[#allocation2 + $0x208] sm:$0xff]
  %v5925 = vld [vmem:[#allocation2 + $0x210] sm:$0xff]
  %v5926 = vld [vmem:[#allocation2 + $0x218] sm:$0xff]
  %v5927 = vld [vmem:[%s4] sm:$0xf]
  %v5928 = vld [vmem:[%s4 + $0x4] sm:$0xf]
  %v5929 = vld [vmem:[%s4 + $0x8] sm:$0xf]
  %v5930 = vld [vmem:[%s4 + $0xc] sm:$0xf]
  %v5931 = vld [vmem:[%s4 + $0x10] sm:$0xf]
  %v5932 = vld [vmem:[%s4 + $0x14] sm:$0xf]
  %v5933 = vld [vmem:[%s4 + $0x18] sm:$0xf]
  %v5934 = vld [vmem:[%s4 + $0x1c] sm:$0xf]
  %v5935 = vld [vmem:[%s4 + $0x20] sm:$0xf]
  %v5936 = vld [vmem:[%s4 + $0x24] sm:$0xf]
  %v5937 = vld [vmem:[%s4 + $0x28] sm:$0xf]
  %v5938 = vld [vmem:[%s4 + $0x2c] sm:$0xf]
  %v5939 = vld [vmem:[%s4 + $0x30] sm:$0xf]
  %v5940 = vld [vmem:[%s4 + $0x34] sm:$0xf]
  %v5941 = vld [vmem:[%s4 + $0x38] sm:$0xf]
  %v5942 = vld [vmem:[%s4 + $0x3c] sm:$0xf]
  %v5943 = vld [vmem:[%s4 + $0x40] sm:$0xf]
  %v5944 = vld [vmem:[%s4 + $0x44] sm:$0xf]
  %v5945 = vld [vmem:[%s4 + $0x48] sm:$0xf]
  %v5946 = vld [vmem:[%s4 + $0x4c] sm:$0xf]
  %v5947 = vld [vmem:[%s4 + $0x50] sm:$0xf]
  %v5948 = vld [vmem:[%s4 + $0x54] sm:$0xf]
  %v5949 = vld [vmem:[%s4 + $0x58] sm:$0xf]
  %v5950 = vld [vmem:[%s4 + $0x5c] sm:$0xf]
  %v5951 = vld [vmem:[%s1761] sm:$0xff]
  %v5952 = vld [vmem:[%s1761 + $0x8] sm:$0xff]
  %v5953 = vld [vmem:[%s1761 + $0x10] sm:$0xff]
  %v5954 = vld [vmem:[%s1761 + $0x18] sm:$0xff]
  %v5955 = vld [vmem:[%s1761 + $0x20] sm:$0xff]
  %v5956 = vld [vmem:[%s1761 + $0x28] sm:$0xff]
  %v5957 = vld [vmem:[%s1761 + $0x30] sm:$0xff]
  %v5958 = vld [vmem:[%s1761 + $0x38] sm:$0xff]
  %v5959 = vld [vmem:[%s1761 + $0x40] sm:$0xff]
  %v5960 = vld [vmem:[%s1761 + $0x48] sm:$0xff]
  %v5961 = vld [vmem:[%s1761 + $0x50] sm:$0xff]
  %v5962 = vld [vmem:[%s1761 + $0x58] sm:$0xff]
  %v5963 = vld [vmem:[%s1761 + $0x60] sm:$0xff]
  %v5964 = vld [vmem:[%s1761 + $0x68] sm:$0xff]
  %v5965 = vld [vmem:[%s1761 + $0x70] sm:$0xff]
  %v5966 = vld [vmem:[%s1761 + $0x78] sm:$0xff]
  %v5967 = vld [vmem:[%s1761 + $0x80] sm:$0xff]
  %v5968 = vld [vmem:[%s1761 + $0x88] sm:$0xff]
  %v5969 = vld [vmem:[%s1761 + $0x90] sm:$0xff]
  %v5970 = vld [vmem:[%s1761 + $0x98] sm:$0xff]
  %v5971 = vld [vmem:[%s1761 + $0xa0] sm:$0xff]
  %v5972 = vld [vmem:[%s1761 + $0xa8] sm:$0xff]
  %v5973 = vld [vmem:[%s1761 + $0xb0] sm:$0xff]
  %v5974 = vld [vmem:[%s1761 + $0xb8] sm:$0xff]
  %v5975 = vld [vmem:[%s1761 + $0xc0] sm:$0xff]
  %v5976 = vld [vmem:[%s1761 + $0xc8] sm:$0xff]
  %v5977 = vld [vmem:[%s1761 + $0xd0] sm:$0xff]
  %v5978 = vld [vmem:[%s1761 + $0xd8] sm:$0xff]
  %v5979 = vld [vmem:[%s1761 + $0xe0] sm:$0xff]
  %v5980 = vld [vmem:[%s1761 + $0xe8] sm:$0xff]
  %v5981 = vld [vmem:[%s1761 + $0xf0] sm:$0xff]
  %v5982 = vld [vmem:[%s1761 + $0xf8] sm:$0xff]
  %v5983 = vld [vmem:[%s1761 + $0x120] sm:$0xff]
  %v5984 = vld [vmem:[%s1761 + $0x128] sm:$0xff]
  %v5985 = vld [vmem:[%s1761 + $0x130] sm:$0xff]
  %v5986 = vld [vmem:[%s1761 + $0x138] sm:$0xff]
  %v5987 = vld [vmem:[%s1761 + $0x140] sm:$0xff]
  %v5988 = vld [vmem:[%s1761 + $0x148] sm:$0xff]
  %v5989 = vld [vmem:[%s1761 + $0x150] sm:$0xff]
  %v5990 = vld [vmem:[%s1761 + $0x158] sm:$0xff]
  %v5991 = vld [vmem:[%s1761 + $0x160] sm:$0xff]
  %v5992 = vld [vmem:[%s1761 + $0x168] sm:$0xff]
  %v5993 = vld [vmem:[%s1761 + $0x170] sm:$0xff]
  %v5994 = vld [vmem:[%s1761 + $0x178] sm:$0xff]
  %v5995 = vld [vmem:[%s1761 + $0x180] sm:$0xff]
  %v5996 = vld [vmem:[%s1761 + $0x188] sm:$0xff]
  %v5997 = vld [vmem:[%s1761 + $0x190] sm:$0xff]
  %v5998 = vld [vmem:[%s1761 + $0x198] sm:$0xff]
  %v5999 = vld [vmem:[%s1761 + $0x1a0] sm:$0xff]
  %v6000 = vld [vmem:[%s1761 + $0x1a8] sm:$0xff]
  %v6001 = vld [vmem:[%s1761 + $0x1b0] sm:$0xff]
  %v6002 = vld [vmem:[%s1761 + $0x1b8] sm:$0xff]
  %v6003 = vld [vmem:[%s1761 + $0x1c0] sm:$0xff]
  %v6004 = vld [vmem:[%s1761 + $0x1c8] sm:$0xff]
  %v6005 = vld [vmem:[%s1761 + $0x1d0] sm:$0xff]
  %v6006 = vld [vmem:[%s1761 + $0x1d8] sm:$0xff]
  %v6007 = vld [vmem:[%s1761 + $0x1e0] sm:$0xff]
  %v6008 = vld [vmem:[%s1761 + $0x1e8] sm:$0xff]
  %v6009 = vld [vmem:[%s1761 + $0x1f0] sm:$0xff]
  %v6010 = vld [vmem:[%s1761 + $0x1f8] sm:$0xff]
  %v6011 = vld [vmem:[%s1761 + $0x200] sm:$0xff]
  %v6012 = vld [vmem:[%s1761 + $0x208] sm:$0xff]
  %v6013 = vld [vmem:[%s1761 + $0x210] sm:$0xff]
  %v6014 = vld [vmem:[%s1761 + $0x218] sm:$0xff]
  %s6015 = scalar_lea.vmem %s4, 96
  %v6016 = vld [vmem:[%s6015] sm:$0xf]
  %v6017 = vld [vmem:[%s6015 + $0x4] sm:$0xf]
  %v6018 = vld [vmem:[%s6015 + $0x8] sm:$0xf]
  %v6019 = vld [vmem:[%s6015 + $0xc] sm:$0xf]
  %v6020 = vld [vmem:[%s6015 + $0x10] sm:$0xf]
  %v6021 = vld [vmem:[%s6015 + $0x14] sm:$0xf]
  %v6022 = vld [vmem:[%s6015 + $0x18] sm:$0xf]
  %v6023 = vld [vmem:[%s6015 + $0x1c] sm:$0xf]
  %v6024 = vld [vmem:[%s6015 + $0x20] sm:$0xf]
  %v6025 = vld [vmem:[%s6015 + $0x24] sm:$0xf]
  %v6026 = vld [vmem:[%s6015 + $0x28] sm:$0xf]
  %v6027 = vld [vmem:[%s6015 + $0x2c] sm:$0xf]
  %v6028 = vld [vmem:[%s6015 + $0x30] sm:$0xf]
  %v6029 = vld [vmem:[%s6015 + $0x34] sm:$0xf]
  %v6030 = vld [vmem:[%s6015 + $0x38] sm:$0xf]
  %v6031 = vld [vmem:[%s6015 + $0x3c] sm:$0xf]
  %v6032 = vld [vmem:[%s6015 + $0x40] sm:$0xf]
  %v6033 = vld [vmem:[%s6015 + $0x44] sm:$0xf]
  %v6034 = vld [vmem:[%s6015 + $0x48] sm:$0xf]
  %v6035 = vld [vmem:[%s6015 + $0x4c] sm:$0xf]
  %v6036 = vld [vmem:[%s6015 + $0x50] sm:$0xf]
  %v6037 = vld [vmem:[%s6015 + $0x54] sm:$0xf]
  %v6038 = vld [vmem:[%s6015 + $0x58] sm:$0xf]
  %v6039 = vld [vmem:[%s6015 + $0x5c] sm:$0xf]
  %v6064 = vunpack.c.l.b16 %v6016
  %v6065 = vunpack.c.l.b16 %v6017
  %v6066 = vunpack.c.l.b16 %v6018
  %v6067 = vunpack.c.l.b16 %v6019
  %v6068 = vunpack.c.l.b16 %v6020
  %v6069 = vunpack.c.l.b16 %v6021
  %v6070 = vunpack.c.l.b16 %v6022
  %v6071 = vunpack.c.l.b16 %v6023
  %v6072 = vunpack.c.l.b16 %v6024
  %v6073 = vunpack.c.l.b16 %v6025
  %v6074 = vunpack.c.l.b16 %v6026
  %v6075 = vunpack.c.l.b16 %v6027
  %v6076 = vunpack.c.l.b16 %v6028
  %v6077 = vunpack.c.l.b16 %v6029
  %v6078 = vunpack.c.l.b16 %v6030
  %v6079 = vunpack.c.l.b16 %v6031
  %v6080 = vunpack.c.l.b16 %v6032
  %v6081 = vunpack.c.l.b16 %v6033
  %v6082 = vunpack.c.l.b16 %v6034
  %v6083 = vunpack.c.l.b16 %v6035
  %v6084 = vunpack.c.l.b16 %v6036
  %v6085 = vunpack.c.l.b16 %v6037
  %v6086 = vunpack.c.l.b16 %v6038
  %v6087 = vunpack.c.l.b16 %v6039
  %v6088 = vpack.c.b16 %v6065, %v6064
  %v6089 = vpack.c.b16 %v6067, %v6066
  %v6090 = vpack.c.b16 %v6069, %v6068
  %v6091 = vpack.c.b16 %v6071, %v6070
  %v6092 = vpack.c.b16 %v6073, %v6072
  %v6093 = vpack.c.b16 %v6075, %v6074
  %v6094 = vpack.c.b16 %v6077, %v6076
  %v6095 = vpack.c.b16 %v6079, %v6078
  %v6096 = vpack.c.b16 %v6081, %v6080
  %v6097 = vpack.c.b16 %v6083, %v6082
  %v6098 = vpack.c.b16 %v6085, %v6084
  %v6099 = vpack.c.b16 %v6087, %v6086
  %v6113 = vsel %vm94, %v5952, 0
  %v6116 = vsel %vm94, %v5954, 0
  %v6119 = vsel %vm94, %v5956, 0
  %v6122 = vsel %vm94, %v5958, 0
  %v6125 = vsel %vm94, %v5960, 0
  %v6128 = vsel %vm94, %v5962, 0
  %v6131 = vsel %vm94, %v5964, 0
  %v6134 = vsel %vm94, %v5966, 0
  %v6137 = vsel %vm94, %v5968, 0
  %v6140 = vsel %vm94, %v5970, 0
  %v6143 = vsel %vm94, %v5972, 0
  %v6146 = vsel %vm94, %v5974, 0
  %v6149 = vsel %vm94, %v5976, 0
  %v6152 = vsel %vm94, %v5978, 0
  %v6155 = vsel %vm94, %v5980, 0
  %v6158 = vsel %vm94, %v5982, 0
  %v6161 = vsel %vm94, %v5984, 0
  %v6164 = vsel %vm94, %v5986, 0
  %v6167 = vsel %vm94, %v5988, 0
  %v6170 = vsel %vm94, %v5990, 0
  %v6173 = vsel %vm94, %v5992, 0
  %v6176 = vsel %vm94, %v5994, 0
  %v6179 = vsel %vm94, %v5996, 0
  %v6182 = vsel %vm94, %v5998, 0
  %v6185 = vsel %vm94, %v6000, 0
  %v6188 = vsel %vm94, %v6002, 0
  %v6191 = vsel %vm94, %v6004, 0
  %v6194 = vsel %vm94, %v6006, 0
  %v6197 = vsel %vm94, %v6008, 0
  %v6200 = vsel %vm94, %v6010, 0
  %v6203 = vsel %vm94, %v6012, 0
  %v6206 = vsel %vm94, %v6014, 0
  %6208 = vmatprep.subr.bf16.mxu0 0
  %6209 = vmatpush1.bf16.msra.mxu0 %v6088
  %6210 = vmatprep.subr.bf16.mxu0 0
  %6211 = vmatpush1.bf16.msra.mxu0 %v6089
  %6212 = vmatprep.subr.bf16.mxu0 0
  %6213 = vmatpush1.bf16.msra.mxu0 %v6090
  %6214 = vmatprep.subr.bf16.mxu0 0
  %6215 = vmatpush1.bf16.msra.mxu0 %v6091
  %6216 = vmatprep.subr.bf16.mxu0 0
  %6217 = vmatpush1.bf16.msra.mxu0 %v6092
  %6218 = vmatprep.subr.bf16.mxu0 0
  %6219 = vmatpush1.bf16.msra.mxu0 %v6093
  %6220 = vmatprep.subr.bf16.mxu0 0
  %6221 = vmatpush1.bf16.msra.mxu0 %v6094
  %6222 = vmatprep.subr.bf16.mxu0 0
  %6223 = vmatpush1.bf16.msra.mxu0 %v6095
  %6224 = vmatprep.subr.bf16.mxu0 0
  %6225 = vmatpush1.bf16.msra.mxu0 %v6096
  %6226 = vmatprep.subr.bf16.mxu0 0
  %6227 = vmatpush1.bf16.msra.mxu0 %v6097
  %6228 = vmatprep.subr.bf16.mxu0 0
  %6229 = vmatpush1.bf16.msra.mxu0 %v6098
  %6230 = vmatprep.subr.bf16.mxu0 0
  %6231 = vmatpush1.bf16.msra.mxu0 %v6099
  %6232 = vmatprep.subr.bf16.mxu0 0
  %6233 = vmatpush1.bf16.msra.mxu0 0
  %6234 = vmatprep.subr.bf16.mxu0 0
  %6235 = vmatpush1.bf16.msra.mxu0 0
  %6236 = vmatprep.subr.bf16.mxu0 0
  %6237 = vmatpush1.bf16.msra.mxu0 0
  %6238 = vmatprep.subr.bf16.mxu0 0
  %6239 = vmatpush1.bf16.msra.mxu0 0
  %6240 = vmatprep.mubr.bf16.mxu0 %v6113
  %6241 = vmatmul.mubr.bf16.gmra.mrb[0].mxu0 %v5951
  %v6242 = vpop.f32.mrb[0].mxu0
  %v6243 = vadd.f32 0.0, %v6242
  %v6244 = vpop.f32.mrb[0].mxu0
  %v6245 = vpop.f32.mrb[0].mxu0
  %v6246 = vadd.f32 0.0, %v6245
  %v6247 = vpop.f32.mrb[0].mxu0
  %6248 = vmatprep.mubr.bf16.mxu0 %v6116
  %6249 = vmatmul.mubr.bf16.gmra.mrb[0].mxu0 %v5953
  %v6250 = vpop.f32.mrb[0].mxu0
  %v6251 = vadd.f32 0.0, %v6250
  %v6252 = vpop.f32.mrb[0].mxu0
  %v6253 = vpop.f32.mrb[0].mxu0
  %v6254 = vadd.f32 0.0, %v6253
  %v6255 = vpop.f32.mrb[0].mxu0
  %6256 = vmatprep.mubr.bf16.mxu0 %v6119
  %6257 = vmatmul.mubr.bf16.gmra.mrb[0].mxu0 %v5955
  %v6258 = vpop.f32.mrb[0].mxu0
  %v6259 = vadd.f32 0.0, %v6258
  %v6260 = vpop.f32.mrb[0].mxu0
  %v6261 = vpop.f32.mrb[0].mxu0
  %v6262 = vadd.f32 0.0, %v6261
  %v6263 = vpop.f32.mrb[0].mxu0
  %6264 = vmatprep.mubr.bf16.mxu0 %v6122
  %6265 = vmatmul.mubr.bf16.gmra.mrb[0].mxu0 %v5957
  %v6266 = vpop.f32.mrb[0].mxu0
  %v6267 = vadd.f32 0.0, %v6266
  %v6268 = vpop.f32.mrb[0].mxu0
  %v6269 = vpop.f32.mrb[0].mxu0
  %v6270 = vadd.f32 0.0, %v6269
  %v6271 = vpop.f32.mrb[0].mxu0
  %6272 = vmatprep.mubr.bf16.mxu0 %v6125
  %6273 = vmatmul.mubr.bf16.gmra.mrb[0].mxu0 %v5959
  %v6274 = vpop.f32.mrb[0].mxu0
  %v6275 = vadd.f32 0.0, %v6274
  %v6276 = vpop.f32.mrb[0].mxu0
  %v6277 = vpop.f32.mrb[0].mxu0
  %v6278 = vadd.f32 0.0, %v6277
  %v6279 = vpop.f32.mrb[0].mxu0
  %6280 = vmatprep.mubr.bf16.mxu0 %v6128
  %6281 = vmatmul.mubr.bf16.gmra.mrb[0].mxu0 %v5961
  %v6282 = vpop.f32.mrb[0].mxu0
  %v6283 = vadd.f32 0.0, %v6282
  %v6284 = vpop.f32.mrb[0].mxu0
  %v6285 = vpop.f32.mrb[0].mxu0
  %v6286 = vadd.f32 0.0, %v6285
  %v6287 = vpop.f32.mrb[0].mxu0
  %6288 = vmatprep.mubr.bf16.mxu0 %v6131
  %6289 = vmatmul.mubr.bf16.gmra.mrb[0].mxu0 %v5963
  %v6290 = vpop.f32.mrb[0].mxu0
  %v6291 = vadd.f32 0.0, %v6290
  %v6292 = vpop.f32.mrb[0].mxu0
  %v6293 = vpop.f32.mrb[0].mxu0
  %v6294 = vadd.f32 0.0, %v6293
  %v6295 = vpop.f32.mrb[0].mxu0
  %6296 = vmatprep.mubr.bf16.mxu0 %v6134
  %6297 = vmatmul.mubr.bf16.gmra.mrb[0].mxu0 %v5965
  %v6298 = vpop.f32.mrb[0].mxu0
  %v6299 = vadd.f32 0.0, %v6298
  %v6300 = vpop.f32.mrb[0].mxu0
  %v6301 = vpop.f32.mrb[0].mxu0
  %v6302 = vadd.f32 0.0, %v6301
  %v6303 = vpop.f32.mrb[0].mxu0
  %6304 = vmatprep.mubr.bf16.mxu0 %v6137
  %6305 = vmatmul.mubr.bf16.gmra.mrb[0].mxu0 %v5967
  %v6306 = vpop.f32.mrb[0].mxu0
  %v6307 = vadd.f32 0.0, %v6306
  %v6308 = vpop.f32.mrb[0].mxu0
  %v6309 = vpop.f32.mrb[0].mxu0
  %v6310 = vadd.f32 0.0, %v6309
  %v6311 = vpop.f32.mrb[0].mxu0
  %6312 = vmatprep.mubr.bf16.mxu0 %v6140
  %6313 = vmatmul.mubr.bf16.gmra.mrb[0].mxu0 %v5969
  %v6314 = vpop.f32.mrb[0].mxu0
  %v6315 = vadd.f32 0.0, %v6314
  %v6316 = vpop.f32.mrb[0].mxu0
  %v6317 = vpop.f32.mrb[0].mxu0
  %v6318 = vadd.f32 0.0, %v6317
  %v6319 = vpop.f32.mrb[0].mxu0
  %6320 = vmatprep.mubr.bf16.mxu0 %v6143
  %6321 = vmatmul.mubr.bf16.gmra.mrb[0].mxu0 %v5971
  %v6322 = vpop.f32.mrb[0].mxu0
  %v6323 = vadd.f32 0.0, %v6322
  %v6324 = vpop.f32.mrb[0].mxu0
  %v6325 = vpop.f32.mrb[0].mxu0
  %v6326 = vadd.f32 0.0, %v6325
  %v6327 = vpop.f32.mrb[0].mxu0
  %6328 = vmatprep.mubr.bf16.mxu0 %v6146
  %6329 = vmatmul.mubr.bf16.gmra.mrb[0].mxu0 %v5973
  %v6330 = vpop.f32.mrb[0].mxu0
  %v6331 = vadd.f32 0.0, %v6330
  %v6332 = vpop.f32.mrb[0].mxu0
  %v6333 = vpop.f32.mrb[0].mxu0
  %v6334 = vadd.f32 0.0, %v6333
  %v6335 = vpop.f32.mrb[0].mxu0
  %6336 = vmatprep.mubr.bf16.mxu0 %v6149
  %6337 = vmatmul.mubr.bf16.gmra.mrb[0].mxu0 %v5975
  %v6338 = vpop.f32.mrb[0].mxu0
  %v6339 = vadd.f32 0.0, %v6338
  %v6340 = vpop.f32.mrb[0].mxu0
  %v6341 = vpop.f32.mrb[0].mxu0
  %v6342 = vadd.f32 0.0, %v6341
  %v6343 = vpop.f32.mrb[0].mxu0
  %6344 = vmatprep.mubr.bf16.mxu0 %v6152
  %6345 = vmatmul.mubr.bf16.gmra.mrb[0].mxu0 %v5977
  %v6346 = vpop.f32.mrb[0].mxu0
  %v6347 = vadd.f32 0.0, %v6346
  %v6348 = vpop.f32.mrb[0].mxu0
  %v6349 = vpop.f32.mrb[0].mxu0
  %v6350 = vadd.f32 0.0, %v6349
  %v6351 = vpop.f32.mrb[0].mxu0
  %6352 = vmatprep.mubr.bf16.mxu0 %v6155
  %6353 = vmatmul.mubr.bf16.gmra.mrb[0].mxu0 %v5979
  %v6354 = vpop.f32.mrb[0].mxu0
  %v6355 = vadd.f32 0.0, %v6354
  %v6356 = vpop.f32.mrb[0].mxu0
  %v6357 = vpop.f32.mrb[0].mxu0
  %v6358 = vadd.f32 0.0, %v6357
  %v6359 = vpop.f32.mrb[0].mxu0
  %6360 = vmatprep.mubr.bf16.mxu0 %v6158
  %6361 = vmatmul.mubr.bf16.gmra.mrb[0].mxu0 %v5981
  %v6362 = vpop.f32.mrb[0].mxu0
  %v6363 = vadd.f32 0.0, %v6362
  %v6364 = vpop.f32.mrb[0].mxu0
  %v6365 = vpop.f32.mrb[0].mxu0
  %v6366 = vadd.f32 0.0, %v6365
  %v6367 = vpop.f32.mrb[0].mxu0
  %6368 = vmatprep.mubr.bf16.mxu0 %v6161
  %6369 = vmatmul.mubr.bf16.gmra.mrb[0].mxu0 %v5983
  %v6370 = vpop.f32.mrb[0].mxu0
  %v6371 = vadd.f32 0.0, %v6370
  %v6372 = vpop.f32.mrb[0].mxu0
  %v6373 = vpop.f32.mrb[0].mxu0
  %v6374 = vadd.f32 0.0, %v6373
  %v6375 = vpop.f32.mrb[0].mxu0
  %6376 = vmatprep.mubr.bf16.mxu0 %v6164
  %6377 = vmatmul.mubr.bf16.gmra.mrb[0].mxu0 %v5985
  %v6378 = vpop.f32.mrb[0].mxu0
  %v6379 = vadd.f32 0.0, %v6378
  %v6380 = vpop.f32.mrb[0].mxu0
  %v6381 = vpop.f32.mrb[0].mxu0
  %v6382 = vadd.f32 0.0, %v6381
  %v6383 = vpop.f32.mrb[0].mxu0
  %6384 = vmatprep.mubr.bf16.mxu0 %v6167
  %6385 = vmatmul.mubr.bf16.gmra.mrb[0].mxu0 %v5987
  %v6386 = vpop.f32.mrb[0].mxu0
  %v6387 = vadd.f32 0.0, %v6386
  %v6388 = vpop.f32.mrb[0].mxu0
  %v6389 = vpop.f32.mrb[0].mxu0
  %v6390 = vadd.f32 0.0, %v6389
  %v6391 = vpop.f32.mrb[0].mxu0
  %6392 = vmatprep.mubr.bf16.mxu0 %v6170
  %6393 = vmatmul.mubr.bf16.gmra.mrb[0].mxu0 %v5989
  %v6394 = vpop.f32.mrb[0].mxu0
  %v6395 = vadd.f32 0.0, %v6394
  %v6396 = vpop.f32.mrb[0].mxu0
  %v6397 = vpop.f32.mrb[0].mxu0
  %v6398 = vadd.f32 0.0, %v6397
  %v6399 = vpop.f32.mrb[0].mxu0
  %6400 = vmatprep.mubr.bf16.mxu0 %v6173
  %6401 = vmatmul.mubr.bf16.gmra.mrb[0].mxu0 %v5991
  %v6402 = vpop.f32.mrb[0].mxu0
  %v6403 = vadd.f32 0.0, %v6402
  %v6404 = vpop.f32.mrb[0].mxu0
  %v6405 = vpop.f32.mrb[0].mxu0
  %v6406 = vadd.f32 0.0, %v6405
  %v6407 = vpop.f32.mrb[0].mxu0
  %6408 = vmatprep.mubr.bf16.mxu0 %v6176
  %6409 = vmatmul.mubr.bf16.gmra.mrb[0].mxu0 %v5993
  %v6410 = vpop.f32.mrb[0].mxu0
  %v6411 = vadd.f32 0.0, %v6410
  %v6412 = vpop.f32.mrb[0].mxu0
  %v6413 = vpop.f32.mrb[0].mxu0
  %v6414 = vadd.f32 0.0, %v6413
  %v6415 = vpop.f32.mrb[0].mxu0
  %6416 = vmatprep.mubr.bf16.mxu0 %v6179
  %6417 = vmatmul.mubr.bf16.gmra.mrb[0].mxu0 %v5995
  %v6418 = vpop.f32.mrb[0].mxu0
  %v6419 = vadd.f32 0.0, %v6418
  %v6420 = vpop.f32.mrb[0].mxu0
  %v6421 = vpop.f32.mrb[0].mxu0
  %v6422 = vadd.f32 0.0, %v6421
  %v6423 = vpop.f32.mrb[0].mxu0
  %6424 = vmatprep.mubr.bf16.mxu0 %v6182
  %6425 = vmatmul.mubr.bf16.gmra.mrb[0].mxu0 %v5997
  %v6426 = vpop.f32.mrb[0].mxu0
  %v6427 = vadd.f32 0.0, %v6426
  %v6428 = vpop.f32.mrb[0].mxu0
  %v6429 = vpop.f32.mrb[0].mxu0
  %v6430 = vadd.f32 0.0, %v6429
  %v6431 = vpop.f32.mrb[0].mxu0
  %6432 = vmatprep.mubr.bf16.mxu0 %v6185
  %6433 = vmatmul.mubr.bf16.gmra.mrb[0].mxu0 %v5999
  %v6434 = vpop.f32.mrb[0].mxu0
  %v6435 = vadd.f32 0.0, %v6434
  %v6436 = vpop.f32.mrb[0].mxu0
  %v6437 = vpop.f32.mrb[0].mxu0
  %v6438 = vadd.f32 0.0, %v6437
  %v6439 = vpop.f32.mrb[0].mxu0
  %6440 = vmatprep.mubr.bf16.mxu0 %v6188
  %6441 = vmatmul.mubr.bf16.gmra.mrb[0].mxu0 %v6001
  %v6442 = vpop.f32.mrb[0].mxu0
  %v6443 = vadd.f32 0.0, %v6442
  %v6444 = vpop.f32.mrb[0].mxu0
  %v6445 = vpop.f32.mrb[0].mxu0
  %v6446 = vadd.f32 0.0, %v6445
  %v6447 = vpop.f32.mrb[0].mxu0
  %6448 = vmatprep.mubr.bf16.mxu0 %v6191
  %6449 = vmatmul.mubr.bf16.gmra.mrb[0].mxu0 %v6003
  %v6450 = vpop.f32.mrb[0].mxu0
  %v6451 = vadd.f32 0.0, %v6450
  %v6452 = vpop.f32.mrb[0].mxu0
  %v6453 = vpop.f32.mrb[0].mxu0
  %v6454 = vadd.f32 0.0, %v6453
  %v6455 = vpop.f32.mrb[0].mxu0
  %6456 = vmatprep.mubr.bf16.mxu0 %v6194
  %6457 = vmatmul.mubr.bf16.gmra.mrb[0].mxu0 %v6005
  %v6458 = vpop.f32.mrb[0].mxu0
  %v6459 = vadd.f32 0.0, %v6458
  %v6460 = vpop.f32.mrb[0].mxu0
  %v6461 = vpop.f32.mrb[0].mxu0
  %v6462 = vadd.f32 0.0, %v6461
  %v6463 = vpop.f32.mrb[0].mxu0
  %6464 = vmatprep.mubr.bf16.mxu0 %v6197
  %6465 = vmatmul.mubr.bf16.gmra.mrb[0].mxu0 %v6007
  %v6466 = vpop.f32.mrb[0].mxu0
  %v6467 = vadd.f32 0.0, %v6466
  %v6468 = vpop.f32.mrb[0].mxu0
  %v6469 = vpop.f32.mrb[0].mxu0
  %v6470 = vadd.f32 0.0, %v6469
  %v6471 = vpop.f32.mrb[0].mxu0
  %6472 = vmatprep.mubr.bf16.mxu0 %v6200
  %6473 = vmatmul.mubr.bf16.gmra.mrb[0].mxu0 %v6009
  %v6474 = vpop.f32.mrb[0].mxu0
  %v6475 = vadd.f32 0.0, %v6474
  %v6476 = vpop.f32.mrb[0].mxu0
  %v6477 = vpop.f32.mrb[0].mxu0
  %v6478 = vadd.f32 0.0, %v6477
  %v6479 = vpop.f32.mrb[0].mxu0
  %6480 = vmatprep.mubr.bf16.mxu0 %v6203
  %6481 = vmatmul.mubr.bf16.gmra.mrb[0].mxu0 %v6011
  %v6482 = vpop.f32.mrb[0].mxu0
  %v6483 = vadd.f32 0.0, %v6482
  %v6484 = vpop.f32.mrb[0].mxu0
  %v6485 = vpop.f32.mrb[0].mxu0
  %v6486 = vadd.f32 0.0, %v6485
  %v6487 = vpop.f32.mrb[0].mxu0
  %6488 = vmatprep.mubr.bf16.mxu0 %v6206
  %6489 = vmatmul.mubr.bf16.gmra.mrb[0].mxu0 %v6013
  %v6490 = vpop.f32.mrb[0].mxu0
  %v6491 = vadd.f32 0.0, %v6490
  %v6492 = vpop.f32.mrb[0].mxu0
  %v6493 = vpop.f32.mrb[0].mxu0
  %v6494 = vadd.f32 0.0, %v6493
  %v6495 = vpop.f32.mrb[0].mxu0
  %6496 = vdwg.mxu0
  %v6521 = vunpack.c.l.b16 %v5927
  %v6522 = vunpack.c.l.b16 %v5928
  %v6523 = vunpack.c.l.b16 %v5929
  %v6524 = vunpack.c.l.b16 %v5930
  %v6525 = vunpack.c.l.b16 %v5931
  %v6526 = vunpack.c.l.b16 %v5932
  %v6527 = vunpack.c.l.b16 %v5933
  %v6528 = vunpack.c.l.b16 %v5934
  %v6529 = vunpack.c.l.b16 %v5935
  %v6530 = vunpack.c.l.b16 %v5936
  %v6531 = vunpack.c.l.b16 %v5937
  %v6532 = vunpack.c.l.b16 %v5938
  %v6533 = vunpack.c.l.b16 %v5939
  %v6534 = vunpack.c.l.b16 %v5940
  %v6535 = vunpack.c.l.b16 %v5941
  %v6536 = vunpack.c.l.b16 %v5942
  %v6537 = vunpack.c.l.b16 %v5943
  %v6538 = vunpack.c.l.b16 %v5944
  %v6539 = vunpack.c.l.b16 %v5945
  %v6540 = vunpack.c.l.b16 %v5946
  %v6541 = vunpack.c.l.b16 %v5947
  %v6542 = vunpack.c.l.b16 %v5948
  %v6543 = vunpack.c.l.b16 %v5949
  %v6544 = vunpack.c.l.b16 %v5950
  %v6545 = vpack.c.b16 %v6522, %v6521
  %v6546 = vpack.c.b16 %v6524, %v6523
  %v6547 = vpack.c.b16 %v6526, %v6525
  %v6548 = vpack.c.b16 %v6528, %v6527
  %v6549 = vpack.c.b16 %v6530, %v6529
  %v6550 = vpack.c.b16 %v6532, %v6531
  %v6551 = vpack.c.b16 %v6534, %v6533
  %v6552 = vpack.c.b16 %v6536, %v6535
  %v6553 = vpack.c.b16 %v6538, %v6537
  %v6554 = vpack.c.b16 %v6540, %v6539
  %v6555 = vpack.c.b16 %v6542, %v6541
  %v6556 = vpack.c.b16 %v6544, %v6543
  %v6570 = vsel %vm94, %v5864, 0
  %v6573 = vsel %vm94, %v5866, 0
  %v6576 = vsel %vm94, %v5868, 0
  %v6579 = vsel %vm94, %v5870, 0
  %v6582 = vsel %vm94, %v5872, 0
  %v6585 = vsel %vm94, %v5874, 0
  %v6588 = vsel %vm94, %v5876, 0
  %v6591 = vsel %vm94, %v5878, 0
  %v6594 = vsel %vm94, %v5880, 0
  %v6597 = vsel %vm94, %v5882, 0
  %v6600 = vsel %vm94, %v5884, 0
  %v6603 = vsel %vm94, %v5886, 0
  %v6606 = vsel %vm94, %v5888, 0
  %v6609 = vsel %vm94, %v5890, 0
  %v6612 = vsel %vm94, %v5892, 0
  %v6615 = vsel %vm94, %v5894, 0
  %v6618 = vsel %vm94, %v5896, 0
  %v6621 = vsel %vm94, %v5898, 0
  %v6624 = vsel %vm94, %v5900, 0
  %v6627 = vsel %vm94, %v5902, 0
  %v6630 = vsel %vm94, %v5904, 0
  %v6633 = vsel %vm94, %v5906, 0
  %v6636 = vsel %vm94, %v5908, 0
  %v6639 = vsel %vm94, %v5910, 0
  %v6642 = vsel %vm94, %v5912, 0
  %v6645 = vsel %vm94, %v5914, 0
  %v6648 = vsel %vm94, %v5916, 0
  %v6651 = vsel %vm94, %v5918, 0
  %v6654 = vsel %vm94, %v5920, 0
  %v6657 = vsel %vm94, %v5922, 0
  %v6660 = vsel %vm94, %v5924, 0
  %v6663 = vsel %vm94, %v5926, 0
  %6665 = vmatprep.subr.bf16.mxu0 0
  %6666 = vmatpush1.bf16.msra.mxu0 %v6545
  %6667 = vmatprep.subr.bf16.mxu0 0
  %6668 = vmatpush1.bf16.msra.mxu0 %v6546
  %6669 = vmatprep.subr.bf16.mxu0 0
  %6670 = vmatpush1.bf16.msra.mxu0 %v6547
  %6671 = vmatprep.subr.bf16.mxu0 0
  %6672 = vmatpush1.bf16.msra.mxu0 %v6548
  %6673 = vmatprep.subr.bf16.mxu0 0
  %6674 = vmatpush1.bf16.msra.mxu0 %v6549
  %6675 = vmatprep.subr.bf16.mxu0 0
  %6676 = vmatpush1.bf16.msra.mxu0 %v6550
  %6677 = vmatprep.subr.bf16.mxu0 0
  %6678 = vmatpush1.bf16.msra.mxu0 %v6551
  %6679 = vmatprep.subr.bf16.mxu0 0
  %6680 = vmatpush1.bf16.msra.mxu0 %v6552
  %6681 = vmatprep.subr.bf16.mxu0 0
  %6682 = vmatpush1.bf16.msra.mxu0 %v6553
  %6683 = vmatprep.subr.bf16.mxu0 0
  %6684 = vmatpush1.bf16.msra.mxu0 %v6554
  %6685 = vmatprep.subr.bf16.mxu0 0
  %6686 = vmatpush1.bf16.msra.mxu0 %v6555
  %6687 = vmatprep.subr.bf16.mxu0 0
  %6688 = vmatpush1.bf16.msra.mxu0 %v6556
  %6689 = vmatprep.subr.bf16.mxu0 0
  %6690 = vmatpush1.bf16.msra.mxu0 0
  %6691 = vmatprep.subr.bf16.mxu0 0
  %6692 = vmatpush1.bf16.msra.mxu0 0
  %6693 = vmatprep.subr.bf16.mxu0 0
  %6694 = vmatpush1.bf16.msra.mxu0 0
  %6695 = vmatprep.subr.bf16.mxu0 0
  %6696 = vmatpush1.bf16.msra.mxu0 0
  %6697 = vmatprep.mubr.bf16.mxu0 %v6570
  %6698 = vmatmul.mubr.bf16.gmra.mrb[0].mxu0 %v5863
  %v6699 = vpop.f32.mrb[0].mxu0
  %v6700 = vadd.f32 %v6243, %v6699
  %v6701 = vpop.f32.mrb[0].mxu0
  %v6702 = vpop.f32.mrb[0].mxu0
  %v6703 = vadd.f32 %v6246, %v6702
  %v6704 = vpop.f32.mrb[0].mxu0
  %6705 = vmatprep.mubr.bf16.mxu0 %v6573
  %6706 = vmatmul.mubr.bf16.gmra.mrb[0].mxu0 %v5865
  %v6707 = vpop.f32.mrb[0].mxu0
  %v6708 = vadd.f32 %v6251, %v6707
  %v6709 = vpop.f32.mrb[0].mxu0
  %v6710 = vpop.f32.mrb[0].mxu0
  %v6711 = vadd.f32 %v6254, %v6710
  %v6712 = vpop.f32.mrb[0].mxu0
  %6713 = vmatprep.mubr.bf16.mxu0 %v6576
  %6714 = vmatmul.mubr.bf16.gmra.mrb[0].mxu0 %v5867
  %v6715 = vpop.f32.mrb[0].mxu0
  %v6716 = vadd.f32 %v6259, %v6715
  %v6717 = vpop.f32.mrb[0].mxu0
  %v6718 = vpop.f32.mrb[0].mxu0
  %v6719 = vadd.f32 %v6262, %v6718
  %v6720 = vpop.f32.mrb[0].mxu0
  %6721 = vmatprep.mubr.bf16.mxu0 %v6579
  %6722 = vmatmul.mubr.bf16.gmra.mrb[0].mxu0 %v5869
  %v6723 = vpop.f32.mrb[0].mxu0
  %v6724 = vadd.f32 %v6267, %v6723
  %v6725 = vpop.f32.mrb[0].mxu0
  %v6726 = vpop.f32.mrb[0].mxu0
  %v6727 = vadd.f32 %v6270, %v6726
  %v6728 = vpop.f32.mrb[0].mxu0
  %6729 = vmatprep.mubr.bf16.mxu0 %v6582
  %6730 = vmatmul.mubr.bf16.gmra.mrb[0].mxu0 %v5871
  %v6731 = vpop.f32.mrb[0].mxu0
  %v6732 = vadd.f32 %v6275, %v6731
  %v6733 = vpop.f32.mrb[0].mxu0
  %v6734 = vpop.f32.mrb[0].mxu0
  %v6735 = vadd.f32 %v6278, %v6734
  %v6736 = vpop.f32.mrb[0].mxu0
  %6737 = vmatprep.mubr.bf16.mxu0 %v6585
  %6738 = vmatmul.mubr.bf16.gmra.mrb[0].mxu0 %v5873
  %v6739 = vpop.f32.mrb[0].mxu0
  %v6740 = vadd.f32 %v6283, %v6739
  %v6741 = vpop.f32.mrb[0].mxu0
  %v6742 = vpop.f32.mrb[0].mxu0
  %v6743 = vadd.f32 %v6286, %v6742
  %v6744 = vpop.f32.mrb[0].mxu0
  %6745 = vmatprep.mubr.bf16.mxu0 %v6588
  %6746 = vmatmul.mubr.bf16.gmra.mrb[0].mxu0 %v5875
  %v6747 = vpop.f32.mrb[0].mxu0
  %v6748 = vadd.f32 %v6291, %v6747
  %v6749 = vpop.f32.mrb[0].mxu0
  %v6750 = vpop.f32.mrb[0].mxu0
  %v6751 = vadd.f32 %v6294, %v6750
  %v6752 = vpop.f32.mrb[0].mxu0
  %6753 = vmatprep.mubr.bf16.mxu0 %v6591
  %6754 = vmatmul.mubr.bf16.gmra.mrb[0].mxu0 %v5877
  %v6755 = vpop.f32.mrb[0].mxu0
  %v6756 = vadd.f32 %v6299, %v6755
  %v6757 = vpop.f32.mrb[0].mxu0
  %v6758 = vpop.f32.mrb[0].mxu0
  %v6759 = vadd.f32 %v6302, %v6758
  %v6760 = vpop.f32.mrb[0].mxu0
  %6761 = vmatprep.mubr.bf16.mxu0 %v6594
  %6762 = vmatmul.mubr.bf16.gmra.mrb[0].mxu0 %v5879
  %v6763 = vpop.f32.mrb[0].mxu0
  %v6764 = vadd.f32 %v6307, %v6763
  %v6765 = vpop.f32.mrb[0].mxu0
  %v6766 = vpop.f32.mrb[0].mxu0
  %v6767 = vadd.f32 %v6310, %v6766
  %v6768 = vpop.f32.mrb[0].mxu0
  %6769 = vmatprep.mubr.bf16.mxu0 %v6597
  %6770 = vmatmul.mubr.bf16.gmra.mrb[0].mxu0 %v5881
  %v6771 = vpop.f32.mrb[0].mxu0
  %v6772 = vadd.f32 %v6315, %v6771
  %v6773 = vpop.f32.mrb[0].mxu0
  %v6774 = vpop.f32.mrb[0].mxu0
  %v6775 = vadd.f32 %v6318, %v6774
  %v6776 = vpop.f32.mrb[0].mxu0
  %6777 = vmatprep.mubr.bf16.mxu0 %v6600
  %6778 = vmatmul.mubr.bf16.gmra.mrb[0].mxu0 %v5883
  %v6779 = vpop.f32.mrb[0].mxu0
  %v6780 = vadd.f32 %v6323, %v6779
  %v6781 = vpop.f32.mrb[0].mxu0
  %v6782 = vpop.f32.mrb[0].mxu0
  %v6783 = vadd.f32 %v6326, %v6782
  %v6784 = vpop.f32.mrb[0].mxu0
  %6785 = vmatprep.mubr.bf16.mxu0 %v6603
  %6786 = vmatmul.mubr.bf16.gmra.mrb[0].mxu0 %v5885
  %v6787 = vpop.f32.mrb[0].mxu0
  %v6788 = vadd.f32 %v6331, %v6787
  %v6789 = vpop.f32.mrb[0].mxu0
  %v6790 = vpop.f32.mrb[0].mxu0
  %v6791 = vadd.f32 %v6334, %v6790
  %v6792 = vpop.f32.mrb[0].mxu0
  %6793 = vmatprep.mubr.bf16.mxu0 %v6606
  %6794 = vmatmul.mubr.bf16.gmra.mrb[0].mxu0 %v5887
  %v6795 = vpop.f32.mrb[0].mxu0
  %v6796 = vadd.f32 %v6339, %v6795
  %v6797 = vpop.f32.mrb[0].mxu0
  %v6798 = vpop.f32.mrb[0].mxu0
  %v6799 = vadd.f32 %v6342, %v6798
  %v6800 = vpop.f32.mrb[0].mxu0
  %6801 = vmatprep.mubr.bf16.mxu0 %v6609
  %6802 = vmatmul.mubr.bf16.gmra.mrb[0].mxu0 %v5889
  %v6803 = vpop.f32.mrb[0].mxu0
  %v6804 = vadd.f32 %v6347, %v6803
  %v6805 = vpop.f32.mrb[0].mxu0
  %v6806 = vpop.f32.mrb[0].mxu0
  %v6807 = vadd.f32 %v6350, %v6806
  %v6808 = vpop.f32.mrb[0].mxu0
  %6809 = vmatprep.mubr.bf16.mxu0 %v6612
  %6810 = vmatmul.mubr.bf16.gmra.mrb[0].mxu0 %v5891
  %v6811 = vpop.f32.mrb[0].mxu0
  %v6812 = vadd.f32 %v6355, %v6811
  %v6813 = vpop.f32.mrb[0].mxu0
  %v6814 = vpop.f32.mrb[0].mxu0
  %v6815 = vadd.f32 %v6358, %v6814
  %v6816 = vpop.f32.mrb[0].mxu0
  %6817 = vmatprep.mubr.bf16.mxu0 %v6615
  %6818 = vmatmul.mubr.bf16.gmra.mrb[0].mxu0 %v5893
  %v6819 = vpop.f32.mrb[0].mxu0
  %v6820 = vadd.f32 %v6363, %v6819
  %v6821 = vpop.f32.mrb[0].mxu0
  %v6822 = vpop.f32.mrb[0].mxu0
  %v6823 = vadd.f32 %v6366, %v6822
  %v6824 = vpop.f32.mrb[0].mxu0
  %6825 = vmatprep.mubr.bf16.mxu0 %v6618
  %6826 = vmatmul.mubr.bf16.gmra.mrb[0].mxu0 %v5895
  %v6827 = vpop.f32.mrb[0].mxu0
  %v6828 = vadd.f32 %v6371, %v6827
  %v6829 = vpop.f32.mrb[0].mxu0
  %v6830 = vpop.f32.mrb[0].mxu0
  %v6831 = vadd.f32 %v6374, %v6830
  %v6832 = vpop.f32.mrb[0].mxu0
  %6833 = vmatprep.mubr.bf16.mxu0 %v6621
  %6834 = vmatmul.mubr.bf16.gmra.mrb[0].mxu0 %v5897
  %v6835 = vpop.f32.mrb[0].mxu0
  %v6836 = vadd.f32 %v6379, %v6835
  %v6837 = vpop.f32.mrb[0].mxu0
  %v6838 = vpop.f32.mrb[0].mxu0
  %v6839 = vadd.f32 %v6382, %v6838
  %v6840 = vpop.f32.mrb[0].mxu0
  %6841 = vmatprep.mubr.bf16.mxu0 %v6624
  %6842 = vmatmul.mubr.bf16.gmra.mrb[0].mxu0 %v5899
  %v6843 = vpop.f32.mrb[0].mxu0
  %v6844 = vadd.f32 %v6387, %v6843
  %v6845 = vpop.f32.mrb[0].mxu0
  %v6846 = vpop.f32.mrb[0].mxu0
  %v6847 = vadd.f32 %v6390, %v6846
  %v6848 = vpop.f32.mrb[0].mxu0
  %6849 = vmatprep.mubr.bf16.mxu0 %v6627
  %6850 = vmatmul.mubr.bf16.gmra.mrb[0].mxu0 %v5901
  %v6851 = vpop.f32.mrb[0].mxu0
  %v6852 = vadd.f32 %v6395, %v6851
  %v6853 = vpop.f32.mrb[0].mxu0
  %v6854 = vpop.f32.mrb[0].mxu0
  %v6855 = vadd.f32 %v6398, %v6854
  %v6856 = vpop.f32.mrb[0].mxu0
  %6857 = vmatprep.mubr.bf16.mxu0 %v6630
  %6858 = vmatmul.mubr.bf16.gmra.mrb[0].mxu0 %v5903
  %v6859 = vpop.f32.mrb[0].mxu0
  %v6860 = vadd.f32 %v6403, %v6859
  %v6861 = vpop.f32.mrb[0].mxu0
  %v6862 = vpop.f32.mrb[0].mxu0
  %v6863 = vadd.f32 %v6406, %v6862
  %v6864 = vpop.f32.mrb[0].mxu0
  %6865 = vmatprep.mubr.bf16.mxu0 %v6633
  %6866 = vmatmul.mubr.bf16.gmra.mrb[0].mxu0 %v5905
  %v6867 = vpop.f32.mrb[0].mxu0
  %v6868 = vadd.f32 %v6411, %v6867
  %v6869 = vpop.f32.mrb[0].mxu0
  %v6870 = vpop.f32.mrb[0].mxu0
  %v6871 = vadd.f32 %v6414, %v6870
  %v6872 = vpop.f32.mrb[0].mxu0
  %6873 = vmatprep.mubr.bf16.mxu0 %v6636
  %6874 = vmatmul.mubr.bf16.gmra.mrb[0].mxu0 %v5907
  %v6875 = vpop.f32.mrb[0].mxu0
  %v6876 = vadd.f32 %v6419, %v6875
  %v6877 = vpop.f32.mrb[0].mxu0
  %v6878 = vpop.f32.mrb[0].mxu0
  %v6879 = vadd.f32 %v6422, %v6878
  %v6880 = vpop.f32.mrb[0].mxu0
  %6881 = vmatprep.mubr.bf16.mxu0 %v6639
  %6882 = vmatmul.mubr.bf16.gmra.mrb[0].mxu0 %v5909
  %v6883 = vpop.f32.mrb[0].mxu0
  %v6884 = vadd.f32 %v6427, %v6883
  %v6885 = vpop.f32.mrb[0].mxu0
  %v6886 = vpop.f32.mrb[0].mxu0
  %v6887 = vadd.f32 %v6430, %v6886
  %v6888 = vpop.f32.mrb[0].mxu0
  %6889 = vmatprep.mubr.bf16.mxu0 %v6642
  %6890 = vmatmul.mubr.bf16.gmra.mrb[0].mxu0 %v5911
  %v6891 = vpop.f32.mrb[0].mxu0
  %v6892 = vadd.f32 %v6435, %v6891
  %v6893 = vpop.f32.mrb[0].mxu0
  %v6894 = vpop.f32.mrb[0].mxu0
  %v6895 = vadd.f32 %v6438, %v6894
  %v6896 = vpop.f32.mrb[0].mxu0
  %6897 = vmatprep.mubr.bf16.mxu0 %v6645
  %6898 = vmatmul.mubr.bf16.gmra.mrb[0].mxu0 %v5913
  %v6899 = vpop.f32.mrb[0].mxu0
  %v6900 = vadd.f32 %v6443, %v6899
  %v6901 = vpop.f32.mrb[0].mxu0
  %v6902 = vpop.f32.mrb[0].mxu0
  %v6903 = vadd.f32 %v6446, %v6902
  %v6904 = vpop.f32.mrb[0].mxu0
  %6905 = vmatprep.mubr.bf16.mxu0 %v6648
  %6906 = vmatmul.mubr.bf16.gmra.mrb[0].mxu0 %v5915
  %v6907 = vpop.f32.mrb[0].mxu0
  %v6908 = vadd.f32 %v6451, %v6907
  %v6909 = vpop.f32.mrb[0].mxu0
  %v6910 = vpop.f32.mrb[0].mxu0
  %v6911 = vadd.f32 %v6454, %v6910
  %v6912 = vpop.f32.mrb[0].mxu0
  %6913 = vmatprep.mubr.bf16.mxu0 %v6651
  %6914 = vmatmul.mubr.bf16.gmra.mrb[0].mxu0 %v5917
  %v6915 = vpop.f32.mrb[0].mxu0
  %v6916 = vadd.f32 %v6459, %v6915
  %v6917 = vpop.f32.mrb[0].mxu0
  %v6918 = vpop.f32.mrb[0].mxu0
  %v6919 = vadd.f32 %v6462, %v6918
  %v6920 = vpop.f32.mrb[0].mxu0
  %6921 = vmatprep.mubr.bf16.mxu0 %v6654
  %6922 = vmatmul.mubr.bf16.gmra.mrb[0].mxu0 %v5919
  %v6923 = vpop.f32.mrb[0].mxu0
  %v6924 = vadd.f32 %v6467, %v6923
  %v6925 = vpop.f32.mrb[0].mxu0
  %v6926 = vpop.f32.mrb[0].mxu0
  %v6927 = vadd.f32 %v6470, %v6926
  %v6928 = vpop.f32.mrb[0].mxu0
  %6929 = vmatprep.mubr.bf16.mxu0 %v6657
  %6930 = vmatmul.mubr.bf16.gmra.mrb[0].mxu0 %v5921
  %v6931 = vpop.f32.mrb[0].mxu0
  %v6932 = vadd.f32 %v6475, %v6931
  %v6933 = vpop.f32.mrb[0].mxu0
  %v6934 = vpop.f32.mrb[0].mxu0
  %v6935 = vadd.f32 %v6478, %v6934
  %v6936 = vpop.f32.mrb[0].mxu0
  %6937 = vmatprep.mubr.bf16.mxu0 %v6660
  %6938 = vmatmul.mubr.bf16.gmra.mrb[0].mxu0 %v5923
  %v6939 = vpop.f32.mrb[0].mxu0
  %v6940 = vadd.f32 %v6483, %v6939
  %v6941 = vpop.f32.mrb[0].mxu0
  %v6942 = vpop.f32.mrb[0].mxu0
  %v6943 = vadd.f32 %v6486, %v6942
  %v6944 = vpop.f32.mrb[0].mxu0
  %6945 = vmatprep.mubr.bf16.mxu0 %v6663
  %6946 = vmatmul.mubr.bf16.gmra.mrb[0].mxu0 %v5925
  %v6947 = vpop.f32.mrb[0].mxu0
  %v6948 = vadd.f32 %v6491, %v6947
  %v6949 = vpop.f32.mrb[0].mxu0
  %v6950 = vpop.f32.mrb[0].mxu0
  %v6951 = vadd.f32 %v6494, %v6950
  %v6952 = vpop.f32.mrb[0].mxu0
  %6953 = vdwg.mxu0
  %v6954 = vld [vmem:[%s3307] sm:$0xff]
  %v6955 = vld [vmem:[%s3307 + $0x8] sm:$0xff]
  %v6956 = vld [vmem:[%s3307 + $0x10] sm:$0xff]
  %v6957 = vld [vmem:[%s3307 + $0x18] sm:$0xff]
  %v6958 = vld [vmem:[%s3307 + $0x20] sm:$0xff]
  %v6959 = vld [vmem:[%s3307 + $0x28] sm:$0xff]
  %v6960 = vld [vmem:[%s3307 + $0x30] sm:$0xff]
  %v6961 = vld [vmem:[%s3307 + $0x38] sm:$0xff]
  %v6962 = vld [vmem:[%s3307 + $0x40] sm:$0xff]
  %v6963 = vld [vmem:[%s3307 + $0x48] sm:$0xff]
  %v6964 = vld [vmem:[%s3307 + $0x50] sm:$0xff]
  %v6965 = vld [vmem:[%s3307 + $0x58] sm:$0xff]
  %v6966 = vld [vmem:[%s3307 + $0x60] sm:$0xff]
  %v6967 = vld [vmem:[%s3307 + $0x68] sm:$0xff]
  %v6968 = vld [vmem:[%s3307 + $0x70] sm:$0xff]
  %v6969 = vld [vmem:[%s3307 + $0x78] sm:$0xff]
  %v6970 = vld [vmem:[%s3307 + $0x80] sm:$0xff]
  %v6971 = vld [vmem:[%s3307 + $0x88] sm:$0xff]
  %v6972 = vld [vmem:[%s3307 + $0x90] sm:$0xff]
  %v6973 = vld [vmem:[%s3307 + $0x98] sm:$0xff]
  %v6974 = vld [vmem:[%s3307 + $0xa0] sm:$0xff]
  %v6975 = vld [vmem:[%s3307 + $0xa8] sm:$0xff]
  %v6976 = vld [vmem:[%s3307 + $0xb0] sm:$0xff]
  %v6977 = vld [vmem:[%s3307 + $0xb8] sm:$0xff]
  %v6978 = vld [vmem:[%s3307 + $0xc0] sm:$0xff]
  %v6979 = vld [vmem:[%s3307 + $0xc8] sm:$0xff]
  %v6980 = vld [vmem:[%s3307 + $0xd0] sm:$0xff]
  %v6981 = vld [vmem:[%s3307 + $0xd8] sm:$0xff]
  %v6982 = vld [vmem:[%s3307 + $0xe0] sm:$0xff]
  %v6983 = vld [vmem:[%s3307 + $0xe8] sm:$0xff]
  %v6984 = vld [vmem:[%s3307 + $0xf0] sm:$0xff]
  %v6985 = vld [vmem:[%s3307 + $0xf8] sm:$0xff]
  %v6986 = vld [vmem:[%s3307 + $0x120] sm:$0xff]
  %v6987 = vld [vmem:[%s3307 + $0x128] sm:$0xff]
  %v6988 = vld [vmem:[%s3307 + $0x130] sm:$0xff]
  %v6989 = vld [vmem:[%s3307 + $0x138] sm:$0xff]
  %v6990 = vld [vmem:[%s3307 + $0x140] sm:$0xff]
  %v6991 = vld [vmem:[%s3307 + $0x148] sm:$0xff]
  %v6992 = vld [vmem:[%s3307 + $0x150] sm:$0xff]
  %v6993 = vld [vmem:[%s3307 + $0x158] sm:$0xff]
  %v6994 = vld [vmem:[%s3307 + $0x160] sm:$0xff]
  %v6995 = vld [vmem:[%s3307 + $0x168] sm:$0xff]
  %v6996 = vld [vmem:[%s3307 + $0x170] sm:$0xff]
  %v6997 = vld [vmem:[%s3307 + $0x178] sm:$0xff]
  %v6998 = vld [vmem:[%s3307 + $0x180] sm:$0xff]
  %v6999 = vld [vmem:[%s3307 + $0x188] sm:$0xff]
  %v7000 = vld [vmem:[%s3307 + $0x190] sm:$0xff]
  %v7001 = vld [vmem:[%s3307 + $0x198] sm:$0xff]
  %v7002 = vld [vmem:[%s3307 + $0x1a0] sm:$0xff]
  %v7003 = vld [vmem:[%s3307 + $0x1a8] sm:$0xff]
  %v7004 = vld [vmem:[%s3307 + $0x1b0] sm:$0xff]
  %v7005 = vld [vmem:[%s3307 + $0x1b8] sm:$0xff]
  %v7006 = vld [vmem:[%s3307 + $0x1c0] sm:$0xff]
  %v7007 = vld [vmem:[%s3307 + $0x1c8] sm:$0xff]
  %v7008 = vld [vmem:[%s3307 + $0x1d0] sm:$0xff]
  %v7009 = vld [vmem:[%s3307 + $0x1d8] sm:$0xff]
  %v7010 = vld [vmem:[%s3307 + $0x1e0] sm:$0xff]
  %v7011 = vld [vmem:[%s3307 + $0x1e8] sm:$0xff]
  %v7012 = vld [vmem:[%s3307 + $0x1f0] sm:$0xff]
  %v7013 = vld [vmem:[%s3307 + $0x1f8] sm:$0xff]
  %v7014 = vld [vmem:[%s3307 + $0x200] sm:$0xff]
  %v7015 = vld [vmem:[%s3307 + $0x208] sm:$0xff]
  %v7016 = vld [vmem:[%s3307 + $0x210] sm:$0xff]
  %v7017 = vld [vmem:[%s3307 + $0x218] sm:$0xff]
  %s7018 = scalar_lea.vmem %s4, 192
  %v7019 = vld [vmem:[%s7018] sm:$0xf]
  %v7020 = vld [vmem:[%s7018 + $0x4] sm:$0xf]
  %v7021 = vld [vmem:[%s7018 + $0x8] sm:$0xf]
  %v7022 = vld [vmem:[%s7018 + $0xc] sm:$0xf]
  %v7023 = vld [vmem:[%s7018 + $0x10] sm:$0xf]
  %v7024 = vld [vmem:[%s7018 + $0x14] sm:$0xf]
  %v7025 = vld [vmem:[%s7018 + $0x18] sm:$0xf]
  %v7026 = vld [vmem:[%s7018 + $0x1c] sm:$0xf]
  %v7027 = vld [vmem:[%s7018 + $0x20] sm:$0xf]
  %v7028 = vld [vmem:[%s7018 + $0x24] sm:$0xf]
  %v7029 = vld [vmem:[%s7018 + $0x28] sm:$0xf]
  %v7030 = vld [vmem:[%s7018 + $0x2c] sm:$0xf]
  %v7031 = vld [vmem:[%s7018 + $0x30] sm:$0xf]
  %v7032 = vld [vmem:[%s7018 + $0x34] sm:$0xf]
  %v7033 = vld [vmem:[%s7018 + $0x38] sm:$0xf]
  %v7034 = vld [vmem:[%s7018 + $0x3c] sm:$0xf]
  %v7035 = vld [vmem:[%s7018 + $0x40] sm:$0xf]
  %v7036 = vld [vmem:[%s7018 + $0x44] sm:$0xf]
  %v7037 = vld [vmem:[%s7018 + $0x48] sm:$0xf]
  %v7038 = vld [vmem:[%s7018 + $0x4c] sm:$0xf]
  %v7039 = vld [vmem:[%s7018 + $0x50] sm:$0xf]
  %v7040 = vld [vmem:[%s7018 + $0x54] sm:$0xf]
  %v7041 = vld [vmem:[%s7018 + $0x58] sm:$0xf]
  %v7042 = vld [vmem:[%s7018 + $0x5c] sm:$0xf]
  %v7067 = vunpack.c.l.b16 %v7019
  %v7068 = vunpack.c.l.b16 %v7020
  %v7069 = vunpack.c.l.b16 %v7021
  %v7070 = vunpack.c.l.b16 %v7022
  %v7071 = vunpack.c.l.b16 %v7023
  %v7072 = vunpack.c.l.b16 %v7024
  %v7073 = vunpack.c.l.b16 %v7025
  %v7074 = vunpack.c.l.b16 %v7026
  %v7075 = vunpack.c.l.b16 %v7027
  %v7076 = vunpack.c.l.b16 %v7028
  %v7077 = vunpack.c.l.b16 %v7029
  %v7078 = vunpack.c.l.b16 %v7030
  %v7079 = vunpack.c.l.b16 %v7031
  %v7080 = vunpack.c.l.b16 %v7032
  %v7081 = vunpack.c.l.b16 %v7033
  %v7082 = vunpack.c.l.b16 %v7034
  %v7083 = vunpack.c.l.b16 %v7035
  %v7084 = vunpack.c.l.b16 %v7036
  %v7085 = vunpack.c.l.b16 %v7037
  %v7086 = vunpack.c.l.b16 %v7038
  %v7087 = vunpack.c.l.b16 %v7039
  %v7088 = vunpack.c.l.b16 %v7040
  %v7089 = vunpack.c.l.b16 %v7041
  %v7090 = vunpack.c.l.b16 %v7042
  %v7091 = vpack.c.b16 %v7068, %v7067
  %v7092 = vpack.c.b16 %v7070, %v7069
  %v7093 = vpack.c.b16 %v7072, %v7071
  %v7094 = vpack.c.b16 %v7074, %v7073
  %v7095 = vpack.c.b16 %v7076, %v7075
  %v7096 = vpack.c.b16 %v7078, %v7077
  %v7097 = vpack.c.b16 %v7080, %v7079
  %v7098 = vpack.c.b16 %v7082, %v7081
  %v7099 = vpack.c.b16 %v7084, %v7083
  %v7100 = vpack.c.b16 %v7086, %v7085
  %v7101 = vpack.c.b16 %v7088, %v7087
  %v7102 = vpack.c.b16 %v7090, %v7089
  %v7116 = vsel %vm94, %v6955, 0
  %v7119 = vsel %vm94, %v6957, 0
  %v7122 = vsel %vm94, %v6959, 0
  %v7125 = vsel %vm94, %v6961, 0
  %v7128 = vsel %vm94, %v6963, 0
  %v7131 = vsel %vm94, %v6965, 0
  %v7134 = vsel %vm94, %v6967, 0
  %v7137 = vsel %vm94, %v6969, 0
  %v7140 = vsel %vm94, %v6971, 0
  %v7143 = vsel %vm94, %v6973, 0
  %v7146 = vsel %vm94, %v6975, 0
  %v7149 = vsel %vm94, %v6977, 0
  %v7152 = vsel %vm94, %v6979, 0
  %v7155 = vsel %vm94, %v6981, 0
  %v7158 = vsel %vm94, %v6983, 0
  %v7161 = vsel %vm94, %v6985, 0
  %v7164 = vsel %vm94, %v6987, 0
  %v7167 = vsel %vm94, %v6989, 0
  %v7170 = vsel %vm94, %v6991, 0
  %v7173 = vsel %vm94, %v6993, 0
  %v7176 = vsel %vm94, %v6995, 0
  %v7179 = vsel %vm94, %v6997, 0
  %v7182 = vsel %vm94, %v6999, 0
  %v7185 = vsel %vm94, %v7001, 0
  %v7188 = vsel %vm94, %v7003, 0
  %v7191 = vsel %vm94, %v7005, 0
  %v7194 = vsel %vm94, %v7007, 0
  %v7197 = vsel %vm94, %v7009, 0
  %v7200 = vsel %vm94, %v7011, 0
  %v7203 = vsel %vm94, %v7013, 0
  %v7206 = vsel %vm94, %v7015, 0
  %v7209 = vsel %vm94, %v7017, 0
  %7211 = vmatprep.subr.bf16.mxu0 0
  %7212 = vmatpush1.bf16.msra.mxu0 %v7091
  %7213 = vmatprep.subr.bf16.mxu0 0
  %7214 = vmatpush1.bf16.msra.mxu0 %v7092
  %7215 = vmatprep.subr.bf16.mxu0 0
  %7216 = vmatpush1.bf16.msra.mxu0 %v7093
  %7217 = vmatprep.subr.bf16.mxu0 0
  %7218 = vmatpush1.bf16.msra.mxu0 %v7094
  %7219 = vmatprep.subr.bf16.mxu0 0
  %7220 = vmatpush1.bf16.msra.mxu0 %v7095
  %7221 = vmatprep.subr.bf16.mxu0 0
  %7222 = vmatpush1.bf16.msra.mxu0 %v7096
  %7223 = vmatprep.subr.bf16.mxu0 0
  %7224 = vmatpush1.bf16.msra.mxu0 %v7097
  %7225 = vmatprep.subr.bf16.mxu0 0
  %7226 = vmatpush1.bf16.msra.mxu0 %v7098
  %7227 = vmatprep.subr.bf16.mxu0 0
  %7228 = vmatpush1.bf16.msra.mxu0 %v7099
  %7229 = vmatprep.subr.bf16.mxu0 0
  %7230 = vmatpush1.bf16.msra.mxu0 %v7100
  %7231 = vmatprep.subr.bf16.mxu0 0
  %7232 = vmatpush1.bf16.msra.mxu0 %v7101
  %7233 = vmatprep.subr.bf16.mxu0 0
  %7234 = vmatpush1.bf16.msra.mxu0 %v7102
  %7235 = vmatprep.subr.bf16.mxu0 0
  %7236 = vmatpush1.bf16.msra.mxu0 0
  %7237 = vmatprep.subr.bf16.mxu0 0
  %7238 = vmatpush1.bf16.msra.mxu0 0
  %7239 = vmatprep.subr.bf16.mxu0 0
  %7240 = vmatpush1.bf16.msra.mxu0 0
  %7241 = vmatprep.subr.bf16.mxu0 0
  %7242 = vmatpush1.bf16.msra.mxu0 0
  %7243 = vmatprep.mubr.bf16.mxu0 %v7116
  %7244 = vmatmul.mubr.bf16.gmra.mrb[0].mxu0 %v6954
  %v7245 = vpop.f32.mrb[0].mxu0
  %v7246 = vadd.f32 0.0, %v7245
  %v7247 = vpop.f32.mrb[0].mxu0
  %v7248 = vpop.f32.mrb[0].mxu0
  %v7249 = vadd.f32 0.0, %v7248
  %v7250 = vpop.f32.mrb[0].mxu0
  %7251 = vmatprep.mubr.bf16.mxu0 %v7119
  %7252 = vmatmul.mubr.bf16.gmra.mrb[0].mxu0 %v6956
  %v7253 = vpop.f32.mrb[0].mxu0
  %v7254 = vadd.f32 0.0, %v7253
  %v7255 = vpop.f32.mrb[0].mxu0
  %v7256 = vpop.f32.mrb[0].mxu0
  %v7257 = vadd.f32 0.0, %v7256
  %v7258 = vpop.f32.mrb[0].mxu0
  %7259 = vmatprep.mubr.bf16.mxu0 %v7122
  %7260 = vmatmul.mubr.bf16.gmra.mrb[0].mxu0 %v6958
  %v7261 = vpop.f32.mrb[0].mxu0
  %v7262 = vadd.f32 0.0, %v7261
  %v7263 = vpop.f32.mrb[0].mxu0
  %v7264 = vpop.f32.mrb[0].mxu0
  %v7265 = vadd.f32 0.0, %v7264
  %v7266 = vpop.f32.mrb[0].mxu0
  %7267 = vmatprep.mubr.bf16.mxu0 %v7125
  %7268 = vmatmul.mubr.bf16.gmra.mrb[0].mxu0 %v6960
  %v7269 = vpop.f32.mrb[0].mxu0
  %v7270 = vadd.f32 0.0, %v7269
  %v7271 = vpop.f32.mrb[0].mxu0
  %v7272 = vpop.f32.mrb[0].mxu0
  %v7273 = vadd.f32 0.0, %v7272
  %v7274 = vpop.f32.mrb[0].mxu0
  %7275 = vmatprep.mubr.bf16.mxu0 %v7128
  %7276 = vmatmul.mubr.bf16.gmra.mrb[0].mxu0 %v6962
  %v7277 = vpop.f32.mrb[0].mxu0
  %v7278 = vadd.f32 0.0, %v7277
  %v7279 = vpop.f32.mrb[0].mxu0
  %v7280 = vpop.f32.mrb[0].mxu0
  %v7281 = vadd.f32 0.0, %v7280
  %v7282 = vpop.f32.mrb[0].mxu0
  %7283 = vmatprep.mubr.bf16.mxu0 %v7131
  %7284 = vmatmul.mubr.bf16.gmra.mrb[0].mxu0 %v6964
  %v7285 = vpop.f32.mrb[0].mxu0
  %v7286 = vadd.f32 0.0, %v7285
  %v7287 = vpop.f32.mrb[0].mxu0
  %v7288 = vpop.f32.mrb[0].mxu0
  %v7289 = vadd.f32 0.0, %v7288
  %v7290 = vpop.f32.mrb[0].mxu0
  %7291 = vmatprep.mubr.bf16.mxu0 %v7134
  %7292 = vmatmul.mubr.bf16.gmra.mrb[0].mxu0 %v6966
  %v7293 = vpop.f32.mrb[0].mxu0
  %v7294 = vadd.f32 0.0, %v7293
  %v7295 = vpop.f32.mrb[0].mxu0
  %v7296 = vpop.f32.mrb[0].mxu0
  %v7297 = vadd.f32 0.0, %v7296
  %v7298 = vpop.f32.mrb[0].mxu0
  %7299 = vmatprep.mubr.bf16.mxu0 %v7137
  %7300 = vmatmul.mubr.bf16.gmra.mrb[0].mxu0 %v6968
  %v7301 = vpop.f32.mrb[0].mxu0
  %v7302 = vadd.f32 0.0, %v7301
  %v7303 = vpop.f32.mrb[0].mxu0
  %v7304 = vpop.f32.mrb[0].mxu0
  %v7305 = vadd.f32 0.0, %v7304
  %v7306 = vpop.f32.mrb[0].mxu0
  %7307 = vmatprep.mubr.bf16.mxu0 %v7140
  %7308 = vmatmul.mubr.bf16.gmra.mrb[0].mxu0 %v6970
  %v7309 = vpop.f32.mrb[0].mxu0
  %v7310 = vadd.f32 0.0, %v7309
  %v7311 = vpop.f32.mrb[0].mxu0
  %v7312 = vpop.f32.mrb[0].mxu0
  %v7313 = vadd.f32 0.0, %v7312
  %v7314 = vpop.f32.mrb[0].mxu0
  %7315 = vmatprep.mubr.bf16.mxu0 %v7143
  %7316 = vmatmul.mubr.bf16.gmra.mrb[0].mxu0 %v6972
  %v7317 = vpop.f32.mrb[0].mxu0
  %v7318 = vadd.f32 0.0, %v7317
  %v7319 = vpop.f32.mrb[0].mxu0
  %v7320 = vpop.f32.mrb[0].mxu0
  %v7321 = vadd.f32 0.0, %v7320
  %v7322 = vpop.f32.mrb[0].mxu0
  %7323 = vmatprep.mubr.bf16.mxu0 %v7146
  %7324 = vmatmul.mubr.bf16.gmra.mrb[0].mxu0 %v6974
  %v7325 = vpop.f32.mrb[0].mxu0
  %v7326 = vadd.f32 0.0, %v7325
  %v7327 = vpop.f32.mrb[0].mxu0
  %v7328 = vpop.f32.mrb[0].mxu0
  %v7329 = vadd.f32 0.0, %v7328
  %v7330 = vpop.f32.mrb[0].mxu0
  %7331 = vmatprep.mubr.bf16.mxu0 %v7149
  %7332 = vmatmul.mubr.bf16.gmra.mrb[0].mxu0 %v6976
  %v7333 = vpop.f32.mrb[0].mxu0
  %v7334 = vadd.f32 0.0, %v7333
  %v7335 = vpop.f32.mrb[0].mxu0
  %v7336 = vpop.f32.mrb[0].mxu0
  %v7337 = vadd.f32 0.0, %v7336
  %v7338 = vpop.f32.mrb[0].mxu0
  %7339 = vmatprep.mubr.bf16.mxu0 %v7152
  %7340 = vmatmul.mubr.bf16.gmra.mrb[0].mxu0 %v6978
  %v7341 = vpop.f32.mrb[0].mxu0
  %v7342 = vadd.f32 0.0, %v7341
  %v7343 = vpop.f32.mrb[0].mxu0
  %v7344 = vpop.f32.mrb[0].mxu0
  %v7345 = vadd.f32 0.0, %v7344
  %v7346 = vpop.f32.mrb[0].mxu0
  %7347 = vmatprep.mubr.bf16.mxu0 %v7155
  %7348 = vmatmul.mubr.bf16.gmra.mrb[0].mxu0 %v6980
  %v7349 = vpop.f32.mrb[0].mxu0
  %v7350 = vadd.f32 0.0, %v7349
  %v7351 = vpop.f32.mrb[0].mxu0
  %v7352 = vpop.f32.mrb[0].mxu0
  %v7353 = vadd.f32 0.0, %v7352
  %v7354 = vpop.f32.mrb[0].mxu0
  %7355 = vmatprep.mubr.bf16.mxu0 %v7158
  %7356 = vmatmul.mubr.bf16.gmra.mrb[0].mxu0 %v6982
  %v7357 = vpop.f32.mrb[0].mxu0
  %v7358 = vadd.f32 0.0, %v7357
  %v7359 = vpop.f32.mrb[0].mxu0
  %v7360 = vpop.f32.mrb[0].mxu0
  %v7361 = vadd.f32 0.0, %v7360
  %v7362 = vpop.f32.mrb[0].mxu0
  %7363 = vmatprep.mubr.bf16.mxu0 %v7161
  %7364 = vmatmul.mubr.bf16.gmra.mrb[0].mxu0 %v6984
  %v7365 = vpop.f32.mrb[0].mxu0
  %v7366 = vadd.f32 0.0, %v7365
  %v7367 = vpop.f32.mrb[0].mxu0
  %v7368 = vpop.f32.mrb[0].mxu0
  %v7369 = vadd.f32 0.0, %v7368
  %v7370 = vpop.f32.mrb[0].mxu0
  %7371 = vmatprep.mubr.bf16.mxu0 %v7164
  %7372 = vmatmul.mubr.bf16.gmra.mrb[0].mxu0 %v6986
  %v7373 = vpop.f32.mrb[0].mxu0
  %v7374 = vadd.f32 0.0, %v7373
  %v7375 = vpop.f32.mrb[0].mxu0
  %v7376 = vpop.f32.mrb[0].mxu0
  %v7377 = vadd.f32 0.0, %v7376
  %v7378 = vpop.f32.mrb[0].mxu0
  %7379 = vmatprep.mubr.bf16.mxu0 %v7167
  %7380 = vmatmul.mubr.bf16.gmra.mrb[0].mxu0 %v6988
  %v7381 = vpop.f32.mrb[0].mxu0
  %v7382 = vadd.f32 0.0, %v7381
  %v7383 = vpop.f32.mrb[0].mxu0
  %v7384 = vpop.f32.mrb[0].mxu0
  %v7385 = vadd.f32 0.0, %v7384
  %v7386 = vpop.f32.mrb[0].mxu0
  %7387 = vmatprep.mubr.bf16.mxu0 %v7170
  %7388 = vmatmul.mubr.bf16.gmra.mrb[0].mxu0 %v6990
  %v7389 = vpop.f32.mrb[0].mxu0
  %v7390 = vadd.f32 0.0, %v7389
  %v7391 = vpop.f32.mrb[0].mxu0
  %v7392 = vpop.f32.mrb[0].mxu0
  %v7393 = vadd.f32 0.0, %v7392
  %v7394 = vpop.f32.mrb[0].mxu0
  %7395 = vmatprep.mubr.bf16.mxu0 %v7173
  %7396 = vmatmul.mubr.bf16.gmra.mrb[0].mxu0 %v6992
  %v7397 = vpop.f32.mrb[0].mxu0
  %v7398 = vadd.f32 0.0, %v7397
  %v7399 = vpop.f32.mrb[0].mxu0
  %v7400 = vpop.f32.mrb[0].mxu0
  %v7401 = vadd.f32 0.0, %v7400
  %v7402 = vpop.f32.mrb[0].mxu0
  %7403 = vmatprep.mubr.bf16.mxu0 %v7176
  %7404 = vmatmul.mubr.bf16.gmra.mrb[0].mxu0 %v6994
  %v7405 = vpop.f32.mrb[0].mxu0
  %v7406 = vadd.f32 0.0, %v7405
  %v7407 = vpop.f32.mrb[0].mxu0
  %v7408 = vpop.f32.mrb[0].mxu0
  %v7409 = vadd.f32 0.0, %v7408
  %v7410 = vpop.f32.mrb[0].mxu0
  %7411 = vmatprep.mubr.bf16.mxu0 %v7179
  %7412 = vmatmul.mubr.bf16.gmra.mrb[0].mxu0 %v6996
  %v7413 = vpop.f32.mrb[0].mxu0
  %v7414 = vadd.f32 0.0, %v7413
  %v7415 = vpop.f32.mrb[0].mxu0
  %v7416 = vpop.f32.mrb[0].mxu0
  %v7417 = vadd.f32 0.0, %v7416
  %v7418 = vpop.f32.mrb[0].mxu0
  %7419 = vmatprep.mubr.bf16.mxu0 %v7182
  %7420 = vmatmul.mubr.bf16.gmra.mrb[0].mxu0 %v6998
  %v7421 = vpop.f32.mrb[0].mxu0
  %v7422 = vadd.f32 0.0, %v7421
  %v7423 = vpop.f32.mrb[0].mxu0
  %v7424 = vpop.f32.mrb[0].mxu0
  %v7425 = vadd.f32 0.0, %v7424
  %v7426 = vpop.f32.mrb[0].mxu0
  %7427 = vmatprep.mubr.bf16.mxu0 %v7185
  %7428 = vmatmul.mubr.bf16.gmra.mrb[0].mxu0 %v7000
  %v7429 = vpop.f32.mrb[0].mxu0
  %v7430 = vadd.f32 0.0, %v7429
  %v7431 = vpop.f32.mrb[0].mxu0
  %v7432 = vpop.f32.mrb[0].mxu0
  %v7433 = vadd.f32 0.0, %v7432
  %v7434 = vpop.f32.mrb[0].mxu0
  %7435 = vmatprep.mubr.bf16.mxu0 %v7188
  %7436 = vmatmul.mubr.bf16.gmra.mrb[0].mxu0 %v7002
  %v7437 = vpop.f32.mrb[0].mxu0
  %v7438 = vadd.f32 0.0, %v7437
  %v7439 = vpop.f32.mrb[0].mxu0
  %v7440 = vpop.f32.mrb[0].mxu0
  %v7441 = vadd.f32 0.0, %v7440
  %v7442 = vpop.f32.mrb[0].mxu0
  %7443 = vmatprep.mubr.bf16.mxu0 %v7191
  %7444 = vmatmul.mubr.bf16.gmra.mrb[0].mxu0 %v7004
  %v7445 = vpop.f32.mrb[0].mxu0
  %v7446 = vadd.f32 0.0, %v7445
  %v7447 = vpop.f32.mrb[0].mxu0
  %v7448 = vpop.f32.mrb[0].mxu0
  %v7449 = vadd.f32 0.0, %v7448
  %v7450 = vpop.f32.mrb[0].mxu0
  %7451 = vmatprep.mubr.bf16.mxu0 %v7194
  %7452 = vmatmul.mubr.bf16.gmra.mrb[0].mxu0 %v7006
  %v7453 = vpop.f32.mrb[0].mxu0
  %v7454 = vadd.f32 0.0, %v7453
  %v7455 = vpop.f32.mrb[0].mxu0
  %v7456 = vpop.f32.mrb[0].mxu0
  %v7457 = vadd.f32 0.0, %v7456
  %v7458 = vpop.f32.mrb[0].mxu0
  %7459 = vmatprep.mubr.bf16.mxu0 %v7197
  %7460 = vmatmul.mubr.bf16.gmra.mrb[0].mxu0 %v7008
  %v7461 = vpop.f32.mrb[0].mxu0
  %v7462 = vadd.f32 0.0, %v7461
  %v7463 = vpop.f32.mrb[0].mxu0
  %v7464 = vpop.f32.mrb[0].mxu0
  %v7465 = vadd.f32 0.0, %v7464
  %v7466 = vpop.f32.mrb[0].mxu0
  %7467 = vmatprep.mubr.bf16.mxu0 %v7200
  %7468 = vmatmul.mubr.bf16.gmra.mrb[0].mxu0 %v7010
  %v7469 = vpop.f32.mrb[0].mxu0
  %v7470 = vadd.f32 0.0, %v7469
  %v7471 = vpop.f32.mrb[0].mxu0
  %v7472 = vpop.f32.mrb[0].mxu0
  %v7473 = vadd.f32 0.0, %v7472
  %v7474 = vpop.f32.mrb[0].mxu0
  %7475 = vmatprep.mubr.bf16.mxu0 %v7203
  %7476 = vmatmul.mubr.bf16.gmra.mrb[0].mxu0 %v7012
  %v7477 = vpop.f32.mrb[0].mxu0
  %v7478 = vadd.f32 0.0, %v7477
  %v7479 = vpop.f32.mrb[0].mxu0
  %v7480 = vpop.f32.mrb[0].mxu0
  %v7481 = vadd.f32 0.0, %v7480
  %v7482 = vpop.f32.mrb[0].mxu0
  %7483 = vmatprep.mubr.bf16.mxu0 %v7206
  %7484 = vmatmul.mubr.bf16.gmra.mrb[0].mxu0 %v7014
  %v7485 = vpop.f32.mrb[0].mxu0
  %v7486 = vadd.f32 0.0, %v7485
  %v7487 = vpop.f32.mrb[0].mxu0
  %v7488 = vpop.f32.mrb[0].mxu0
  %v7489 = vadd.f32 0.0, %v7488
  %v7490 = vpop.f32.mrb[0].mxu0
  %7491 = vmatprep.mubr.bf16.mxu0 %v7209
  %7492 = vmatmul.mubr.bf16.gmra.mrb[0].mxu0 %v7016
  %v7493 = vpop.f32.mrb[0].mxu0
  %v7494 = vadd.f32 0.0, %v7493
  %v7495 = vpop.f32.mrb[0].mxu0
  %v7496 = vpop.f32.mrb[0].mxu0
  %v7497 = vadd.f32 0.0, %v7496
  %v7498 = vpop.f32.mrb[0].mxu0
  %7499 = vdwg.mxu0
  %v7500 = vadd.f32 %v6700, %v7246
  %v7501 = vadd.f32 %v6703, %v7249
  %v7502 = vadd.f32 %v6708, %v7254
  %v7503 = vadd.f32 %v6711, %v7257
  %v7504 = vadd.f32 %v6716, %v7262
  %v7505 = vadd.f32 %v6719, %v7265
  %v7506 = vadd.f32 %v6724, %v7270
  %v7507 = vadd.f32 %v6727, %v7273
  %v7508 = vadd.f32 %v6732, %v7278
  %v7509 = vadd.f32 %v6735, %v7281
  %v7510 = vadd.f32 %v6740, %v7286
  %v7511 = vadd.f32 %v6743, %v7289
  %v7512 = vadd.f32 %v6748, %v7294
  %v7513 = vadd.f32 %v6751, %v7297
  %v7514 = vadd.f32 %v6756, %v7302
  %v7515 = vadd.f32 %v6759, %v7305
  %v7516 = vadd.f32 %v6764, %v7310
  %v7517 = vadd.f32 %v6767, %v7313
  %v7518 = vadd.f32 %v6772, %v7318
  %v7519 = vadd.f32 %v6775, %v7321
  %v7520 = vadd.f32 %v6780, %v7326
  %v7521 = vadd.f32 %v6783, %v7329
  %v7522 = vadd.f32 %v6788, %v7334
  %v7523 = vadd.f32 %v6791, %v7337
  %v7524 = vadd.f32 %v6796, %v7342
  %v7525 = vadd.f32 %v6799, %v7345
  %v7526 = vadd.f32 %v6804, %v7350
  %v7527 = vadd.f32 %v6807, %v7353
  %v7528 = vadd.f32 %v6812, %v7358
  %v7529 = vadd.f32 %v6815, %v7361
  %v7530 = vadd.f32 %v6820, %v7366
  %v7531 = vadd.f32 %v6823, %v7369
  %v7532 = vadd.f32 %v6828, %v7374
  %v7533 = vadd.f32 %v6831, %v7377
  %v7534 = vadd.f32 %v6836, %v7382
  %v7535 = vadd.f32 %v6839, %v7385
  %v7536 = vadd.f32 %v6844, %v7390
  %v7537 = vadd.f32 %v6847, %v7393
  %v7538 = vadd.f32 %v6852, %v7398
  %v7539 = vadd.f32 %v6855, %v7401
  %v7540 = vadd.f32 %v6860, %v7406
  %v7541 = vadd.f32 %v6863, %v7409
  %v7542 = vadd.f32 %v6868, %v7414
  %v7543 = vadd.f32 %v6871, %v7417
  %v7544 = vadd.f32 %v6876, %v7422
  %v7545 = vadd.f32 %v6879, %v7425
  %v7546 = vadd.f32 %v6884, %v7430
  %v7547 = vadd.f32 %v6887, %v7433
  %v7548 = vadd.f32 %v6892, %v7438
  %v7549 = vadd.f32 %v6895, %v7441
  %v7550 = vadd.f32 %v6900, %v7446
  %v7551 = vadd.f32 %v6903, %v7449
  %v7552 = vadd.f32 %v6908, %v7454
  %v7553 = vadd.f32 %v6911, %v7457
  %v7554 = vadd.f32 %v6916, %v7462
  %v7555 = vadd.f32 %v6919, %v7465
  %v7556 = vadd.f32 %v6924, %v7470
  %v7557 = vadd.f32 %v6927, %v7473
  %v7558 = vadd.f32 %v6932, %v7478
  %v7559 = vadd.f32 %v6935, %v7481
  %v7560 = vadd.f32 %v6940, %v7486
  %v7561 = vadd.f32 %v6943, %v7489
  %v7562 = vadd.f32 %v6948, %v7494
  %v7563 = vadd.f32 %v6951, %v7497
  %v7564 = vlaneseq
  %v7565 = vshrl.u32 %v7564, 7
  %v7566 = vsub.s32 0, %v7565
  %v7567 = vrot.slane %v330, %v7566
  %v7568 = vadd.f32 %v7500, %v7567
  %v7569 = vadd.f32 %v7501, %v7567
  %v7570 = vadd.f32 %v7502, %v7567
  %v7571 = vadd.f32 %v7503, %v7567
  %v7572 = vadd.f32 %v7504, %v7567
  %v7573 = vadd.f32 %v7505, %v7567
  %v7574 = vadd.f32 %v7506, %v7567
  %v7575 = vadd.f32 %v7507, %v7567
  %v7576 = vadd.f32 %v7508, %v7567
  %v7577 = vadd.f32 %v7509, %v7567
  %v7578 = vadd.f32 %v7510, %v7567
  %v7579 = vadd.f32 %v7511, %v7567
  %v7580 = vadd.f32 %v7512, %v7567
  %v7581 = vadd.f32 %v7513, %v7567
  %v7582 = vadd.f32 %v7514, %v7567
  %v7583 = vadd.f32 %v7515, %v7567
  %v7584 = vadd.f32 %v7516, %v7567
  %v7585 = vadd.f32 %v7517, %v7567
  %v7586 = vadd.f32 %v7518, %v7567
  %v7587 = vadd.f32 %v7519, %v7567
  %v7588 = vadd.f32 %v7520, %v7567
  %v7589 = vadd.f32 %v7521, %v7567
  %v7590 = vadd.f32 %v7522, %v7567
  %v7591 = vadd.f32 %v7523, %v7567
  %v7592 = vadd.f32 %v7524, %v7567
  %v7593 = vadd.f32 %v7525, %v7567
  %v7594 = vadd.f32 %v7526, %v7567
  %v7595 = vadd.f32 %v7527, %v7567
  %v7596 = vadd.f32 %v7528, %v7567
  %v7597 = vadd.f32 %v7529, %v7567
  %v7598 = vadd.f32 %v7530, %v7567
  %v7599 = vadd.f32 %v7531, %v7567
  %v7600 = vadd.f32 %v7532, %v7567
  %v7601 = vadd.f32 %v7533, %v7567
  %v7602 = vadd.f32 %v7534, %v7567
  %v7603 = vadd.f32 %v7535, %v7567
  %v7604 = vadd.f32 %v7536, %v7567
  %v7605 = vadd.f32 %v7537, %v7567
  %v7606 = vadd.f32 %v7538, %v7567
  %v7607 = vadd.f32 %v7539, %v7567
  %v7608 = vadd.f32 %v7540, %v7567
  %v7609 = vadd.f32 %v7541, %v7567
  %v7610 = vadd.f32 %v7542, %v7567
  %v7611 = vadd.f32 %v7543, %v7567
  %v7612 = vadd.f32 %v7544, %v7567
  %v7613 = vadd.f32 %v7545, %v7567
  %v7614 = vadd.f32 %v7546, %v7567
  %v7615 = vadd.f32 %v7547, %v7567
  %v7616 = vadd.f32 %v7548, %v7567
  %v7617 = vadd.f32 %v7549, %v7567
  %v7618 = vadd.f32 %v7550, %v7567
  %v7619 = vadd.f32 %v7551, %v7567
  %v7620 = vadd.f32 %v7552, %v7567
  %v7621 = vadd.f32 %v7553, %v7567
  %v7622 = vadd.f32 %v7554, %v7567
  %v7623 = vadd.f32 %v7555, %v7567
  %v7624 = vadd.f32 %v7556, %v7567
  %v7625 = vadd.f32 %v7557, %v7567
  %v7626 = vadd.f32 %v7558, %v7567
  %v7627 = vadd.f32 %v7559, %v7567
  %v7628 = vadd.f32 %v7560, %v7567
  %v7629 = vadd.f32 %v7561, %v7567
  %v7630 = vadd.f32 %v7562, %v7567
  %v7631 = vadd.f32 %v7563, %v7567
  %v7632 = vadd.f32 %v21, %v7568
  %v7633 = vadd.f32 %v22, %v7569
  %v7634 = vadd.f32 %v23, %v7570
  %v7635 = vadd.f32 %v24, %v7571
  %v7636 = vadd.f32 %v25, %v7572
  %v7637 = vadd.f32 %v26, %v7573
  %v7638 = vadd.f32 %v27, %v7574
  %v7639 = vadd.f32 %v28, %v7575
  %v7640 = vadd.f32 %v29, %v7576
  %v7641 = vadd.f32 %v30, %v7577
  %v7642 = vadd.f32 %v31, %v7578
  %v7643 = vadd.f32 %v32, %v7579
  %v7644 = vadd.f32 %v33, %v7580
  %v7645 = vadd.f32 %v34, %v7581
  %v7646 = vadd.f32 %v35, %v7582
  %v7647 = vadd.f32 %v36, %v7583
  %v7648 = vadd.f32 %v37, %v7584
  %v7649 = vadd.f32 %v38, %v7585
  %v7650 = vadd.f32 %v39, %v7586
  %v7651 = vadd.f32 %v40, %v7587
  %v7652 = vadd.f32 %v41, %v7588
  %v7653 = vadd.f32 %v42, %v7589
  %v7654 = vadd.f32 %v43, %v7590
  %v7655 = vadd.f32 %v44, %v7591
  %v7656 = vadd.f32 %v45, %v7592
  %v7657 = vadd.f32 %v46, %v7593
  %v7658 = vadd.f32 %v47, %v7594
  %v7659 = vadd.f32 %v48, %v7595
  %v7660 = vadd.f32 %v49, %v7596
  %v7661 = vadd.f32 %v50, %v7597
  %v7662 = vadd.f32 %v51, %v7598
  %v7663 = vadd.f32 %v52, %v7599
  %v7664 = vadd.f32 %v53, %v7600
  %v7665 = vadd.f32 %v54, %v7601
  %v7666 = vadd.f32 %v55, %v7602
  %v7667 = vadd.f32 %v56, %v7603
  %v7668 = vadd.f32 %v57, %v7604
  %v7669 = vadd.f32 %v58, %v7605
  %v7670 = vadd.f32 %v59, %v7606
  %v7671 = vadd.f32 %v60, %v7607
  %v7672 = vadd.f32 %v61, %v7608
  %v7673 = vadd.f32 %v62, %v7609
  %v7674 = vadd.f32 %v63, %v7610
  %v7675 = vadd.f32 %v64, %v7611
  %v7676 = vadd.f32 %v65, %v7612
  %v7677 = vadd.f32 %v66, %v7613
  %v7678 = vadd.f32 %v67, %v7614
  %v7679 = vadd.f32 %v68, %v7615
  %v7680 = vadd.f32 %v69, %v7616
  %v7681 = vadd.f32 %v70, %v7617
  %v7682 = vadd.f32 %v71, %v7618
  %v7683 = vadd.f32 %v72, %v7619
  %v7684 = vadd.f32 %v73, %v7620
  %v7685 = vadd.f32 %v74, %v7621
  %v7686 = vadd.f32 %v75, %v7622
  %v7687 = vadd.f32 %v76, %v7623
  %v7688 = vadd.f32 %v77, %v7624
  %v7689 = vadd.f32 %v78, %v7625
  %v7690 = vadd.f32 %v79, %v7626
  %v7691 = vadd.f32 %v80, %v7627
  %v7692 = vadd.f32 %v81, %v7628
  %v7693 = vadd.f32 %v82, %v7629
  %v7694 = vadd.f32 %v83, %v7630
  %v7695 = vadd.f32 %v84, %v7631
  %7696 = vst.msk [vmem:[%s5] sm:$0xff] %vm94, %v7632
  %7697 = vst.msk [vmem:[%s5 + $0x8] sm:$0xff] %vm94, %v7633
  %7698 = vst.msk [vmem:[%s5 + $0x10] sm:$0xff] %vm94, %v7634
  %7699 = vst.msk [vmem:[%s5 + $0x18] sm:$0xff] %vm94, %v7635
  %7700 = vst.msk [vmem:[%s5 + $0x20] sm:$0xff] %vm94, %v7636
  %7701 = vst.msk [vmem:[%s5 + $0x28] sm:$0xff] %vm94, %v7637
  %7702 = vst.msk [vmem:[%s5 + $0x30] sm:$0xff] %vm94, %v7638
  %7703 = vst.msk [vmem:[%s5 + $0x38] sm:$0xff] %vm94, %v7639
  %7704 = vst.msk [vmem:[%s5 + $0x40] sm:$0xff] %vm94, %v7640
  %7705 = vst.msk [vmem:[%s5 + $0x48] sm:$0xff] %vm94, %v7641
  %7706 = vst.msk [vmem:[%s5 + $0x50] sm:$0xff] %vm94, %v7642
  %7707 = vst.msk [vmem:[%s5 + $0x58] sm:$0xff] %vm94, %v7643
  %7708 = vst.msk [vmem:[%s5 + $0x60] sm:$0xff] %vm94, %v7644
  %7709 = vst.msk [vmem:[%s5 + $0x68] sm:$0xff] %vm94, %v7645
  %7710 = vst.msk [vmem:[%s5 + $0x70] sm:$0xff] %vm94, %v7646
  %7711 = vst.msk [vmem:[%s5 + $0x78] sm:$0xff] %vm94, %v7647
  %7712 = vst.msk [vmem:[%s5 + $0x80] sm:$0xff] %vm94, %v7648
  %7713 = vst.msk [vmem:[%s5 + $0x88] sm:$0xff] %vm94, %v7649
  %7714 = vst.msk [vmem:[%s5 + $0x90] sm:$0xff] %vm94, %v7650
  %7715 = vst.msk [vmem:[%s5 + $0x98] sm:$0xff] %vm94, %v7651
  %7716 = vst.msk [vmem:[%s5 + $0xa0] sm:$0xff] %vm94, %v7652
  %7717 = vst.msk [vmem:[%s5 + $0xa8] sm:$0xff] %vm94, %v7653
  %7718 = vst.msk [vmem:[%s5 + $0xb0] sm:$0xff] %vm94, %v7654
  %7719 = vst.msk [vmem:[%s5 + $0xb8] sm:$0xff] %vm94, %v7655
  %7720 = vst.msk [vmem:[%s5 + $0xc0] sm:$0xff] %vm94, %v7656
  %7721 = vst.msk [vmem:[%s5 + $0xc8] sm:$0xff] %vm94, %v7657
  %7722 = vst.msk [vmem:[%s5 + $0xd0] sm:$0xff] %vm94, %v7658
  %7723 = vst.msk [vmem:[%s5 + $0xd8] sm:$0xff] %vm94, %v7659
  %7724 = vst.msk [vmem:[%s5 + $0xe0] sm:$0xff] %vm94, %v7660
  %7725 = vst.msk [vmem:[%s5 + $0xe8] sm:$0xff] %vm94, %v7661
  %7726 = vst.msk [vmem:[%s5 + $0xf0] sm:$0xff] %vm94, %v7662
  %7727 = vst.msk [vmem:[%s5 + $0xf8] sm:$0xff] %vm94, %v7663
  %7728 = vst.msk [vmem:[%s5 + $0x100] sm:$0xff] %vm94, %v7664
  %7729 = vst.msk [vmem:[%s5 + $0x108] sm:$0xff] %vm94, %v7665
  %7730 = vst.msk [vmem:[%s5 + $0x110] sm:$0xff] %vm94, %v7666
  %7731 = vst.msk [vmem:[%s5 + $0x118] sm:$0xff] %vm94, %v7667
  %7732 = vst.msk [vmem:[%s5 + $0x120] sm:$0xff] %vm94, %v7668
  %7733 = vst.msk [vmem:[%s5 + $0x128] sm:$0xff] %vm94, %v7669
  %7734 = vst.msk [vmem:[%s5 + $0x130] sm:$0xff] %vm94, %v7670
  %7735 = vst.msk [vmem:[%s5 + $0x138] sm:$0xff] %vm94, %v7671
  %7736 = vst.msk [vmem:[%s5 + $0x140] sm:$0xff] %vm94, %v7672
  %7737 = vst.msk [vmem:[%s5 + $0x148] sm:$0xff] %vm94, %v7673
  %7738 = vst.msk [vmem:[%s5 + $0x150] sm:$0xff] %vm94, %v7674
  %7739 = vst.msk [vmem:[%s5 + $0x158] sm:$0xff] %vm94, %v7675
  %7740 = vst.msk [vmem:[%s5 + $0x160] sm:$0xff] %vm94, %v7676
  %7741 = vst.msk [vmem:[%s5 + $0x168] sm:$0xff] %vm94, %v7677
  %7742 = vst.msk [vmem:[%s5 + $0x170] sm:$0xff] %vm94, %v7678
  %7743 = vst.msk [vmem:[%s5 + $0x178] sm:$0xff] %vm94, %v7679
  %7744 = vst.msk [vmem:[%s5 + $0x180] sm:$0xff] %vm94, %v7680
  %7745 = vst.msk [vmem:[%s5 + $0x188] sm:$0xff] %vm94, %v7681
  %7746 = vst.msk [vmem:[%s5 + $0x190] sm:$0xff] %vm94, %v7682
  %7747 = vst.msk [vmem:[%s5 + $0x198] sm:$0xff] %vm94, %v7683
  %7748 = vst.msk [vmem:[%s5 + $0x1a0] sm:$0xff] %vm94, %v7684
  %7749 = vst.msk [vmem:[%s5 + $0x1a8] sm:$0xff] %vm94, %v7685
  %7750 = vst.msk [vmem:[%s5 + $0x1b0] sm:$0xff] %vm94, %v7686
  %7751 = vst.msk [vmem:[%s5 + $0x1b8] sm:$0xff] %vm94, %v7687
  %7752 = vst.msk [vmem:[%s5 + $0x1c0] sm:$0xff] %vm94, %v7688
  %7753 = vst.msk [vmem:[%s5 + $0x1c8] sm:$0xff] %vm94, %v7689
  %7754 = vst.msk [vmem:[%s5 + $0x1d0] sm:$0xff] %vm94, %v7690
  %7755 = vst.msk [vmem:[%s5 + $0x1d8] sm:$0xff] %vm94, %v7691
  %7756 = vst.msk [vmem:[%s5 + $0x1e0] sm:$0xff] %vm94, %v7692
  %7757 = vst.msk [vmem:[%s5 + $0x1e8] sm:$0xff] %vm94, %v7693
  %7758 = vst.msk [vmem:[%s5 + $0x1f0] sm:$0xff] %vm94, %v7694
  %7759 = vst.msk [vmem:[%s5 + $0x1f8] sm:$0xff] %vm94, %v7695
  // Predicated region
  $region22: #{tpu_custom_call.1} parent=0 // pred_check
    _
  $region23: #{tpu_custom_call.1} parent=0 // pred_check_branch
    %7761 = sbr.rel (0) target = $region25
  $region24: #{tpu_custom_call.1} parent=0 // pred_region
    _
  $region25: #{tpu_custom_call.1} parent=0 // pred_fallthru
    _
  // Predicated region
  $region26: #{tpu_custom_call.1} parent=0 // pred_check
    _
  $region27: #{tpu_custom_call.1} parent=0 // pred_check_branch
    %7763 = sbr.rel (0) target = $region29
  $region28: #{tpu_custom_call.1} parent=0 // pred_region
    _
  $region29: #{tpu_custom_call.1} parent=0 // pred_fallthru
    _

</llo_original>
